<compile_context>
chip_gen: v6e
topology: v6e:2x2x1
jax: 0.10.0
libtpu: 0.0.40
codegen_flags: <defaults>
</compile_context>

<pallas_src>
import functools

import jax
import jax.numpy as jnp
import numpy as np
from jax.experimental import pallas as pl
from jax.experimental.pallas import tpu as pltpu

NGF = 64                      # hidden width
N_BLOCKS = 4                  # resnet blocks
INPUT_NC = 128                # input channel count (fixed by the model)
OUTPUT_NC = 1
KPAD = 128                    # every tap's channel slab is zero-padded to 128 lanes
N_STACK = 2 * N_BLOCKS + 2    # layer0 + 8 resblock convs + conv(64->16) = 10


# -----------------------------------------------------------------------------
# Fused kernel: whole network for one batch element, VMEM resident.
# -----------------------------------------------------------------------------
def _fused_kernel(xg_ref, w_ref, b_ref, wl_ref, bl_ref, o_ref, pad_ref, *,
                  H, W, n_blocks, ngf):
    M = H * W
    state = {"cin": None}          # trace-time bookkeeping only

    def patches(a, cin):
        # Build the (M, 9*128) im2col matrix for a 3x3 "same" conv.
        # The scratch's zero border supplies the spatial zero-padding; channels
        # [cin:128] are kept at zero so every tap is a full, lane-aligned
        # 128-wide slab (aligned loads + aligned lane concat).
        if state["cin"] != cin:                       # decided at trace time
            pad_ref[...] = jnp.zeros_like(pad_ref)    # border + channel pad = 0
            state["cin"] = cin
        pad_ref[1:1 + H, 1:1 + W, :cin] = a           # write interior only
        xt = pad_ref[...]                             # (H+2, W+2, 128)
        cols = [xt[dy:dy + H, dx:dx + W, :].reshape(M, KPAD)
                for dy in range(3) for dx in range(3)]
        return jnp.concatenate(cols, axis=-1)         # (M, 9*128)

    def conv(a, cin, li):
        p = patches(a, cin)
        return (jnp.dot(p, w_ref[li], preferred_element_type=jnp.float32)
                + b_ref[li])

    # --- Conv(128 -> 64) + ReLU ------------------------------------------------
    h = jnp.maximum(conv(xg_ref[0], INPUT_NC, 0), 0.0)            # (M, 64)

    # --- 4 x ResnetBlock(64): x + conv2(relu(conv1(x))) -------------------------
    for i in range(n_blocks):
        t = jnp.maximum(conv(h.reshape(H, W, ngf), ngf, 2 * i + 1), 0.0)
        h = h + conv(t.reshape(H, W, ngf), ngf, 2 * i + 2)

    # --- Conv(64 -> 16) + Tanh (cout zero-padded to 64; padded cols = tanh(0)=0)
    h = jnp.tanh(conv(h.reshape(H, W, ngf), ngf, 2 * n_blocks + 1))  # (M, 64)

    # --- Conv(16 -> 1) + Tanh: N=1 matvec kept on the VPU/XLU, not the MXU ------
    p = patches(h.reshape(H, W, ngf), ngf)                           # (M, 9*128)
    y = jnp.sum(p * wl_ref[...], axis=-1, keepdims=True) + bl_ref[...]
    o_ref[0] = jnp.tanh(y)                                           # (M, 1)


# -----------------------------------------------------------------------------
# Host-side weight packing: (3,3,cin,cout) -> lane-aligned (9*128, cout_pad)
# -----------------------------------------------------------------------------
def _pack_conv_w(w, cout_pad=None):
    kh, kw, cin, cout = w.shape
    if cout_pad is None:
        cout_pad = cout
    wp = jnp.zeros((kh, kw, KPAD, cout_pad), w.dtype)
    wp = wp.at[:, :, :cin, :cout].set(w)
    return wp.reshape(kh * kw * KPAD, cout_pad)


def _pack_bias(b, cout_pad):
    return jnp.zeros((1, cout_pad), b.dtype).at[0, :b.shape[0]].set(b)


# -----------------------------------------------------------------------------
# Parameters (deterministic synthetic init, same layer list as the nn.Module)
# -----------------------------------------------------------------------------
def init_params(key):
    def conv_p(k, cin, cout):
        k1, k2 = jax.random.split(k)
        w = jax.random.normal(k1, (3, 3, cin, cout), jnp.float32) * 0.05
        b = jax.random.normal(k2, (cout,), jnp.float32) * 0.05
        return (w, b)

    shapes = [(INPUT_NC, NGF)]
    for _ in range(N_BLOCKS):
        shapes += [(NGF, NGF), (NGF, NGF)]
    shapes += [(NGF, 16), (16, OUTPUT_NC)]

    keys = jax.random.split(key, len(shapes))
    return [conv_p(k, ci, co) for k, (ci, co) in zip(keys, shapes)]


# -----------------------------------------------------------------------------
# Forward pass (mirrors recon_resnet.forward)
# -----------------------------------------------------------------------------
def recon_resnet_forward(x, ttds_x, ttds_y, params):
    # TODO(synk): the index gather could also be pulled into the kernel via
    # PrefetchScalarGridSpec + per-row DMA; here it is a one-off ~64 KB XLA
    # gather feeding the fused kernel directly.
    xg = x[:, ttds_x, ttds_y, :].astype(jnp.float32)          # (B, H, W, 128)
    B, H, W, _ = xg.shape
    M = H * W

    # Pack all 3x3 weights into one lane-aligned stack (DMA'd once).
    ws = [_pack_conv_w(params[0][0])]
    bs = [_pack_bias(params[0][1], NGF)]
    for i in range(1, 2 * N_BLOCKS + 1):                      # 8 resblock convs
        ws.append(_pack_conv_w(params[i][0]))
        bs.append(_pack_bias(params[i][1], NGF))
    ws.append(_pack_conv_w(params[2 * N_BLOCKS + 1][0], cout_pad=NGF))  # 64->16
    bs.append(_pack_bias(params[2 * N_BLOCKS + 1][1], NGF))
    w_stack = jnp.stack(ws)                                   # (10, 1152, 64)
    b_stack = jnp.stack(bs)                                   # (10, 1, 64)
    w_last = _pack_conv_w(params[-1][0]).reshape(1, 9 * KPAD)  # (1, 1152)
    b_last = params[-1][1].reshape(1, 1)                       # (1, 1)

    kernel = functools.partial(_fused_kernel, H=H, W=W,
                               n_blocks=N_BLOCKS, ngf=NGF)

    flops = 2 * B * M * (9 * KPAD) * NGF * N_STACK + 2 * B * M * (9 * KPAD)
    transcendentals = B * M * (NGF + 1)
    bytes_accessed = 4 * (xg.size + w_stack.size + b_stack.size
                          + w_last.size + b_last.size + B * M)

    out = pl.pallas_call(
        kernel,
        out_shape=jax.ShapeDtypeStruct((B, M, 1), jnp.float32),
        grid=(B,),
        in_specs=[
            pl.BlockSpec((1, H, W, INPUT_NC), lambda b: (b, 0, 0, 0)),      # xg
            pl.BlockSpec((N_STACK, 9 * KPAD, NGF), lambda b: (0, 0, 0)),    # weights
            pl.BlockSpec((N_STACK, 1, NGF), lambda b: (0, 0, 0)),           # biases
            pl.BlockSpec((1, 9 * KPAD), lambda b: (0, 0)),                  # last w
            pl.BlockSpec((1, 1), lambda b: (0, 0)),                         # last b
        ],
        out_specs=pl.BlockSpec((1, M, 1), lambda b: (b, 0, 0)),
        scratch_shapes=[pltpu.VMEM((H + 2, W + 2, KPAD), jnp.float32)],
        compiler_params=pltpu.CompilerParams(
            dimension_semantics=("parallel",),
            vmem_limit_bytes=32 * 1024 * 1024),
        cost_estimate=pl.CostEstimate(
            flops=flops, transcendentals=transcendentals,
            bytes_accessed=bytes_accessed),
    )(xg, w_stack, b_stack, w_last, b_last)

    return out.reshape(B, 1, H, W)                            # NCHW (B,1,H,W)


# -----------------------------------------------------------------------------
# Pure-JAX reference (sanity check against the fused Pallas kernel)
# -----------------------------------------------------------------------------
def _conv3x3_ref(x, w, b, act="none", residual=None):
    y = jax.lax.conv_general_dilated(
        x, w, window_strides=(1, 1), padding="SAME",
        dimension_numbers=("NHWC", "HWIO", "NHWC"))
    y = y + b[None, None, None, :]
    if act == "relu":
        y = jnp.maximum(y, 0.0)
    elif act == "tanh":
        y = jnp.tanh(y)
    if residual is not None:
        y = y + residual
    return y


def recon_resnet_ref(x, ttds_x, ttds_y, params):
    xg = x[:, ttds_x, ttds_y, :]
    h = _conv3x3_ref(xg, *params[0], act="relu")
    idx = 1
    for _ in range(N_BLOCKS):
        t = _conv3x3_ref(h, *params[idx], act="relu"); idx += 1
        h = _conv3x3_ref(t, *params[idx], act="none", residual=h); idx += 1
    h = _conv3x3_ref(h, *params[idx], act="tanh"); idx += 1
    h = _conv3x3_ref(h, *params[idx], act="tanh"); idx += 1
    return jnp.transpose(h, (0, 3, 1, 2))


# -----------------------------------------------------------------------------
if __name__ == "__main__":
    key = jax.random.PRNGKey(0)
    k_x, k_ix, k_iy, k_p = jax.random.split(key, 4)

    B, N1, N2, C = 2, 10, 10, INPUT_NC      # model fixes input channels at 128
    H, W = 8, 8                             # spatial size selected by ttds_x/y

    x = jax.random.normal(k_x, (B, N1, N2, C), jnp.float32)
    ttds_x = jax.random.randint(k_ix, (H, W), 0, N1, jnp.int32)
    ttds_y = jax.random.randint(k_iy, (H, W), 0, N2, jnp.int32)

    params = init_params(k_p)

    out = recon_resnet_forward(x, ttds_x, ttds_y, params)
    out = jax.block_until_ready(out)

    ref = jax.block_until_ready(recon_resnet_ref(x, ttds_x, ttds_y, params))
    np.testing.assert_allclose(np.asarray(out), np.asarray(ref),
                               atol=1e-3, rtol=1e-3)
    assert out.shape == (B, OUTPUT_NC, H, W)

    print("KERNEL_OK")
</pallas_src>

<mosaic_0001>
module attributes {stable_mosaic.version = 11 : i64} {
  func.func @_fused_kernel(%arg0: i32, %arg1: memref<1x8x8x128xf32, #tpu.memory_space<vmem>>, %arg2: memref<10x1152x64xf32, #tpu.memory_space<vmem>>, %arg3: memref<10x1x64xf32, #tpu.memory_space<vmem>>, %arg4: memref<1x1152xf32, #tpu.memory_space<vmem>>, %arg5: memref<1x1xf32, #tpu.memory_space<vmem>>, %arg6: memref<1x64x1xf32, #tpu.memory_space<vmem>>, %arg7: memref<10x10x128xf32, #tpu.memory_space<vmem>>) attributes {dimension_semantics = [#tpu.dimension_semantics<parallel>], iteration_bounds = array<i64: 2>, scalar_prefetch = 0 : i64, scratch_operands = 1 : i64, tpu.core_type = #tpu.core_type<tc>, window_params = [{transform_indices = @transform_0, window_bounds = array<i64: 1, 8, 8, 128>}, {pipeline_mode = #tpu.pipeline_mode<synchronous>, transform_indices = @transform_1, window_bounds = array<i64: 10, 1152, 64>}, {pipeline_mode = #tpu.pipeline_mode<synchronous>, transform_indices = @transform_2, window_bounds = array<i64: 10, 1, 64>}, {pipeline_mode = #tpu.pipeline_mode<synchronous>, transform_indices = @transform_3, window_bounds = array<i64: 1, 1152>}, {pipeline_mode = #tpu.pipeline_mode<synchronous>, transform_indices = @transform_4, window_bounds = array<i64: 1, 1>}, {transform_indices = @transform_5, window_bounds = array<i64: 1, 64, 1>}]} {
    %c0 = arith.constant 0 : index
    %c0_0 = arith.constant 0 : index
    %c0_1 = arith.constant 0 : index
    %c0_2 = arith.constant 0 : index
    %0 = vector.load %arg1[%c0, %c0_0, %c0_1, %c0_2] : memref<1x8x8x128xf32, #tpu.memory_space<vmem>>, vector<1x8x8x128xf32>
    %1 = vector.shape_cast %0 : vector<1x8x8x128xf32> to vector<8x8x128xf32>
    %cst = arith.constant 0.000000e+00 : f32
    %2 = vector.broadcast %cst : f32 to vector<10x10x128xf32>
    %c0_3 = arith.constant 0 : index
    %c0_4 = arith.constant 0 : index
    %c0_5 = arith.constant 0 : index
    %3 = vector.load %arg7[%c0_3, %c0_4, %c0_5] : memref<10x10x128xf32, #tpu.memory_space<vmem>>, vector<10x10x128xf32>
    tpu.vector_store %arg7[%c0_3, %c0_4, %c0_5], %2 {strides = array<i32>} : memref<10x10x128xf32, #tpu.memory_space<vmem>>, vector<10x10x128xf32>,
    %c1 = arith.constant 1 : index
    %c1_6 = arith.constant 1 : index
    %c0_7 = arith.constant 0 : index
    %4 = vector.load %arg7[%c1, %c1_6, %c0_7] : memref<10x10x128xf32, #tpu.memory_space<vmem>>, vector<8x8x128xf32>
    tpu.vector_store %arg7[%c1, %c1_6, %c0_7], %1 {strides = array<i32>} : memref<10x10x128xf32, #tpu.memory_space<vmem>>, vector<8x8x128xf32>,
    %c0_8 = arith.constant 0 : index
    %c0_9 = arith.constant 0 : index
    %c0_10 = arith.constant 0 : index
    %5 = vector.load %arg7[%c0_8, %c0_9, %c0_10] : memref<10x10x128xf32, #tpu.memory_space<vmem>>, vector<10x10x128xf32>
    %6 = vector.extract_strided_slice %5 {offsets = [0, 0, 0], sizes = [8, 8, 128], strides = [1, 1, 1]} : vector<10x10x128xf32> to vector<8x8x128xf32>
    %7 = vector.shape_cast %6 : vector<8x8x128xf32> to vector<64x128xf32>
    %8 = vector.extract_strided_slice %5 {offsets = [0, 1, 0], sizes = [8, 8, 128], strides = [1, 1, 1]} : vector<10x10x128xf32> to vector<8x8x128xf32>
    %9 = vector.shape_cast %8 : vector<8x8x128xf32> to vector<64x128xf32>
    %10 = vector.extract_strided_slice %5 {offsets = [0, 2, 0], sizes = [8, 8, 128], strides = [1, 1, 1]} : vector<10x10x128xf32> to vector<8x8x128xf32>
    %11 = vector.shape_cast %10 : vector<8x8x128xf32> to vector<64x128xf32>
    %12 = vector.extract_strided_slice %5 {offsets = [1, 0, 0], sizes = [8, 8, 128], strides = [1, 1, 1]} : vector<10x10x128xf32> to vector<8x8x128xf32>
    %13 = vector.shape_cast %12 : vector<8x8x128xf32> to vector<64x128xf32>
    %14 = vector.extract_strided_slice %5 {offsets = [1, 1, 0], sizes = [8, 8, 128], strides = [1, 1, 1]} : vector<10x10x128xf32> to vector<8x8x128xf32>
    %15 = vector.shape_cast %14 : vector<8x8x128xf32> to vector<64x128xf32>
    %16 = vector.extract_strided_slice %5 {offsets = [1, 2, 0], sizes = [8, 8, 128], strides = [1, 1, 1]} : vector<10x10x128xf32> to vector<8x8x128xf32>
    %17 = vector.shape_cast %16 : vector<8x8x128xf32> to vector<64x128xf32>
    %18 = vector.extract_strided_slice %5 {offsets = [2, 0, 0], sizes = [8, 8, 128], strides = [1, 1, 1]} : vector<10x10x128xf32> to vector<8x8x128xf32>
    %19 = vector.shape_cast %18 : vector<8x8x128xf32> to vector<64x128xf32>
    %20 = vector.extract_strided_slice %5 {offsets = [2, 1, 0], sizes = [8, 8, 128], strides = [1, 1, 1]} : vector<10x10x128xf32> to vector<8x8x128xf32>
    %21 = vector.shape_cast %20 : vector<8x8x128xf32> to vector<64x128xf32>
    %22 = vector.extract_strided_slice %5 {offsets = [2, 2, 0], sizes = [8, 8, 128], strides = [1, 1, 1]} : vector<10x10x128xf32> to vector<8x8x128xf32>
    %23 = vector.shape_cast %22 : vector<8x8x128xf32> to vector<64x128xf32>
    %24 = tpu.concatenate %7, %9, %11, %13, %15, %17, %19, %21, %23 in 1 : vector<64x128xf32>, vector<64x128xf32>, vector<64x128xf32>, vector<64x128xf32>, vector<64x128xf32>, vector<64x128xf32>, vector<64x128xf32>, vector<64x128xf32>, vector<64x128xf32> -> vector<64x1152xf32>
    %c0_11 = arith.constant 0 : index
    %c0_12 = arith.constant 0 : index
    %c0_13 = arith.constant 0 : index
    %25 = vector.load %arg2[%c0_11, %c0_12, %c0_13] : memref<10x1152x64xf32, #tpu.memory_space<vmem>>, vector<1x1152x64xf32>
    %26 = vector.shape_cast %25 : vector<1x1152x64xf32> to vector<1152x64xf32>
    %cst_14 = arith.constant dense<0.000000e+00> : vector<64x64xf32>
    %27 = tpu.matmul %24, %26, %cst_14 {dimension_numbers = #tpu.dot_dimension_numbers<[1], [0], [0], [1], [0, 0, 1, 1], [], []>} : vector<64x1152xf32>, vector<1152x64xf32>, vector<64x64xf32> -> vector<64x64xf32>
    %c0_15 = arith.constant 0 : index
    %c0_16 = arith.constant 0 : index
    %c0_17 = arith.constant 0 : index
    %28 = vector.load %arg3[%c0_15, %c0_16, %c0_17] : memref<10x1x64xf32, #tpu.memory_space<vmem>>, vector<1x1x64xf32>
    %29 = vector.shape_cast %28 : vector<1x1x64xf32> to vector<1x64xf32>
    %30 = vector.broadcast %29 : vector<1x64xf32> to vector<64x64xf32>
    %31 = arith.addf %27, %30 : vector<64x64xf32>
    %cst_18 = arith.constant 0.000000e+00 : f32
    %32 = vector.broadcast %cst_18 : f32 to vector<64x64xf32>
    %33 = arith.maximumf %31, %32 : vector<64x64xf32>
    %34 = vector.shape_cast %33 : vector<64x64xf32> to vector<8x8x64xf32>
    %cst_19 = arith.constant 0.000000e+00 : f32
    %35 = vector.broadcast %cst_19 : f32 to vector<10x10x128xf32>
    %c0_20 = arith.constant 0 : index
    %c0_21 = arith.constant 0 : index
    %c0_22 = arith.constant 0 : index
    %36 = vector.load %arg7[%c0_20, %c0_21, %c0_22] : memref<10x10x128xf32, #tpu.memory_space<vmem>>, vector<10x10x128xf32>
    tpu.vector_store %arg7[%c0_20, %c0_21, %c0_22], %35 {strides = array<i32>} : memref<10x10x128xf32, #tpu.memory_space<vmem>>, vector<10x10x128xf32>,
    %c1_23 = arith.constant 1 : index
    %c1_24 = arith.constant 1 : index
    %c0_25 = arith.constant 0 : index
    %37 = vector.load %arg7[%c1_23, %c1_24, %c0_25] : memref<10x10x128xf32, #tpu.memory_space<vmem>>, vector<8x8x64xf32>
    tpu.vector_store %arg7[%c1_23, %c1_24, %c0_25], %34 {strides = array<i32>} : memref<10x10x128xf32, #tpu.memory_space<vmem>>, vector<8x8x64xf32>,
    %c0_26 = arith.constant 0 : index
    %c0_27 = arith.constant 0 : index
    %c0_28 = arith.constant 0 : index
    %38 = vector.load %arg7[%c0_26, %c0_27, %c0_28] : memref<10x10x128xf32, #tpu.memory_space<vmem>>, vector<10x10x128xf32>
    %39 = vector.extract_strided_slice %38 {offsets = [0, 0, 0], sizes = [8, 8, 128], strides = [1, 1, 1]} : vector<10x10x128xf32> to vector<8x8x128xf32>
    %40 = vector.shape_cast %39 : vector<8x8x128xf32> to vector<64x128xf32>
    %41 = vector.extract_strided_slice %38 {offsets = [0, 1, 0], sizes = [8, 8, 128], strides = [1, 1, 1]} : vector<10x10x128xf32> to vector<8x8x128xf32>
    %42 = vector.shape_cast %41 : vector<8x8x128xf32> to vector<64x128xf32>
    %43 = vector.extract_strided_slice %38 {offsets = [0, 2, 0], sizes = [8, 8, 128], strides = [1, 1, 1]} : vector<10x10x128xf32> to vector<8x8x128xf32>
    %44 = vector.shape_cast %43 : vector<8x8x128xf32> to vector<64x128xf32>
    %45 = vector.extract_strided_slice %38 {offsets = [1, 0, 0], sizes = [8, 8, 128], strides = [1, 1, 1]} : vector<10x10x128xf32> to vector<8x8x128xf32>
    %46 = vector.shape_cast %45 : vector<8x8x128xf32> to vector<64x128xf32>
    %47 = vector.extract_strided_slice %38 {offsets = [1, 1, 0], sizes = [8, 8, 128], strides = [1, 1, 1]} : vector<10x10x128xf32> to vector<8x8x128xf32>
    %48 = vector.shape_cast %47 : vector<8x8x128xf32> to vector<64x128xf32>
    %49 = vector.extract_strided_slice %38 {offsets = [1, 2, 0], sizes = [8, 8, 128], strides = [1, 1, 1]} : vector<10x10x128xf32> to vector<8x8x128xf32>
    %50 = vector.shape_cast %49 : vector<8x8x128xf32> to vector<64x128xf32>
    %51 = vector.extract_strided_slice %38 {offsets = [2, 0, 0], sizes = [8, 8, 128], strides = [1, 1, 1]} : vector<10x10x128xf32> to vector<8x8x128xf32>
    %52 = vector.shape_cast %51 : vector<8x8x128xf32> to vector<64x128xf32>
    %53 = vector.extract_strided_slice %38 {offsets = [2, 1, 0], sizes = [8, 8, 128], strides = [1, 1, 1]} : vector<10x10x128xf32> to vector<8x8x128xf32>
    %54 = vector.shape_cast %53 : vector<8x8x128xf32> to vector<64x128xf32>
    %55 = vector.extract_strided_slice %38 {offsets = [2, 2, 0], sizes = [8, 8, 128], strides = [1, 1, 1]} : vector<10x10x128xf32> to vector<8x8x128xf32>
    %56 = vector.shape_cast %55 : vector<8x8x128xf32> to vector<64x128xf32>
    %57 = tpu.concatenate %40, %42, %44, %46, %48, %50, %52, %54, %56 in 1 : vector<64x128xf32>, vector<64x128xf32>, vector<64x128xf32>, vector<64x128xf32>, vector<64x128xf32>, vector<64x128xf32>, vector<64x128xf32>, vector<64x128xf32>, vector<64x128xf32> -> vector<64x1152xf32>
    %c1_29 = arith.constant 1 : index
    %c0_30 = arith.constant 0 : index
    %c0_31 = arith.constant 0 : index
    %58 = vector.load %arg2[%c1_29, %c0_30, %c0_31] : memref<10x1152x64xf32, #tpu.memory_space<vmem>>, vector<1x1152x64xf32>
    %59 = vector.shape_cast %58 : vector<1x1152x64xf32> to vector<1152x64xf32>
    %cst_32 = arith.constant dense<0.000000e+00> : vector<64x64xf32>
    %60 = tpu.matmul %57, %59, %cst_32 {dimension_numbers = #tpu.dot_dimension_numbers<[1], [0], [0], [1], [0, 0, 1, 1], [], []>} : vector<64x1152xf32>, vector<1152x64xf32>, vector<64x64xf32> -> vector<64x64xf32>
    %c1_33 = arith.constant 1 : index
    %c0_34 = arith.constant 0 : index
    %c0_35 = arith.constant 0 : index
    %61 = vector.load %arg3[%c1_33, %c0_34, %c0_35] : memref<10x1x64xf32, #tpu.memory_space<vmem>>, vector<1x1x64xf32>
    %62 = vector.shape_cast %61 : vector<1x1x64xf32> to vector<1x64xf32>
    %63 = vector.broadcast %62 : vector<1x64xf32> to vector<64x64xf32>
    %64 = arith.addf %60, %63 : vector<64x64xf32>
    %cst_36 = arith.constant 0.000000e+00 : f32
    %65 = vector.broadcast %cst_36 : f32 to vector<64x64xf32>
    %66 = arith.maximumf %64, %65 : vector<64x64xf32>
    %67 = vector.shape_cast %66 : vector<64x64xf32> to vector<8x8x64xf32>
    %c1_37 = arith.constant 1 : index
    %c1_38 = arith.constant 1 : index
    %c0_39 = arith.constant 0 : index
    %68 = vector.load %arg7[%c1_37, %c1_38, %c0_39] : memref<10x10x128xf32, #tpu.memory_space<vmem>>, vector<8x8x64xf32>
    tpu.vector_store %arg7[%c1_37, %c1_38, %c0_39], %67 {strides = array<i32>} : memref<10x10x128xf32, #tpu.memory_space<vmem>>, vector<8x8x64xf32>,
    %c0_40 = arith.constant 0 : index
    %c0_41 = arith.constant 0 : index
    %c0_42 = arith.constant 0 : index
    %69 = vector.load %arg7[%c0_40, %c0_41, %c0_42] : memref<10x10x128xf32, #tpu.memory_space<vmem>>, vector<10x10x128xf32>
    %70 = vector.extract_strided_slice %69 {offsets = [0, 0, 0], sizes = [8, 8, 128], strides = [1, 1, 1]} : vector<10x10x128xf32> to vector<8x8x128xf32>
    %71 = vector.shape_cast %70 : vector<8x8x128xf32> to vector<64x128xf32>
    %72 = vector.extract_strided_slice %69 {offsets = [0, 1, 0], sizes = [8, 8, 128], strides = [1, 1, 1]} : vector<10x10x128xf32> to vector<8x8x128xf32>
    %73 = vector.shape_cast %72 : vector<8x8x128xf32> to vector<64x128xf32>
    %74 = vector.extract_strided_slice %69 {offsets = [0, 2, 0], sizes = [8, 8, 128], strides = [1, 1, 1]} : vector<10x10x128xf32> to vector<8x8x128xf32>
    %75 = vector.shape_cast %74 : vector<8x8x128xf32> to vector<64x128xf32>
    %76 = vector.extract_strided_slice %69 {offsets = [1, 0, 0], sizes = [8, 8, 128], strides = [1, 1, 1]} : vector<10x10x128xf32> to vector<8x8x128xf32>
    %77 = vector.shape_cast %76 : vector<8x8x128xf32> to vector<64x128xf32>
    %78 = vector.extract_strided_slice %69 {offsets = [1, 1, 0], sizes = [8, 8, 128], strides = [1, 1, 1]} : vector<10x10x128xf32> to vector<8x8x128xf32>
    %79 = vector.shape_cast %78 : vector<8x8x128xf32> to vector<64x128xf32>
    %80 = vector.extract_strided_slice %69 {offsets = [1, 2, 0], sizes = [8, 8, 128], strides = [1, 1, 1]} : vector<10x10x128xf32> to vector<8x8x128xf32>
    %81 = vector.shape_cast %80 : vector<8x8x128xf32> to vector<64x128xf32>
    %82 = vector.extract_strided_slice %69 {offsets = [2, 0, 0], sizes = [8, 8, 128], strides = [1, 1, 1]} : vector<10x10x128xf32> to vector<8x8x128xf32>
    %83 = vector.shape_cast %82 : vector<8x8x128xf32> to vector<64x128xf32>
    %84 = vector.extract_strided_slice %69 {offsets = [2, 1, 0], sizes = [8, 8, 128], strides = [1, 1, 1]} : vector<10x10x128xf32> to vector<8x8x128xf32>
    %85 = vector.shape_cast %84 : vector<8x8x128xf32> to vector<64x128xf32>
    %86 = vector.extract_strided_slice %69 {offsets = [2, 2, 0], sizes = [8, 8, 128], strides = [1, 1, 1]} : vector<10x10x128xf32> to vector<8x8x128xf32>
    %87 = vector.shape_cast %86 : vector<8x8x128xf32> to vector<64x128xf32>
    %88 = tpu.concatenate %71, %73, %75, %77, %79, %81, %83, %85, %87 in 1 : vector<64x128xf32>, vector<64x128xf32>, vector<64x128xf32>, vector<64x128xf32>, vector<64x128xf32>, vector<64x128xf32>, vector<64x128xf32>, vector<64x128xf32>, vector<64x128xf32> -> vector<64x1152xf32>
    %c2 = arith.constant 2 : index
    %c0_43 = arith.constant 0 : index
    %c0_44 = arith.constant 0 : index
    %89 = vector.load %arg2[%c2, %c0_43, %c0_44] : memref<10x1152x64xf32, #tpu.memory_space<vmem>>, vector<1x1152x64xf32>
    %90 = vector.shape_cast %89 : vector<1x1152x64xf32> to vector<1152x64xf32>
    %cst_45 = arith.constant dense<0.000000e+00> : vector<64x64xf32>
    %91 = tpu.matmul %88, %90, %cst_45 {dimension_numbers = #tpu.dot_dimension_numbers<[1], [0], [0], [1], [0, 0, 1, 1], [], []>} : vector<64x1152xf32>, vector<1152x64xf32>, vector<64x64xf32> -> vector<64x64xf32>
    %c2_46 = arith.constant 2 : index
    %c0_47 = arith.constant 0 : index
    %c0_48 = arith.constant 0 : index
    %92 = vector.load %arg3[%c2_46, %c0_47, %c0_48] : memref<10x1x64xf32, #tpu.memory_space<vmem>>, vector<1x1x64xf32>
    %93 = vector.shape_cast %92 : vector<1x1x64xf32> to vector<1x64xf32>
    %94 = vector.broadcast %93 : vector<1x64xf32> to vector<64x64xf32>
    %95 = arith.addf %91, %94 : vector<64x64xf32>
    %96 = arith.addf %33, %95 : vector<64x64xf32>
    %97 = vector.shape_cast %96 : vector<64x64xf32> to vector<8x8x64xf32>
    %c1_49 = arith.constant 1 : index
    %c1_50 = arith.constant 1 : index
    %c0_51 = arith.constant 0 : index
    %98 = vector.load %arg7[%c1_49, %c1_50, %c0_51] : memref<10x10x128xf32, #tpu.memory_space<vmem>>, vector<8x8x64xf32>
    tpu.vector_store %arg7[%c1_49, %c1_50, %c0_51], %97 {strides = array<i32>} : memref<10x10x128xf32, #tpu.memory_space<vmem>>, vector<8x8x64xf32>,
    %c0_52 = arith.constant 0 : index
    %c0_53 = arith.constant 0 : index
    %c0_54 = arith.constant 0 : index
    %99 = vector.load %arg7[%c0_52, %c0_53, %c0_54] : memref<10x10x128xf32, #tpu.memory_space<vmem>>, vector<10x10x128xf32>
    %100 = vector.extract_strided_slice %99 {offsets = [0, 0, 0], sizes = [8, 8, 128], strides = [1, 1, 1]} : vector<10x10x128xf32> to vector<8x8x128xf32>
    %101 = vector.shape_cast %100 : vector<8x8x128xf32> to vector<64x128xf32>
    %102 = vector.extract_strided_slice %99 {offsets = [0, 1, 0], sizes = [8, 8, 128], strides = [1, 1, 1]} : vector<10x10x128xf32> to vector<8x8x128xf32>
    %103 = vector.shape_cast %102 : vector<8x8x128xf32> to vector<64x128xf32>
    %104 = vector.extract_strided_slice %99 {offsets = [0, 2, 0], sizes = [8, 8, 128], strides = [1, 1, 1]} : vector<10x10x128xf32> to vector<8x8x128xf32>
    %105 = vector.shape_cast %104 : vector<8x8x128xf32> to vector<64x128xf32>
    %106 = vector.extract_strided_slice %99 {offsets = [1, 0, 0], sizes = [8, 8, 128], strides = [1, 1, 1]} : vector<10x10x128xf32> to vector<8x8x128xf32>
    %107 = vector.shape_cast %106 : vector<8x8x128xf32> to vector<64x128xf32>
    %108 = vector.extract_strided_slice %99 {offsets = [1, 1, 0], sizes = [8, 8, 128], strides = [1, 1, 1]} : vector<10x10x128xf32> to vector<8x8x128xf32>
    %109 = vector.shape_cast %108 : vector<8x8x128xf32> to vector<64x128xf32>
    %110 = vector.extract_strided_slice %99 {offsets = [1, 2, 0], sizes = [8, 8, 128], strides = [1, 1, 1]} : vector<10x10x128xf32> to vector<8x8x128xf32>
    %111 = vector.shape_cast %110 : vector<8x8x128xf32> to vector<64x128xf32>
    %112 = vector.extract_strided_slice %99 {offsets = [2, 0, 0], sizes = [8, 8, 128], strides = [1, 1, 1]} : vector<10x10x128xf32> to vector<8x8x128xf32>
    %113 = vector.shape_cast %112 : vector<8x8x128xf32> to vector<64x128xf32>
    %114 = vector.extract_strided_slice %99 {offsets = [2, 1, 0], sizes = [8, 8, 128], strides = [1, 1, 1]} : vector<10x10x128xf32> to vector<8x8x128xf32>
    %115 = vector.shape_cast %114 : vector<8x8x128xf32> to vector<64x128xf32>
    %116 = vector.extract_strided_slice %99 {offsets = [2, 2, 0], sizes = [8, 8, 128], strides = [1, 1, 1]} : vector<10x10x128xf32> to vector<8x8x128xf32>
    %117 = vector.shape_cast %116 : vector<8x8x128xf32> to vector<64x128xf32>
    %118 = tpu.concatenate %101, %103, %105, %107, %109, %111, %113, %115, %117 in 1 : vector<64x128xf32>, vector<64x128xf32>, vector<64x128xf32>, vector<64x128xf32>, vector<64x128xf32>, vector<64x128xf32>, vector<64x128xf32>, vector<64x128xf32>, vector<64x128xf32> -> vector<64x1152xf32>
    %c3 = arith.constant 3 : index
    %c0_55 = arith.constant 0 : index
    %c0_56 = arith.constant 0 : index
    %119 = vector.load %arg2[%c3, %c0_55, %c0_56] : memref<10x1152x64xf32, #tpu.memory_space<vmem>>, vector<1x1152x64xf32>
    %120 = vector.shape_cast %119 : vector<1x1152x64xf32> to vector<1152x64xf32>
    %cst_57 = arith.constant dense<0.000000e+00> : vector<64x64xf32>
    %121 = tpu.matmul %118, %120, %cst_57 {dimension_numbers = #tpu.dot_dimension_numbers<[1], [0], [0], [1], [0, 0, 1, 1], [], []>} : vector<64x1152xf32>, vector<1152x64xf32>, vector<64x64xf32> -> vector<64x64xf32>
    %c3_58 = arith.constant 3 : index
    %c0_59 = arith.constant 0 : index
    %c0_60 = arith.constant 0 : index
    %122 = vector.load %arg3[%c3_58, %c0_59, %c0_60] : memref<10x1x64xf32, #tpu.memory_space<vmem>>, vector<1x1x64xf32>
    %123 = vector.shape_cast %122 : vector<1x1x64xf32> to vector<1x64xf32>
    %124 = vector.broadcast %123 : vector<1x64xf32> to vector<64x64xf32>
    %125 = arith.addf %121, %124 : vector<64x64xf32>
    %cst_61 = arith.constant 0.000000e+00 : f32
    %126 = vector.broadcast %cst_61 : f32 to vector<64x64xf32>
    %127 = arith.maximumf %125, %126 : vector<64x64xf32>
    %128 = vector.shape_cast %127 : vector<64x64xf32> to vector<8x8x64xf32>
    %c1_62 = arith.constant 1 : index
    %c1_63 = arith.constant 1 : index
    %c0_64 = arith.constant 0 : index
    %129 = vector.load %arg7[%c1_62, %c1_63, %c0_64] : memref<10x10x128xf32, #tpu.memory_space<vmem>>, vector<8x8x64xf32>
    tpu.vector_store %arg7[%c1_62, %c1_63, %c0_64], %128 {strides = array<i32>} : memref<10x10x128xf32, #tpu.memory_space<vmem>>, vector<8x8x64xf32>,
    %c0_65 = arith.constant 0 : index
    %c0_66 = arith.constant 0 : index
    %c0_67 = arith.constant 0 : index
    %130 = vector.load %arg7[%c0_65, %c0_66, %c0_67] : memref<10x10x128xf32, #tpu.memory_space<vmem>>, vector<10x10x128xf32>
    %131 = vector.extract_strided_slice %130 {offsets = [0, 0, 0], sizes = [8, 8, 128], strides = [1, 1, 1]} : vector<10x10x128xf32> to vector<8x8x128xf32>
    %132 = vector.shape_cast %131 : vector<8x8x128xf32> to vector<64x128xf32>
    %133 = vector.extract_strided_slice %130 {offsets = [0, 1, 0], sizes = [8, 8, 128], strides = [1, 1, 1]} : vector<10x10x128xf32> to vector<8x8x128xf32>
    %134 = vector.shape_cast %133 : vector<8x8x128xf32> to vector<64x128xf32>
    %135 = vector.extract_strided_slice %130 {offsets = [0, 2, 0], sizes = [8, 8, 128], strides = [1, 1, 1]} : vector<10x10x128xf32> to vector<8x8x128xf32>
    %136 = vector.shape_cast %135 : vector<8x8x128xf32> to vector<64x128xf32>
    %137 = vector.extract_strided_slice %130 {offsets = [1, 0, 0], sizes = [8, 8, 128], strides = [1, 1, 1]} : vector<10x10x128xf32> to vector<8x8x128xf32>
    %138 = vector.shape_cast %137 : vector<8x8x128xf32> to vector<64x128xf32>
    %139 = vector.extract_strided_slice %130 {offsets = [1, 1, 0], sizes = [8, 8, 128], strides = [1, 1, 1]} : vector<10x10x128xf32> to vector<8x8x128xf32>
    %140 = vector.shape_cast %139 : vector<8x8x128xf32> to vector<64x128xf32>
    %141 = vector.extract_strided_slice %130 {offsets = [1, 2, 0], sizes = [8, 8, 128], strides = [1, 1, 1]} : vector<10x10x128xf32> to vector<8x8x128xf32>
    %142 = vector.shape_cast %141 : vector<8x8x128xf32> to vector<64x128xf32>
    %143 = vector.extract_strided_slice %130 {offsets = [2, 0, 0], sizes = [8, 8, 128], strides = [1, 1, 1]} : vector<10x10x128xf32> to vector<8x8x128xf32>
    %144 = vector.shape_cast %143 : vector<8x8x128xf32> to vector<64x128xf32>
    %145 = vector.extract_strided_slice %130 {offsets = [2, 1, 0], sizes = [8, 8, 128], strides = [1, 1, 1]} : vector<10x10x128xf32> to vector<8x8x128xf32>
    %146 = vector.shape_cast %145 : vector<8x8x128xf32> to vector<64x128xf32>
    %147 = vector.extract_strided_slice %130 {offsets = [2, 2, 0], sizes = [8, 8, 128], strides = [1, 1, 1]} : vector<10x10x128xf32> to vector<8x8x128xf32>
    %148 = vector.shape_cast %147 : vector<8x8x128xf32> to vector<64x128xf32>
    %149 = tpu.concatenate %132, %134, %136, %138, %140, %142, %144, %146, %148 in 1 : vector<64x128xf32>, vector<64x128xf32>, vector<64x128xf32>, vector<64x128xf32>, vector<64x128xf32>, vector<64x128xf32>, vector<64x128xf32>, vector<64x128xf32>, vector<64x128xf32> -> vector<64x1152xf32>
    %c4 = arith.constant 4 : index
    %c0_68 = arith.constant 0 : index
    %c0_69 = arith.constant 0 : index
    %150 = vector.load %arg2[%c4, %c0_68, %c0_69] : memref<10x1152x64xf32, #tpu.memory_space<vmem>>, vector<1x1152x64xf32>
    %151 = vector.shape_cast %150 : vector<1x1152x64xf32> to vector<1152x64xf32>
    %cst_70 = arith.constant dense<0.000000e+00> : vector<64x64xf32>
    %152 = tpu.matmul %149, %151, %cst_70 {dimension_numbers = #tpu.dot_dimension_numbers<[1], [0], [0], [1], [0, 0, 1, 1], [], []>} : vector<64x1152xf32>, vector<1152x64xf32>, vector<64x64xf32> -> vector<64x64xf32>
    %c4_71 = arith.constant 4 : index
    %c0_72 = arith.constant 0 : index
    %c0_73 = arith.constant 0 : index
    %153 = vector.load %arg3[%c4_71, %c0_72, %c0_73] : memref<10x1x64xf32, #tpu.memory_space<vmem>>, vector<1x1x64xf32>
    %154 = vector.shape_cast %153 : vector<1x1x64xf32> to vector<1x64xf32>
    %155 = vector.broadcast %154 : vector<1x64xf32> to vector<64x64xf32>
    %156 = arith.addf %152, %155 : vector<64x64xf32>
    %157 = arith.addf %96, %156 : vector<64x64xf32>
    %158 = vector.shape_cast %157 : vector<64x64xf32> to vector<8x8x64xf32>
    %c1_74 = arith.constant 1 : index
    %c1_75 = arith.constant 1 : index
    %c0_76 = arith.constant 0 : index
    %159 = vector.load %arg7[%c1_74, %c1_75, %c0_76] : memref<10x10x128xf32, #tpu.memory_space<vmem>>, vector<8x8x64xf32>
    tpu.vector_store %arg7[%c1_74, %c1_75, %c0_76], %158 {strides = array<i32>} : memref<10x10x128xf32, #tpu.memory_space<vmem>>, vector<8x8x64xf32>,
    %c0_77 = arith.constant 0 : index
    %c0_78 = arith.constant 0 : index
    %c0_79 = arith.constant 0 : index
    %160 = vector.load %arg7[%c0_77, %c0_78, %c0_79] : memref<10x10x128xf32, #tpu.memory_space<vmem>>, vector<10x10x128xf32>
    %161 = vector.extract_strided_slice %160 {offsets = [0, 0, 0], sizes = [8, 8, 128], strides = [1, 1, 1]} : vector<10x10x128xf32> to vector<8x8x128xf32>
    %162 = vector.shape_cast %161 : vector<8x8x128xf32> to vector<64x128xf32>
    %163 = vector.extract_strided_slice %160 {offsets = [0, 1, 0], sizes = [8, 8, 128], strides = [1, 1, 1]} : vector<10x10x128xf32> to vector<8x8x128xf32>
    %164 = vector.shape_cast %163 : vector<8x8x128xf32> to vector<64x128xf32>
    %165 = vector.extract_strided_slice %160 {offsets = [0, 2, 0], sizes = [8, 8, 128], strides = [1, 1, 1]} : vector<10x10x128xf32> to vector<8x8x128xf32>
    %166 = vector.shape_cast %165 : vector<8x8x128xf32> to vector<64x128xf32>
    %167 = vector.extract_strided_slice %160 {offsets = [1, 0, 0], sizes = [8, 8, 128], strides = [1, 1, 1]} : vector<10x10x128xf32> to vector<8x8x128xf32>
    %168 = vector.shape_cast %167 : vector<8x8x128xf32> to vector<64x128xf32>
    %169 = vector.extract_strided_slice %160 {offsets = [1, 1, 0], sizes = [8, 8, 128], strides = [1, 1, 1]} : vector<10x10x128xf32> to vector<8x8x128xf32>
    %170 = vector.shape_cast %169 : vector<8x8x128xf32> to vector<64x128xf32>
    %171 = vector.extract_strided_slice %160 {offsets = [1, 2, 0], sizes = [8, 8, 128], strides = [1, 1, 1]} : vector<10x10x128xf32> to vector<8x8x128xf32>
    %172 = vector.shape_cast %171 : vector<8x8x128xf32> to vector<64x128xf32>
    %173 = vector.extract_strided_slice %160 {offsets = [2, 0, 0], sizes = [8, 8, 128], strides = [1, 1, 1]} : vector<10x10x128xf32> to vector<8x8x128xf32>
    %174 = vector.shape_cast %173 : vector<8x8x128xf32> to vector<64x128xf32>
    %175 = vector.extract_strided_slice %160 {offsets = [2, 1, 0], sizes = [8, 8, 128], strides = [1, 1, 1]} : vector<10x10x128xf32> to vector<8x8x128xf32>
    %176 = vector.shape_cast %175 : vector<8x8x128xf32> to vector<64x128xf32>
    %177 = vector.extract_strided_slice %160 {offsets = [2, 2, 0], sizes = [8, 8, 128], strides = [1, 1, 1]} : vector<10x10x128xf32> to vector<8x8x128xf32>
    %178 = vector.shape_cast %177 : vector<8x8x128xf32> to vector<64x128xf32>
    %179 = tpu.concatenate %162, %164, %166, %168, %170, %172, %174, %176, %178 in 1 : vector<64x128xf32>, vector<64x128xf32>, vector<64x128xf32>, vector<64x128xf32>, vector<64x128xf32>, vector<64x128xf32>, vector<64x128xf32>, vector<64x128xf32>, vector<64x128xf32> -> vector<64x1152xf32>
    %c5 = arith.constant 5 : index
    %c0_80 = arith.constant 0 : index
    %c0_81 = arith.constant 0 : index
    %180 = vector.load %arg2[%c5, %c0_80, %c0_81] : memref<10x1152x64xf32, #tpu.memory_space<vmem>>, vector<1x1152x64xf32>
    %181 = vector.shape_cast %180 : vector<1x1152x64xf32> to vector<1152x64xf32>
    %cst_82 = arith.constant dense<0.000000e+00> : vector<64x64xf32>
    %182 = tpu.matmul %179, %181, %cst_82 {dimension_numbers = #tpu.dot_dimension_numbers<[1], [0], [0], [1], [0, 0, 1, 1], [], []>} : vector<64x1152xf32>, vector<1152x64xf32>, vector<64x64xf32> -> vector<64x64xf32>
    %c5_83 = arith.constant 5 : index
    %c0_84 = arith.constant 0 : index
    %c0_85 = arith.constant 0 : index
    %183 = vector.load %arg3[%c5_83, %c0_84, %c0_85] : memref<10x1x64xf32, #tpu.memory_space<vmem>>, vector<1x1x64xf32>
    %184 = vector.shape_cast %183 : vector<1x1x64xf32> to vector<1x64xf32>
    %185 = vector.broadcast %184 : vector<1x64xf32> to vector<64x64xf32>
    %186 = arith.addf %182, %185 : vector<64x64xf32>
    %cst_86 = arith.constant 0.000000e+00 : f32
    %187 = vector.broadcast %cst_86 : f32 to vector<64x64xf32>
    %188 = arith.maximumf %186, %187 : vector<64x64xf32>
    %189 = vector.shape_cast %188 : vector<64x64xf32> to vector<8x8x64xf32>
    %c1_87 = arith.constant 1 : index
    %c1_88 = arith.constant 1 : index
    %c0_89 = arith.constant 0 : index
    %190 = vector.load %arg7[%c1_87, %c1_88, %c0_89] : memref<10x10x128xf32, #tpu.memory_space<vmem>>, vector<8x8x64xf32>
    tpu.vector_store %arg7[%c1_87, %c1_88, %c0_89], %189 {strides = array<i32>} : memref<10x10x128xf32, #tpu.memory_space<vmem>>, vector<8x8x64xf32>,
    %c0_90 = arith.constant 0 : index
    %c0_91 = arith.constant 0 : index
    %c0_92 = arith.constant 0 : index
    %191 = vector.load %arg7[%c0_90, %c0_91, %c0_92] : memref<10x10x128xf32, #tpu.memory_space<vmem>>, vector<10x10x128xf32>
    %192 = vector.extract_strided_slice %191 {offsets = [0, 0, 0], sizes = [8, 8, 128], strides = [1, 1, 1]} : vector<10x10x128xf32> to vector<8x8x128xf32>
    %193 = vector.shape_cast %192 : vector<8x8x128xf32> to vector<64x128xf32>
    %194 = vector.extract_strided_slice %191 {offsets = [0, 1, 0], sizes = [8, 8, 128], strides = [1, 1, 1]} : vector<10x10x128xf32> to vector<8x8x128xf32>
    %195 = vector.shape_cast %194 : vector<8x8x128xf32> to vector<64x128xf32>
    %196 = vector.extract_strided_slice %191 {offsets = [0, 2, 0], sizes = [8, 8, 128], strides = [1, 1, 1]} : vector<10x10x128xf32> to vector<8x8x128xf32>
    %197 = vector.shape_cast %196 : vector<8x8x128xf32> to vector<64x128xf32>
    %198 = vector.extract_strided_slice %191 {offsets = [1, 0, 0], sizes = [8, 8, 128], strides = [1, 1, 1]} : vector<10x10x128xf32> to vector<8x8x128xf32>
    %199 = vector.shape_cast %198 : vector<8x8x128xf32> to vector<64x128xf32>
    %200 = vector.extract_strided_slice %191 {offsets = [1, 1, 0], sizes = [8, 8, 128], strides = [1, 1, 1]} : vector<10x10x128xf32> to vector<8x8x128xf32>
    %201 = vector.shape_cast %200 : vector<8x8x128xf32> to vector<64x128xf32>
    %202 = vector.extract_strided_slice %191 {offsets = [1, 2, 0], sizes = [8, 8, 128], strides = [1, 1, 1]} : vector<10x10x128xf32> to vector<8x8x128xf32>
    %203 = vector.shape_cast %202 : vector<8x8x128xf32> to vector<64x128xf32>
    %204 = vector.extract_strided_slice %191 {offsets = [2, 0, 0], sizes = [8, 8, 128], strides = [1, 1, 1]} : vector<10x10x128xf32> to vector<8x8x128xf32>
    %205 = vector.shape_cast %204 : vector<8x8x128xf32> to vector<64x128xf32>
    %206 = vector.extract_strided_slice %191 {offsets = [2, 1, 0], sizes = [8, 8, 128], strides = [1, 1, 1]} : vector<10x10x128xf32> to vector<8x8x128xf32>
    %207 = vector.shape_cast %206 : vector<8x8x128xf32> to vector<64x128xf32>
    %208 = vector.extract_strided_slice %191 {offsets = [2, 2, 0], sizes = [8, 8, 128], strides = [1, 1, 1]} : vector<10x10x128xf32> to vector<8x8x128xf32>
    %209 = vector.shape_cast %208 : vector<8x8x128xf32> to vector<64x128xf32>
    %210 = tpu.concatenate %193, %195, %197, %199, %201, %203, %205, %207, %209 in 1 : vector<64x128xf32>, vector<64x128xf32>, vector<64x128xf32>, vector<64x128xf32>, vector<64x128xf32>, vector<64x128xf32>, vector<64x128xf32>, vector<64x128xf32>, vector<64x128xf32> -> vector<64x1152xf32>
    %c6 = arith.constant 6 : index
    %c0_93 = arith.constant 0 : index
    %c0_94 = arith.constant 0 : index
    %211 = vector.load %arg2[%c6, %c0_93, %c0_94] : memref<10x1152x64xf32, #tpu.memory_space<vmem>>, vector<1x1152x64xf32>
    %212 = vector.shape_cast %211 : vector<1x1152x64xf32> to vector<1152x64xf32>
    %cst_95 = arith.constant dense<0.000000e+00> : vector<64x64xf32>
    %213 = tpu.matmul %210, %212, %cst_95 {dimension_numbers = #tpu.dot_dimension_numbers<[1], [0], [0], [1], [0, 0, 1, 1], [], []>} : vector<64x1152xf32>, vector<1152x64xf32>, vector<64x64xf32> -> vector<64x64xf32>
    %c6_96 = arith.constant 6 : index
    %c0_97 = arith.constant 0 : index
    %c0_98 = arith.constant 0 : index
    %214 = vector.load %arg3[%c6_96, %c0_97, %c0_98] : memref<10x1x64xf32, #tpu.memory_space<vmem>>, vector<1x1x64xf32>
    %215 = vector.shape_cast %214 : vector<1x1x64xf32> to vector<1x64xf32>
    %216 = vector.broadcast %215 : vector<1x64xf32> to vector<64x64xf32>
    %217 = arith.addf %213, %216 : vector<64x64xf32>
    %218 = arith.addf %157, %217 : vector<64x64xf32>
    %219 = vector.shape_cast %218 : vector<64x64xf32> to vector<8x8x64xf32>
    %c1_99 = arith.constant 1 : index
    %c1_100 = arith.constant 1 : index
    %c0_101 = arith.constant 0 : index
    %220 = vector.load %arg7[%c1_99, %c1_100, %c0_101] : memref<10x10x128xf32, #tpu.memory_space<vmem>>, vector<8x8x64xf32>
    tpu.vector_store %arg7[%c1_99, %c1_100, %c0_101], %219 {strides = array<i32>} : memref<10x10x128xf32, #tpu.memory_space<vmem>>, vector<8x8x64xf32>,
    %c0_102 = arith.constant 0 : index
    %c0_103 = arith.constant 0 : index
    %c0_104 = arith.constant 0 : index
    %221 = vector.load %arg7[%c0_102, %c0_103, %c0_104] : memref<10x10x128xf32, #tpu.memory_space<vmem>>, vector<10x10x128xf32>
    %222 = vector.extract_strided_slice %221 {offsets = [0, 0, 0], sizes = [8, 8, 128], strides = [1, 1, 1]} : vector<10x10x128xf32> to vector<8x8x128xf32>
    %223 = vector.shape_cast %222 : vector<8x8x128xf32> to vector<64x128xf32>
    %224 = vector.extract_strided_slice %221 {offsets = [0, 1, 0], sizes = [8, 8, 128], strides = [1, 1, 1]} : vector<10x10x128xf32> to vector<8x8x128xf32>
    %225 = vector.shape_cast %224 : vector<8x8x128xf32> to vector<64x128xf32>
    %226 = vector.extract_strided_slice %221 {offsets = [0, 2, 0], sizes = [8, 8, 128], strides = [1, 1, 1]} : vector<10x10x128xf32> to vector<8x8x128xf32>
    %227 = vector.shape_cast %226 : vector<8x8x128xf32> to vector<64x128xf32>
    %228 = vector.extract_strided_slice %221 {offsets = [1, 0, 0], sizes = [8, 8, 128], strides = [1, 1, 1]} : vector<10x10x128xf32> to vector<8x8x128xf32>
    %229 = vector.shape_cast %228 : vector<8x8x128xf32> to vector<64x128xf32>
    %230 = vector.extract_strided_slice %221 {offsets = [1, 1, 0], sizes = [8, 8, 128], strides = [1, 1, 1]} : vector<10x10x128xf32> to vector<8x8x128xf32>
    %231 = vector.shape_cast %230 : vector<8x8x128xf32> to vector<64x128xf32>
    %232 = vector.extract_strided_slice %221 {offsets = [1, 2, 0], sizes = [8, 8, 128], strides = [1, 1, 1]} : vector<10x10x128xf32> to vector<8x8x128xf32>
    %233 = vector.shape_cast %232 : vector<8x8x128xf32> to vector<64x128xf32>
    %234 = vector.extract_strided_slice %221 {offsets = [2, 0, 0], sizes = [8, 8, 128], strides = [1, 1, 1]} : vector<10x10x128xf32> to vector<8x8x128xf32>
    %235 = vector.shape_cast %234 : vector<8x8x128xf32> to vector<64x128xf32>
    %236 = vector.extract_strided_slice %221 {offsets = [2, 1, 0], sizes = [8, 8, 128], strides = [1, 1, 1]} : vector<10x10x128xf32> to vector<8x8x128xf32>
    %237 = vector.shape_cast %236 : vector<8x8x128xf32> to vector<64x128xf32>
    %238 = vector.extract_strided_slice %221 {offsets = [2, 2, 0], sizes = [8, 8, 128], strides = [1, 1, 1]} : vector<10x10x128xf32> to vector<8x8x128xf32>
    %239 = vector.shape_cast %238 : vector<8x8x128xf32> to vector<64x128xf32>
    %240 = tpu.concatenate %223, %225, %227, %229, %231, %233, %235, %237, %239 in 1 : vector<64x128xf32>, vector<64x128xf32>, vector<64x128xf32>, vector<64x128xf32>, vector<64x128xf32>, vector<64x128xf32>, vector<64x128xf32>, vector<64x128xf32>, vector<64x128xf32> -> vector<64x1152xf32>
    %c7 = arith.constant 7 : index
    %c0_105 = arith.constant 0 : index
    %c0_106 = arith.constant 0 : index
    %241 = vector.load %arg2[%c7, %c0_105, %c0_106] : memref<10x1152x64xf32, #tpu.memory_space<vmem>>, vector<1x1152x64xf32>
    %242 = vector.shape_cast %241 : vector<1x1152x64xf32> to vector<1152x64xf32>
    %cst_107 = arith.constant dense<0.000000e+00> : vector<64x64xf32>
    %243 = tpu.matmul %240, %242, %cst_107 {dimension_numbers = #tpu.dot_dimension_numbers<[1], [0], [0], [1], [0, 0, 1, 1], [], []>} : vector<64x1152xf32>, vector<1152x64xf32>, vector<64x64xf32> -> vector<64x64xf32>
    %c7_108 = arith.constant 7 : index
    %c0_109 = arith.constant 0 : index
    %c0_110 = arith.constant 0 : index
    %244 = vector.load %arg3[%c7_108, %c0_109, %c0_110] : memref<10x1x64xf32, #tpu.memory_space<vmem>>, vector<1x1x64xf32>
    %245 = vector.shape_cast %244 : vector<1x1x64xf32> to vector<1x64xf32>
    %246 = vector.broadcast %245 : vector<1x64xf32> to vector<64x64xf32>
    %247 = arith.addf %243, %246 : vector<64x64xf32>
    %cst_111 = arith.constant 0.000000e+00 : f32
    %248 = vector.broadcast %cst_111 : f32 to vector<64x64xf32>
    %249 = arith.maximumf %247, %248 : vector<64x64xf32>
    %250 = vector.shape_cast %249 : vector<64x64xf32> to vector<8x8x64xf32>
    %c1_112 = arith.constant 1 : index
    %c1_113 = arith.constant 1 : index
    %c0_114 = arith.constant 0 : index
    %251 = vector.load %arg7[%c1_112, %c1_113, %c0_114] : memref<10x10x128xf32, #tpu.memory_space<vmem>>, vector<8x8x64xf32>
    tpu.vector_store %arg7[%c1_112, %c1_113, %c0_114], %250 {strides = array<i32>} : memref<10x10x128xf32, #tpu.memory_space<vmem>>, vector<8x8x64xf32>,
    %c0_115 = arith.constant 0 : index
    %c0_116 = arith.constant 0 : index
    %c0_117 = arith.constant 0 : index
    %252 = vector.load %arg7[%c0_115, %c0_116, %c0_117] : memref<10x10x128xf32, #tpu.memory_space<vmem>>, vector<10x10x128xf32>
    %253 = vector.extract_strided_slice %252 {offsets = [0, 0, 0], sizes = [8, 8, 128], strides = [1, 1, 1]} : vector<10x10x128xf32> to vector<8x8x128xf32>
    %254 = vector.shape_cast %253 : vector<8x8x128xf32> to vector<64x128xf32>
    %255 = vector.extract_strided_slice %252 {offsets = [0, 1, 0], sizes = [8, 8, 128], strides = [1, 1, 1]} : vector<10x10x128xf32> to vector<8x8x128xf32>
    %256 = vector.shape_cast %255 : vector<8x8x128xf32> to vector<64x128xf32>
    %257 = vector.extract_strided_slice %252 {offsets = [0, 2, 0], sizes = [8, 8, 128], strides = [1, 1, 1]} : vector<10x10x128xf32> to vector<8x8x128xf32>
    %258 = vector.shape_cast %257 : vector<8x8x128xf32> to vector<64x128xf32>
    %259 = vector.extract_strided_slice %252 {offsets = [1, 0, 0], sizes = [8, 8, 128], strides = [1, 1, 1]} : vector<10x10x128xf32> to vector<8x8x128xf32>
    %260 = vector.shape_cast %259 : vector<8x8x128xf32> to vector<64x128xf32>
    %261 = vector.extract_strided_slice %252 {offsets = [1, 1, 0], sizes = [8, 8, 128], strides = [1, 1, 1]} : vector<10x10x128xf32> to vector<8x8x128xf32>
    %262 = vector.shape_cast %261 : vector<8x8x128xf32> to vector<64x128xf32>
    %263 = vector.extract_strided_slice %252 {offsets = [1, 2, 0], sizes = [8, 8, 128], strides = [1, 1, 1]} : vector<10x10x128xf32> to vector<8x8x128xf32>
    %264 = vector.shape_cast %263 : vector<8x8x128xf32> to vector<64x128xf32>
    %265 = vector.extract_strided_slice %252 {offsets = [2, 0, 0], sizes = [8, 8, 128], strides = [1, 1, 1]} : vector<10x10x128xf32> to vector<8x8x128xf32>
    %266 = vector.shape_cast %265 : vector<8x8x128xf32> to vector<64x128xf32>
    %267 = vector.extract_strided_slice %252 {offsets = [2, 1, 0], sizes = [8, 8, 128], strides = [1, 1, 1]} : vector<10x10x128xf32> to vector<8x8x128xf32>
    %268 = vector.shape_cast %267 : vector<8x8x128xf32> to vector<64x128xf32>
    %269 = vector.extract_strided_slice %252 {offsets = [2, 2, 0], sizes = [8, 8, 128], strides = [1, 1, 1]} : vector<10x10x128xf32> to vector<8x8x128xf32>
    %270 = vector.shape_cast %269 : vector<8x8x128xf32> to vector<64x128xf32>
    %271 = tpu.concatenate %254, %256, %258, %260, %262, %264, %266, %268, %270 in 1 : vector<64x128xf32>, vector<64x128xf32>, vector<64x128xf32>, vector<64x128xf32>, vector<64x128xf32>, vector<64x128xf32>, vector<64x128xf32>, vector<64x128xf32>, vector<64x128xf32> -> vector<64x1152xf32>
    %c8 = arith.constant 8 : index
    %c0_118 = arith.constant 0 : index
    %c0_119 = arith.constant 0 : index
    %272 = vector.load %arg2[%c8, %c0_118, %c0_119] : memref<10x1152x64xf32, #tpu.memory_space<vmem>>, vector<1x1152x64xf32>
    %273 = vector.shape_cast %272 : vector<1x1152x64xf32> to vector<1152x64xf32>
    %cst_120 = arith.constant dense<0.000000e+00> : vector<64x64xf32>
    %274 = tpu.matmul %271, %273, %cst_120 {dimension_numbers = #tpu.dot_dimension_numbers<[1], [0], [0], [1], [0, 0, 1, 1], [], []>} : vector<64x1152xf32>, vector<1152x64xf32>, vector<64x64xf32> -> vector<64x64xf32>
    %c8_121 = arith.constant 8 : index
    %c0_122 = arith.constant 0 : index
    %c0_123 = arith.constant 0 : index
    %275 = vector.load %arg3[%c8_121, %c0_122, %c0_123] : memref<10x1x64xf32, #tpu.memory_space<vmem>>, vector<1x1x64xf32>
    %276 = vector.shape_cast %275 : vector<1x1x64xf32> to vector<1x64xf32>
    %277 = vector.broadcast %276 : vector<1x64xf32> to vector<64x64xf32>
    %278 = arith.addf %274, %277 : vector<64x64xf32>
    %279 = arith.addf %218, %278 : vector<64x64xf32>
    %280 = vector.shape_cast %279 : vector<64x64xf32> to vector<8x8x64xf32>
    %c1_124 = arith.constant 1 : index
    %c1_125 = arith.constant 1 : index
    %c0_126 = arith.constant 0 : index
    %281 = vector.load %arg7[%c1_124, %c1_125, %c0_126] : memref<10x10x128xf32, #tpu.memory_space<vmem>>, vector<8x8x64xf32>
    tpu.vector_store %arg7[%c1_124, %c1_125, %c0_126], %280 {strides = array<i32>} : memref<10x10x128xf32, #tpu.memory_space<vmem>>, vector<8x8x64xf32>,
    %c0_127 = arith.constant 0 : index
    %c0_128 = arith.constant 0 : index
    %c0_129 = arith.constant 0 : index
    %282 = vector.load %arg7[%c0_127, %c0_128, %c0_129] : memref<10x10x128xf32, #tpu.memory_space<vmem>>, vector<10x10x128xf32>
    %283 = vector.extract_strided_slice %282 {offsets = [0, 0, 0], sizes = [8, 8, 128], strides = [1, 1, 1]} : vector<10x10x128xf32> to vector<8x8x128xf32>
    %284 = vector.shape_cast %283 : vector<8x8x128xf32> to vector<64x128xf32>
    %285 = vector.extract_strided_slice %282 {offsets = [0, 1, 0], sizes = [8, 8, 128], strides = [1, 1, 1]} : vector<10x10x128xf32> to vector<8x8x128xf32>
    %286 = vector.shape_cast %285 : vector<8x8x128xf32> to vector<64x128xf32>
    %287 = vector.extract_strided_slice %282 {offsets = [0, 2, 0], sizes = [8, 8, 128], strides = [1, 1, 1]} : vector<10x10x128xf32> to vector<8x8x128xf32>
    %288 = vector.shape_cast %287 : vector<8x8x128xf32> to vector<64x128xf32>
    %289 = vector.extract_strided_slice %282 {offsets = [1, 0, 0], sizes = [8, 8, 128], strides = [1, 1, 1]} : vector<10x10x128xf32> to vector<8x8x128xf32>
    %290 = vector.shape_cast %289 : vector<8x8x128xf32> to vector<64x128xf32>
    %291 = vector.extract_strided_slice %282 {offsets = [1, 1, 0], sizes = [8, 8, 128], strides = [1, 1, 1]} : vector<10x10x128xf32> to vector<8x8x128xf32>
    %292 = vector.shape_cast %291 : vector<8x8x128xf32> to vector<64x128xf32>
    %293 = vector.extract_strided_slice %282 {offsets = [1, 2, 0], sizes = [8, 8, 128], strides = [1, 1, 1]} : vector<10x10x128xf32> to vector<8x8x128xf32>
    %294 = vector.shape_cast %293 : vector<8x8x128xf32> to vector<64x128xf32>
    %295 = vector.extract_strided_slice %282 {offsets = [2, 0, 0], sizes = [8, 8, 128], strides = [1, 1, 1]} : vector<10x10x128xf32> to vector<8x8x128xf32>
    %296 = vector.shape_cast %295 : vector<8x8x128xf32> to vector<64x128xf32>
    %297 = vector.extract_strided_slice %282 {offsets = [2, 1, 0], sizes = [8, 8, 128], strides = [1, 1, 1]} : vector<10x10x128xf32> to vector<8x8x128xf32>
    %298 = vector.shape_cast %297 : vector<8x8x128xf32> to vector<64x128xf32>
    %299 = vector.extract_strided_slice %282 {offsets = [2, 2, 0], sizes = [8, 8, 128], strides = [1, 1, 1]} : vector<10x10x128xf32> to vector<8x8x128xf32>
    %300 = vector.shape_cast %299 : vector<8x8x128xf32> to vector<64x128xf32>
    %301 = tpu.concatenate %284, %286, %288, %290, %292, %294, %296, %298, %300 in 1 : vector<64x128xf32>, vector<64x128xf32>, vector<64x128xf32>, vector<64x128xf32>, vector<64x128xf32>, vector<64x128xf32>, vector<64x128xf32>, vector<64x128xf32>, vector<64x128xf32> -> vector<64x1152xf32>
    %c9 = arith.constant 9 : index
    %c0_130 = arith.constant 0 : index
    %c0_131 = arith.constant 0 : index
    %302 = vector.load %arg2[%c9, %c0_130, %c0_131] : memref<10x1152x64xf32, #tpu.memory_space<vmem>>, vector<1x1152x64xf32>
    %303 = vector.shape_cast %302 : vector<1x1152x64xf32> to vector<1152x64xf32>
    %cst_132 = arith.constant dense<0.000000e+00> : vector<64x64xf32>
    %304 = tpu.matmul %301, %303, %cst_132 {dimension_numbers = #tpu.dot_dimension_numbers<[1], [0], [0], [1], [0, 0, 1, 1], [], []>} : vector<64x1152xf32>, vector<1152x64xf32>, vector<64x64xf32> -> vector<64x64xf32>
    %c9_133 = arith.constant 9 : index
    %c0_134 = arith.constant 0 : index
    %c0_135 = arith.constant 0 : index
    %305 = vector.load %arg3[%c9_133, %c0_134, %c0_135] : memref<10x1x64xf32, #tpu.memory_space<vmem>>, vector<1x1x64xf32>
    %306 = vector.shape_cast %305 : vector<1x1x64xf32> to vector<1x64xf32>
    %307 = vector.broadcast %306 : vector<1x64xf32> to vector<64x64xf32>
    %308 = arith.addf %304, %307 : vector<64x64xf32>
    %309 = math.tanh %308 : vector<64x64xf32>
    %310 = vector.shape_cast %309 : vector<64x64xf32> to vector<8x8x64xf32>
    %c1_136 = arith.constant 1 : index
    %c1_137 = arith.constant 1 : index
    %c0_138 = arith.constant 0 : index
    %311 = vector.load %arg7[%c1_136, %c1_137, %c0_138] : memref<10x10x128xf32, #tpu.memory_space<vmem>>, vector<8x8x64xf32>
    tpu.vector_store %arg7[%c1_136, %c1_137, %c0_138], %310 {strides = array<i32>} : memref<10x10x128xf32, #tpu.memory_space<vmem>>, vector<8x8x64xf32>,
    %c0_139 = arith.constant 0 : index
    %c0_140 = arith.constant 0 : index
    %c0_141 = arith.constant 0 : index
    %312 = vector.load %arg7[%c0_139, %c0_140, %c0_141] : memref<10x10x128xf32, #tpu.memory_space<vmem>>, vector<10x10x128xf32>
    %313 = vector.extract_strided_slice %312 {offsets = [0, 0, 0], sizes = [8, 8, 128], strides = [1, 1, 1]} : vector<10x10x128xf32> to vector<8x8x128xf32>
    %314 = vector.shape_cast %313 : vector<8x8x128xf32> to vector<64x128xf32>
    %315 = vector.extract_strided_slice %312 {offsets = [0, 1, 0], sizes = [8, 8, 128], strides = [1, 1, 1]} : vector<10x10x128xf32> to vector<8x8x128xf32>
    %316 = vector.shape_cast %315 : vector<8x8x128xf32> to vector<64x128xf32>
    %317 = vector.extract_strided_slice %312 {offsets = [0, 2, 0], sizes = [8, 8, 128], strides = [1, 1, 1]} : vector<10x10x128xf32> to vector<8x8x128xf32>
    %318 = vector.shape_cast %317 : vector<8x8x128xf32> to vector<64x128xf32>
    %319 = vector.extract_strided_slice %312 {offsets = [1, 0, 0], sizes = [8, 8, 128], strides = [1, 1, 1]} : vector<10x10x128xf32> to vector<8x8x128xf32>
    %320 = vector.shape_cast %319 : vector<8x8x128xf32> to vector<64x128xf32>
    %321 = vector.extract_strided_slice %312 {offsets = [1, 1, 0], sizes = [8, 8, 128], strides = [1, 1, 1]} : vector<10x10x128xf32> to vector<8x8x128xf32>
    %322 = vector.shape_cast %321 : vector<8x8x128xf32> to vector<64x128xf32>
    %323 = vector.extract_strided_slice %312 {offsets = [1, 2, 0], sizes = [8, 8, 128], strides = [1, 1, 1]} : vector<10x10x128xf32> to vector<8x8x128xf32>
    %324 = vector.shape_cast %323 : vector<8x8x128xf32> to vector<64x128xf32>
    %325 = vector.extract_strided_slice %312 {offsets = [2, 0, 0], sizes = [8, 8, 128], strides = [1, 1, 1]} : vector<10x10x128xf32> to vector<8x8x128xf32>
    %326 = vector.shape_cast %325 : vector<8x8x128xf32> to vector<64x128xf32>
    %327 = vector.extract_strided_slice %312 {offsets = [2, 1, 0], sizes = [8, 8, 128], strides = [1, 1, 1]} : vector<10x10x128xf32> to vector<8x8x128xf32>
    %328 = vector.shape_cast %327 : vector<8x8x128xf32> to vector<64x128xf32>
    %329 = vector.extract_strided_slice %312 {offsets = [2, 2, 0], sizes = [8, 8, 128], strides = [1, 1, 1]} : vector<10x10x128xf32> to vector<8x8x128xf32>
    %330 = vector.shape_cast %329 : vector<8x8x128xf32> to vector<64x128xf32>
    %331 = tpu.concatenate %314, %316, %318, %320, %322, %324, %326, %328, %330 in 1 : vector<64x128xf32>, vector<64x128xf32>, vector<64x128xf32>, vector<64x128xf32>, vector<64x128xf32>, vector<64x128xf32>, vector<64x128xf32>, vector<64x128xf32>, vector<64x128xf32> -> vector<64x1152xf32>
    %c0_142 = arith.constant 0 : index
    %c0_143 = arith.constant 0 : index
    %332 = vector.load %arg4[%c0_142, %c0_143] : memref<1x1152xf32, #tpu.memory_space<vmem>>, vector<1x1152xf32>
    %333 = vector.broadcast %332 : vector<1x1152xf32> to vector<64x1152xf32>
    %334 = arith.mulf %331, %333 : vector<64x1152xf32>
    %cst_144 = arith.constant dense<0.000000e+00> : vector<64xf32>
    %335 = vector.multi_reduction <add>, %334, %cst_144 [1] : vector<64x1152xf32> to vector<64xf32>
    %336 = vector.shape_cast %335 : vector<64xf32> to vector<64x1xf32>
    %c0_145 = arith.constant 0 : index
    %c0_146 = arith.constant 0 : index
    %337 = vector.load %arg5[%c0_145, %c0_146] : memref<1x1xf32, #tpu.memory_space<vmem>>, vector<1x1xf32>
    %338 = vector.broadcast %337 : vector<1x1xf32> to vector<64x1xf32>
    %339 = arith.addf %336, %338 : vector<64x1xf32>
    %340 = math.tanh %339 : vector<64x1xf32>
    %c0_147 = arith.constant 0 : index
    %c0_148 = arith.constant 0 : index
    %c0_149 = arith.constant 0 : index
    %341 = vector.load %arg6[%c0_147, %c0_148, %c0_149] : memref<1x64x1xf32, #tpu.memory_space<vmem>>, vector<1x64x1xf32>
    %342 = vector.shape_cast %341 : vector<1x64x1xf32> to vector<64x1xf32>
    %343 = vector.shape_cast %340 : vector<64x1xf32> to vector<1x64x1xf32>
    tpu.vector_store %arg6[%c0_147, %c0_148, %c0_149], %343 {strides = array<i32>} : memref<1x64x1xf32, #tpu.memory_space<vmem>>, vector<1x64x1xf32>,
    return
  }
  func.func @transform_0(%arg0: i32) -> (i32, i32, i32, i32) {
    %c0_i32 = arith.constant 0 : i32
    %c0_i32_0 = arith.constant 0 : i32
    %c0_i32_1 = arith.constant 0 : i32
    %c0_i32_2 = arith.constant 0 : i32
    return %arg0, %c0_i32, %c0_i32_0, %c0_i32_1 : i32, i32, i32, i32
  }
  func.func @transform_1(%arg0: i32) -> (i32, i32, i32) {
    %c0_i32 = arith.constant 0 : i32
    %c0_i32_0 = arith.constant 0 : i32
    %c0_i32_1 = arith.constant 0 : i32
    %c0_i32_2 = arith.constant 0 : i32
    return %c0_i32, %c0_i32_0, %c0_i32_1 : i32, i32, i32
  }
  func.func @transform_2(%arg0: i32) -> (i32, i32, i32) {
    %c0_i32 = arith.constant 0 : i32
    %c0_i32_0 = arith.constant 0 : i32
    %c0_i32_1 = arith.constant 0 : i32
    %c0_i32_2 = arith.constant 0 : i32
    return %c0_i32, %c0_i32_0, %c0_i32_1 : i32, i32, i32
  }
  func.func @transform_3(%arg0: i32) -> (i32, i32) {
    %c0_i32 = arith.constant 0 : i32
    %c0_i32_0 = arith.constant 0 : i32
    %c0_i32_1 = arith.constant 0 : i32
    return %c0_i32, %c0_i32_0 : i32, i32
  }
  func.func @transform_4(%arg0: i32) -> (i32, i32) {
    %c0_i32 = arith.constant 0 : i32
    %c0_i32_0 = arith.constant 0 : i32
    %c0_i32_1 = arith.constant 0 : i32
    return %c0_i32, %c0_i32_0 : i32, i32
  }
  func.func @transform_5(%arg0: i32) -> (i32, i32, i32) {
    %c0_i32 = arith.constant 0 : i32
    %c0_i32_0 = arith.constant 0 : i32
    %c0_i32_1 = arith.constant 0 : i32
    return %arg0, %c0_i32, %c0_i32_0 : i32, i32, i32
  }
}

</mosaic_0001>

<llo_original>
// kernel: tpu_custom_call.1
$region0: #{tpu_custom_call.1}
  #allocation0 [shape = 'u32[]', space=smem, size = 0x4, offset = 0x4, fixed_abs, tag = 'smem constant byte address 0x4 - core index']
  #allocation1 [shape = 'u32[144,128]{1,0:T(1,128)}', space=vmem, size = 0x12000, scoped, tag = 'internal scratch']
  #allocation2 [shape = 'f32[10,10,128]{2,1,0:T(8,128)}', space=vmem, size = 0x14000, scoped, tag = 'scratch operand']
  #allocation3 [shape = 'f32[1,1]{1,0:T(1,128)S(1)}', space=vmem, size = 0x200, scoped, tag = 'scoped memory for tpu_custom_call.1']
  %s0 = inlined_call_operand.vmem [shape: f32[2,8,8,128], index: 0, kind: input, shape index: {}]
  %s1 = inlined_call_operand.vmem [shape: f32[10,1152,64], index: 1, kind: input, shape index: {}]
  %s2 = inlined_call_operand.vmem [shape: f32[10,1,64], index: 2, kind: input, shape index: {}]
  %s3 = inlined_call_operand.vmem [shape: f32[1,1152], index: 3, kind: input, shape index: {}]
  %s4 = inlined_call_operand.<no memory space> [shape: f32[1,1], index: 4, kind: input, shape index: {}]
  %s5 = inlined_call_operand.vmem [shape: f32[2,64,1], index: 5, kind: output, shape index: {}]
  %s6 = sld [smem:[#allocation0]]
  $region53: #{tpu_custom_call.1} parent=0
    _
  %s8 = ssub.s32 1, %s6
  %s9 = scalar_select 0, %s8, %s6
  %v10 = vstv %s4
  %11 = vst [vmem:[#allocation3] sm:$0x1] %v10
  loop: start=0, step=1, limit=4
  $region2: #{tpu_custom_call.1} parent=0 // loop_pre_header
    _
  $region3: #{tpu_custom_call.1} parent=0 // loop_header
    %s13 = sphi 0, %s17
    %p14 = scmp.ge.s32.totalorder %s13, 4
    %s23 = sphi 0, %s25
    %s26 = sphi 0, %s23
    %s27 = sphi 0, %s26
    %s43 = sphi 0, %s27
    %s47 = sphi 0, %s47
    %s49 = sphi 0, %s47
    %s50 = sphi 0, %s49
    %s64 = sphi 0, %s50
    %s68 = sphi 0, %s68
    %s70 = sphi 0, %s68
    %s71 = sphi 0, %s70
    %s85 = sphi 0, %s71
    %s89 = sphi 0, %s89
    %s91 = sphi 0, %s89
    %s92 = sphi 0, %s91
    %s106 = sphi 0, %s92
    %s110 = sphi 0, %s110
    %s112 = sphi 0, %s110
    %s113 = sphi 0, %s112
    %s127 = sphi 0, %s113
    %s133 = sphi 0, %s135
    %s136 = sphi 0, %s133
    %s137 = sphi 0, %s136
    %s153 = sphi 0, %s137
  $region4: #{tpu_custom_call.1} parent=0 // loop_header_branch
    %16 = sbr.rel (%p14) target = $region8
  $region5: #{tpu_custom_call.1} parent=0 // loop_body
    %s18 = ssub.s32 %s13, 1
    %s19 = ssub.s32 %s13, 2
    %s20 = sadd.s32 %s13, 1
    %s21 = ssub.s32 %s13, %s20
    %p22 = scmp.eq.s32.totalorder %s21, 0
    %s24 = sadd.s32 %s23, 1
    %s25 = scalar_select %p22, %s23, %s24
    %p28 = pneg %p22
    %p29 = scmp.eq.s32.totalorder %s13, 1
    %p30 = por %p28, %p29
    %p31 = scmp.ne.s32.totalorder %s23, %s26
    %p32 = scmp.eq.s32.totalorder %s13, 0
    %p33 = por %p31, %p32
    %p34 = scmp.ne.s32.totalorder %s23, %s26
    %p35 = scmp.eq.s32.totalorder %s18, 1
    %p36 = por %p34, %p35
    %p37 = scmp.ne.s32.totalorder %s26, %s27
    %p38 = scmp.eq.s32.totalorder %s18, 0
    %p39 = por %p37, %p38
    %p40 = scmp.ne.s32.totalorder %s26, %s27
    %p41 = scmp.eq.s32.totalorder %s19, 1
    %p42 = por %p40, %p41
    %p44 = scmp.ne.s32.totalorder %s27, %s43
    %p45 = scmp.eq.s32.totalorder %s19, 0
    %p46 = por %p44, %p45
    %s48 = sadd.s32 %s47, 1
    %p51 = scmp.eq.s32.totalorder %s13, 1
    %p52 = scmp.ne.s32.totalorder %s47, %s49
    %p53 = scmp.eq.s32.totalorder %s13, 0
    %p54 = por %p52, %p53
    %p55 = scmp.ne.s32.totalorder %s47, %s49
    %p56 = scmp.eq.s32.totalorder %s18, 1
    %p57 = por %p55, %p56
    %p58 = scmp.ne.s32.totalorder %s49, %s50
    %p59 = scmp.eq.s32.totalorder %s18, 0
    %p60 = por %p58, %p59
    %p61 = scmp.ne.s32.totalorder %s49, %s50
    %p62 = scmp.eq.s32.totalorder %s19, 1
    %p63 = por %p61, %p62
    %p65 = scmp.ne.s32.totalorder %s50, %s64
    %p66 = scmp.eq.s32.totalorder %s19, 0
    %p67 = por %p65, %p66
    %s69 = sadd.s32 %s68, 1
    %p72 = scmp.eq.s32.totalorder %s13, 1
    %p73 = scmp.ne.s32.totalorder %s68, %s70
    %p74 = scmp.eq.s32.totalorder %s13, 0
    %p75 = por %p73, %p74
    %p76 = scmp.ne.s32.totalorder %s68, %s70
    %p77 = scmp.eq.s32.totalorder %s18, 1
    %p78 = por %p76, %p77
    %p79 = scmp.ne.s32.totalorder %s70, %s71
    %p80 = scmp.eq.s32.totalorder %s18, 0
    %p81 = por %p79, %p80
    %p82 = scmp.ne.s32.totalorder %s70, %s71
    %p83 = scmp.eq.s32.totalorder %s19, 1
    %p84 = por %p82, %p83
    %p86 = scmp.ne.s32.totalorder %s71, %s85
    %p87 = scmp.eq.s32.totalorder %s19, 0
    %p88 = por %p86, %p87
    %s90 = sadd.s32 %s89, 1
    %p93 = scmp.eq.s32.totalorder %s13, 1
    %p94 = scmp.ne.s32.totalorder %s89, %s91
    %p95 = scmp.eq.s32.totalorder %s13, 0
    %p96 = por %p94, %p95
    %p97 = scmp.ne.s32.totalorder %s89, %s91
    %p98 = scmp.eq.s32.totalorder %s18, 1
    %p99 = por %p97, %p98
    %p100 = scmp.ne.s32.totalorder %s91, %s92
    %p101 = scmp.eq.s32.totalorder %s18, 0
    %p102 = por %p100, %p101
    %p103 = scmp.ne.s32.totalorder %s91, %s92
    %p104 = scmp.eq.s32.totalorder %s19, 1
    %p105 = por %p103, %p104
    %p107 = scmp.ne.s32.totalorder %s92, %s106
    %p108 = scmp.eq.s32.totalorder %s19, 0
    %p109 = por %p107, %p108
    %s111 = sadd.s32 %s110, 1
    %p114 = scmp.eq.s32.totalorder %s13, 1
    %p115 = scmp.ne.s32.totalorder %s110, %s112
    %p116 = scmp.eq.s32.totalorder %s13, 0
    %p117 = por %p115, %p116
    %p118 = scmp.ne.s32.totalorder %s110, %s112
    %p119 = scmp.eq.s32.totalorder %s18, 1
    %p120 = por %p118, %p119
    %p121 = scmp.ne.s32.totalorder %s112, %s113
    %p122 = scmp.eq.s32.totalorder %s18, 0
    %p123 = por %p121, %p122
    %p124 = scmp.ne.s32.totalorder %s112, %s113
    %p125 = scmp.eq.s32.totalorder %s19, 1
    %p126 = por %p124, %p125
    %p128 = scmp.ne.s32.totalorder %s113, %s127
    %p129 = scmp.eq.s32.totalorder %s19, 0
    %p130 = por %p128, %p129
    %s131 = ssub.s32 %s13, %s20
    %p132 = scmp.eq.s32.totalorder %s131, 0
    %s134 = sadd.s32 %s133, 1
    %s135 = scalar_select %p132, %s133, %s134
    %p138 = pneg %p132
    %p139 = scmp.eq.s32.totalorder %s13, 1
    %p140 = por %p138, %p139
    %p141 = scmp.ne.s32.totalorder %s133, %s136
    %p142 = scmp.eq.s32.totalorder %s13, 0
    %p143 = por %p141, %p142
    %p144 = scmp.ne.s32.totalorder %s133, %s136
    %p145 = scmp.eq.s32.totalorder %s18, 1
    %p146 = por %p144, %p145
    %p147 = scmp.ne.s32.totalorder %s136, %s137
    %p148 = scmp.eq.s32.totalorder %s18, 0
    %p149 = por %p147, %p148
    %p150 = scmp.ne.s32.totalorder %s136, %s137
    %p151 = scmp.eq.s32.totalorder %s19, 1
    %p152 = por %p150, %p151
    %p154 = scmp.ne.s32.totalorder %s137, %s153
    %p155 = scmp.eq.s32.totalorder %s19, 0
    %p156 = por %p154, %p155
    %p157 = scmp.le.s32.totalorder 1, %s13
    %p158 = scmp.lt.s32.totalorder %s13, 3
    %p159 = pnand %p157, %p158
    %p160 = pneg %p159
    // Predicated region
    $region9: #{tpu_custom_call.1} parent=5 // pred_check
      _
    $region10: #{tpu_custom_call.1} parent=5 // pred_check_branch
      %162 = sbr.rel (%p159) target = $region12
    $region11: #{tpu_custom_call.1} parent=5 // pred_region
      %s163 = ssub.s32 %s13, 1
      // Predicated region
      $region13: #{tpu_custom_call.1} parent=11 // pred_check
        %p164 = pneg %p60
      $region14: #{tpu_custom_call.1} parent=11 // pred_check_branch
        %166 = sbr.rel (%p164) target = $region16
      $region15: #{tpu_custom_call.1} parent=11 // pred_region
        _
      $region16: #{tpu_custom_call.1} parent=11 // pred_fallthru
        _
      // Predicated region
      $region17: #{tpu_custom_call.1} parent=11 // pred_check
        %p167 = pneg %p81
      $region18: #{tpu_custom_call.1} parent=11 // pred_check_branch
        %169 = sbr.rel (%p167) target = $region20
      $region19: #{tpu_custom_call.1} parent=11 // pred_region
        _
      $region20: #{tpu_custom_call.1} parent=11 // pred_fallthru
        _
      // Predicated region
      $region21: #{tpu_custom_call.1} parent=11 // pred_check
        %p170 = pneg %p102
      $region22: #{tpu_custom_call.1} parent=11 // pred_check_branch
        %172 = sbr.rel (%p170) target = $region24
      $region23: #{tpu_custom_call.1} parent=11 // pred_region
        _
      $region24: #{tpu_custom_call.1} parent=11 // pred_fallthru
        _
      // Predicated region
      $region25: #{tpu_custom_call.1} parent=11 // pred_check
        %p173 = pneg %p123
      $region26: #{tpu_custom_call.1} parent=11 // pred_check_branch
        %175 = sbr.rel (%p173) target = $region28
      $region27: #{tpu_custom_call.1} parent=11 // pred_region
        _
      $region28: #{tpu_custom_call.1} parent=11 // pred_fallthru
        _
    $region12: #{tpu_custom_call.1} parent=5 // pred_fallthru
      _
    %p176 = scmp.lt.s32.totalorder %s13, 2
    // Predicated region
    $region29: #{tpu_custom_call.1} parent=5 // pred_check
      %p177 = pneg %p176
    $region30: #{tpu_custom_call.1} parent=5 // pred_check_branch
      %179 = sbr.rel (%p177) target = $region32
    $region31: #{tpu_custom_call.1} parent=5 // pred_region
      // Predicated region
      $region33: #{tpu_custom_call.1} parent=31 // pred_check
        %p180 = pneg %p33
      $region34: #{tpu_custom_call.1} parent=31 // pred_check_branch
        %182 = sbr.rel (%p180) target = $region36
      $region35: #{tpu_custom_call.1} parent=31 // pred_region
        %p183 = scmp.lt.s32.totalorder %s13, 1
        %s184 = scalar_select %p183, %s13, 1
        %s185 = smul.addr %s184, 8
        %s186 = smul.addr %s185, 8
        %s187 = scalar_lea.vmem %s0, %s186
      $region36: #{tpu_custom_call.1} parent=31 // pred_fallthru
        _
    $region32: #{tpu_custom_call.1} parent=5 // pred_fallthru
      _
    %p188 = scmp.le.s32.totalorder 1, %s13
    %p189 = scmp.lt.s32.totalorder %s13, 3
    %p190 = pnand %p188, %p189
    %p191 = pneg %p190
    // Predicated region
    $region37: #{tpu_custom_call.1} parent=5 // pred_check
      _
    $region38: #{tpu_custom_call.1} parent=5 // pred_check_branch
      %193 = sbr.rel (%p190) target = $region40
    $region39: #{tpu_custom_call.1} parent=5 // pred_region
      %s194 = ssub.s32 %s13, 1
      %p195 = scmp.lt.s32.totalorder %s18, 1
      %s196 = scalar_select %p195, %s18, 1
      %s197 = smul.addr %s196, 8
      %s198 = smul.addr %s197, 8
      %s199 = scalar_lea.vmem %s0, %s198
      %p200 = pneg %p39
      %p201 = pneg %p36
      %p202 = pneg %p60
      %p203 = pneg %p57
      %p204 = pneg %p81
      %p205 = pneg %p78
      %p206 = pneg %p102
      %p207 = pneg %p99
      %p208 = pneg %p123
      %p209 = pneg %p120
      %p210 = pneg %p149
      %p211 = pneg %p146
      %p212 = scmp.lt.s32.totalorder %s18, 1
      %s213 = scalar_select %p212, %s18, 1
      %s214 = smul.addr %s213, 8
      %s215 = smul.addr %s214, 8
      %s216 = scalar_lea.vmem %s5, %s215
      %p217 = scmp.lt.s32.totalorder %s18, 1
      %s218 = scalar_select %p217, %s18, 1
      %s219 = smul.addr %s218, 8
      %s220 = smul.addr %s219, 8
      %s221 = scalar_lea.vmem %s0, %s220
      %p222 = scmp.lt.s32.totalorder %s18, 1
      %s223 = scalar_select %p222, %s18, 1
      %s224 = smul.addr %s223, 8
      %s225 = smul.addr %s224, 8
      %s226 = scalar_lea.vmem %s5, %s225
      %v227 = vld [vmem:[%s221] sm:$0xff]
      %v228 = vld [vmem:[%s221 + $0x8] sm:$0xff]
      %v229 = vld [vmem:[%s221 + $0x10] sm:$0xff]
      %v230 = vld [vmem:[%s221 + $0x18] sm:$0xff]
      %v231 = vld [vmem:[%s221 + $0x20] sm:$0xff]
      %v232 = vld [vmem:[%s221 + $0x28] sm:$0xff]
      %v233 = vld [vmem:[%s221 + $0x30] sm:$0xff]
      %v234 = vld [vmem:[%s221 + $0x38] sm:$0xff]
      %235 = vst [vmem:[#allocation2] sm:$0xff] 0.0
      %236 = vst [vmem:[#allocation2 + $0x8] sm:$0x3] 0.0
      %237 = vst [vmem:[#allocation2 + $0x10] sm:$0xff] 0.0
      %238 = vst [vmem:[#allocation2 + $0x18] sm:$0x3] 0.0
      %239 = vst [vmem:[#allocation2 + $0x20] sm:$0xff] 0.0
      %240 = vst [vmem:[#allocation2 + $0x28] sm:$0x3] 0.0
      %241 = vst [vmem:[#allocation2 + $0x30] sm:$0xff] 0.0
      %242 = vst [vmem:[#allocation2 + $0x38] sm:$0x3] 0.0
      %243 = vst [vmem:[#allocation2 + $0x40] sm:$0xff] 0.0
      %244 = vst [vmem:[#allocation2 + $0x48] sm:$0x3] 0.0
      %245 = vst [vmem:[#allocation2 + $0x50] sm:$0xff] 0.0
      %246 = vst [vmem:[#allocation2 + $0x58] sm:$0x3] 0.0
      %247 = vst [vmem:[#allocation2 + $0x60] sm:$0xff] 0.0
      %248 = vst [vmem:[#allocation2 + $0x68] sm:$0x3] 0.0
      %249 = vst [vmem:[#allocation2 + $0x70] sm:$0xff] 0.0
      %250 = vst [vmem:[#allocation2 + $0x78] sm:$0x3] 0.0
      %251 = vst [vmem:[#allocation2 + $0x80] sm:$0xff] 0.0
      %252 = vst [vmem:[#allocation2 + $0x88] sm:$0x3] 0.0
      %253 = vst [vmem:[#allocation2 + $0x90] sm:$0xff] 0.0
      %254 = vst [vmem:[#allocation2 + $0x98] sm:$0x3] 0.0
      %s255 = scalar_lea.vmem [#allocation2], 16
      %256 = vst [vmem:[%s255 + $0x1] sm:$0xff] %v227
      %257 = vst [vmem:[%s255 + $0x11] sm:$0xff] %v228
      %258 = vst [vmem:[%s255 + $0x21] sm:$0xff] %v229
      %259 = vst [vmem:[%s255 + $0x31] sm:$0xff] %v230
      %260 = vst [vmem:[%s255 + $0x41] sm:$0xff] %v231
      %261 = vst [vmem:[%s255 + $0x51] sm:$0xff] %v232
      %262 = vst [vmem:[%s255 + $0x61] sm:$0xff] %v233
      %263 = vst [vmem:[%s255 + $0x71] sm:$0xff] %v234
      %v264 = vld [vmem:[#allocation2] sm:$0xff]
      %v265 = vld [vmem:[#allocation2 + $0x8] sm:$0x3]
      %v266 = vld [vmem:[#allocation2 + $0x10] sm:$0xff]
      %v267 = vld [vmem:[#allocation2 + $0x18] sm:$0x3]
      %v268 = vld [vmem:[#allocation2 + $0x20] sm:$0xff]
      %v269 = vld [vmem:[#allocation2 + $0x28] sm:$0x3]
      %v270 = vld [vmem:[#allocation2 + $0x30] sm:$0xff]
      %v271 = vld [vmem:[#allocation2 + $0x38] sm:$0x3]
      %v272 = vld [vmem:[#allocation2 + $0x40] sm:$0xff]
      %v273 = vld [vmem:[#allocation2 + $0x48] sm:$0x3]
      %v274 = vld [vmem:[#allocation2 + $0x50] sm:$0xff]
      %v275 = vld [vmem:[#allocation2 + $0x58] sm:$0x3]
      %v276 = vld [vmem:[#allocation2 + $0x60] sm:$0xff]
      %v277 = vld [vmem:[#allocation2 + $0x68] sm:$0x3]
      %v278 = vld [vmem:[#allocation2 + $0x70] sm:$0xff]
      %v279 = vld [vmem:[#allocation2 + $0x78] sm:$0x3]
      %v280 = vld [vmem:[#allocation2 + $0x80] sm:$0xff]
      %v281 = vld [vmem:[#allocation2 + $0x88] sm:$0x3]
      %v282 = vld [vmem:[#allocation2 + $0x90] sm:$0xff]
      %v283 = vld [vmem:[#allocation2 + $0x98] sm:$0x3]
      %vm300 = vcmask 1046528
      %v301 = vrot.slane %v264, 1
      %v302 = vrot.slane %v265, 1
      %v303 = vsel %vm300, %v301, %v302
      %v304 = vrot.slane %v266, 1
      %v305 = vrot.slane %v267, 1
      %v306 = vsel %vm300, %v304, %v305
      %v307 = vrot.slane %v268, 1
      %v308 = vrot.slane %v269, 1
      %v309 = vsel %vm300, %v307, %v308
      %v310 = vrot.slane %v270, 1
      %v311 = vrot.slane %v271, 1
      %v312 = vsel %vm300, %v310, %v311
      %v313 = vrot.slane %v272, 1
      %v314 = vrot.slane %v273, 1
      %v315 = vsel %vm300, %v313, %v314
      %v316 = vrot.slane %v274, 1
      %v317 = vrot.slane %v275, 1
      %v318 = vsel %vm300, %v316, %v317
      %v319 = vrot.slane %v276, 1
      %v320 = vrot.slane %v277, 1
      %v321 = vsel %vm300, %v319, %v320
      %v322 = vrot.slane %v278, 1
      %v323 = vrot.slane %v279, 1
      %v324 = vsel %vm300, %v322, %v323
      %vm333 = vcmask 1045504
      %v334 = vrot.slane %v264, 2
      %v335 = vrot.slane %v265, 2
      %v336 = vsel %vm333, %v334, %v335
      %v337 = vrot.slane %v266, 2
      %v338 = vrot.slane %v267, 2
      %v339 = vsel %vm333, %v337, %v338
      %v340 = vrot.slane %v268, 2
      %v341 = vrot.slane %v269, 2
      %v342 = vsel %vm333, %v340, %v341
      %v343 = vrot.slane %v270, 2
      %v344 = vrot.slane %v271, 2
      %v345 = vsel %vm333, %v343, %v344
      %v346 = vrot.slane %v272, 2
      %v347 = vrot.slane %v273, 2
      %v348 = vsel %vm333, %v346, %v347
      %v349 = vrot.slane %v274, 2
      %v350 = vrot.slane %v275, 2
      %v351 = vsel %vm333, %v349, %v350
      %v352 = vrot.slane %v276, 2
      %v353 = vrot.slane %v277, 2
      %v354 = vsel %vm333, %v352, %v353
      %v355 = vrot.slane %v278, 2
      %v356 = vrot.slane %v279, 2
      %v357 = vsel %vm333, %v355, %v356
      %v368 = vrot.slane %v280, 1
      %v369 = vrot.slane %v281, 1
      %v370 = vsel %vm300, %v368, %v369
      %v372 = vrot.slane %v280, 2
      %v373 = vrot.slane %v281, 2
      %v374 = vsel %vm333, %v372, %v373
      %v378 = vrot.slane %v282, 1
      %v379 = vrot.slane %v283, 1
      %v380 = vsel %vm300, %v378, %v379
      %v382 = vrot.slane %v282, 2
      %v383 = vrot.slane %v283, 2
      %v384 = vsel %vm333, %v382, %v383
      %v386 = vld [vmem:[%s1] sm:$0xff]
      %v387 = vld [vmem:[%s1 + $0x8] sm:$0xff]
      %v388 = vld [vmem:[%s1 + $0x10] sm:$0xff]
      %v389 = vld [vmem:[%s1 + $0x18] sm:$0xff]
      %v390 = vld [vmem:[%s1 + $0x20] sm:$0xff]
      %v391 = vld [vmem:[%s1 + $0x28] sm:$0xff]
      %v392 = vld [vmem:[%s1 + $0x30] sm:$0xff]
      %v393 = vld [vmem:[%s1 + $0x38] sm:$0xff]
      %v394 = vld [vmem:[%s1 + $0x40] sm:$0xff]
      %v395 = vld [vmem:[%s1 + $0x48] sm:$0xff]
      %v396 = vld [vmem:[%s1 + $0x50] sm:$0xff]
      %v397 = vld [vmem:[%s1 + $0x58] sm:$0xff]
      %v398 = vld [vmem:[%s1 + $0x60] sm:$0xff]
      %v399 = vld [vmem:[%s1 + $0x68] sm:$0xff]
      %v400 = vld [vmem:[%s1 + $0x70] sm:$0xff]
      %v401 = vld [vmem:[%s1 + $0x78] sm:$0xff]
      %v402 = vld [vmem:[%s1 + $0x80] sm:$0xff]
      %v403 = vld [vmem:[%s1 + $0x88] sm:$0xff]
      %v404 = vld [vmem:[%s1 + $0x90] sm:$0xff]
      %v405 = vld [vmem:[%s1 + $0x98] sm:$0xff]
      %v406 = vld [vmem:[%s1 + $0xa0] sm:$0xff]
      %v407 = vld [vmem:[%s1 + $0xa8] sm:$0xff]
      %v408 = vld [vmem:[%s1 + $0xb0] sm:$0xff]
      %v409 = vld [vmem:[%s1 + $0xb8] sm:$0xff]
      %v410 = vld [vmem:[%s1 + $0xc0] sm:$0xff]
      %v411 = vld [vmem:[%s1 + $0xc8] sm:$0xff]
      %v412 = vld [vmem:[%s1 + $0xd0] sm:$0xff]
      %v413 = vld [vmem:[%s1 + $0xd8] sm:$0xff]
      %v414 = vld [vmem:[%s1 + $0xe0] sm:$0xff]
      %v415 = vld [vmem:[%s1 + $0xe8] sm:$0xff]
      %v416 = vld [vmem:[%s1 + $0xf0] sm:$0xff]
      %v417 = vld [vmem:[%s1 + $0xf8] sm:$0xff]
      %v418 = vld [vmem:[%s1 + $0x100] sm:$0xff]
      %v419 = vld [vmem:[%s1 + $0x108] sm:$0xff]
      %v420 = vld [vmem:[%s1 + $0x110] sm:$0xff]
      %v421 = vld [vmem:[%s1 + $0x118] sm:$0xff]
      %v422 = vld [vmem:[%s1 + $0x120] sm:$0xff]
      %v423 = vld [vmem:[%s1 + $0x128] sm:$0xff]
      %v424 = vld [vmem:[%s1 + $0x130] sm:$0xff]
      %v425 = vld [vmem:[%s1 + $0x138] sm:$0xff]
      %v426 = vld [vmem:[%s1 + $0x140] sm:$0xff]
      %v427 = vld [vmem:[%s1 + $0x148] sm:$0xff]
      %v428 = vld [vmem:[%s1 + $0x150] sm:$0xff]
      %v429 = vld [vmem:[%s1 + $0x158] sm:$0xff]
      %v430 = vld [vmem:[%s1 + $0x160] sm:$0xff]
      %v431 = vld [vmem:[%s1 + $0x168] sm:$0xff]
      %v432 = vld [vmem:[%s1 + $0x170] sm:$0xff]
      %v433 = vld [vmem:[%s1 + $0x178] sm:$0xff]
      %v434 = vld [vmem:[%s1 + $0x180] sm:$0xff]
      %v435 = vld [vmem:[%s1 + $0x188] sm:$0xff]
      %v436 = vld [vmem:[%s1 + $0x190] sm:$0xff]
      %v437 = vld [vmem:[%s1 + $0x198] sm:$0xff]
      %v438 = vld [vmem:[%s1 + $0x1a0] sm:$0xff]
      %v439 = vld [vmem:[%s1 + $0x1a8] sm:$0xff]
      %v440 = vld [vmem:[%s1 + $0x1b0] sm:$0xff]
      %v441 = vld [vmem:[%s1 + $0x1b8] sm:$0xff]
      %v442 = vld [vmem:[%s1 + $0x1c0] sm:$0xff]
      %v443 = vld [vmem:[%s1 + $0x1c8] sm:$0xff]
      %v444 = vld [vmem:[%s1 + $0x1d0] sm:$0xff]
      %v445 = vld [vmem:[%s1 + $0x1d8] sm:$0xff]
      %v446 = vld [vmem:[%s1 + $0x1e0] sm:$0xff]
      %v447 = vld [vmem:[%s1 + $0x1e8] sm:$0xff]
      %v448 = vld [vmem:[%s1 + $0x1f0] sm:$0xff]
      %v449 = vld [vmem:[%s1 + $0x1f8] sm:$0xff]
      %v450 = vld [vmem:[%s1 + $0x200] sm:$0xff]
      %v451 = vld [vmem:[%s1 + $0x208] sm:$0xff]
      %v452 = vld [vmem:[%s1 + $0x210] sm:$0xff]
      %v453 = vld [vmem:[%s1 + $0x218] sm:$0xff]
      %v454 = vld [vmem:[%s1 + $0x220] sm:$0xff]
      %v455 = vld [vmem:[%s1 + $0x228] sm:$0xff]
      %v456 = vld [vmem:[%s1 + $0x230] sm:$0xff]
      %v457 = vld [vmem:[%s1 + $0x238] sm:$0xff]
      %v458 = vld [vmem:[%s1 + $0x240] sm:$0xff]
      %v459 = vld [vmem:[%s1 + $0x248] sm:$0xff]
      %v460 = vld [vmem:[%s1 + $0x250] sm:$0xff]
      %v461 = vld [vmem:[%s1 + $0x258] sm:$0xff]
      %v462 = vld [vmem:[%s1 + $0x260] sm:$0xff]
      %v463 = vld [vmem:[%s1 + $0x268] sm:$0xff]
      %v464 = vld [vmem:[%s1 + $0x270] sm:$0xff]
      %v465 = vld [vmem:[%s1 + $0x278] sm:$0xff]
      %v466 = vld [vmem:[%s1 + $0x280] sm:$0xff]
      %v467 = vld [vmem:[%s1 + $0x288] sm:$0xff]
      %v468 = vld [vmem:[%s1 + $0x290] sm:$0xff]
      %v469 = vld [vmem:[%s1 + $0x298] sm:$0xff]
      %v470 = vld [vmem:[%s1 + $0x2a0] sm:$0xff]
      %v471 = vld [vmem:[%s1 + $0x2a8] sm:$0xff]
      %v472 = vld [vmem:[%s1 + $0x2b0] sm:$0xff]
      %v473 = vld [vmem:[%s1 + $0x2b8] sm:$0xff]
      %v474 = vld [vmem:[%s1 + $0x2c0] sm:$0xff]
      %v475 = vld [vmem:[%s1 + $0x2c8] sm:$0xff]
      %v476 = vld [vmem:[%s1 + $0x2d0] sm:$0xff]
      %v477 = vld [vmem:[%s1 + $0x2d8] sm:$0xff]
      %v478 = vld [vmem:[%s1 + $0x2e0] sm:$0xff]
      %v479 = vld [vmem:[%s1 + $0x2e8] sm:$0xff]
      %v480 = vld [vmem:[%s1 + $0x2f0] sm:$0xff]
      %v481 = vld [vmem:[%s1 + $0x2f8] sm:$0xff]
      %v482 = vld [vmem:[%s1 + $0x300] sm:$0xff]
      %v483 = vld [vmem:[%s1 + $0x308] sm:$0xff]
      %v484 = vld [vmem:[%s1 + $0x310] sm:$0xff]
      %v485 = vld [vmem:[%s1 + $0x318] sm:$0xff]
      %v486 = vld [vmem:[%s1 + $0x320] sm:$0xff]
      %v487 = vld [vmem:[%s1 + $0x328] sm:$0xff]
      %v488 = vld [vmem:[%s1 + $0x330] sm:$0xff]
      %v489 = vld [vmem:[%s1 + $0x338] sm:$0xff]
      %v490 = vld [vmem:[%s1 + $0x340] sm:$0xff]
      %v491 = vld [vmem:[%s1 + $0x348] sm:$0xff]
      %v492 = vld [vmem:[%s1 + $0x350] sm:$0xff]
      %v493 = vld [vmem:[%s1 + $0x358] sm:$0xff]
      %v494 = vld [vmem:[%s1 + $0x360] sm:$0xff]
      %v495 = vld [vmem:[%s1 + $0x368] sm:$0xff]
      %v496 = vld [vmem:[%s1 + $0x370] sm:$0xff]
      %v497 = vld [vmem:[%s1 + $0x378] sm:$0xff]
      %v498 = vld [vmem:[%s1 + $0x380] sm:$0xff]
      %v499 = vld [vmem:[%s1 + $0x388] sm:$0xff]
      %v500 = vld [vmem:[%s1 + $0x390] sm:$0xff]
      %v501 = vld [vmem:[%s1 + $0x398] sm:$0xff]
      %v502 = vld [vmem:[%s1 + $0x3a0] sm:$0xff]
      %v503 = vld [vmem:[%s1 + $0x3a8] sm:$0xff]
      %v504 = vld [vmem:[%s1 + $0x3b0] sm:$0xff]
      %v505 = vld [vmem:[%s1 + $0x3b8] sm:$0xff]
      %v506 = vld [vmem:[%s1 + $0x3c0] sm:$0xff]
      %v507 = vld [vmem:[%s1 + $0x3c8] sm:$0xff]
      %v508 = vld [vmem:[%s1 + $0x3d0] sm:$0xff]
      %v509 = vld [vmem:[%s1 + $0x3d8] sm:$0xff]
      %v510 = vld [vmem:[%s1 + $0x3e0] sm:$0xff]
      %v511 = vld [vmem:[%s1 + $0x3e8] sm:$0xff]
      %v512 = vld [vmem:[%s1 + $0x3f0] sm:$0xff]
      %v513 = vld [vmem:[%s1 + $0x3f8] sm:$0xff]
      %v514 = vld [vmem:[%s1 + $0x400] sm:$0xff]
      %v515 = vld [vmem:[%s1 + $0x408] sm:$0xff]
      %v516 = vld [vmem:[%s1 + $0x410] sm:$0xff]
      %v517 = vld [vmem:[%s1 + $0x418] sm:$0xff]
      %v518 = vld [vmem:[%s1 + $0x420] sm:$0xff]
      %v519 = vld [vmem:[%s1 + $0x428] sm:$0xff]
      %v520 = vld [vmem:[%s1 + $0x430] sm:$0xff]
      %v521 = vld [vmem:[%s1 + $0x438] sm:$0xff]
      %v522 = vld [vmem:[%s1 + $0x440] sm:$0xff]
      %v523 = vld [vmem:[%s1 + $0x448] sm:$0xff]
      %v524 = vld [vmem:[%s1 + $0x450] sm:$0xff]
      %v525 = vld [vmem:[%s1 + $0x458] sm:$0xff]
      %v526 = vld [vmem:[%s1 + $0x460] sm:$0xff]
      %v527 = vld [vmem:[%s1 + $0x468] sm:$0xff]
      %v528 = vld [vmem:[%s1 + $0x470] sm:$0xff]
      %v529 = vld [vmem:[%s1 + $0x478] sm:$0xff]
      %v530 = vld [vmem:[%s2] sm:$0x1]
      %v532 = vlaneseq
      %v533 = vshrl.u32 %v532, 7
      %v534 = vsub.s32 0, %v533
      %v535 = vrot.slane %v530, %v534
      %537 = vmatprep.subr.mxu0 0.0
      %538 = vmatpush1.msra.mxu0 %v401
      %539 = vmatprep.subr.mxu0 0.0
      %540 = vmatpush1.msra.mxu0 %v400
      %541 = vmatprep.subr.mxu0 0.0
      %542 = vmatpush1.msra.mxu0 %v399
      %543 = vmatprep.subr.mxu0 0.0
      %544 = vmatpush1.msra.mxu0 %v398
      %545 = vmatprep.subr.mxu0 0.0
      %546 = vmatpush1.msra.mxu0 %v397
      %547 = vmatprep.subr.mxu0 0.0
      %548 = vmatpush1.msra.mxu0 %v396
      %549 = vmatprep.subr.mxu0 0.0
      %550 = vmatpush1.msra.mxu0 %v395
      %551 = vmatprep.subr.mxu0 0.0
      %552 = vmatpush1.msra.mxu0 %v394
      %553 = vmatprep.subr.mxu0 0.0
      %554 = vmatpush1.msra.mxu0 %v393
      %555 = vmatprep.subr.mxu0 0.0
      %556 = vmatpush1.msra.mxu0 %v392
      %557 = vmatprep.subr.mxu0 0.0
      %558 = vmatpush1.msra.mxu0 %v391
      %559 = vmatprep.subr.mxu0 0.0
      %560 = vmatpush1.msra.mxu0 %v390
      %561 = vmatprep.subr.mxu0 0.0
      %562 = vmatpush1.msra.mxu0 %v389
      %563 = vmatprep.subr.mxu0 0.0
      %564 = vmatpush1.msra.mxu0 %v388
      %565 = vmatprep.subr.mxu0 0.0
      %566 = vmatpush1.msra.mxu0 %v387
      %567 = vmatprep.subr.mxu0 0.0
      %568 = vmatpush1.msra.mxu0 %v386
      %569 = vmatprep.subr.mxu0 0.0
      %570 = vmatpush2.msra.mxu0 %v417
      %571 = vmatprep.subr.mxu0 0.0
      %572 = vmatpush2.msra.mxu0 %v416
      %573 = vmatprep.subr.mxu0 0.0
      %574 = vmatpush2.msra.mxu0 %v415
      %575 = vmatprep.subr.mxu0 0.0
      %576 = vmatpush2.msra.mxu0 %v414
      %577 = vmatprep.subr.mxu0 0.0
      %578 = vmatpush2.msra.mxu0 %v413
      %579 = vmatprep.subr.mxu0 0.0
      %580 = vmatpush2.msra.mxu0 %v412
      %581 = vmatprep.subr.mxu0 0.0
      %582 = vmatpush2.msra.mxu0 %v411
      %583 = vmatprep.subr.mxu0 0.0
      %584 = vmatpush2.msra.mxu0 %v410
      %585 = vmatprep.subr.mxu0 0.0
      %586 = vmatpush2.msra.mxu0 %v409
      %587 = vmatprep.subr.mxu0 0.0
      %588 = vmatpush2.msra.mxu0 %v408
      %589 = vmatprep.subr.mxu0 0.0
      %590 = vmatpush2.msra.mxu0 %v407
      %591 = vmatprep.subr.mxu0 0.0
      %592 = vmatpush2.msra.mxu0 %v406
      %593 = vmatprep.subr.mxu0 0.0
      %594 = vmatpush2.msra.mxu0 %v405
      %595 = vmatprep.subr.mxu0 0.0
      %596 = vmatpush2.msra.mxu0 %v404
      %597 = vmatprep.subr.mxu0 0.0
      %598 = vmatpush2.msra.mxu0 %v403
      %599 = vmatprep.subr.mxu0 0.0
      %600 = vmatpush2.msra.mxu0 %v402
      %601 = vmatprep.mubr.f32.mxu0 %v303
      %602 = vmatmul.mubr.f32.gmra.mxu0 %v264
      %v603 = vpop.f32.mrf.mxu0
      %v604 = vadd.f32 %v535, %v603
      %v605 = vpop.f32.mrf.mxu0
      %606 = vmatprep.mubr.f32.mxu0 %v306
      %607 = vmatmul.mubr.f32.gmra.mxu0 %v266
      %v608 = vpop.f32.mrf.mxu0
      %v609 = vadd.f32 %v535, %v608
      %v610 = vpop.f32.mrf.mxu0
      %611 = vmatprep.mubr.f32.mxu0 %v309
      %612 = vmatmul.mubr.f32.gmra.mxu0 %v268
      %v613 = vpop.f32.mrf.mxu0
      %v614 = vadd.f32 %v535, %v613
      %v615 = vpop.f32.mrf.mxu0
      %616 = vmatprep.mubr.f32.mxu0 %v312
      %617 = vmatmul.mubr.f32.gmra.mxu0 %v270
      %v618 = vpop.f32.mrf.mxu0
      %v619 = vadd.f32 %v535, %v618
      %v620 = vpop.f32.mrf.mxu0
      %621 = vmatprep.mubr.f32.mxu0 %v315
      %622 = vmatmul.mubr.f32.gmra.mxu0 %v272
      %v623 = vpop.f32.mrf.mxu0
      %v624 = vadd.f32 %v535, %v623
      %v625 = vpop.f32.mrf.mxu0
      %626 = vmatprep.mubr.f32.mxu0 %v318
      %627 = vmatmul.mubr.f32.gmra.mxu0 %v274
      %v628 = vpop.f32.mrf.mxu0
      %v629 = vadd.f32 %v535, %v628
      %v630 = vpop.f32.mrf.mxu0
      %631 = vmatprep.mubr.f32.mxu0 %v321
      %632 = vmatmul.mubr.f32.gmra.mxu0 %v276
      %v633 = vpop.f32.mrf.mxu0
      %v634 = vadd.f32 %v535, %v633
      %v635 = vpop.f32.mrf.mxu0
      %636 = vmatprep.mubr.f32.mxu0 %v324
      %637 = vmatmul.mubr.f32.gmra.mxu0 %v278
      %v638 = vpop.f32.mrf.mxu0
      %v639 = vadd.f32 %v535, %v638
      %v640 = vpop.f32.mrf.mxu0
      %641 = vdwg.mxu0
      %642 = vmatprep.subr.mxu0 0.0
      %643 = vmatpush1.msra.mxu0 %v433
      %644 = vmatprep.subr.mxu0 0.0
      %645 = vmatpush1.msra.mxu0 %v432
      %646 = vmatprep.subr.mxu0 0.0
      %647 = vmatpush1.msra.mxu0 %v431
      %648 = vmatprep.subr.mxu0 0.0
      %649 = vmatpush1.msra.mxu0 %v430
      %650 = vmatprep.subr.mxu0 0.0
      %651 = vmatpush1.msra.mxu0 %v429
      %652 = vmatprep.subr.mxu0 0.0
      %653 = vmatpush1.msra.mxu0 %v428
      %654 = vmatprep.subr.mxu0 0.0
      %655 = vmatpush1.msra.mxu0 %v427
      %656 = vmatprep.subr.mxu0 0.0
      %657 = vmatpush1.msra.mxu0 %v426
      %658 = vmatprep.subr.mxu0 0.0
      %659 = vmatpush1.msra.mxu0 %v425
      %660 = vmatprep.subr.mxu0 0.0
      %661 = vmatpush1.msra.mxu0 %v424
      %662 = vmatprep.subr.mxu0 0.0
      %663 = vmatpush1.msra.mxu0 %v423
      %664 = vmatprep.subr.mxu0 0.0
      %665 = vmatpush1.msra.mxu0 %v422
      %666 = vmatprep.subr.mxu0 0.0
      %667 = vmatpush1.msra.mxu0 %v421
      %668 = vmatprep.subr.mxu0 0.0
      %669 = vmatpush1.msra.mxu0 %v420
      %670 = vmatprep.subr.mxu0 0.0
      %671 = vmatpush1.msra.mxu0 %v419
      %672 = vmatprep.subr.mxu0 0.0
      %673 = vmatpush1.msra.mxu0 %v418
      %674 = vmatprep.subr.mxu0 0.0
      %675 = vmatpush2.msra.mxu0 %v449
      %676 = vmatprep.subr.mxu0 0.0
      %677 = vmatpush2.msra.mxu0 %v448
      %678 = vmatprep.subr.mxu0 0.0
      %679 = vmatpush2.msra.mxu0 %v447
      %680 = vmatprep.subr.mxu0 0.0
      %681 = vmatpush2.msra.mxu0 %v446
      %682 = vmatprep.subr.mxu0 0.0
      %683 = vmatpush2.msra.mxu0 %v445
      %684 = vmatprep.subr.mxu0 0.0
      %685 = vmatpush2.msra.mxu0 %v444
      %686 = vmatprep.subr.mxu0 0.0
      %687 = vmatpush2.msra.mxu0 %v443
      %688 = vmatprep.subr.mxu0 0.0
      %689 = vmatpush2.msra.mxu0 %v442
      %690 = vmatprep.subr.mxu0 0.0
      %691 = vmatpush2.msra.mxu0 %v441
      %692 = vmatprep.subr.mxu0 0.0
      %693 = vmatpush2.msra.mxu0 %v440
      %694 = vmatprep.subr.mxu0 0.0
      %695 = vmatpush2.msra.mxu0 %v439
      %696 = vmatprep.subr.mxu0 0.0
      %697 = vmatpush2.msra.mxu0 %v438
      %698 = vmatprep.subr.mxu0 0.0
      %699 = vmatpush2.msra.mxu0 %v437
      %700 = vmatprep.subr.mxu0 0.0
      %701 = vmatpush2.msra.mxu0 %v436
      %702 = vmatprep.subr.mxu0 0.0
      %703 = vmatpush2.msra.mxu0 %v435
      %704 = vmatprep.subr.mxu0 0.0
      %705 = vmatpush2.msra.mxu0 %v434
      %706 = vmatprep.mubr.f32.mxu0 %v266
      %707 = vmatmul.mubr.f32.gmra.mxu0 %v336
      %v708 = vpop.f32.mrf.mxu0
      %v709 = vadd.f32 %v604, %v708
      %v710 = vpop.f32.mrf.mxu0
      %711 = vmatprep.mubr.f32.mxu0 %v268
      %712 = vmatmul.mubr.f32.gmra.mxu0 %v339
      %v713 = vpop.f32.mrf.mxu0
      %v714 = vadd.f32 %v609, %v713
      %v715 = vpop.f32.mrf.mxu0
      %716 = vmatprep.mubr.f32.mxu0 %v270
      %717 = vmatmul.mubr.f32.gmra.mxu0 %v342
      %v718 = vpop.f32.mrf.mxu0
      %v719 = vadd.f32 %v614, %v718
      %v720 = vpop.f32.mrf.mxu0
      %721 = vmatprep.mubr.f32.mxu0 %v272
      %722 = vmatmul.mubr.f32.gmra.mxu0 %v345
      %v723 = vpop.f32.mrf.mxu0
      %v724 = vadd.f32 %v619, %v723
      %v725 = vpop.f32.mrf.mxu0
      %726 = vmatprep.mubr.f32.mxu0 %v274
      %727 = vmatmul.mubr.f32.gmra.mxu0 %v348
      %v728 = vpop.f32.mrf.mxu0
      %v729 = vadd.f32 %v624, %v728
      %v730 = vpop.f32.mrf.mxu0
      %731 = vmatprep.mubr.f32.mxu0 %v276
      %732 = vmatmul.mubr.f32.gmra.mxu0 %v351
      %v733 = vpop.f32.mrf.mxu0
      %v734 = vadd.f32 %v629, %v733
      %v735 = vpop.f32.mrf.mxu0
      %736 = vmatprep.mubr.f32.mxu0 %v278
      %737 = vmatmul.mubr.f32.gmra.mxu0 %v354
      %v738 = vpop.f32.mrf.mxu0
      %v739 = vadd.f32 %v634, %v738
      %v740 = vpop.f32.mrf.mxu0
      %741 = vmatprep.mubr.f32.mxu0 %v280
      %742 = vmatmul.mubr.f32.gmra.mxu0 %v357
      %v743 = vpop.f32.mrf.mxu0
      %v744 = vadd.f32 %v639, %v743
      %v745 = vpop.f32.mrf.mxu0
      %746 = vdwg.mxu0
      %747 = vmatprep.subr.mxu0 0.0
      %748 = vmatpush1.msra.mxu0 %v465
      %749 = vmatprep.subr.mxu0 0.0
      %750 = vmatpush1.msra.mxu0 %v464
      %751 = vmatprep.subr.mxu0 0.0
      %752 = vmatpush1.msra.mxu0 %v463
      %753 = vmatprep.subr.mxu0 0.0
      %754 = vmatpush1.msra.mxu0 %v462
      %755 = vmatprep.subr.mxu0 0.0
      %756 = vmatpush1.msra.mxu0 %v461
      %757 = vmatprep.subr.mxu0 0.0
      %758 = vmatpush1.msra.mxu0 %v460
      %759 = vmatprep.subr.mxu0 0.0
      %760 = vmatpush1.msra.mxu0 %v459
      %761 = vmatprep.subr.mxu0 0.0
      %762 = vmatpush1.msra.mxu0 %v458
      %763 = vmatprep.subr.mxu0 0.0
      %764 = vmatpush1.msra.mxu0 %v457
      %765 = vmatprep.subr.mxu0 0.0
      %766 = vmatpush1.msra.mxu0 %v456
      %767 = vmatprep.subr.mxu0 0.0
      %768 = vmatpush1.msra.mxu0 %v455
      %769 = vmatprep.subr.mxu0 0.0
      %770 = vmatpush1.msra.mxu0 %v454
      %771 = vmatprep.subr.mxu0 0.0
      %772 = vmatpush1.msra.mxu0 %v453
      %773 = vmatprep.subr.mxu0 0.0
      %774 = vmatpush1.msra.mxu0 %v452
      %775 = vmatprep.subr.mxu0 0.0
      %776 = vmatpush1.msra.mxu0 %v451
      %777 = vmatprep.subr.mxu0 0.0
      %778 = vmatpush1.msra.mxu0 %v450
      %779 = vmatprep.subr.mxu0 0.0
      %780 = vmatpush2.msra.mxu0 %v481
      %781 = vmatprep.subr.mxu0 0.0
      %782 = vmatpush2.msra.mxu0 %v480
      %783 = vmatprep.subr.mxu0 0.0
      %784 = vmatpush2.msra.mxu0 %v479
      %785 = vmatprep.subr.mxu0 0.0
      %786 = vmatpush2.msra.mxu0 %v478
      %787 = vmatprep.subr.mxu0 0.0
      %788 = vmatpush2.msra.mxu0 %v477
      %789 = vmatprep.subr.mxu0 0.0
      %790 = vmatpush2.msra.mxu0 %v476
      %791 = vmatprep.subr.mxu0 0.0
      %792 = vmatpush2.msra.mxu0 %v475
      %793 = vmatprep.subr.mxu0 0.0
      %794 = vmatpush2.msra.mxu0 %v474
      %795 = vmatprep.subr.mxu0 0.0
      %796 = vmatpush2.msra.mxu0 %v473
      %797 = vmatprep.subr.mxu0 0.0
      %798 = vmatpush2.msra.mxu0 %v472
      %799 = vmatprep.subr.mxu0 0.0
      %800 = vmatpush2.msra.mxu0 %v471
      %801 = vmatprep.subr.mxu0 0.0
      %802 = vmatpush2.msra.mxu0 %v470
      %803 = vmatprep.subr.mxu0 0.0
      %804 = vmatpush2.msra.mxu0 %v469
      %805 = vmatprep.subr.mxu0 0.0
      %806 = vmatpush2.msra.mxu0 %v468
      %807 = vmatprep.subr.mxu0 0.0
      %808 = vmatpush2.msra.mxu0 %v467
      %809 = vmatprep.subr.mxu0 0.0
      %810 = vmatpush2.msra.mxu0 %v466
      %811 = vmatprep.mubr.f32.mxu0 %v339
      %812 = vmatmul.mubr.f32.gmra.mxu0 %v306
      %v813 = vpop.f32.mrf.mxu0
      %v814 = vadd.f32 %v709, %v813
      %v815 = vpop.f32.mrf.mxu0
      %816 = vmatprep.mubr.f32.mxu0 %v342
      %817 = vmatmul.mubr.f32.gmra.mxu0 %v309
      %v818 = vpop.f32.mrf.mxu0
      %v819 = vadd.f32 %v714, %v818
      %v820 = vpop.f32.mrf.mxu0
      %821 = vmatprep.mubr.f32.mxu0 %v345
      %822 = vmatmul.mubr.f32.gmra.mxu0 %v312
      %v823 = vpop.f32.mrf.mxu0
      %v824 = vadd.f32 %v719, %v823
      %v825 = vpop.f32.mrf.mxu0
      %826 = vmatprep.mubr.f32.mxu0 %v348
      %827 = vmatmul.mubr.f32.gmra.mxu0 %v315
      %v828 = vpop.f32.mrf.mxu0
      %v829 = vadd.f32 %v724, %v828
      %v830 = vpop.f32.mrf.mxu0
      %831 = vmatprep.mubr.f32.mxu0 %v351
      %832 = vmatmul.mubr.f32.gmra.mxu0 %v318
      %v833 = vpop.f32.mrf.mxu0
      %v834 = vadd.f32 %v729, %v833
      %v835 = vpop.f32.mrf.mxu0
      %836 = vmatprep.mubr.f32.mxu0 %v354
      %837 = vmatmul.mubr.f32.gmra.mxu0 %v321
      %v838 = vpop.f32.mrf.mxu0
      %v839 = vadd.f32 %v734, %v838
      %v840 = vpop.f32.mrf.mxu0
      %841 = vmatprep.mubr.f32.mxu0 %v357
      %842 = vmatmul.mubr.f32.gmra.mxu0 %v324
      %v843 = vpop.f32.mrf.mxu0
      %v844 = vadd.f32 %v739, %v843
      %v845 = vpop.f32.mrf.mxu0
      %846 = vmatprep.mubr.f32.mxu0 %v374
      %847 = vmatmul.mubr.f32.gmra.mxu0 %v370
      %v848 = vpop.f32.mrf.mxu0
      %v849 = vadd.f32 %v744, %v848
      %v850 = vpop.f32.mrf.mxu0
      %851 = vdwg.mxu0
      %852 = vmatprep.subr.mxu0 0.0
      %853 = vmatpush1.msra.mxu0 %v497
      %854 = vmatprep.subr.mxu0 0.0
      %855 = vmatpush1.msra.mxu0 %v496
      %856 = vmatprep.subr.mxu0 0.0
      %857 = vmatpush1.msra.mxu0 %v495
      %858 = vmatprep.subr.mxu0 0.0
      %859 = vmatpush1.msra.mxu0 %v494
      %860 = vmatprep.subr.mxu0 0.0
      %861 = vmatpush1.msra.mxu0 %v493
      %862 = vmatprep.subr.mxu0 0.0
      %863 = vmatpush1.msra.mxu0 %v492
      %864 = vmatprep.subr.mxu0 0.0
      %865 = vmatpush1.msra.mxu0 %v491
      %866 = vmatprep.subr.mxu0 0.0
      %867 = vmatpush1.msra.mxu0 %v490
      %868 = vmatprep.subr.mxu0 0.0
      %869 = vmatpush1.msra.mxu0 %v489
      %870 = vmatprep.subr.mxu0 0.0
      %871 = vmatpush1.msra.mxu0 %v488
      %872 = vmatprep.subr.mxu0 0.0
      %873 = vmatpush1.msra.mxu0 %v487
      %874 = vmatprep.subr.mxu0 0.0
      %875 = vmatpush1.msra.mxu0 %v486
      %876 = vmatprep.subr.mxu0 0.0
      %877 = vmatpush1.msra.mxu0 %v485
      %878 = vmatprep.subr.mxu0 0.0
      %879 = vmatpush1.msra.mxu0 %v484
      %880 = vmatprep.subr.mxu0 0.0
      %881 = vmatpush1.msra.mxu0 %v483
      %882 = vmatprep.subr.mxu0 0.0
      %883 = vmatpush1.msra.mxu0 %v482
      %884 = vmatprep.subr.mxu0 0.0
      %885 = vmatpush2.msra.mxu0 %v513
      %886 = vmatprep.subr.mxu0 0.0
      %887 = vmatpush2.msra.mxu0 %v512
      %888 = vmatprep.subr.mxu0 0.0
      %889 = vmatpush2.msra.mxu0 %v511
      %890 = vmatprep.subr.mxu0 0.0
      %891 = vmatpush2.msra.mxu0 %v510
      %892 = vmatprep.subr.mxu0 0.0
      %893 = vmatpush2.msra.mxu0 %v509
      %894 = vmatprep.subr.mxu0 0.0
      %895 = vmatpush2.msra.mxu0 %v508
      %896 = vmatprep.subr.mxu0 0.0
      %897 = vmatpush2.msra.mxu0 %v507
      %898 = vmatprep.subr.mxu0 0.0
      %899 = vmatpush2.msra.mxu0 %v506
      %900 = vmatprep.subr.mxu0 0.0
      %901 = vmatpush2.msra.mxu0 %v505
      %902 = vmatprep.subr.mxu0 0.0
      %903 = vmatpush2.msra.mxu0 %v504
      %904 = vmatprep.subr.mxu0 0.0
      %905 = vmatpush2.msra.mxu0 %v503
      %906 = vmatprep.subr.mxu0 0.0
      %907 = vmatpush2.msra.mxu0 %v502
      %908 = vmatprep.subr.mxu0 0.0
      %909 = vmatpush2.msra.mxu0 %v501
      %910 = vmatprep.subr.mxu0 0.0
      %911 = vmatpush2.msra.mxu0 %v500
      %912 = vmatprep.subr.mxu0 0.0
      %913 = vmatpush2.msra.mxu0 %v499
      %914 = vmatprep.subr.mxu0 0.0
      %915 = vmatpush2.msra.mxu0 %v498
      %916 = vmatprep.mubr.f32.mxu0 %v309
      %917 = vmatmul.mubr.f32.gmra.mxu0 %v268
      %v918 = vpop.f32.mrf.mxu0
      %v919 = vadd.f32 %v814, %v918
      %v920 = vpop.f32.mrf.mxu0
      %921 = vmatprep.mubr.f32.mxu0 %v312
      %922 = vmatmul.mubr.f32.gmra.mxu0 %v270
      %v923 = vpop.f32.mrf.mxu0
      %v924 = vadd.f32 %v819, %v923
      %v925 = vpop.f32.mrf.mxu0
      %926 = vmatprep.mubr.f32.mxu0 %v315
      %927 = vmatmul.mubr.f32.gmra.mxu0 %v272
      %v928 = vpop.f32.mrf.mxu0
      %v929 = vadd.f32 %v824, %v928
      %v930 = vpop.f32.mrf.mxu0
      %931 = vmatprep.mubr.f32.mxu0 %v318
      %932 = vmatmul.mubr.f32.gmra.mxu0 %v274
      %v933 = vpop.f32.mrf.mxu0
      %v934 = vadd.f32 %v829, %v933
      %v935 = vpop.f32.mrf.mxu0
      %936 = vmatprep.mubr.f32.mxu0 %v321
      %937 = vmatmul.mubr.f32.gmra.mxu0 %v276
      %v938 = vpop.f32.mrf.mxu0
      %v939 = vadd.f32 %v834, %v938
      %v940 = vpop.f32.mrf.mxu0
      %941 = vmatprep.mubr.f32.mxu0 %v324
      %942 = vmatmul.mubr.f32.gmra.mxu0 %v278
      %v943 = vpop.f32.mrf.mxu0
      %v944 = vadd.f32 %v839, %v943
      %v945 = vpop.f32.mrf.mxu0
      %946 = vmatprep.mubr.f32.mxu0 %v370
      %947 = vmatmul.mubr.f32.gmra.mxu0 %v280
      %v948 = vpop.f32.mrf.mxu0
      %v949 = vadd.f32 %v844, %v948
      %v950 = vpop.f32.mrf.mxu0
      %951 = vmatprep.mubr.f32.mxu0 %v380
      %952 = vmatmul.mubr.f32.gmra.mxu0 %v282
      %v953 = vpop.f32.mrf.mxu0
      %v954 = vadd.f32 %v849, %v953
      %v955 = vpop.f32.mrf.mxu0
      %956 = vdwg.mxu0
      %957 = vmatprep.subr.mxu0 0.0
      %958 = vmatpush1.msra.mxu0 %v529
      %959 = vmatprep.subr.mxu0 0.0
      %960 = vmatpush1.msra.mxu0 %v528
      %961 = vmatprep.subr.mxu0 0.0
      %962 = vmatpush1.msra.mxu0 %v527
      %963 = vmatprep.subr.mxu0 0.0
      %964 = vmatpush1.msra.mxu0 %v526
      %965 = vmatprep.subr.mxu0 0.0
      %966 = vmatpush1.msra.mxu0 %v525
      %967 = vmatprep.subr.mxu0 0.0
      %968 = vmatpush1.msra.mxu0 %v524
      %969 = vmatprep.subr.mxu0 0.0
      %970 = vmatpush1.msra.mxu0 %v523
      %971 = vmatprep.subr.mxu0 0.0
      %972 = vmatpush1.msra.mxu0 %v522
      %973 = vmatprep.subr.mxu0 0.0
      %974 = vmatpush1.msra.mxu0 %v521
      %975 = vmatprep.subr.mxu0 0.0
      %976 = vmatpush1.msra.mxu0 %v520
      %977 = vmatprep.subr.mxu0 0.0
      %978 = vmatpush1.msra.mxu0 %v519
      %979 = vmatprep.subr.mxu0 0.0
      %980 = vmatpush1.msra.mxu0 %v518
      %981 = vmatprep.subr.mxu0 0.0
      %982 = vmatpush1.msra.mxu0 %v517
      %983 = vmatprep.subr.mxu0 0.0
      %984 = vmatpush1.msra.mxu0 %v516
      %985 = vmatprep.subr.mxu0 0.0
      %986 = vmatpush1.msra.mxu0 %v515
      %987 = vmatprep.subr.mxu0 0.0
      %988 = vmatpush1.msra.mxu0 %v514
      %989 = vmatprep.subr.mxu0 0.0
      %990 = vmatpush2.msra.mxu0 0.0
      %991 = vmatprep.subr.mxu0 0.0
      %992 = vmatpush2.msra.mxu0 0.0
      %993 = vmatprep.subr.mxu0 0.0
      %994 = vmatpush2.msra.mxu0 0.0
      %995 = vmatprep.subr.mxu0 0.0
      %996 = vmatpush2.msra.mxu0 0.0
      %997 = vmatprep.subr.mxu0 0.0
      %998 = vmatpush2.msra.mxu0 0.0
      %999 = vmatprep.subr.mxu0 0.0
      %1000 = vmatpush2.msra.mxu0 0.0
      %1001 = vmatprep.subr.mxu0 0.0
      %1002 = vmatpush2.msra.mxu0 0.0
      %1003 = vmatprep.subr.mxu0 0.0
      %1004 = vmatpush2.msra.mxu0 0.0
      %1005 = vmatprep.subr.mxu0 0.0
      %1006 = vmatpush2.msra.mxu0 0.0
      %1007 = vmatprep.subr.mxu0 0.0
      %1008 = vmatpush2.msra.mxu0 0.0
      %1009 = vmatprep.subr.mxu0 0.0
      %1010 = vmatpush2.msra.mxu0 0.0
      %1011 = vmatprep.subr.mxu0 0.0
      %1012 = vmatpush2.msra.mxu0 0.0
      %1013 = vmatprep.subr.mxu0 0.0
      %1014 = vmatpush2.msra.mxu0 0.0
      %1015 = vmatprep.subr.mxu0 0.0
      %1016 = vmatpush2.msra.mxu0 0.0
      %1017 = vmatprep.subr.mxu0 0.0
      %1018 = vmatpush2.msra.mxu0 0.0
      %1019 = vmatprep.subr.mxu0 0.0
      %1020 = vmatpush2.msra.mxu0 0.0
      %1021 = vmatprep.mubr.f32.mxu0 0.0
      %1022 = vmatmul.mubr.f32.gmra.mxu0 %v342
      %v1023 = vpop.f32.mrf.mxu0
      %v1024 = vadd.f32 %v919, %v1023
      %v1025 = vpop.f32.mrf.mxu0
      %1026 = vmatprep.mubr.f32.mxu0 0.0
      %1027 = vmatmul.mubr.f32.gmra.mxu0 %v345
      %v1028 = vpop.f32.mrf.mxu0
      %v1029 = vadd.f32 %v924, %v1028
      %v1030 = vpop.f32.mrf.mxu0
      %1031 = vmatprep.mubr.f32.mxu0 0.0
      %1032 = vmatmul.mubr.f32.gmra.mxu0 %v348
      %v1033 = vpop.f32.mrf.mxu0
      %v1034 = vadd.f32 %v929, %v1033
      %v1035 = vpop.f32.mrf.mxu0
      %1036 = vmatprep.mubr.f32.mxu0 0.0
      %1037 = vmatmul.mubr.f32.gmra.mxu0 %v351
      %v1038 = vpop.f32.mrf.mxu0
      %v1039 = vadd.f32 %v934, %v1038
      %v1040 = vpop.f32.mrf.mxu0
      %1041 = vmatprep.mubr.f32.mxu0 0.0
      %1042 = vmatmul.mubr.f32.gmra.mxu0 %v354
      %v1043 = vpop.f32.mrf.mxu0
      %v1044 = vadd.f32 %v939, %v1043
      %v1045 = vpop.f32.mrf.mxu0
      %1046 = vmatprep.mubr.f32.mxu0 0.0
      %1047 = vmatmul.mubr.f32.gmra.mxu0 %v357
      %v1048 = vpop.f32.mrf.mxu0
      %v1049 = vadd.f32 %v944, %v1048
      %v1050 = vpop.f32.mrf.mxu0
      %1051 = vmatprep.mubr.f32.mxu0 0.0
      %1052 = vmatmul.mubr.f32.gmra.mxu0 %v374
      %v1053 = vpop.f32.mrf.mxu0
      %v1054 = vadd.f32 %v949, %v1053
      %v1055 = vpop.f32.mrf.mxu0
      %1056 = vmatprep.mubr.f32.mxu0 0.0
      %1057 = vmatmul.mubr.f32.gmra.mxu0 %v384
      %v1058 = vpop.f32.mrf.mxu0
      %v1059 = vadd.f32 %v954, %v1058
      %v1060 = vpop.f32.mrf.mxu0
      %1061 = vdwg.mxu0
      %v1062 = vmax.f32 %v1024, 0.0
      %v1063 = vmax.f32 %v1029, 0.0
      %v1064 = vmax.f32 %v1034, 0.0
      %v1065 = vmax.f32 %v1039, 0.0
      %v1066 = vmax.f32 %v1044, 0.0
      %v1067 = vmax.f32 %v1049, 0.0
      %v1068 = vmax.f32 %v1054, 0.0
      %v1069 = vmax.f32 %v1059, 0.0
      %1070 = vst [vmem:[#allocation2] sm:$0xff] 0.0
      %1071 = vst [vmem:[#allocation2 + $0x8] sm:$0x3] 0.0
      %1072 = vst [vmem:[#allocation2 + $0x10] sm:$0xff] 0.0
      %1073 = vst [vmem:[#allocation2 + $0x18] sm:$0x3] 0.0
      %1074 = vst [vmem:[#allocation2 + $0x20] sm:$0xff] 0.0
      %1075 = vst [vmem:[#allocation2 + $0x28] sm:$0x3] 0.0
      %1076 = vst [vmem:[#allocation2 + $0x30] sm:$0xff] 0.0
      %1077 = vst [vmem:[#allocation2 + $0x38] sm:$0x3] 0.0
      %1078 = vst [vmem:[#allocation2 + $0x40] sm:$0xff] 0.0
      %1079 = vst [vmem:[#allocation2 + $0x48] sm:$0x3] 0.0
      %1080 = vst [vmem:[#allocation2 + $0x50] sm:$0xff] 0.0
      %1081 = vst [vmem:[#allocation2 + $0x58] sm:$0x3] 0.0
      %1082 = vst [vmem:[#allocation2 + $0x60] sm:$0xff] 0.0
      %1083 = vst [vmem:[#allocation2 + $0x68] sm:$0x3] 0.0
      %1084 = vst [vmem:[#allocation2 + $0x70] sm:$0xff] 0.0
      %1085 = vst [vmem:[#allocation2 + $0x78] sm:$0x3] 0.0
      %1086 = vst [vmem:[#allocation2 + $0x80] sm:$0xff] 0.0
      %1087 = vst [vmem:[#allocation2 + $0x88] sm:$0x3] 0.0
      %1088 = vst [vmem:[#allocation2 + $0x90] sm:$0xff] 0.0
      %1089 = vst [vmem:[#allocation2 + $0x98] sm:$0x3] 0.0
      %vm1090 = vcmask 523264
      %1091 = vst.msk [vmem:[%s255 + $0x1] sm:$0xff] %vm1090, %v1062
      %1092 = vst.msk [vmem:[%s255 + $0x11] sm:$0xff] %vm1090, %v1063
      %1093 = vst.msk [vmem:[%s255 + $0x21] sm:$0xff] %vm1090, %v1064
      %1094 = vst.msk [vmem:[%s255 + $0x31] sm:$0xff] %vm1090, %v1065
      %1095 = vst.msk [vmem:[%s255 + $0x41] sm:$0xff] %vm1090, %v1066
      %1096 = vst.msk [vmem:[%s255 + $0x51] sm:$0xff] %vm1090, %v1067
      %1097 = vst.msk [vmem:[%s255 + $0x61] sm:$0xff] %vm1090, %v1068
      %1098 = vst.msk [vmem:[%s255 + $0x71] sm:$0xff] %vm1090, %v1069
      %v1099 = vld [vmem:[#allocation2] sm:$0xff]
      %v1100 = vld [vmem:[#allocation2 + $0x8] sm:$0x3]
      %v1101 = vld [vmem:[#allocation2 + $0x10] sm:$0xff]
      %v1102 = vld [vmem:[#allocation2 + $0x18] sm:$0x3]
      %v1103 = vld [vmem:[#allocation2 + $0x20] sm:$0xff]
      %v1104 = vld [vmem:[#allocation2 + $0x28] sm:$0x3]
      %v1105 = vld [vmem:[#allocation2 + $0x30] sm:$0xff]
      %v1106 = vld [vmem:[#allocation2 + $0x38] sm:$0x3]
      %v1107 = vld [vmem:[#allocation2 + $0x40] sm:$0xff]
      %v1108 = vld [vmem:[#allocation2 + $0x48] sm:$0x3]
      %v1109 = vld [vmem:[#allocation2 + $0x50] sm:$0xff]
      %v1110 = vld [vmem:[#allocation2 + $0x58] sm:$0x3]
      %v1111 = vld [vmem:[#allocation2 + $0x60] sm:$0xff]
      %v1112 = vld [vmem:[#allocation2 + $0x68] sm:$0x3]
      %v1113 = vld [vmem:[#allocation2 + $0x70] sm:$0xff]
      %v1114 = vld [vmem:[#allocation2 + $0x78] sm:$0x3]
      %v1115 = vld [vmem:[#allocation2 + $0x80] sm:$0xff]
      %v1116 = vld [vmem:[#allocation2 + $0x88] sm:$0x3]
      %v1117 = vld [vmem:[#allocation2 + $0x90] sm:$0xff]
      %v1118 = vld [vmem:[#allocation2 + $0x98] sm:$0x3]
      %v1135 = vrot.slane %v1099, 1
      %v1136 = vrot.slane %v1100, 1
      %v1137 = vsel %vm300, %v1135, %v1136
      %v1138 = vrot.slane %v1101, 1
      %v1139 = vrot.slane %v1102, 1
      %v1140 = vsel %vm300, %v1138, %v1139
      %v1141 = vrot.slane %v1103, 1
      %v1142 = vrot.slane %v1104, 1
      %v1143 = vsel %vm300, %v1141, %v1142
      %v1144 = vrot.slane %v1105, 1
      %v1145 = vrot.slane %v1106, 1
      %v1146 = vsel %vm300, %v1144, %v1145
      %v1147 = vrot.slane %v1107, 1
      %v1148 = vrot.slane %v1108, 1
      %v1149 = vsel %vm300, %v1147, %v1148
      %v1150 = vrot.slane %v1109, 1
      %v1151 = vrot.slane %v1110, 1
      %v1152 = vsel %vm300, %v1150, %v1151
      %v1153 = vrot.slane %v1111, 1
      %v1154 = vrot.slane %v1112, 1
      %v1155 = vsel %vm300, %v1153, %v1154
      %v1156 = vrot.slane %v1113, 1
      %v1157 = vrot.slane %v1114, 1
      %v1158 = vsel %vm300, %v1156, %v1157
      %v1167 = vrot.slane %v1099, 2
      %v1168 = vrot.slane %v1100, 2
      %v1169 = vsel %vm333, %v1167, %v1168
      %v1170 = vrot.slane %v1101, 2
      %v1171 = vrot.slane %v1102, 2
      %v1172 = vsel %vm333, %v1170, %v1171
      %v1173 = vrot.slane %v1103, 2
      %v1174 = vrot.slane %v1104, 2
      %v1175 = vsel %vm333, %v1173, %v1174
      %v1176 = vrot.slane %v1105, 2
      %v1177 = vrot.slane %v1106, 2
      %v1178 = vsel %vm333, %v1176, %v1177
      %v1179 = vrot.slane %v1107, 2
      %v1180 = vrot.slane %v1108, 2
      %v1181 = vsel %vm333, %v1179, %v1180
      %v1182 = vrot.slane %v1109, 2
      %v1183 = vrot.slane %v1110, 2
      %v1184 = vsel %vm333, %v1182, %v1183
      %v1185 = vrot.slane %v1111, 2
      %v1186 = vrot.slane %v1112, 2
      %v1187 = vsel %vm333, %v1185, %v1186
      %v1188 = vrot.slane %v1113, 2
      %v1189 = vrot.slane %v1114, 2
      %v1190 = vsel %vm333, %v1188, %v1189
      %v1201 = vrot.slane %v1115, 1
      %v1202 = vrot.slane %v1116, 1
      %v1203 = vsel %vm300, %v1201, %v1202
      %v1205 = vrot.slane %v1115, 2
      %v1206 = vrot.slane %v1116, 2
      %v1207 = vsel %vm333, %v1205, %v1206
      %v1211 = vrot.slane %v1117, 1
      %v1212 = vrot.slane %v1118, 1
      %v1213 = vsel %vm300, %v1211, %v1212
      %v1215 = vrot.slane %v1117, 2
      %v1216 = vrot.slane %v1118, 2
      %v1217 = vsel %vm333, %v1215, %v1216
      %s1219 = scalar_lea.vmem %s1, 1152
      %v1220 = vld [vmem:[%s1219] sm:$0xff]
      %v1221 = vld [vmem:[%s1219 + $0x8] sm:$0xff]
      %v1222 = vld [vmem:[%s1219 + $0x10] sm:$0xff]
      %v1223 = vld [vmem:[%s1219 + $0x18] sm:$0xff]
      %v1224 = vld [vmem:[%s1219 + $0x20] sm:$0xff]
      %v1225 = vld [vmem:[%s1219 + $0x28] sm:$0xff]
      %v1226 = vld [vmem:[%s1219 + $0x30] sm:$0xff]
      %v1227 = vld [vmem:[%s1219 + $0x38] sm:$0xff]
      %v1228 = vld [vmem:[%s1219 + $0x40] sm:$0xff]
      %v1229 = vld [vmem:[%s1219 + $0x48] sm:$0xff]
      %v1230 = vld [vmem:[%s1219 + $0x50] sm:$0xff]
      %v1231 = vld [vmem:[%s1219 + $0x58] sm:$0xff]
      %v1232 = vld [vmem:[%s1219 + $0x60] sm:$0xff]
      %v1233 = vld [vmem:[%s1219 + $0x68] sm:$0xff]
      %v1234 = vld [vmem:[%s1219 + $0x70] sm:$0xff]
      %v1235 = vld [vmem:[%s1219 + $0x78] sm:$0xff]
      %v1236 = vld [vmem:[%s1219 + $0x80] sm:$0xff]
      %v1237 = vld [vmem:[%s1219 + $0x88] sm:$0xff]
      %v1238 = vld [vmem:[%s1219 + $0x90] sm:$0xff]
      %v1239 = vld [vmem:[%s1219 + $0x98] sm:$0xff]
      %v1240 = vld [vmem:[%s1219 + $0xa0] sm:$0xff]
      %v1241 = vld [vmem:[%s1219 + $0xa8] sm:$0xff]
      %v1242 = vld [vmem:[%s1219 + $0xb0] sm:$0xff]
      %v1243 = vld [vmem:[%s1219 + $0xb8] sm:$0xff]
      %v1244 = vld [vmem:[%s1219 + $0xc0] sm:$0xff]
      %v1245 = vld [vmem:[%s1219 + $0xc8] sm:$0xff]
      %v1246 = vld [vmem:[%s1219 + $0xd0] sm:$0xff]
      %v1247 = vld [vmem:[%s1219 + $0xd8] sm:$0xff]
      %v1248 = vld [vmem:[%s1219 + $0xe0] sm:$0xff]
      %v1249 = vld [vmem:[%s1219 + $0xe8] sm:$0xff]
      %v1250 = vld [vmem:[%s1219 + $0xf0] sm:$0xff]
      %v1251 = vld [vmem:[%s1219 + $0xf8] sm:$0xff]
      %v1252 = vld [vmem:[%s1219 + $0x100] sm:$0xff]
      %v1253 = vld [vmem:[%s1219 + $0x108] sm:$0xff]
      %v1254 = vld [vmem:[%s1219 + $0x110] sm:$0xff]
      %v1255 = vld [vmem:[%s1219 + $0x118] sm:$0xff]
      %v1256 = vld [vmem:[%s1219 + $0x120] sm:$0xff]
      %v1257 = vld [vmem:[%s1219 + $0x128] sm:$0xff]
      %v1258 = vld [vmem:[%s1219 + $0x130] sm:$0xff]
      %v1259 = vld [vmem:[%s1219 + $0x138] sm:$0xff]
      %v1260 = vld [vmem:[%s1219 + $0x140] sm:$0xff]
      %v1261 = vld [vmem:[%s1219 + $0x148] sm:$0xff]
      %v1262 = vld [vmem:[%s1219 + $0x150] sm:$0xff]
      %v1263 = vld [vmem:[%s1219 + $0x158] sm:$0xff]
      %v1264 = vld [vmem:[%s1219 + $0x160] sm:$0xff]
      %v1265 = vld [vmem:[%s1219 + $0x168] sm:$0xff]
      %v1266 = vld [vmem:[%s1219 + $0x170] sm:$0xff]
      %v1267 = vld [vmem:[%s1219 + $0x178] sm:$0xff]
      %v1268 = vld [vmem:[%s1219 + $0x180] sm:$0xff]
      %v1269 = vld [vmem:[%s1219 + $0x188] sm:$0xff]
      %v1270 = vld [vmem:[%s1219 + $0x190] sm:$0xff]
      %v1271 = vld [vmem:[%s1219 + $0x198] sm:$0xff]
      %v1272 = vld [vmem:[%s1219 + $0x1a0] sm:$0xff]
      %v1273 = vld [vmem:[%s1219 + $0x1a8] sm:$0xff]
      %v1274 = vld [vmem:[%s1219 + $0x1b0] sm:$0xff]
      %v1275 = vld [vmem:[%s1219 + $0x1b8] sm:$0xff]
      %v1276 = vld [vmem:[%s1219 + $0x1c0] sm:$0xff]
      %v1277 = vld [vmem:[%s1219 + $0x1c8] sm:$0xff]
      %v1278 = vld [vmem:[%s1219 + $0x1d0] sm:$0xff]
      %v1279 = vld [vmem:[%s1219 + $0x1d8] sm:$0xff]
      %v1280 = vld [vmem:[%s1219 + $0x1e0] sm:$0xff]
      %v1281 = vld [vmem:[%s1219 + $0x1e8] sm:$0xff]
      %v1282 = vld [vmem:[%s1219 + $0x1f0] sm:$0xff]
      %v1283 = vld [vmem:[%s1219 + $0x1f8] sm:$0xff]
      %v1284 = vld [vmem:[%s1219 + $0x200] sm:$0xff]
      %v1285 = vld [vmem:[%s1219 + $0x208] sm:$0xff]
      %v1286 = vld [vmem:[%s1219 + $0x210] sm:$0xff]
      %v1287 = vld [vmem:[%s1219 + $0x218] sm:$0xff]
      %v1288 = vld [vmem:[%s1219 + $0x220] sm:$0xff]
      %v1289 = vld [vmem:[%s1219 + $0x228] sm:$0xff]
      %v1290 = vld [vmem:[%s1219 + $0x230] sm:$0xff]
      %v1291 = vld [vmem:[%s1219 + $0x238] sm:$0xff]
      %v1292 = vld [vmem:[%s1219 + $0x240] sm:$0xff]
      %v1293 = vld [vmem:[%s1219 + $0x248] sm:$0xff]
      %v1294 = vld [vmem:[%s1219 + $0x250] sm:$0xff]
      %v1295 = vld [vmem:[%s1219 + $0x258] sm:$0xff]
      %v1296 = vld [vmem:[%s1219 + $0x260] sm:$0xff]
      %v1297 = vld [vmem:[%s1219 + $0x268] sm:$0xff]
      %v1298 = vld [vmem:[%s1219 + $0x270] sm:$0xff]
      %v1299 = vld [vmem:[%s1219 + $0x278] sm:$0xff]
      %v1300 = vld [vmem:[%s1219 + $0x280] sm:$0xff]
      %v1301 = vld [vmem:[%s1219 + $0x288] sm:$0xff]
      %v1302 = vld [vmem:[%s1219 + $0x290] sm:$0xff]
      %v1303 = vld [vmem:[%s1219 + $0x298] sm:$0xff]
      %v1304 = vld [vmem:[%s1219 + $0x2a0] sm:$0xff]
      %v1305 = vld [vmem:[%s1219 + $0x2a8] sm:$0xff]
      %v1306 = vld [vmem:[%s1219 + $0x2b0] sm:$0xff]
      %v1307 = vld [vmem:[%s1219 + $0x2b8] sm:$0xff]
      %v1308 = vld [vmem:[%s1219 + $0x2c0] sm:$0xff]
      %v1309 = vld [vmem:[%s1219 + $0x2c8] sm:$0xff]
      %v1310 = vld [vmem:[%s1219 + $0x2d0] sm:$0xff]
      %v1311 = vld [vmem:[%s1219 + $0x2d8] sm:$0xff]
      %v1312 = vld [vmem:[%s1219 + $0x2e0] sm:$0xff]
      %v1313 = vld [vmem:[%s1219 + $0x2e8] sm:$0xff]
      %v1314 = vld [vmem:[%s1219 + $0x2f0] sm:$0xff]
      %v1315 = vld [vmem:[%s1219 + $0x2f8] sm:$0xff]
      %v1316 = vld [vmem:[%s1219 + $0x300] sm:$0xff]
      %v1317 = vld [vmem:[%s1219 + $0x308] sm:$0xff]
      %v1318 = vld [vmem:[%s1219 + $0x310] sm:$0xff]
      %v1319 = vld [vmem:[%s1219 + $0x318] sm:$0xff]
      %v1320 = vld [vmem:[%s1219 + $0x320] sm:$0xff]
      %v1321 = vld [vmem:[%s1219 + $0x328] sm:$0xff]
      %v1322 = vld [vmem:[%s1219 + $0x330] sm:$0xff]
      %v1323 = vld [vmem:[%s1219 + $0x338] sm:$0xff]
      %v1324 = vld [vmem:[%s1219 + $0x340] sm:$0xff]
      %v1325 = vld [vmem:[%s1219 + $0x348] sm:$0xff]
      %v1326 = vld [vmem:[%s1219 + $0x350] sm:$0xff]
      %v1327 = vld [vmem:[%s1219 + $0x358] sm:$0xff]
      %v1328 = vld [vmem:[%s1219 + $0x360] sm:$0xff]
      %v1329 = vld [vmem:[%s1219 + $0x368] sm:$0xff]
      %v1330 = vld [vmem:[%s1219 + $0x370] sm:$0xff]
      %v1331 = vld [vmem:[%s1219 + $0x378] sm:$0xff]
      %v1332 = vld [vmem:[%s1219 + $0x380] sm:$0xff]
      %v1333 = vld [vmem:[%s1219 + $0x388] sm:$0xff]
      %v1334 = vld [vmem:[%s1219 + $0x390] sm:$0xff]
      %v1335 = vld [vmem:[%s1219 + $0x398] sm:$0xff]
      %v1336 = vld [vmem:[%s1219 + $0x3a0] sm:$0xff]
      %v1337 = vld [vmem:[%s1219 + $0x3a8] sm:$0xff]
      %v1338 = vld [vmem:[%s1219 + $0x3b0] sm:$0xff]
      %v1339 = vld [vmem:[%s1219 + $0x3b8] sm:$0xff]
      %v1340 = vld [vmem:[%s1219 + $0x3c0] sm:$0xff]
      %v1341 = vld [vmem:[%s1219 + $0x3c8] sm:$0xff]
      %v1342 = vld [vmem:[%s1219 + $0x3d0] sm:$0xff]
      %v1343 = vld [vmem:[%s1219 + $0x3d8] sm:$0xff]
      %v1344 = vld [vmem:[%s1219 + $0x3e0] sm:$0xff]
      %v1345 = vld [vmem:[%s1219 + $0x3e8] sm:$0xff]
      %v1346 = vld [vmem:[%s1219 + $0x3f0] sm:$0xff]
      %v1347 = vld [vmem:[%s1219 + $0x3f8] sm:$0xff]
      %v1348 = vld [vmem:[%s1219 + $0x400] sm:$0xff]
      %v1349 = vld [vmem:[%s1219 + $0x408] sm:$0xff]
      %v1350 = vld [vmem:[%s1219 + $0x410] sm:$0xff]
      %v1351 = vld [vmem:[%s1219 + $0x418] sm:$0xff]
      %v1352 = vld [vmem:[%s1219 + $0x420] sm:$0xff]
      %v1353 = vld [vmem:[%s1219 + $0x428] sm:$0xff]
      %v1354 = vld [vmem:[%s1219 + $0x430] sm:$0xff]
      %v1355 = vld [vmem:[%s1219 + $0x438] sm:$0xff]
      %v1356 = vld [vmem:[%s1219 + $0x440] sm:$0xff]
      %v1357 = vld [vmem:[%s1219 + $0x448] sm:$0xff]
      %v1358 = vld [vmem:[%s1219 + $0x450] sm:$0xff]
      %v1359 = vld [vmem:[%s1219 + $0x458] sm:$0xff]
      %v1360 = vld [vmem:[%s1219 + $0x460] sm:$0xff]
      %v1361 = vld [vmem:[%s1219 + $0x468] sm:$0xff]
      %v1362 = vld [vmem:[%s1219 + $0x470] sm:$0xff]
      %v1363 = vld [vmem:[%s1219 + $0x478] sm:$0xff]
      %s1364 = scalar_lea.vmem %s2, 1
      %v1365 = vld [vmem:[%s1364] sm:$0x1]
      %v1367 = vlaneseq
      %v1368 = vshrl.u32 %v1367, 7
      %v1369 = vsub.s32 0, %v1368
      %v1370 = vrot.slane %v1365, %v1369
      %1372 = vmatprep.subr.mxu0 0.0
      %1373 = vmatpush1.msra.mxu0 %v1235
      %1374 = vmatprep.subr.mxu0 0.0
      %1375 = vmatpush1.msra.mxu0 %v1234
      %1376 = vmatprep.subr.mxu0 0.0
      %1377 = vmatpush1.msra.mxu0 %v1233
      %1378 = vmatprep.subr.mxu0 0.0
      %1379 = vmatpush1.msra.mxu0 %v1232
      %1380 = vmatprep.subr.mxu0 0.0
      %1381 = vmatpush1.msra.mxu0 %v1231
      %1382 = vmatprep.subr.mxu0 0.0
      %1383 = vmatpush1.msra.mxu0 %v1230
      %1384 = vmatprep.subr.mxu0 0.0
      %1385 = vmatpush1.msra.mxu0 %v1229
      %1386 = vmatprep.subr.mxu0 0.0
      %1387 = vmatpush1.msra.mxu0 %v1228
      %1388 = vmatprep.subr.mxu0 0.0
      %1389 = vmatpush1.msra.mxu0 %v1227
      %1390 = vmatprep.subr.mxu0 0.0
      %1391 = vmatpush1.msra.mxu0 %v1226
      %1392 = vmatprep.subr.mxu0 0.0
      %1393 = vmatpush1.msra.mxu0 %v1225
      %1394 = vmatprep.subr.mxu0 0.0
      %1395 = vmatpush1.msra.mxu0 %v1224
      %1396 = vmatprep.subr.mxu0 0.0
      %1397 = vmatpush1.msra.mxu0 %v1223
      %1398 = vmatprep.subr.mxu0 0.0
      %1399 = vmatpush1.msra.mxu0 %v1222
      %1400 = vmatprep.subr.mxu0 0.0
      %1401 = vmatpush1.msra.mxu0 %v1221
      %1402 = vmatprep.subr.mxu0 0.0
      %1403 = vmatpush1.msra.mxu0 %v1220
      %1404 = vmatprep.subr.mxu0 0.0
      %1405 = vmatpush2.msra.mxu0 %v1251
      %1406 = vmatprep.subr.mxu0 0.0
      %1407 = vmatpush2.msra.mxu0 %v1250
      %1408 = vmatprep.subr.mxu0 0.0
      %1409 = vmatpush2.msra.mxu0 %v1249
      %1410 = vmatprep.subr.mxu0 0.0
      %1411 = vmatpush2.msra.mxu0 %v1248
      %1412 = vmatprep.subr.mxu0 0.0
      %1413 = vmatpush2.msra.mxu0 %v1247
      %1414 = vmatprep.subr.mxu0 0.0
      %1415 = vmatpush2.msra.mxu0 %v1246
      %1416 = vmatprep.subr.mxu0 0.0
      %1417 = vmatpush2.msra.mxu0 %v1245
      %1418 = vmatprep.subr.mxu0 0.0
      %1419 = vmatpush2.msra.mxu0 %v1244
      %1420 = vmatprep.subr.mxu0 0.0
      %1421 = vmatpush2.msra.mxu0 %v1243
      %1422 = vmatprep.subr.mxu0 0.0
      %1423 = vmatpush2.msra.mxu0 %v1242
      %1424 = vmatprep.subr.mxu0 0.0
      %1425 = vmatpush2.msra.mxu0 %v1241
      %1426 = vmatprep.subr.mxu0 0.0
      %1427 = vmatpush2.msra.mxu0 %v1240
      %1428 = vmatprep.subr.mxu0 0.0
      %1429 = vmatpush2.msra.mxu0 %v1239
      %1430 = vmatprep.subr.mxu0 0.0
      %1431 = vmatpush2.msra.mxu0 %v1238
      %1432 = vmatprep.subr.mxu0 0.0
      %1433 = vmatpush2.msra.mxu0 %v1237
      %1434 = vmatprep.subr.mxu0 0.0
      %1435 = vmatpush2.msra.mxu0 %v1236
      %1436 = vmatprep.mubr.f32.mxu0 %v1137
      %1437 = vmatmul.mubr.f32.gmra.mxu0 %v1099
      %v1438 = vpop.f32.mrf.mxu0
      %v1439 = vadd.f32 %v1370, %v1438
      %v1440 = vpop.f32.mrf.mxu0
      %1441 = vmatprep.mubr.f32.mxu0 %v1140
      %1442 = vmatmul.mubr.f32.gmra.mxu0 %v1101
      %v1443 = vpop.f32.mrf.mxu0
      %v1444 = vadd.f32 %v1370, %v1443
      %v1445 = vpop.f32.mrf.mxu0
      %1446 = vmatprep.mubr.f32.mxu0 %v1143
      %1447 = vmatmul.mubr.f32.gmra.mxu0 %v1103
      %v1448 = vpop.f32.mrf.mxu0
      %v1449 = vadd.f32 %v1370, %v1448
      %v1450 = vpop.f32.mrf.mxu0
      %1451 = vmatprep.mubr.f32.mxu0 %v1146
      %1452 = vmatmul.mubr.f32.gmra.mxu0 %v1105
      %v1453 = vpop.f32.mrf.mxu0
      %v1454 = vadd.f32 %v1370, %v1453
      %v1455 = vpop.f32.mrf.mxu0
      %1456 = vmatprep.mubr.f32.mxu0 %v1149
      %1457 = vmatmul.mubr.f32.gmra.mxu0 %v1107
      %v1458 = vpop.f32.mrf.mxu0
      %v1459 = vadd.f32 %v1370, %v1458
      %v1460 = vpop.f32.mrf.mxu0
      %1461 = vmatprep.mubr.f32.mxu0 %v1152
      %1462 = vmatmul.mubr.f32.gmra.mxu0 %v1109
      %v1463 = vpop.f32.mrf.mxu0
      %v1464 = vadd.f32 %v1370, %v1463
      %v1465 = vpop.f32.mrf.mxu0
      %1466 = vmatprep.mubr.f32.mxu0 %v1155
      %1467 = vmatmul.mubr.f32.gmra.mxu0 %v1111
      %v1468 = vpop.f32.mrf.mxu0
      %v1469 = vadd.f32 %v1370, %v1468
      %v1470 = vpop.f32.mrf.mxu0
      %1471 = vmatprep.mubr.f32.mxu0 %v1158
      %1472 = vmatmul.mubr.f32.gmra.mxu0 %v1113
      %v1473 = vpop.f32.mrf.mxu0
      %v1474 = vadd.f32 %v1370, %v1473
      %v1475 = vpop.f32.mrf.mxu0
      %1476 = vdwg.mxu0
      %1477 = vmatprep.subr.mxu0 0.0
      %1478 = vmatpush1.msra.mxu0 %v1267
      %1479 = vmatprep.subr.mxu0 0.0
      %1480 = vmatpush1.msra.mxu0 %v1266
      %1481 = vmatprep.subr.mxu0 0.0
      %1482 = vmatpush1.msra.mxu0 %v1265
      %1483 = vmatprep.subr.mxu0 0.0
      %1484 = vmatpush1.msra.mxu0 %v1264
      %1485 = vmatprep.subr.mxu0 0.0
      %1486 = vmatpush1.msra.mxu0 %v1263
      %1487 = vmatprep.subr.mxu0 0.0
      %1488 = vmatpush1.msra.mxu0 %v1262
      %1489 = vmatprep.subr.mxu0 0.0
      %1490 = vmatpush1.msra.mxu0 %v1261
      %1491 = vmatprep.subr.mxu0 0.0
      %1492 = vmatpush1.msra.mxu0 %v1260
      %1493 = vmatprep.subr.mxu0 0.0
      %1494 = vmatpush1.msra.mxu0 %v1259
      %1495 = vmatprep.subr.mxu0 0.0
      %1496 = vmatpush1.msra.mxu0 %v1258
      %1497 = vmatprep.subr.mxu0 0.0
      %1498 = vmatpush1.msra.mxu0 %v1257
      %1499 = vmatprep.subr.mxu0 0.0
      %1500 = vmatpush1.msra.mxu0 %v1256
      %1501 = vmatprep.subr.mxu0 0.0
      %1502 = vmatpush1.msra.mxu0 %v1255
      %1503 = vmatprep.subr.mxu0 0.0
      %1504 = vmatpush1.msra.mxu0 %v1254
      %1505 = vmatprep.subr.mxu0 0.0
      %1506 = vmatpush1.msra.mxu0 %v1253
      %1507 = vmatprep.subr.mxu0 0.0
      %1508 = vmatpush1.msra.mxu0 %v1252
      %1509 = vmatprep.subr.mxu0 0.0
      %1510 = vmatpush2.msra.mxu0 %v1283
      %1511 = vmatprep.subr.mxu0 0.0
      %1512 = vmatpush2.msra.mxu0 %v1282
      %1513 = vmatprep.subr.mxu0 0.0
      %1514 = vmatpush2.msra.mxu0 %v1281
      %1515 = vmatprep.subr.mxu0 0.0
      %1516 = vmatpush2.msra.mxu0 %v1280
      %1517 = vmatprep.subr.mxu0 0.0
      %1518 = vmatpush2.msra.mxu0 %v1279
      %1519 = vmatprep.subr.mxu0 0.0
      %1520 = vmatpush2.msra.mxu0 %v1278
      %1521 = vmatprep.subr.mxu0 0.0
      %1522 = vmatpush2.msra.mxu0 %v1277
      %1523 = vmatprep.subr.mxu0 0.0
      %1524 = vmatpush2.msra.mxu0 %v1276
      %1525 = vmatprep.subr.mxu0 0.0
      %1526 = vmatpush2.msra.mxu0 %v1275
      %1527 = vmatprep.subr.mxu0 0.0
      %1528 = vmatpush2.msra.mxu0 %v1274
      %1529 = vmatprep.subr.mxu0 0.0
      %1530 = vmatpush2.msra.mxu0 %v1273
      %1531 = vmatprep.subr.mxu0 0.0
      %1532 = vmatpush2.msra.mxu0 %v1272
      %1533 = vmatprep.subr.mxu0 0.0
      %1534 = vmatpush2.msra.mxu0 %v1271
      %1535 = vmatprep.subr.mxu0 0.0
      %1536 = vmatpush2.msra.mxu0 %v1270
      %1537 = vmatprep.subr.mxu0 0.0
      %1538 = vmatpush2.msra.mxu0 %v1269
      %1539 = vmatprep.subr.mxu0 0.0
      %1540 = vmatpush2.msra.mxu0 %v1268
      %1541 = vmatprep.mubr.f32.mxu0 %v1101
      %1542 = vmatmul.mubr.f32.gmra.mxu0 %v1169
      %v1543 = vpop.f32.mrf.mxu0
      %v1544 = vadd.f32 %v1439, %v1543
      %v1545 = vpop.f32.mrf.mxu0
      %1546 = vmatprep.mubr.f32.mxu0 %v1103
      %1547 = vmatmul.mubr.f32.gmra.mxu0 %v1172
      %v1548 = vpop.f32.mrf.mxu0
      %v1549 = vadd.f32 %v1444, %v1548
      %v1550 = vpop.f32.mrf.mxu0
      %1551 = vmatprep.mubr.f32.mxu0 %v1105
      %1552 = vmatmul.mubr.f32.gmra.mxu0 %v1175
      %v1553 = vpop.f32.mrf.mxu0
      %v1554 = vadd.f32 %v1449, %v1553
      %v1555 = vpop.f32.mrf.mxu0
      %1556 = vmatprep.mubr.f32.mxu0 %v1107
      %1557 = vmatmul.mubr.f32.gmra.mxu0 %v1178
      %v1558 = vpop.f32.mrf.mxu0
      %v1559 = vadd.f32 %v1454, %v1558
      %v1560 = vpop.f32.mrf.mxu0
      %1561 = vmatprep.mubr.f32.mxu0 %v1109
      %1562 = vmatmul.mubr.f32.gmra.mxu0 %v1181
      %v1563 = vpop.f32.mrf.mxu0
      %v1564 = vadd.f32 %v1459, %v1563
      %v1565 = vpop.f32.mrf.mxu0
      %1566 = vmatprep.mubr.f32.mxu0 %v1111
      %1567 = vmatmul.mubr.f32.gmra.mxu0 %v1184
      %v1568 = vpop.f32.mrf.mxu0
      %v1569 = vadd.f32 %v1464, %v1568
      %v1570 = vpop.f32.mrf.mxu0
      %1571 = vmatprep.mubr.f32.mxu0 %v1113
      %1572 = vmatmul.mubr.f32.gmra.mxu0 %v1187
      %v1573 = vpop.f32.mrf.mxu0
      %v1574 = vadd.f32 %v1469, %v1573
      %v1575 = vpop.f32.mrf.mxu0
      %1576 = vmatprep.mubr.f32.mxu0 %v1115
      %1577 = vmatmul.mubr.f32.gmra.mxu0 %v1190
      %v1578 = vpop.f32.mrf.mxu0
      %v1579 = vadd.f32 %v1474, %v1578
      %v1580 = vpop.f32.mrf.mxu0
      %1581 = vdwg.mxu0
      %1582 = vmatprep.subr.mxu0 0.0
      %1583 = vmatpush1.msra.mxu0 %v1299
      %1584 = vmatprep.subr.mxu0 0.0
      %1585 = vmatpush1.msra.mxu0 %v1298
      %1586 = vmatprep.subr.mxu0 0.0
      %1587 = vmatpush1.msra.mxu0 %v1297
      %1588 = vmatprep.subr.mxu0 0.0
      %1589 = vmatpush1.msra.mxu0 %v1296
      %1590 = vmatprep.subr.mxu0 0.0
      %1591 = vmatpush1.msra.mxu0 %v1295
      %1592 = vmatprep.subr.mxu0 0.0
      %1593 = vmatpush1.msra.mxu0 %v1294
      %1594 = vmatprep.subr.mxu0 0.0
      %1595 = vmatpush1.msra.mxu0 %v1293
      %1596 = vmatprep.subr.mxu0 0.0
      %1597 = vmatpush1.msra.mxu0 %v1292
      %1598 = vmatprep.subr.mxu0 0.0
      %1599 = vmatpush1.msra.mxu0 %v1291
      %1600 = vmatprep.subr.mxu0 0.0
      %1601 = vmatpush1.msra.mxu0 %v1290
      %1602 = vmatprep.subr.mxu0 0.0
      %1603 = vmatpush1.msra.mxu0 %v1289
      %1604 = vmatprep.subr.mxu0 0.0
      %1605 = vmatpush1.msra.mxu0 %v1288
      %1606 = vmatprep.subr.mxu0 0.0
      %1607 = vmatpush1.msra.mxu0 %v1287
      %1608 = vmatprep.subr.mxu0 0.0
      %1609 = vmatpush1.msra.mxu0 %v1286
      %1610 = vmatprep.subr.mxu0 0.0
      %1611 = vmatpush1.msra.mxu0 %v1285
      %1612 = vmatprep.subr.mxu0 0.0
      %1613 = vmatpush1.msra.mxu0 %v1284
      %1614 = vmatprep.subr.mxu0 0.0
      %1615 = vmatpush2.msra.mxu0 %v1315
      %1616 = vmatprep.subr.mxu0 0.0
      %1617 = vmatpush2.msra.mxu0 %v1314
      %1618 = vmatprep.subr.mxu0 0.0
      %1619 = vmatpush2.msra.mxu0 %v1313
      %1620 = vmatprep.subr.mxu0 0.0
      %1621 = vmatpush2.msra.mxu0 %v1312
      %1622 = vmatprep.subr.mxu0 0.0
      %1623 = vmatpush2.msra.mxu0 %v1311
      %1624 = vmatprep.subr.mxu0 0.0
      %1625 = vmatpush2.msra.mxu0 %v1310
      %1626 = vmatprep.subr.mxu0 0.0
      %1627 = vmatpush2.msra.mxu0 %v1309
      %1628 = vmatprep.subr.mxu0 0.0
      %1629 = vmatpush2.msra.mxu0 %v1308
      %1630 = vmatprep.subr.mxu0 0.0
      %1631 = vmatpush2.msra.mxu0 %v1307
      %1632 = vmatprep.subr.mxu0 0.0
      %1633 = vmatpush2.msra.mxu0 %v1306
      %1634 = vmatprep.subr.mxu0 0.0
      %1635 = vmatpush2.msra.mxu0 %v1305
      %1636 = vmatprep.subr.mxu0 0.0
      %1637 = vmatpush2.msra.mxu0 %v1304
      %1638 = vmatprep.subr.mxu0 0.0
      %1639 = vmatpush2.msra.mxu0 %v1303
      %1640 = vmatprep.subr.mxu0 0.0
      %1641 = vmatpush2.msra.mxu0 %v1302
      %1642 = vmatprep.subr.mxu0 0.0
      %1643 = vmatpush2.msra.mxu0 %v1301
      %1644 = vmatprep.subr.mxu0 0.0
      %1645 = vmatpush2.msra.mxu0 %v1300
      %1646 = vmatprep.mubr.f32.mxu0 %v1172
      %1647 = vmatmul.mubr.f32.gmra.mxu0 %v1140
      %v1648 = vpop.f32.mrf.mxu0
      %v1649 = vadd.f32 %v1544, %v1648
      %v1650 = vpop.f32.mrf.mxu0
      %1651 = vmatprep.mubr.f32.mxu0 %v1175
      %1652 = vmatmul.mubr.f32.gmra.mxu0 %v1143
      %v1653 = vpop.f32.mrf.mxu0
      %v1654 = vadd.f32 %v1549, %v1653
      %v1655 = vpop.f32.mrf.mxu0
      %1656 = vmatprep.mubr.f32.mxu0 %v1178
      %1657 = vmatmul.mubr.f32.gmra.mxu0 %v1146
      %v1658 = vpop.f32.mrf.mxu0
      %v1659 = vadd.f32 %v1554, %v1658
      %v1660 = vpop.f32.mrf.mxu0
      %1661 = vmatprep.mubr.f32.mxu0 %v1181
      %1662 = vmatmul.mubr.f32.gmra.mxu0 %v1149
      %v1663 = vpop.f32.mrf.mxu0
      %v1664 = vadd.f32 %v1559, %v1663
      %v1665 = vpop.f32.mrf.mxu0
      %1666 = vmatprep.mubr.f32.mxu0 %v1184
      %1667 = vmatmul.mubr.f32.gmra.mxu0 %v1152
      %v1668 = vpop.f32.mrf.mxu0
      %v1669 = vadd.f32 %v1564, %v1668
      %v1670 = vpop.f32.mrf.mxu0
      %1671 = vmatprep.mubr.f32.mxu0 %v1187
      %1672 = vmatmul.mubr.f32.gmra.mxu0 %v1155
      %v1673 = vpop.f32.mrf.mxu0
      %v1674 = vadd.f32 %v1569, %v1673
      %v1675 = vpop.f32.mrf.mxu0
      %1676 = vmatprep.mubr.f32.mxu0 %v1190
      %1677 = vmatmul.mubr.f32.gmra.mxu0 %v1158
      %v1678 = vpop.f32.mrf.mxu0
      %v1679 = vadd.f32 %v1574, %v1678
      %v1680 = vpop.f32.mrf.mxu0
      %1681 = vmatprep.mubr.f32.mxu0 %v1207
      %1682 = vmatmul.mubr.f32.gmra.mxu0 %v1203
      %v1683 = vpop.f32.mrf.mxu0
      %v1684 = vadd.f32 %v1579, %v1683
      %v1685 = vpop.f32.mrf.mxu0
      %1686 = vdwg.mxu0
      %1687 = vmatprep.subr.mxu0 0.0
      %1688 = vmatpush1.msra.mxu0 %v1331
      %1689 = vmatprep.subr.mxu0 0.0
      %1690 = vmatpush1.msra.mxu0 %v1330
      %1691 = vmatprep.subr.mxu0 0.0
      %1692 = vmatpush1.msra.mxu0 %v1329
      %1693 = vmatprep.subr.mxu0 0.0
      %1694 = vmatpush1.msra.mxu0 %v1328
      %1695 = vmatprep.subr.mxu0 0.0
      %1696 = vmatpush1.msra.mxu0 %v1327
      %1697 = vmatprep.subr.mxu0 0.0
      %1698 = vmatpush1.msra.mxu0 %v1326
      %1699 = vmatprep.subr.mxu0 0.0
      %1700 = vmatpush1.msra.mxu0 %v1325
      %1701 = vmatprep.subr.mxu0 0.0
      %1702 = vmatpush1.msra.mxu0 %v1324
      %1703 = vmatprep.subr.mxu0 0.0
      %1704 = vmatpush1.msra.mxu0 %v1323
      %1705 = vmatprep.subr.mxu0 0.0
      %1706 = vmatpush1.msra.mxu0 %v1322
      %1707 = vmatprep.subr.mxu0 0.0
      %1708 = vmatpush1.msra.mxu0 %v1321
      %1709 = vmatprep.subr.mxu0 0.0
      %1710 = vmatpush1.msra.mxu0 %v1320
      %1711 = vmatprep.subr.mxu0 0.0
      %1712 = vmatpush1.msra.mxu0 %v1319
      %1713 = vmatprep.subr.mxu0 0.0
      %1714 = vmatpush1.msra.mxu0 %v1318
      %1715 = vmatprep.subr.mxu0 0.0
      %1716 = vmatpush1.msra.mxu0 %v1317
      %1717 = vmatprep.subr.mxu0 0.0
      %1718 = vmatpush1.msra.mxu0 %v1316
      %1719 = vmatprep.subr.mxu0 0.0
      %1720 = vmatpush2.msra.mxu0 %v1347
      %1721 = vmatprep.subr.mxu0 0.0
      %1722 = vmatpush2.msra.mxu0 %v1346
      %1723 = vmatprep.subr.mxu0 0.0
      %1724 = vmatpush2.msra.mxu0 %v1345
      %1725 = vmatprep.subr.mxu0 0.0
      %1726 = vmatpush2.msra.mxu0 %v1344
      %1727 = vmatprep.subr.mxu0 0.0
      %1728 = vmatpush2.msra.mxu0 %v1343
      %1729 = vmatprep.subr.mxu0 0.0
      %1730 = vmatpush2.msra.mxu0 %v1342
      %1731 = vmatprep.subr.mxu0 0.0
      %1732 = vmatpush2.msra.mxu0 %v1341
      %1733 = vmatprep.subr.mxu0 0.0
      %1734 = vmatpush2.msra.mxu0 %v1340
      %1735 = vmatprep.subr.mxu0 0.0
      %1736 = vmatpush2.msra.mxu0 %v1339
      %1737 = vmatprep.subr.mxu0 0.0
      %1738 = vmatpush2.msra.mxu0 %v1338
      %1739 = vmatprep.subr.mxu0 0.0
      %1740 = vmatpush2.msra.mxu0 %v1337
      %1741 = vmatprep.subr.mxu0 0.0
      %1742 = vmatpush2.msra.mxu0 %v1336
      %1743 = vmatprep.subr.mxu0 0.0
      %1744 = vmatpush2.msra.mxu0 %v1335
      %1745 = vmatprep.subr.mxu0 0.0
      %1746 = vmatpush2.msra.mxu0 %v1334
      %1747 = vmatprep.subr.mxu0 0.0
      %1748 = vmatpush2.msra.mxu0 %v1333
      %1749 = vmatprep.subr.mxu0 0.0
      %1750 = vmatpush2.msra.mxu0 %v1332
      %1751 = vmatprep.mubr.f32.mxu0 %v1143
      %1752 = vmatmul.mubr.f32.gmra.mxu0 %v1103
      %v1753 = vpop.f32.mrf.mxu0
      %v1754 = vadd.f32 %v1649, %v1753
      %v1755 = vpop.f32.mrf.mxu0
      %1756 = vmatprep.mubr.f32.mxu0 %v1146
      %1757 = vmatmul.mubr.f32.gmra.mxu0 %v1105
      %v1758 = vpop.f32.mrf.mxu0
      %v1759 = vadd.f32 %v1654, %v1758
      %v1760 = vpop.f32.mrf.mxu0
      %1761 = vmatprep.mubr.f32.mxu0 %v1149
      %1762 = vmatmul.mubr.f32.gmra.mxu0 %v1107
      %v1763 = vpop.f32.mrf.mxu0
      %v1764 = vadd.f32 %v1659, %v1763
      %v1765 = vpop.f32.mrf.mxu0
      %1766 = vmatprep.mubr.f32.mxu0 %v1152
      %1767 = vmatmul.mubr.f32.gmra.mxu0 %v1109
      %v1768 = vpop.f32.mrf.mxu0
      %v1769 = vadd.f32 %v1664, %v1768
      %v1770 = vpop.f32.mrf.mxu0
      %1771 = vmatprep.mubr.f32.mxu0 %v1155
      %1772 = vmatmul.mubr.f32.gmra.mxu0 %v1111
      %v1773 = vpop.f32.mrf.mxu0
      %v1774 = vadd.f32 %v1669, %v1773
      %v1775 = vpop.f32.mrf.mxu0
      %1776 = vmatprep.mubr.f32.mxu0 %v1158
      %1777 = vmatmul.mubr.f32.gmra.mxu0 %v1113
      %v1778 = vpop.f32.mrf.mxu0
      %v1779 = vadd.f32 %v1674, %v1778
      %v1780 = vpop.f32.mrf.mxu0
      %1781 = vmatprep.mubr.f32.mxu0 %v1203
      %1782 = vmatmul.mubr.f32.gmra.mxu0 %v1115
      %v1783 = vpop.f32.mrf.mxu0
      %v1784 = vadd.f32 %v1679, %v1783
      %v1785 = vpop.f32.mrf.mxu0
      %1786 = vmatprep.mubr.f32.mxu0 %v1213
      %1787 = vmatmul.mubr.f32.gmra.mxu0 %v1117
      %v1788 = vpop.f32.mrf.mxu0
      %v1789 = vadd.f32 %v1684, %v1788
      %v1790 = vpop.f32.mrf.mxu0
      %1791 = vdwg.mxu0
      %1792 = vmatprep.subr.mxu0 0.0
      %1793 = vmatpush1.msra.mxu0 %v1363
      %1794 = vmatprep.subr.mxu0 0.0
      %1795 = vmatpush1.msra.mxu0 %v1362
      %1796 = vmatprep.subr.mxu0 0.0
      %1797 = vmatpush1.msra.mxu0 %v1361
      %1798 = vmatprep.subr.mxu0 0.0
      %1799 = vmatpush1.msra.mxu0 %v1360
      %1800 = vmatprep.subr.mxu0 0.0
      %1801 = vmatpush1.msra.mxu0 %v1359
      %1802 = vmatprep.subr.mxu0 0.0
      %1803 = vmatpush1.msra.mxu0 %v1358
      %1804 = vmatprep.subr.mxu0 0.0
      %1805 = vmatpush1.msra.mxu0 %v1357
      %1806 = vmatprep.subr.mxu0 0.0
      %1807 = vmatpush1.msra.mxu0 %v1356
      %1808 = vmatprep.subr.mxu0 0.0
      %1809 = vmatpush1.msra.mxu0 %v1355
      %1810 = vmatprep.subr.mxu0 0.0
      %1811 = vmatpush1.msra.mxu0 %v1354
      %1812 = vmatprep.subr.mxu0 0.0
      %1813 = vmatpush1.msra.mxu0 %v1353
      %1814 = vmatprep.subr.mxu0 0.0
      %1815 = vmatpush1.msra.mxu0 %v1352
      %1816 = vmatprep.subr.mxu0 0.0
      %1817 = vmatpush1.msra.mxu0 %v1351
      %1818 = vmatprep.subr.mxu0 0.0
      %1819 = vmatpush1.msra.mxu0 %v1350
      %1820 = vmatprep.subr.mxu0 0.0
      %1821 = vmatpush1.msra.mxu0 %v1349
      %1822 = vmatprep.subr.mxu0 0.0
      %1823 = vmatpush1.msra.mxu0 %v1348
      %1824 = vmatprep.subr.mxu0 0.0
      %1825 = vmatpush2.msra.mxu0 0.0
      %1826 = vmatprep.subr.mxu0 0.0
      %1827 = vmatpush2.msra.mxu0 0.0
      %1828 = vmatprep.subr.mxu0 0.0
      %1829 = vmatpush2.msra.mxu0 0.0
      %1830 = vmatprep.subr.mxu0 0.0
      %1831 = vmatpush2.msra.mxu0 0.0
      %1832 = vmatprep.subr.mxu0 0.0
      %1833 = vmatpush2.msra.mxu0 0.0
      %1834 = vmatprep.subr.mxu0 0.0
      %1835 = vmatpush2.msra.mxu0 0.0
      %1836 = vmatprep.subr.mxu0 0.0
      %1837 = vmatpush2.msra.mxu0 0.0
      %1838 = vmatprep.subr.mxu0 0.0
      %1839 = vmatpush2.msra.mxu0 0.0
      %1840 = vmatprep.subr.mxu0 0.0
      %1841 = vmatpush2.msra.mxu0 0.0
      %1842 = vmatprep.subr.mxu0 0.0
      %1843 = vmatpush2.msra.mxu0 0.0
      %1844 = vmatprep.subr.mxu0 0.0
      %1845 = vmatpush2.msra.mxu0 0.0
      %1846 = vmatprep.subr.mxu0 0.0
      %1847 = vmatpush2.msra.mxu0 0.0
      %1848 = vmatprep.subr.mxu0 0.0
      %1849 = vmatpush2.msra.mxu0 0.0
      %1850 = vmatprep.subr.mxu0 0.0
      %1851 = vmatpush2.msra.mxu0 0.0
      %1852 = vmatprep.subr.mxu0 0.0
      %1853 = vmatpush2.msra.mxu0 0.0
      %1854 = vmatprep.subr.mxu0 0.0
      %1855 = vmatpush2.msra.mxu0 0.0
      %1856 = vmatprep.mubr.f32.mxu0 0.0
      %1857 = vmatmul.mubr.f32.gmra.mxu0 %v1175
      %v1858 = vpop.f32.mrf.mxu0
      %v1859 = vadd.f32 %v1754, %v1858
      %v1860 = vpop.f32.mrf.mxu0
      %1861 = vmatprep.mubr.f32.mxu0 0.0
      %1862 = vmatmul.mubr.f32.gmra.mxu0 %v1178
      %v1863 = vpop.f32.mrf.mxu0
      %v1864 = vadd.f32 %v1759, %v1863
      %v1865 = vpop.f32.mrf.mxu0
      %1866 = vmatprep.mubr.f32.mxu0 0.0
      %1867 = vmatmul.mubr.f32.gmra.mxu0 %v1181
      %v1868 = vpop.f32.mrf.mxu0
      %v1869 = vadd.f32 %v1764, %v1868
      %v1870 = vpop.f32.mrf.mxu0
      %1871 = vmatprep.mubr.f32.mxu0 0.0
      %1872 = vmatmul.mubr.f32.gmra.mxu0 %v1184
      %v1873 = vpop.f32.mrf.mxu0
      %v1874 = vadd.f32 %v1769, %v1873
      %v1875 = vpop.f32.mrf.mxu0
      %1876 = vmatprep.mubr.f32.mxu0 0.0
      %1877 = vmatmul.mubr.f32.gmra.mxu0 %v1187
      %v1878 = vpop.f32.mrf.mxu0
      %v1879 = vadd.f32 %v1774, %v1878
      %v1880 = vpop.f32.mrf.mxu0
      %1881 = vmatprep.mubr.f32.mxu0 0.0
      %1882 = vmatmul.mubr.f32.gmra.mxu0 %v1190
      %v1883 = vpop.f32.mrf.mxu0
      %v1884 = vadd.f32 %v1779, %v1883
      %v1885 = vpop.f32.mrf.mxu0
      %1886 = vmatprep.mubr.f32.mxu0 0.0
      %1887 = vmatmul.mubr.f32.gmra.mxu0 %v1207
      %v1888 = vpop.f32.mrf.mxu0
      %v1889 = vadd.f32 %v1784, %v1888
      %v1890 = vpop.f32.mrf.mxu0
      %1891 = vmatprep.mubr.f32.mxu0 0.0
      %1892 = vmatmul.mubr.f32.gmra.mxu0 %v1217
      %v1893 = vpop.f32.mrf.mxu0
      %v1894 = vadd.f32 %v1789, %v1893
      %v1895 = vpop.f32.mrf.mxu0
      %1896 = vdwg.mxu0
      %v1897 = vmax.f32 %v1859, 0.0
      %v1898 = vmax.f32 %v1864, 0.0
      %v1899 = vmax.f32 %v1869, 0.0
      %v1900 = vmax.f32 %v1874, 0.0
      %v1901 = vmax.f32 %v1879, 0.0
      %v1902 = vmax.f32 %v1884, 0.0
      %v1903 = vmax.f32 %v1889, 0.0
      %v1904 = vmax.f32 %v1894, 0.0
      %1905 = vst.msk [vmem:[%s255 + $0x1] sm:$0xff] %vm1090, %v1897
      %1906 = vst.msk [vmem:[%s255 + $0x11] sm:$0xff] %vm1090, %v1898
      %1907 = vst.msk [vmem:[%s255 + $0x21] sm:$0xff] %vm1090, %v1899
      %1908 = vst.msk [vmem:[%s255 + $0x31] sm:$0xff] %vm1090, %v1900
      %1909 = vst.msk [vmem:[%s255 + $0x41] sm:$0xff] %vm1090, %v1901
      %1910 = vst.msk [vmem:[%s255 + $0x51] sm:$0xff] %vm1090, %v1902
      %1911 = vst.msk [vmem:[%s255 + $0x61] sm:$0xff] %vm1090, %v1903
      %1912 = vst.msk [vmem:[%s255 + $0x71] sm:$0xff] %vm1090, %v1904
      %v1913 = vld [vmem:[#allocation2] sm:$0xff]
      %v1914 = vld [vmem:[#allocation2 + $0x8] sm:$0x3]
      %v1915 = vld [vmem:[#allocation2 + $0x10] sm:$0xff]
      %v1916 = vld [vmem:[#allocation2 + $0x18] sm:$0x3]
      %v1917 = vld [vmem:[#allocation2 + $0x20] sm:$0xff]
      %v1918 = vld [vmem:[#allocation2 + $0x28] sm:$0x3]
      %v1919 = vld [vmem:[#allocation2 + $0x30] sm:$0xff]
      %v1920 = vld [vmem:[#allocation2 + $0x38] sm:$0x3]
      %v1921 = vld [vmem:[#allocation2 + $0x40] sm:$0xff]
      %v1922 = vld [vmem:[#allocation2 + $0x48] sm:$0x3]
      %v1923 = vld [vmem:[#allocation2 + $0x50] sm:$0xff]
      %v1924 = vld [vmem:[#allocation2 + $0x58] sm:$0x3]
      %v1925 = vld [vmem:[#allocation2 + $0x60] sm:$0xff]
      %v1926 = vld [vmem:[#allocation2 + $0x68] sm:$0x3]
      %v1927 = vld [vmem:[#allocation2 + $0x70] sm:$0xff]
      %v1928 = vld [vmem:[#allocation2 + $0x78] sm:$0x3]
      %v1929 = vld [vmem:[#allocation2 + $0x80] sm:$0xff]
      %v1930 = vld [vmem:[#allocation2 + $0x88] sm:$0x3]
      %v1931 = vld [vmem:[#allocation2 + $0x90] sm:$0xff]
      %v1932 = vld [vmem:[#allocation2 + $0x98] sm:$0x3]
      %v1949 = vrot.slane %v1913, 1
      %v1950 = vrot.slane %v1914, 1
      %v1951 = vsel %vm300, %v1949, %v1950
      %v1952 = vrot.slane %v1915, 1
      %v1953 = vrot.slane %v1916, 1
      %v1954 = vsel %vm300, %v1952, %v1953
      %v1955 = vrot.slane %v1917, 1
      %v1956 = vrot.slane %v1918, 1
      %v1957 = vsel %vm300, %v1955, %v1956
      %v1958 = vrot.slane %v1919, 1
      %v1959 = vrot.slane %v1920, 1
      %v1960 = vsel %vm300, %v1958, %v1959
      %v1961 = vrot.slane %v1921, 1
      %v1962 = vrot.slane %v1922, 1
      %v1963 = vsel %vm300, %v1961, %v1962
      %v1964 = vrot.slane %v1923, 1
      %v1965 = vrot.slane %v1924, 1
      %v1966 = vsel %vm300, %v1964, %v1965
      %v1967 = vrot.slane %v1925, 1
      %v1968 = vrot.slane %v1926, 1
      %v1969 = vsel %vm300, %v1967, %v1968
      %v1970 = vrot.slane %v1927, 1
      %v1971 = vrot.slane %v1928, 1
      %v1972 = vsel %vm300, %v1970, %v1971
      %v1981 = vrot.slane %v1913, 2
      %v1982 = vrot.slane %v1914, 2
      %v1983 = vsel %vm333, %v1981, %v1982
      %v1984 = vrot.slane %v1915, 2
      %v1985 = vrot.slane %v1916, 2
      %v1986 = vsel %vm333, %v1984, %v1985
      %v1987 = vrot.slane %v1917, 2
      %v1988 = vrot.slane %v1918, 2
      %v1989 = vsel %vm333, %v1987, %v1988
      %v1990 = vrot.slane %v1919, 2
      %v1991 = vrot.slane %v1920, 2
      %v1992 = vsel %vm333, %v1990, %v1991
      %v1993 = vrot.slane %v1921, 2
      %v1994 = vrot.slane %v1922, 2
      %v1995 = vsel %vm333, %v1993, %v1994
      %v1996 = vrot.slane %v1923, 2
      %v1997 = vrot.slane %v1924, 2
      %v1998 = vsel %vm333, %v1996, %v1997
      %v1999 = vrot.slane %v1925, 2
      %v2000 = vrot.slane %v1926, 2
      %v2001 = vsel %vm333, %v1999, %v2000
      %v2002 = vrot.slane %v1927, 2
      %v2003 = vrot.slane %v1928, 2
      %v2004 = vsel %vm333, %v2002, %v2003
      %v2015 = vrot.slane %v1929, 1
      %v2016 = vrot.slane %v1930, 1
      %v2017 = vsel %vm300, %v2015, %v2016
      %v2019 = vrot.slane %v1929, 2
      %v2020 = vrot.slane %v1930, 2
      %v2021 = vsel %vm333, %v2019, %v2020
      %v2025 = vrot.slane %v1931, 1
      %v2026 = vrot.slane %v1932, 1
      %v2027 = vsel %vm300, %v2025, %v2026
      %v2029 = vrot.slane %v1931, 2
      %v2030 = vrot.slane %v1932, 2
      %v2031 = vsel %vm333, %v2029, %v2030
      %s2033 = scalar_lea.vmem %s1, 2304
      %v2034 = vld [vmem:[%s2033] sm:$0xff]
      %v2035 = vld [vmem:[%s2033 + $0x8] sm:$0xff]
      %v2036 = vld [vmem:[%s2033 + $0x10] sm:$0xff]
      %v2037 = vld [vmem:[%s2033 + $0x18] sm:$0xff]
      %v2038 = vld [vmem:[%s2033 + $0x20] sm:$0xff]
      %v2039 = vld [vmem:[%s2033 + $0x28] sm:$0xff]
      %v2040 = vld [vmem:[%s2033 + $0x30] sm:$0xff]
      %v2041 = vld [vmem:[%s2033 + $0x38] sm:$0xff]
      %v2042 = vld [vmem:[%s2033 + $0x40] sm:$0xff]
      %v2043 = vld [vmem:[%s2033 + $0x48] sm:$0xff]
      %v2044 = vld [vmem:[%s2033 + $0x50] sm:$0xff]
      %v2045 = vld [vmem:[%s2033 + $0x58] sm:$0xff]
      %v2046 = vld [vmem:[%s2033 + $0x60] sm:$0xff]
      %v2047 = vld [vmem:[%s2033 + $0x68] sm:$0xff]
      %v2048 = vld [vmem:[%s2033 + $0x70] sm:$0xff]
      %v2049 = vld [vmem:[%s2033 + $0x78] sm:$0xff]
      %v2050 = vld [vmem:[%s2033 + $0x80] sm:$0xff]
      %v2051 = vld [vmem:[%s2033 + $0x88] sm:$0xff]
      %v2052 = vld [vmem:[%s2033 + $0x90] sm:$0xff]
      %v2053 = vld [vmem:[%s2033 + $0x98] sm:$0xff]
      %v2054 = vld [vmem:[%s2033 + $0xa0] sm:$0xff]
      %v2055 = vld [vmem:[%s2033 + $0xa8] sm:$0xff]
      %v2056 = vld [vmem:[%s2033 + $0xb0] sm:$0xff]
      %v2057 = vld [vmem:[%s2033 + $0xb8] sm:$0xff]
      %v2058 = vld [vmem:[%s2033 + $0xc0] sm:$0xff]
      %v2059 = vld [vmem:[%s2033 + $0xc8] sm:$0xff]
      %v2060 = vld [vmem:[%s2033 + $0xd0] sm:$0xff]
      %v2061 = vld [vmem:[%s2033 + $0xd8] sm:$0xff]
      %v2062 = vld [vmem:[%s2033 + $0xe0] sm:$0xff]
      %v2063 = vld [vmem:[%s2033 + $0xe8] sm:$0xff]
      %v2064 = vld [vmem:[%s2033 + $0xf0] sm:$0xff]
      %v2065 = vld [vmem:[%s2033 + $0xf8] sm:$0xff]
      %v2066 = vld [vmem:[%s2033 + $0x100] sm:$0xff]
      %v2067 = vld [vmem:[%s2033 + $0x108] sm:$0xff]
      %v2068 = vld [vmem:[%s2033 + $0x110] sm:$0xff]
      %v2069 = vld [vmem:[%s2033 + $0x118] sm:$0xff]
      %v2070 = vld [vmem:[%s2033 + $0x120] sm:$0xff]
      %v2071 = vld [vmem:[%s2033 + $0x128] sm:$0xff]
      %v2072 = vld [vmem:[%s2033 + $0x130] sm:$0xff]
      %v2073 = vld [vmem:[%s2033 + $0x138] sm:$0xff]
      %v2074 = vld [vmem:[%s2033 + $0x140] sm:$0xff]
      %v2075 = vld [vmem:[%s2033 + $0x148] sm:$0xff]
      %v2076 = vld [vmem:[%s2033 + $0x150] sm:$0xff]
      %v2077 = vld [vmem:[%s2033 + $0x158] sm:$0xff]
      %v2078 = vld [vmem:[%s2033 + $0x160] sm:$0xff]
      %v2079 = vld [vmem:[%s2033 + $0x168] sm:$0xff]
      %v2080 = vld [vmem:[%s2033 + $0x170] sm:$0xff]
      %v2081 = vld [vmem:[%s2033 + $0x178] sm:$0xff]
      %v2082 = vld [vmem:[%s2033 + $0x180] sm:$0xff]
      %v2083 = vld [vmem:[%s2033 + $0x188] sm:$0xff]
      %v2084 = vld [vmem:[%s2033 + $0x190] sm:$0xff]
      %v2085 = vld [vmem:[%s2033 + $0x198] sm:$0xff]
      %v2086 = vld [vmem:[%s2033 + $0x1a0] sm:$0xff]
      %v2087 = vld [vmem:[%s2033 + $0x1a8] sm:$0xff]
      %v2088 = vld [vmem:[%s2033 + $0x1b0] sm:$0xff]
      %v2089 = vld [vmem:[%s2033 + $0x1b8] sm:$0xff]
      %v2090 = vld [vmem:[%s2033 + $0x1c0] sm:$0xff]
      %v2091 = vld [vmem:[%s2033 + $0x1c8] sm:$0xff]
      %v2092 = vld [vmem:[%s2033 + $0x1d0] sm:$0xff]
      %v2093 = vld [vmem:[%s2033 + $0x1d8] sm:$0xff]
      %v2094 = vld [vmem:[%s2033 + $0x1e0] sm:$0xff]
      %v2095 = vld [vmem:[%s2033 + $0x1e8] sm:$0xff]
      %v2096 = vld [vmem:[%s2033 + $0x1f0] sm:$0xff]
      %v2097 = vld [vmem:[%s2033 + $0x1f8] sm:$0xff]
      %v2098 = vld [vmem:[%s2033 + $0x200] sm:$0xff]
      %v2099 = vld [vmem:[%s2033 + $0x208] sm:$0xff]
      %v2100 = vld [vmem:[%s2033 + $0x210] sm:$0xff]
      %v2101 = vld [vmem:[%s2033 + $0x218] sm:$0xff]
      %v2102 = vld [vmem:[%s2033 + $0x220] sm:$0xff]
      %v2103 = vld [vmem:[%s2033 + $0x228] sm:$0xff]
      %v2104 = vld [vmem:[%s2033 + $0x230] sm:$0xff]
      %v2105 = vld [vmem:[%s2033 + $0x238] sm:$0xff]
      %v2106 = vld [vmem:[%s2033 + $0x240] sm:$0xff]
      %v2107 = vld [vmem:[%s2033 + $0x248] sm:$0xff]
      %v2108 = vld [vmem:[%s2033 + $0x250] sm:$0xff]
      %v2109 = vld [vmem:[%s2033 + $0x258] sm:$0xff]
      %v2110 = vld [vmem:[%s2033 + $0x260] sm:$0xff]
      %v2111 = vld [vmem:[%s2033 + $0x268] sm:$0xff]
      %v2112 = vld [vmem:[%s2033 + $0x270] sm:$0xff]
      %v2113 = vld [vmem:[%s2033 + $0x278] sm:$0xff]
      %v2114 = vld [vmem:[%s2033 + $0x280] sm:$0xff]
      %v2115 = vld [vmem:[%s2033 + $0x288] sm:$0xff]
      %v2116 = vld [vmem:[%s2033 + $0x290] sm:$0xff]
      %v2117 = vld [vmem:[%s2033 + $0x298] sm:$0xff]
      %v2118 = vld [vmem:[%s2033 + $0x2a0] sm:$0xff]
      %v2119 = vld [vmem:[%s2033 + $0x2a8] sm:$0xff]
      %v2120 = vld [vmem:[%s2033 + $0x2b0] sm:$0xff]
      %v2121 = vld [vmem:[%s2033 + $0x2b8] sm:$0xff]
      %v2122 = vld [vmem:[%s2033 + $0x2c0] sm:$0xff]
      %v2123 = vld [vmem:[%s2033 + $0x2c8] sm:$0xff]
      %v2124 = vld [vmem:[%s2033 + $0x2d0] sm:$0xff]
      %v2125 = vld [vmem:[%s2033 + $0x2d8] sm:$0xff]
      %v2126 = vld [vmem:[%s2033 + $0x2e0] sm:$0xff]
      %v2127 = vld [vmem:[%s2033 + $0x2e8] sm:$0xff]
      %v2128 = vld [vmem:[%s2033 + $0x2f0] sm:$0xff]
      %v2129 = vld [vmem:[%s2033 + $0x2f8] sm:$0xff]
      %v2130 = vld [vmem:[%s2033 + $0x300] sm:$0xff]
      %v2131 = vld [vmem:[%s2033 + $0x308] sm:$0xff]
      %v2132 = vld [vmem:[%s2033 + $0x310] sm:$0xff]
      %v2133 = vld [vmem:[%s2033 + $0x318] sm:$0xff]
      %v2134 = vld [vmem:[%s2033 + $0x320] sm:$0xff]
      %v2135 = vld [vmem:[%s2033 + $0x328] sm:$0xff]
      %v2136 = vld [vmem:[%s2033 + $0x330] sm:$0xff]
      %v2137 = vld [vmem:[%s2033 + $0x338] sm:$0xff]
      %v2138 = vld [vmem:[%s2033 + $0x340] sm:$0xff]
      %v2139 = vld [vmem:[%s2033 + $0x348] sm:$0xff]
      %v2140 = vld [vmem:[%s2033 + $0x350] sm:$0xff]
      %v2141 = vld [vmem:[%s2033 + $0x358] sm:$0xff]
      %v2142 = vld [vmem:[%s2033 + $0x360] sm:$0xff]
      %v2143 = vld [vmem:[%s2033 + $0x368] sm:$0xff]
      %v2144 = vld [vmem:[%s2033 + $0x370] sm:$0xff]
      %v2145 = vld [vmem:[%s2033 + $0x378] sm:$0xff]
      %v2146 = vld [vmem:[%s2033 + $0x380] sm:$0xff]
      %v2147 = vld [vmem:[%s2033 + $0x388] sm:$0xff]
      %v2148 = vld [vmem:[%s2033 + $0x390] sm:$0xff]
      %v2149 = vld [vmem:[%s2033 + $0x398] sm:$0xff]
      %v2150 = vld [vmem:[%s2033 + $0x3a0] sm:$0xff]
      %v2151 = vld [vmem:[%s2033 + $0x3a8] sm:$0xff]
      %v2152 = vld [vmem:[%s2033 + $0x3b0] sm:$0xff]
      %v2153 = vld [vmem:[%s2033 + $0x3b8] sm:$0xff]
      %v2154 = vld [vmem:[%s2033 + $0x3c0] sm:$0xff]
      %v2155 = vld [vmem:[%s2033 + $0x3c8] sm:$0xff]
      %v2156 = vld [vmem:[%s2033 + $0x3d0] sm:$0xff]
      %v2157 = vld [vmem:[%s2033 + $0x3d8] sm:$0xff]
      %v2158 = vld [vmem:[%s2033 + $0x3e0] sm:$0xff]
      %v2159 = vld [vmem:[%s2033 + $0x3e8] sm:$0xff]
      %v2160 = vld [vmem:[%s2033 + $0x3f0] sm:$0xff]
      %v2161 = vld [vmem:[%s2033 + $0x3f8] sm:$0xff]
      %v2162 = vld [vmem:[%s2033 + $0x400] sm:$0xff]
      %v2163 = vld [vmem:[%s2033 + $0x408] sm:$0xff]
      %v2164 = vld [vmem:[%s2033 + $0x410] sm:$0xff]
      %v2165 = vld [vmem:[%s2033 + $0x418] sm:$0xff]
      %v2166 = vld [vmem:[%s2033 + $0x420] sm:$0xff]
      %v2167 = vld [vmem:[%s2033 + $0x428] sm:$0xff]
      %v2168 = vld [vmem:[%s2033 + $0x430] sm:$0xff]
      %v2169 = vld [vmem:[%s2033 + $0x438] sm:$0xff]
      %v2170 = vld [vmem:[%s2033 + $0x440] sm:$0xff]
      %v2171 = vld [vmem:[%s2033 + $0x448] sm:$0xff]
      %v2172 = vld [vmem:[%s2033 + $0x450] sm:$0xff]
      %v2173 = vld [vmem:[%s2033 + $0x458] sm:$0xff]
      %v2174 = vld [vmem:[%s2033 + $0x460] sm:$0xff]
      %v2175 = vld [vmem:[%s2033 + $0x468] sm:$0xff]
      %v2176 = vld [vmem:[%s2033 + $0x470] sm:$0xff]
      %v2177 = vld [vmem:[%s2033 + $0x478] sm:$0xff]
      %s2178 = scalar_lea.vmem %s2, 2
      %v2179 = vld [vmem:[%s2178] sm:$0x1]
      %v2181 = vlaneseq
      %v2182 = vshrl.u32 %v2181, 7
      %v2183 = vsub.s32 0, %v2182
      %v2184 = vrot.slane %v2179, %v2183
      %2186 = vmatprep.subr.mxu0 0.0
      %2187 = vmatpush1.msra.mxu0 %v2049
      %2188 = vmatprep.subr.mxu0 0.0
      %2189 = vmatpush1.msra.mxu0 %v2048
      %2190 = vmatprep.subr.mxu0 0.0
      %2191 = vmatpush1.msra.mxu0 %v2047
      %2192 = vmatprep.subr.mxu0 0.0
      %2193 = vmatpush1.msra.mxu0 %v2046
      %2194 = vmatprep.subr.mxu0 0.0
      %2195 = vmatpush1.msra.mxu0 %v2045
      %2196 = vmatprep.subr.mxu0 0.0
      %2197 = vmatpush1.msra.mxu0 %v2044
      %2198 = vmatprep.subr.mxu0 0.0
      %2199 = vmatpush1.msra.mxu0 %v2043
      %2200 = vmatprep.subr.mxu0 0.0
      %2201 = vmatpush1.msra.mxu0 %v2042
      %2202 = vmatprep.subr.mxu0 0.0
      %2203 = vmatpush1.msra.mxu0 %v2041
      %2204 = vmatprep.subr.mxu0 0.0
      %2205 = vmatpush1.msra.mxu0 %v2040
      %2206 = vmatprep.subr.mxu0 0.0
      %2207 = vmatpush1.msra.mxu0 %v2039
      %2208 = vmatprep.subr.mxu0 0.0
      %2209 = vmatpush1.msra.mxu0 %v2038
      %2210 = vmatprep.subr.mxu0 0.0
      %2211 = vmatpush1.msra.mxu0 %v2037
      %2212 = vmatprep.subr.mxu0 0.0
      %2213 = vmatpush1.msra.mxu0 %v2036
      %2214 = vmatprep.subr.mxu0 0.0
      %2215 = vmatpush1.msra.mxu0 %v2035
      %2216 = vmatprep.subr.mxu0 0.0
      %2217 = vmatpush1.msra.mxu0 %v2034
      %2218 = vmatprep.subr.mxu0 0.0
      %2219 = vmatpush2.msra.mxu0 %v2065
      %2220 = vmatprep.subr.mxu0 0.0
      %2221 = vmatpush2.msra.mxu0 %v2064
      %2222 = vmatprep.subr.mxu0 0.0
      %2223 = vmatpush2.msra.mxu0 %v2063
      %2224 = vmatprep.subr.mxu0 0.0
      %2225 = vmatpush2.msra.mxu0 %v2062
      %2226 = vmatprep.subr.mxu0 0.0
      %2227 = vmatpush2.msra.mxu0 %v2061
      %2228 = vmatprep.subr.mxu0 0.0
      %2229 = vmatpush2.msra.mxu0 %v2060
      %2230 = vmatprep.subr.mxu0 0.0
      %2231 = vmatpush2.msra.mxu0 %v2059
      %2232 = vmatprep.subr.mxu0 0.0
      %2233 = vmatpush2.msra.mxu0 %v2058
      %2234 = vmatprep.subr.mxu0 0.0
      %2235 = vmatpush2.msra.mxu0 %v2057
      %2236 = vmatprep.subr.mxu0 0.0
      %2237 = vmatpush2.msra.mxu0 %v2056
      %2238 = vmatprep.subr.mxu0 0.0
      %2239 = vmatpush2.msra.mxu0 %v2055
      %2240 = vmatprep.subr.mxu0 0.0
      %2241 = vmatpush2.msra.mxu0 %v2054
      %2242 = vmatprep.subr.mxu0 0.0
      %2243 = vmatpush2.msra.mxu0 %v2053
      %2244 = vmatprep.subr.mxu0 0.0
      %2245 = vmatpush2.msra.mxu0 %v2052
      %2246 = vmatprep.subr.mxu0 0.0
      %2247 = vmatpush2.msra.mxu0 %v2051
      %2248 = vmatprep.subr.mxu0 0.0
      %2249 = vmatpush2.msra.mxu0 %v2050
      %2250 = vmatprep.mubr.f32.mxu0 %v1951
      %2251 = vmatmul.mubr.f32.gmra.mxu0 %v1913
      %v2252 = vpop.f32.mrf.mxu0
      %v2253 = vadd.f32 %v2184, %v2252
      %v2254 = vpop.f32.mrf.mxu0
      %2255 = vmatprep.mubr.f32.mxu0 %v1954
      %2256 = vmatmul.mubr.f32.gmra.mxu0 %v1915
      %v2257 = vpop.f32.mrf.mxu0
      %v2258 = vadd.f32 %v2184, %v2257
      %v2259 = vpop.f32.mrf.mxu0
      %2260 = vmatprep.mubr.f32.mxu0 %v1957
      %2261 = vmatmul.mubr.f32.gmra.mxu0 %v1917
      %v2262 = vpop.f32.mrf.mxu0
      %v2263 = vadd.f32 %v2184, %v2262
      %v2264 = vpop.f32.mrf.mxu0
      %2265 = vmatprep.mubr.f32.mxu0 %v1960
      %2266 = vmatmul.mubr.f32.gmra.mxu0 %v1919
      %v2267 = vpop.f32.mrf.mxu0
      %v2268 = vadd.f32 %v2184, %v2267
      %v2269 = vpop.f32.mrf.mxu0
      %2270 = vmatprep.mubr.f32.mxu0 %v1963
      %2271 = vmatmul.mubr.f32.gmra.mxu0 %v1921
      %v2272 = vpop.f32.mrf.mxu0
      %v2273 = vadd.f32 %v2184, %v2272
      %v2274 = vpop.f32.mrf.mxu0
      %2275 = vmatprep.mubr.f32.mxu0 %v1966
      %2276 = vmatmul.mubr.f32.gmra.mxu0 %v1923
      %v2277 = vpop.f32.mrf.mxu0
      %v2278 = vadd.f32 %v2184, %v2277
      %v2279 = vpop.f32.mrf.mxu0
      %2280 = vmatprep.mubr.f32.mxu0 %v1969
      %2281 = vmatmul.mubr.f32.gmra.mxu0 %v1925
      %v2282 = vpop.f32.mrf.mxu0
      %v2283 = vadd.f32 %v2184, %v2282
      %v2284 = vpop.f32.mrf.mxu0
      %2285 = vmatprep.mubr.f32.mxu0 %v1972
      %2286 = vmatmul.mubr.f32.gmra.mxu0 %v1927
      %v2287 = vpop.f32.mrf.mxu0
      %v2288 = vadd.f32 %v2184, %v2287
      %v2289 = vpop.f32.mrf.mxu0
      %2290 = vdwg.mxu0
      %2291 = vmatprep.subr.mxu0 0.0
      %2292 = vmatpush1.msra.mxu0 %v2081
      %2293 = vmatprep.subr.mxu0 0.0
      %2294 = vmatpush1.msra.mxu0 %v2080
      %2295 = vmatprep.subr.mxu0 0.0
      %2296 = vmatpush1.msra.mxu0 %v2079
      %2297 = vmatprep.subr.mxu0 0.0
      %2298 = vmatpush1.msra.mxu0 %v2078
      %2299 = vmatprep.subr.mxu0 0.0
      %2300 = vmatpush1.msra.mxu0 %v2077
      %2301 = vmatprep.subr.mxu0 0.0
      %2302 = vmatpush1.msra.mxu0 %v2076
      %2303 = vmatprep.subr.mxu0 0.0
      %2304 = vmatpush1.msra.mxu0 %v2075
      %2305 = vmatprep.subr.mxu0 0.0
      %2306 = vmatpush1.msra.mxu0 %v2074
      %2307 = vmatprep.subr.mxu0 0.0
      %2308 = vmatpush1.msra.mxu0 %v2073
      %2309 = vmatprep.subr.mxu0 0.0
      %2310 = vmatpush1.msra.mxu0 %v2072
      %2311 = vmatprep.subr.mxu0 0.0
      %2312 = vmatpush1.msra.mxu0 %v2071
      %2313 = vmatprep.subr.mxu0 0.0
      %2314 = vmatpush1.msra.mxu0 %v2070
      %2315 = vmatprep.subr.mxu0 0.0
      %2316 = vmatpush1.msra.mxu0 %v2069
      %2317 = vmatprep.subr.mxu0 0.0
      %2318 = vmatpush1.msra.mxu0 %v2068
      %2319 = vmatprep.subr.mxu0 0.0
      %2320 = vmatpush1.msra.mxu0 %v2067
      %2321 = vmatprep.subr.mxu0 0.0
      %2322 = vmatpush1.msra.mxu0 %v2066
      %2323 = vmatprep.subr.mxu0 0.0
      %2324 = vmatpush2.msra.mxu0 %v2097
      %2325 = vmatprep.subr.mxu0 0.0
      %2326 = vmatpush2.msra.mxu0 %v2096
      %2327 = vmatprep.subr.mxu0 0.0
      %2328 = vmatpush2.msra.mxu0 %v2095
      %2329 = vmatprep.subr.mxu0 0.0
      %2330 = vmatpush2.msra.mxu0 %v2094
      %2331 = vmatprep.subr.mxu0 0.0
      %2332 = vmatpush2.msra.mxu0 %v2093
      %2333 = vmatprep.subr.mxu0 0.0
      %2334 = vmatpush2.msra.mxu0 %v2092
      %2335 = vmatprep.subr.mxu0 0.0
      %2336 = vmatpush2.msra.mxu0 %v2091
      %2337 = vmatprep.subr.mxu0 0.0
      %2338 = vmatpush2.msra.mxu0 %v2090
      %2339 = vmatprep.subr.mxu0 0.0
      %2340 = vmatpush2.msra.mxu0 %v2089
      %2341 = vmatprep.subr.mxu0 0.0
      %2342 = vmatpush2.msra.mxu0 %v2088
      %2343 = vmatprep.subr.mxu0 0.0
      %2344 = vmatpush2.msra.mxu0 %v2087
      %2345 = vmatprep.subr.mxu0 0.0
      %2346 = vmatpush2.msra.mxu0 %v2086
      %2347 = vmatprep.subr.mxu0 0.0
      %2348 = vmatpush2.msra.mxu0 %v2085
      %2349 = vmatprep.subr.mxu0 0.0
      %2350 = vmatpush2.msra.mxu0 %v2084
      %2351 = vmatprep.subr.mxu0 0.0
      %2352 = vmatpush2.msra.mxu0 %v2083
      %2353 = vmatprep.subr.mxu0 0.0
      %2354 = vmatpush2.msra.mxu0 %v2082
      %2355 = vmatprep.mubr.f32.mxu0 %v1915
      %2356 = vmatmul.mubr.f32.gmra.mxu0 %v1983
      %v2357 = vpop.f32.mrf.mxu0
      %v2358 = vadd.f32 %v2253, %v2357
      %v2359 = vpop.f32.mrf.mxu0
      %2360 = vmatprep.mubr.f32.mxu0 %v1917
      %2361 = vmatmul.mubr.f32.gmra.mxu0 %v1986
      %v2362 = vpop.f32.mrf.mxu0
      %v2363 = vadd.f32 %v2258, %v2362
      %v2364 = vpop.f32.mrf.mxu0
      %2365 = vmatprep.mubr.f32.mxu0 %v1919
      %2366 = vmatmul.mubr.f32.gmra.mxu0 %v1989
      %v2367 = vpop.f32.mrf.mxu0
      %v2368 = vadd.f32 %v2263, %v2367
      %v2369 = vpop.f32.mrf.mxu0
      %2370 = vmatprep.mubr.f32.mxu0 %v1921
      %2371 = vmatmul.mubr.f32.gmra.mxu0 %v1992
      %v2372 = vpop.f32.mrf.mxu0
      %v2373 = vadd.f32 %v2268, %v2372
      %v2374 = vpop.f32.mrf.mxu0
      %2375 = vmatprep.mubr.f32.mxu0 %v1923
      %2376 = vmatmul.mubr.f32.gmra.mxu0 %v1995
      %v2377 = vpop.f32.mrf.mxu0
      %v2378 = vadd.f32 %v2273, %v2377
      %v2379 = vpop.f32.mrf.mxu0
      %2380 = vmatprep.mubr.f32.mxu0 %v1925
      %2381 = vmatmul.mubr.f32.gmra.mxu0 %v1998
      %v2382 = vpop.f32.mrf.mxu0
      %v2383 = vadd.f32 %v2278, %v2382
      %v2384 = vpop.f32.mrf.mxu0
      %2385 = vmatprep.mubr.f32.mxu0 %v1927
      %2386 = vmatmul.mubr.f32.gmra.mxu0 %v2001
      %v2387 = vpop.f32.mrf.mxu0
      %v2388 = vadd.f32 %v2283, %v2387
      %v2389 = vpop.f32.mrf.mxu0
      %2390 = vmatprep.mubr.f32.mxu0 %v1929
      %2391 = vmatmul.mubr.f32.gmra.mxu0 %v2004
      %v2392 = vpop.f32.mrf.mxu0
      %v2393 = vadd.f32 %v2288, %v2392
      %v2394 = vpop.f32.mrf.mxu0
      %2395 = vdwg.mxu0
      %2396 = vmatprep.subr.mxu0 0.0
      %2397 = vmatpush1.msra.mxu0 %v2113
      %2398 = vmatprep.subr.mxu0 0.0
      %2399 = vmatpush1.msra.mxu0 %v2112
      %2400 = vmatprep.subr.mxu0 0.0
      %2401 = vmatpush1.msra.mxu0 %v2111
      %2402 = vmatprep.subr.mxu0 0.0
      %2403 = vmatpush1.msra.mxu0 %v2110
      %2404 = vmatprep.subr.mxu0 0.0
      %2405 = vmatpush1.msra.mxu0 %v2109
      %2406 = vmatprep.subr.mxu0 0.0
      %2407 = vmatpush1.msra.mxu0 %v2108
      %2408 = vmatprep.subr.mxu0 0.0
      %2409 = vmatpush1.msra.mxu0 %v2107
      %2410 = vmatprep.subr.mxu0 0.0
      %2411 = vmatpush1.msra.mxu0 %v2106
      %2412 = vmatprep.subr.mxu0 0.0
      %2413 = vmatpush1.msra.mxu0 %v2105
      %2414 = vmatprep.subr.mxu0 0.0
      %2415 = vmatpush1.msra.mxu0 %v2104
      %2416 = vmatprep.subr.mxu0 0.0
      %2417 = vmatpush1.msra.mxu0 %v2103
      %2418 = vmatprep.subr.mxu0 0.0
      %2419 = vmatpush1.msra.mxu0 %v2102
      %2420 = vmatprep.subr.mxu0 0.0
      %2421 = vmatpush1.msra.mxu0 %v2101
      %2422 = vmatprep.subr.mxu0 0.0
      %2423 = vmatpush1.msra.mxu0 %v2100
      %2424 = vmatprep.subr.mxu0 0.0
      %2425 = vmatpush1.msra.mxu0 %v2099
      %2426 = vmatprep.subr.mxu0 0.0
      %2427 = vmatpush1.msra.mxu0 %v2098
      %2428 = vmatprep.subr.mxu0 0.0
      %2429 = vmatpush2.msra.mxu0 %v2129
      %2430 = vmatprep.subr.mxu0 0.0
      %2431 = vmatpush2.msra.mxu0 %v2128
      %2432 = vmatprep.subr.mxu0 0.0
      %2433 = vmatpush2.msra.mxu0 %v2127
      %2434 = vmatprep.subr.mxu0 0.0
      %2435 = vmatpush2.msra.mxu0 %v2126
      %2436 = vmatprep.subr.mxu0 0.0
      %2437 = vmatpush2.msra.mxu0 %v2125
      %2438 = vmatprep.subr.mxu0 0.0
      %2439 = vmatpush2.msra.mxu0 %v2124
      %2440 = vmatprep.subr.mxu0 0.0
      %2441 = vmatpush2.msra.mxu0 %v2123
      %2442 = vmatprep.subr.mxu0 0.0
      %2443 = vmatpush2.msra.mxu0 %v2122
      %2444 = vmatprep.subr.mxu0 0.0
      %2445 = vmatpush2.msra.mxu0 %v2121
      %2446 = vmatprep.subr.mxu0 0.0
      %2447 = vmatpush2.msra.mxu0 %v2120
      %2448 = vmatprep.subr.mxu0 0.0
      %2449 = vmatpush2.msra.mxu0 %v2119
      %2450 = vmatprep.subr.mxu0 0.0
      %2451 = vmatpush2.msra.mxu0 %v2118
      %2452 = vmatprep.subr.mxu0 0.0
      %2453 = vmatpush2.msra.mxu0 %v2117
      %2454 = vmatprep.subr.mxu0 0.0
      %2455 = vmatpush2.msra.mxu0 %v2116
      %2456 = vmatprep.subr.mxu0 0.0
      %2457 = vmatpush2.msra.mxu0 %v2115
      %2458 = vmatprep.subr.mxu0 0.0
      %2459 = vmatpush2.msra.mxu0 %v2114
      %2460 = vmatprep.mubr.f32.mxu0 %v1986
      %2461 = vmatmul.mubr.f32.gmra.mxu0 %v1954
      %v2462 = vpop.f32.mrf.mxu0
      %v2463 = vadd.f32 %v2358, %v2462
      %v2464 = vpop.f32.mrf.mxu0
      %2465 = vmatprep.mubr.f32.mxu0 %v1989
      %2466 = vmatmul.mubr.f32.gmra.mxu0 %v1957
      %v2467 = vpop.f32.mrf.mxu0
      %v2468 = vadd.f32 %v2363, %v2467
      %v2469 = vpop.f32.mrf.mxu0
      %2470 = vmatprep.mubr.f32.mxu0 %v1992
      %2471 = vmatmul.mubr.f32.gmra.mxu0 %v1960
      %v2472 = vpop.f32.mrf.mxu0
      %v2473 = vadd.f32 %v2368, %v2472
      %v2474 = vpop.f32.mrf.mxu0
      %2475 = vmatprep.mubr.f32.mxu0 %v1995
      %2476 = vmatmul.mubr.f32.gmra.mxu0 %v1963
      %v2477 = vpop.f32.mrf.mxu0
      %v2478 = vadd.f32 %v2373, %v2477
      %v2479 = vpop.f32.mrf.mxu0
      %2480 = vmatprep.mubr.f32.mxu0 %v1998
      %2481 = vmatmul.mubr.f32.gmra.mxu0 %v1966
      %v2482 = vpop.f32.mrf.mxu0
      %v2483 = vadd.f32 %v2378, %v2482
      %v2484 = vpop.f32.mrf.mxu0
      %2485 = vmatprep.mubr.f32.mxu0 %v2001
      %2486 = vmatmul.mubr.f32.gmra.mxu0 %v1969
      %v2487 = vpop.f32.mrf.mxu0
      %v2488 = vadd.f32 %v2383, %v2487
      %v2489 = vpop.f32.mrf.mxu0
      %2490 = vmatprep.mubr.f32.mxu0 %v2004
      %2491 = vmatmul.mubr.f32.gmra.mxu0 %v1972
      %v2492 = vpop.f32.mrf.mxu0
      %v2493 = vadd.f32 %v2388, %v2492
      %v2494 = vpop.f32.mrf.mxu0
      %2495 = vmatprep.mubr.f32.mxu0 %v2021
      %2496 = vmatmul.mubr.f32.gmra.mxu0 %v2017
      %v2497 = vpop.f32.mrf.mxu0
      %v2498 = vadd.f32 %v2393, %v2497
      %v2499 = vpop.f32.mrf.mxu0
      %2500 = vdwg.mxu0
      %2501 = vmatprep.subr.mxu0 0.0
      %2502 = vmatpush1.msra.mxu0 %v2145
      %2503 = vmatprep.subr.mxu0 0.0
      %2504 = vmatpush1.msra.mxu0 %v2144
      %2505 = vmatprep.subr.mxu0 0.0
      %2506 = vmatpush1.msra.mxu0 %v2143
      %2507 = vmatprep.subr.mxu0 0.0
      %2508 = vmatpush1.msra.mxu0 %v2142
      %2509 = vmatprep.subr.mxu0 0.0
      %2510 = vmatpush1.msra.mxu0 %v2141
      %2511 = vmatprep.subr.mxu0 0.0
      %2512 = vmatpush1.msra.mxu0 %v2140
      %2513 = vmatprep.subr.mxu0 0.0
      %2514 = vmatpush1.msra.mxu0 %v2139
      %2515 = vmatprep.subr.mxu0 0.0
      %2516 = vmatpush1.msra.mxu0 %v2138
      %2517 = vmatprep.subr.mxu0 0.0
      %2518 = vmatpush1.msra.mxu0 %v2137
      %2519 = vmatprep.subr.mxu0 0.0
      %2520 = vmatpush1.msra.mxu0 %v2136
      %2521 = vmatprep.subr.mxu0 0.0
      %2522 = vmatpush1.msra.mxu0 %v2135
      %2523 = vmatprep.subr.mxu0 0.0
      %2524 = vmatpush1.msra.mxu0 %v2134
      %2525 = vmatprep.subr.mxu0 0.0
      %2526 = vmatpush1.msra.mxu0 %v2133
      %2527 = vmatprep.subr.mxu0 0.0
      %2528 = vmatpush1.msra.mxu0 %v2132
      %2529 = vmatprep.subr.mxu0 0.0
      %2530 = vmatpush1.msra.mxu0 %v2131
      %2531 = vmatprep.subr.mxu0 0.0
      %2532 = vmatpush1.msra.mxu0 %v2130
      %2533 = vmatprep.subr.mxu0 0.0
      %2534 = vmatpush2.msra.mxu0 %v2161
      %2535 = vmatprep.subr.mxu0 0.0
      %2536 = vmatpush2.msra.mxu0 %v2160
      %2537 = vmatprep.subr.mxu0 0.0
      %2538 = vmatpush2.msra.mxu0 %v2159
      %2539 = vmatprep.subr.mxu0 0.0
      %2540 = vmatpush2.msra.mxu0 %v2158
      %2541 = vmatprep.subr.mxu0 0.0
      %2542 = vmatpush2.msra.mxu0 %v2157
      %2543 = vmatprep.subr.mxu0 0.0
      %2544 = vmatpush2.msra.mxu0 %v2156
      %2545 = vmatprep.subr.mxu0 0.0
      %2546 = vmatpush2.msra.mxu0 %v2155
      %2547 = vmatprep.subr.mxu0 0.0
      %2548 = vmatpush2.msra.mxu0 %v2154
      %2549 = vmatprep.subr.mxu0 0.0
      %2550 = vmatpush2.msra.mxu0 %v2153
      %2551 = vmatprep.subr.mxu0 0.0
      %2552 = vmatpush2.msra.mxu0 %v2152
      %2553 = vmatprep.subr.mxu0 0.0
      %2554 = vmatpush2.msra.mxu0 %v2151
      %2555 = vmatprep.subr.mxu0 0.0
      %2556 = vmatpush2.msra.mxu0 %v2150
      %2557 = vmatprep.subr.mxu0 0.0
      %2558 = vmatpush2.msra.mxu0 %v2149
      %2559 = vmatprep.subr.mxu0 0.0
      %2560 = vmatpush2.msra.mxu0 %v2148
      %2561 = vmatprep.subr.mxu0 0.0
      %2562 = vmatpush2.msra.mxu0 %v2147
      %2563 = vmatprep.subr.mxu0 0.0
      %2564 = vmatpush2.msra.mxu0 %v2146
      %2565 = vmatprep.mubr.f32.mxu0 %v1957
      %2566 = vmatmul.mubr.f32.gmra.mxu0 %v1917
      %v2567 = vpop.f32.mrf.mxu0
      %v2568 = vadd.f32 %v2463, %v2567
      %v2569 = vpop.f32.mrf.mxu0
      %2570 = vmatprep.mubr.f32.mxu0 %v1960
      %2571 = vmatmul.mubr.f32.gmra.mxu0 %v1919
      %v2572 = vpop.f32.mrf.mxu0
      %v2573 = vadd.f32 %v2468, %v2572
      %v2574 = vpop.f32.mrf.mxu0
      %2575 = vmatprep.mubr.f32.mxu0 %v1963
      %2576 = vmatmul.mubr.f32.gmra.mxu0 %v1921
      %v2577 = vpop.f32.mrf.mxu0
      %v2578 = vadd.f32 %v2473, %v2577
      %v2579 = vpop.f32.mrf.mxu0
      %2580 = vmatprep.mubr.f32.mxu0 %v1966
      %2581 = vmatmul.mubr.f32.gmra.mxu0 %v1923
      %v2582 = vpop.f32.mrf.mxu0
      %v2583 = vadd.f32 %v2478, %v2582
      %v2584 = vpop.f32.mrf.mxu0
      %2585 = vmatprep.mubr.f32.mxu0 %v1969
      %2586 = vmatmul.mubr.f32.gmra.mxu0 %v1925
      %v2587 = vpop.f32.mrf.mxu0
      %v2588 = vadd.f32 %v2483, %v2587
      %v2589 = vpop.f32.mrf.mxu0
      %2590 = vmatprep.mubr.f32.mxu0 %v1972
      %2591 = vmatmul.mubr.f32.gmra.mxu0 %v1927
      %v2592 = vpop.f32.mrf.mxu0
      %v2593 = vadd.f32 %v2488, %v2592
      %v2594 = vpop.f32.mrf.mxu0
      %2595 = vmatprep.mubr.f32.mxu0 %v2017
      %2596 = vmatmul.mubr.f32.gmra.mxu0 %v1929
      %v2597 = vpop.f32.mrf.mxu0
      %v2598 = vadd.f32 %v2493, %v2597
      %v2599 = vpop.f32.mrf.mxu0
      %2600 = vmatprep.mubr.f32.mxu0 %v2027
      %2601 = vmatmul.mubr.f32.gmra.mxu0 %v1931
      %v2602 = vpop.f32.mrf.mxu0
      %v2603 = vadd.f32 %v2498, %v2602
      %v2604 = vpop.f32.mrf.mxu0
      %2605 = vdwg.mxu0
      %2606 = vmatprep.subr.mxu0 0.0
      %2607 = vmatpush1.msra.mxu0 %v2177
      %2608 = vmatprep.subr.mxu0 0.0
      %2609 = vmatpush1.msra.mxu0 %v2176
      %2610 = vmatprep.subr.mxu0 0.0
      %2611 = vmatpush1.msra.mxu0 %v2175
      %2612 = vmatprep.subr.mxu0 0.0
      %2613 = vmatpush1.msra.mxu0 %v2174
      %2614 = vmatprep.subr.mxu0 0.0
      %2615 = vmatpush1.msra.mxu0 %v2173
      %2616 = vmatprep.subr.mxu0 0.0
      %2617 = vmatpush1.msra.mxu0 %v2172
      %2618 = vmatprep.subr.mxu0 0.0
      %2619 = vmatpush1.msra.mxu0 %v2171
      %2620 = vmatprep.subr.mxu0 0.0
      %2621 = vmatpush1.msra.mxu0 %v2170
      %2622 = vmatprep.subr.mxu0 0.0
      %2623 = vmatpush1.msra.mxu0 %v2169
      %2624 = vmatprep.subr.mxu0 0.0
      %2625 = vmatpush1.msra.mxu0 %v2168
      %2626 = vmatprep.subr.mxu0 0.0
      %2627 = vmatpush1.msra.mxu0 %v2167
      %2628 = vmatprep.subr.mxu0 0.0
      %2629 = vmatpush1.msra.mxu0 %v2166
      %2630 = vmatprep.subr.mxu0 0.0
      %2631 = vmatpush1.msra.mxu0 %v2165
      %2632 = vmatprep.subr.mxu0 0.0
      %2633 = vmatpush1.msra.mxu0 %v2164
      %2634 = vmatprep.subr.mxu0 0.0
      %2635 = vmatpush1.msra.mxu0 %v2163
      %2636 = vmatprep.subr.mxu0 0.0
      %2637 = vmatpush1.msra.mxu0 %v2162
      %2638 = vmatprep.subr.mxu0 0.0
      %2639 = vmatpush2.msra.mxu0 0.0
      %2640 = vmatprep.subr.mxu0 0.0
      %2641 = vmatpush2.msra.mxu0 0.0
      %2642 = vmatprep.subr.mxu0 0.0
      %2643 = vmatpush2.msra.mxu0 0.0
      %2644 = vmatprep.subr.mxu0 0.0
      %2645 = vmatpush2.msra.mxu0 0.0
      %2646 = vmatprep.subr.mxu0 0.0
      %2647 = vmatpush2.msra.mxu0 0.0
      %2648 = vmatprep.subr.mxu0 0.0
      %2649 = vmatpush2.msra.mxu0 0.0
      %2650 = vmatprep.subr.mxu0 0.0
      %2651 = vmatpush2.msra.mxu0 0.0
      %2652 = vmatprep.subr.mxu0 0.0
      %2653 = vmatpush2.msra.mxu0 0.0
      %2654 = vmatprep.subr.mxu0 0.0
      %2655 = vmatpush2.msra.mxu0 0.0
      %2656 = vmatprep.subr.mxu0 0.0
      %2657 = vmatpush2.msra.mxu0 0.0
      %2658 = vmatprep.subr.mxu0 0.0
      %2659 = vmatpush2.msra.mxu0 0.0
      %2660 = vmatprep.subr.mxu0 0.0
      %2661 = vmatpush2.msra.mxu0 0.0
      %2662 = vmatprep.subr.mxu0 0.0
      %2663 = vmatpush2.msra.mxu0 0.0
      %2664 = vmatprep.subr.mxu0 0.0
      %2665 = vmatpush2.msra.mxu0 0.0
      %2666 = vmatprep.subr.mxu0 0.0
      %2667 = vmatpush2.msra.mxu0 0.0
      %2668 = vmatprep.subr.mxu0 0.0
      %2669 = vmatpush2.msra.mxu0 0.0
      %2670 = vmatprep.mubr.f32.mxu0 0.0
      %2671 = vmatmul.mubr.f32.gmra.mxu0 %v1989
      %v2672 = vpop.f32.mrf.mxu0
      %v2673 = vadd.f32 %v2568, %v2672
      %v2674 = vpop.f32.mrf.mxu0
      %2675 = vmatprep.mubr.f32.mxu0 0.0
      %2676 = vmatmul.mubr.f32.gmra.mxu0 %v1992
      %v2677 = vpop.f32.mrf.mxu0
      %v2678 = vadd.f32 %v2573, %v2677
      %v2679 = vpop.f32.mrf.mxu0
      %2680 = vmatprep.mubr.f32.mxu0 0.0
      %2681 = vmatmul.mubr.f32.gmra.mxu0 %v1995
      %v2682 = vpop.f32.mrf.mxu0
      %v2683 = vadd.f32 %v2578, %v2682
      %v2684 = vpop.f32.mrf.mxu0
      %2685 = vmatprep.mubr.f32.mxu0 0.0
      %2686 = vmatmul.mubr.f32.gmra.mxu0 %v1998
      %v2687 = vpop.f32.mrf.mxu0
      %v2688 = vadd.f32 %v2583, %v2687
      %v2689 = vpop.f32.mrf.mxu0
      %2690 = vmatprep.mubr.f32.mxu0 0.0
      %2691 = vmatmul.mubr.f32.gmra.mxu0 %v2001
      %v2692 = vpop.f32.mrf.mxu0
      %v2693 = vadd.f32 %v2588, %v2692
      %v2694 = vpop.f32.mrf.mxu0
      %2695 = vmatprep.mubr.f32.mxu0 0.0
      %2696 = vmatmul.mubr.f32.gmra.mxu0 %v2004
      %v2697 = vpop.f32.mrf.mxu0
      %v2698 = vadd.f32 %v2593, %v2697
      %v2699 = vpop.f32.mrf.mxu0
      %2700 = vmatprep.mubr.f32.mxu0 0.0
      %2701 = vmatmul.mubr.f32.gmra.mxu0 %v2021
      %v2702 = vpop.f32.mrf.mxu0
      %v2703 = vadd.f32 %v2598, %v2702
      %v2704 = vpop.f32.mrf.mxu0
      %2705 = vmatprep.mubr.f32.mxu0 0.0
      %2706 = vmatmul.mubr.f32.gmra.mxu0 %v2031
      %v2707 = vpop.f32.mrf.mxu0
      %v2708 = vadd.f32 %v2603, %v2707
      %v2709 = vpop.f32.mrf.mxu0
      %2710 = vdwg.mxu0
      %v2711 = vadd.f32 %v1062, %v2673
      %v2712 = vadd.f32 %v1063, %v2678
      %v2713 = vadd.f32 %v1064, %v2683
      %v2714 = vadd.f32 %v1065, %v2688
      %v2715 = vadd.f32 %v1066, %v2693
      %v2716 = vadd.f32 %v1067, %v2698
      %v2717 = vadd.f32 %v1068, %v2703
      %v2718 = vadd.f32 %v1069, %v2708
      %2719 = vst.msk [vmem:[%s255 + $0x1] sm:$0xff] %vm1090, %v2711
      %2720 = vst.msk [vmem:[%s255 + $0x11] sm:$0xff] %vm1090, %v2712
      %2721 = vst.msk [vmem:[%s255 + $0x21] sm:$0xff] %vm1090, %v2713
      %2722 = vst.msk [vmem:[%s255 + $0x31] sm:$0xff] %vm1090, %v2714
      %2723 = vst.msk [vmem:[%s255 + $0x41] sm:$0xff] %vm1090, %v2715
      %2724 = vst.msk [vmem:[%s255 + $0x51] sm:$0xff] %vm1090, %v2716
      %2725 = vst.msk [vmem:[%s255 + $0x61] sm:$0xff] %vm1090, %v2717
      %2726 = vst.msk [vmem:[%s255 + $0x71] sm:$0xff] %vm1090, %v2718
      %v2727 = vld [vmem:[#allocation2] sm:$0xff]
      %v2728 = vld [vmem:[#allocation2 + $0x8] sm:$0x3]
      %v2729 = vld [vmem:[#allocation2 + $0x10] sm:$0xff]
      %v2730 = vld [vmem:[#allocation2 + $0x18] sm:$0x3]
      %v2731 = vld [vmem:[#allocation2 + $0x20] sm:$0xff]
      %v2732 = vld [vmem:[#allocation2 + $0x28] sm:$0x3]
      %v2733 = vld [vmem:[#allocation2 + $0x30] sm:$0xff]
      %v2734 = vld [vmem:[#allocation2 + $0x38] sm:$0x3]
      %v2735 = vld [vmem:[#allocation2 + $0x40] sm:$0xff]
      %v2736 = vld [vmem:[#allocation2 + $0x48] sm:$0x3]
      %v2737 = vld [vmem:[#allocation2 + $0x50] sm:$0xff]
      %v2738 = vld [vmem:[#allocation2 + $0x58] sm:$0x3]
      %v2739 = vld [vmem:[#allocation2 + $0x60] sm:$0xff]
      %v2740 = vld [vmem:[#allocation2 + $0x68] sm:$0x3]
      %v2741 = vld [vmem:[#allocation2 + $0x70] sm:$0xff]
      %v2742 = vld [vmem:[#allocation2 + $0x78] sm:$0x3]
      %v2743 = vld [vmem:[#allocation2 + $0x80] sm:$0xff]
      %v2744 = vld [vmem:[#allocation2 + $0x88] sm:$0x3]
      %v2745 = vld [vmem:[#allocation2 + $0x90] sm:$0xff]
      %v2746 = vld [vmem:[#allocation2 + $0x98] sm:$0x3]
      %v2763 = vrot.slane %v2727, 1
      %v2764 = vrot.slane %v2728, 1
      %v2765 = vsel %vm300, %v2763, %v2764
      %v2766 = vrot.slane %v2729, 1
      %v2767 = vrot.slane %v2730, 1
      %v2768 = vsel %vm300, %v2766, %v2767
      %v2769 = vrot.slane %v2731, 1
      %v2770 = vrot.slane %v2732, 1
      %v2771 = vsel %vm300, %v2769, %v2770
      %v2772 = vrot.slane %v2733, 1
      %v2773 = vrot.slane %v2734, 1
      %v2774 = vsel %vm300, %v2772, %v2773
      %v2775 = vrot.slane %v2735, 1
      %v2776 = vrot.slane %v2736, 1
      %v2777 = vsel %vm300, %v2775, %v2776
      %v2778 = vrot.slane %v2737, 1
      %v2779 = vrot.slane %v2738, 1
      %v2780 = vsel %vm300, %v2778, %v2779
      %v2781 = vrot.slane %v2739, 1
      %v2782 = vrot.slane %v2740, 1
      %v2783 = vsel %vm300, %v2781, %v2782
      %v2784 = vrot.slane %v2741, 1
      %v2785 = vrot.slane %v2742, 1
      %v2786 = vsel %vm300, %v2784, %v2785
      %v2795 = vrot.slane %v2727, 2
      %v2796 = vrot.slane %v2728, 2
      %v2797 = vsel %vm333, %v2795, %v2796
      %v2798 = vrot.slane %v2729, 2
      %v2799 = vrot.slane %v2730, 2
      %v2800 = vsel %vm333, %v2798, %v2799
      %v2801 = vrot.slane %v2731, 2
      %v2802 = vrot.slane %v2732, 2
      %v2803 = vsel %vm333, %v2801, %v2802
      %v2804 = vrot.slane %v2733, 2
      %v2805 = vrot.slane %v2734, 2
      %v2806 = vsel %vm333, %v2804, %v2805
      %v2807 = vrot.slane %v2735, 2
      %v2808 = vrot.slane %v2736, 2
      %v2809 = vsel %vm333, %v2807, %v2808
      %v2810 = vrot.slane %v2737, 2
      %v2811 = vrot.slane %v2738, 2
      %v2812 = vsel %vm333, %v2810, %v2811
      %v2813 = vrot.slane %v2739, 2
      %v2814 = vrot.slane %v2740, 2
      %v2815 = vsel %vm333, %v2813, %v2814
      %v2816 = vrot.slane %v2741, 2
      %v2817 = vrot.slane %v2742, 2
      %v2818 = vsel %vm333, %v2816, %v2817
      %v2829 = vrot.slane %v2743, 1
      %v2830 = vrot.slane %v2744, 1
      %v2831 = vsel %vm300, %v2829, %v2830
      %v2833 = vrot.slane %v2743, 2
      %v2834 = vrot.slane %v2744, 2
      %v2835 = vsel %vm333, %v2833, %v2834
      %v2839 = vrot.slane %v2745, 1
      %v2840 = vrot.slane %v2746, 1
      %v2841 = vsel %vm300, %v2839, %v2840
      %v2843 = vrot.slane %v2745, 2
      %v2844 = vrot.slane %v2746, 2
      %v2845 = vsel %vm333, %v2843, %v2844
      %s2847 = scalar_lea.vmem %s1, 3456
      %v2848 = vld [vmem:[%s2847] sm:$0xff]
      %v2849 = vld [vmem:[%s2847 + $0x8] sm:$0xff]
      %v2850 = vld [vmem:[%s2847 + $0x10] sm:$0xff]
      %v2851 = vld [vmem:[%s2847 + $0x18] sm:$0xff]
      %v2852 = vld [vmem:[%s2847 + $0x20] sm:$0xff]
      %v2853 = vld [vmem:[%s2847 + $0x28] sm:$0xff]
      %v2854 = vld [vmem:[%s2847 + $0x30] sm:$0xff]
      %v2855 = vld [vmem:[%s2847 + $0x38] sm:$0xff]
      %v2856 = vld [vmem:[%s2847 + $0x40] sm:$0xff]
      %v2857 = vld [vmem:[%s2847 + $0x48] sm:$0xff]
      %v2858 = vld [vmem:[%s2847 + $0x50] sm:$0xff]
      %v2859 = vld [vmem:[%s2847 + $0x58] sm:$0xff]
      %v2860 = vld [vmem:[%s2847 + $0x60] sm:$0xff]
      %v2861 = vld [vmem:[%s2847 + $0x68] sm:$0xff]
      %v2862 = vld [vmem:[%s2847 + $0x70] sm:$0xff]
      %v2863 = vld [vmem:[%s2847 + $0x78] sm:$0xff]
      %v2864 = vld [vmem:[%s2847 + $0x80] sm:$0xff]
      %v2865 = vld [vmem:[%s2847 + $0x88] sm:$0xff]
      %v2866 = vld [vmem:[%s2847 + $0x90] sm:$0xff]
      %v2867 = vld [vmem:[%s2847 + $0x98] sm:$0xff]
      %v2868 = vld [vmem:[%s2847 + $0xa0] sm:$0xff]
      %v2869 = vld [vmem:[%s2847 + $0xa8] sm:$0xff]
      %v2870 = vld [vmem:[%s2847 + $0xb0] sm:$0xff]
      %v2871 = vld [vmem:[%s2847 + $0xb8] sm:$0xff]
      %v2872 = vld [vmem:[%s2847 + $0xc0] sm:$0xff]
      %v2873 = vld [vmem:[%s2847 + $0xc8] sm:$0xff]
      %v2874 = vld [vmem:[%s2847 + $0xd0] sm:$0xff]
      %v2875 = vld [vmem:[%s2847 + $0xd8] sm:$0xff]
      %v2876 = vld [vmem:[%s2847 + $0xe0] sm:$0xff]
      %v2877 = vld [vmem:[%s2847 + $0xe8] sm:$0xff]
      %v2878 = vld [vmem:[%s2847 + $0xf0] sm:$0xff]
      %v2879 = vld [vmem:[%s2847 + $0xf8] sm:$0xff]
      %v2880 = vld [vmem:[%s2847 + $0x100] sm:$0xff]
      %v2881 = vld [vmem:[%s2847 + $0x108] sm:$0xff]
      %v2882 = vld [vmem:[%s2847 + $0x110] sm:$0xff]
      %v2883 = vld [vmem:[%s2847 + $0x118] sm:$0xff]
      %v2884 = vld [vmem:[%s2847 + $0x120] sm:$0xff]
      %v2885 = vld [vmem:[%s2847 + $0x128] sm:$0xff]
      %v2886 = vld [vmem:[%s2847 + $0x130] sm:$0xff]
      %v2887 = vld [vmem:[%s2847 + $0x138] sm:$0xff]
      %v2888 = vld [vmem:[%s2847 + $0x140] sm:$0xff]
      %v2889 = vld [vmem:[%s2847 + $0x148] sm:$0xff]
      %v2890 = vld [vmem:[%s2847 + $0x150] sm:$0xff]
      %v2891 = vld [vmem:[%s2847 + $0x158] sm:$0xff]
      %v2892 = vld [vmem:[%s2847 + $0x160] sm:$0xff]
      %v2893 = vld [vmem:[%s2847 + $0x168] sm:$0xff]
      %v2894 = vld [vmem:[%s2847 + $0x170] sm:$0xff]
      %v2895 = vld [vmem:[%s2847 + $0x178] sm:$0xff]
      %v2896 = vld [vmem:[%s2847 + $0x180] sm:$0xff]
      %v2897 = vld [vmem:[%s2847 + $0x188] sm:$0xff]
      %v2898 = vld [vmem:[%s2847 + $0x190] sm:$0xff]
      %v2899 = vld [vmem:[%s2847 + $0x198] sm:$0xff]
      %v2900 = vld [vmem:[%s2847 + $0x1a0] sm:$0xff]
      %v2901 = vld [vmem:[%s2847 + $0x1a8] sm:$0xff]
      %v2902 = vld [vmem:[%s2847 + $0x1b0] sm:$0xff]
      %v2903 = vld [vmem:[%s2847 + $0x1b8] sm:$0xff]
      %v2904 = vld [vmem:[%s2847 + $0x1c0] sm:$0xff]
      %v2905 = vld [vmem:[%s2847 + $0x1c8] sm:$0xff]
      %v2906 = vld [vmem:[%s2847 + $0x1d0] sm:$0xff]
      %v2907 = vld [vmem:[%s2847 + $0x1d8] sm:$0xff]
      %v2908 = vld [vmem:[%s2847 + $0x1e0] sm:$0xff]
      %v2909 = vld [vmem:[%s2847 + $0x1e8] sm:$0xff]
      %v2910 = vld [vmem:[%s2847 + $0x1f0] sm:$0xff]
      %v2911 = vld [vmem:[%s2847 + $0x1f8] sm:$0xff]
      %v2912 = vld [vmem:[%s2847 + $0x200] sm:$0xff]
      %v2913 = vld [vmem:[%s2847 + $0x208] sm:$0xff]
      %v2914 = vld [vmem:[%s2847 + $0x210] sm:$0xff]
      %v2915 = vld [vmem:[%s2847 + $0x218] sm:$0xff]
      %v2916 = vld [vmem:[%s2847 + $0x220] sm:$0xff]
      %v2917 = vld [vmem:[%s2847 + $0x228] sm:$0xff]
      %v2918 = vld [vmem:[%s2847 + $0x230] sm:$0xff]
      %v2919 = vld [vmem:[%s2847 + $0x238] sm:$0xff]
      %v2920 = vld [vmem:[%s2847 + $0x240] sm:$0xff]
      %v2921 = vld [vmem:[%s2847 + $0x248] sm:$0xff]
      %v2922 = vld [vmem:[%s2847 + $0x250] sm:$0xff]
      %v2923 = vld [vmem:[%s2847 + $0x258] sm:$0xff]
      %v2924 = vld [vmem:[%s2847 + $0x260] sm:$0xff]
      %v2925 = vld [vmem:[%s2847 + $0x268] sm:$0xff]
      %v2926 = vld [vmem:[%s2847 + $0x270] sm:$0xff]
      %v2927 = vld [vmem:[%s2847 + $0x278] sm:$0xff]
      %v2928 = vld [vmem:[%s2847 + $0x280] sm:$0xff]
      %v2929 = vld [vmem:[%s2847 + $0x288] sm:$0xff]
      %v2930 = vld [vmem:[%s2847 + $0x290] sm:$0xff]
      %v2931 = vld [vmem:[%s2847 + $0x298] sm:$0xff]
      %v2932 = vld [vmem:[%s2847 + $0x2a0] sm:$0xff]
      %v2933 = vld [vmem:[%s2847 + $0x2a8] sm:$0xff]
      %v2934 = vld [vmem:[%s2847 + $0x2b0] sm:$0xff]
      %v2935 = vld [vmem:[%s2847 + $0x2b8] sm:$0xff]
      %v2936 = vld [vmem:[%s2847 + $0x2c0] sm:$0xff]
      %v2937 = vld [vmem:[%s2847 + $0x2c8] sm:$0xff]
      %v2938 = vld [vmem:[%s2847 + $0x2d0] sm:$0xff]
      %v2939 = vld [vmem:[%s2847 + $0x2d8] sm:$0xff]
      %v2940 = vld [vmem:[%s2847 + $0x2e0] sm:$0xff]
      %v2941 = vld [vmem:[%s2847 + $0x2e8] sm:$0xff]
      %v2942 = vld [vmem:[%s2847 + $0x2f0] sm:$0xff]
      %v2943 = vld [vmem:[%s2847 + $0x2f8] sm:$0xff]
      %v2944 = vld [vmem:[%s2847 + $0x300] sm:$0xff]
      %v2945 = vld [vmem:[%s2847 + $0x308] sm:$0xff]
      %v2946 = vld [vmem:[%s2847 + $0x310] sm:$0xff]
      %v2947 = vld [vmem:[%s2847 + $0x318] sm:$0xff]
      %v2948 = vld [vmem:[%s2847 + $0x320] sm:$0xff]
      %v2949 = vld [vmem:[%s2847 + $0x328] sm:$0xff]
      %v2950 = vld [vmem:[%s2847 + $0x330] sm:$0xff]
      %v2951 = vld [vmem:[%s2847 + $0x338] sm:$0xff]
      %v2952 = vld [vmem:[%s2847 + $0x340] sm:$0xff]
      %v2953 = vld [vmem:[%s2847 + $0x348] sm:$0xff]
      %v2954 = vld [vmem:[%s2847 + $0x350] sm:$0xff]
      %v2955 = vld [vmem:[%s2847 + $0x358] sm:$0xff]
      %v2956 = vld [vmem:[%s2847 + $0x360] sm:$0xff]
      %v2957 = vld [vmem:[%s2847 + $0x368] sm:$0xff]
      %v2958 = vld [vmem:[%s2847 + $0x370] sm:$0xff]
      %v2959 = vld [vmem:[%s2847 + $0x378] sm:$0xff]
      %v2960 = vld [vmem:[%s2847 + $0x380] sm:$0xff]
      %v2961 = vld [vmem:[%s2847 + $0x388] sm:$0xff]
      %v2962 = vld [vmem:[%s2847 + $0x390] sm:$0xff]
      %v2963 = vld [vmem:[%s2847 + $0x398] sm:$0xff]
      %v2964 = vld [vmem:[%s2847 + $0x3a0] sm:$0xff]
      %v2965 = vld [vmem:[%s2847 + $0x3a8] sm:$0xff]
      %v2966 = vld [vmem:[%s2847 + $0x3b0] sm:$0xff]
      %v2967 = vld [vmem:[%s2847 + $0x3b8] sm:$0xff]
      %v2968 = vld [vmem:[%s2847 + $0x3c0] sm:$0xff]
      %v2969 = vld [vmem:[%s2847 + $0x3c8] sm:$0xff]
      %v2970 = vld [vmem:[%s2847 + $0x3d0] sm:$0xff]
      %v2971 = vld [vmem:[%s2847 + $0x3d8] sm:$0xff]
      %v2972 = vld [vmem:[%s2847 + $0x3e0] sm:$0xff]
      %v2973 = vld [vmem:[%s2847 + $0x3e8] sm:$0xff]
      %v2974 = vld [vmem:[%s2847 + $0x3f0] sm:$0xff]
      %v2975 = vld [vmem:[%s2847 + $0x3f8] sm:$0xff]
      %v2976 = vld [vmem:[%s2847 + $0x400] sm:$0xff]
      %v2977 = vld [vmem:[%s2847 + $0x408] sm:$0xff]
      %v2978 = vld [vmem:[%s2847 + $0x410] sm:$0xff]
      %v2979 = vld [vmem:[%s2847 + $0x418] sm:$0xff]
      %v2980 = vld [vmem:[%s2847 + $0x420] sm:$0xff]
      %v2981 = vld [vmem:[%s2847 + $0x428] sm:$0xff]
      %v2982 = vld [vmem:[%s2847 + $0x430] sm:$0xff]
      %v2983 = vld [vmem:[%s2847 + $0x438] sm:$0xff]
      %v2984 = vld [vmem:[%s2847 + $0x440] sm:$0xff]
      %v2985 = vld [vmem:[%s2847 + $0x448] sm:$0xff]
      %v2986 = vld [vmem:[%s2847 + $0x450] sm:$0xff]
      %v2987 = vld [vmem:[%s2847 + $0x458] sm:$0xff]
      %v2988 = vld [vmem:[%s2847 + $0x460] sm:$0xff]
      %v2989 = vld [vmem:[%s2847 + $0x468] sm:$0xff]
      %v2990 = vld [vmem:[%s2847 + $0x470] sm:$0xff]
      %v2991 = vld [vmem:[%s2847 + $0x478] sm:$0xff]
      %s2992 = scalar_lea.vmem %s2, 3
      %v2993 = vld [vmem:[%s2992] sm:$0x1]
      %v2995 = vlaneseq
      %v2996 = vshrl.u32 %v2995, 7
      %v2997 = vsub.s32 0, %v2996
      %v2998 = vrot.slane %v2993, %v2997
      %3000 = vmatprep.subr.mxu0 0.0
      %3001 = vmatpush1.msra.mxu0 %v2863
      %3002 = vmatprep.subr.mxu0 0.0
      %3003 = vmatpush1.msra.mxu0 %v2862
      %3004 = vmatprep.subr.mxu0 0.0
      %3005 = vmatpush1.msra.mxu0 %v2861
      %3006 = vmatprep.subr.mxu0 0.0
      %3007 = vmatpush1.msra.mxu0 %v2860
      %3008 = vmatprep.subr.mxu0 0.0
      %3009 = vmatpush1.msra.mxu0 %v2859
      %3010 = vmatprep.subr.mxu0 0.0
      %3011 = vmatpush1.msra.mxu0 %v2858
      %3012 = vmatprep.subr.mxu0 0.0
      %3013 = vmatpush1.msra.mxu0 %v2857
      %3014 = vmatprep.subr.mxu0 0.0
      %3015 = vmatpush1.msra.mxu0 %v2856
      %3016 = vmatprep.subr.mxu0 0.0
      %3017 = vmatpush1.msra.mxu0 %v2855
      %3018 = vmatprep.subr.mxu0 0.0
      %3019 = vmatpush1.msra.mxu0 %v2854
      %3020 = vmatprep.subr.mxu0 0.0
      %3021 = vmatpush1.msra.mxu0 %v2853
      %3022 = vmatprep.subr.mxu0 0.0
      %3023 = vmatpush1.msra.mxu0 %v2852
      %3024 = vmatprep.subr.mxu0 0.0
      %3025 = vmatpush1.msra.mxu0 %v2851
      %3026 = vmatprep.subr.mxu0 0.0
      %3027 = vmatpush1.msra.mxu0 %v2850
      %3028 = vmatprep.subr.mxu0 0.0
      %3029 = vmatpush1.msra.mxu0 %v2849
      %3030 = vmatprep.subr.mxu0 0.0
      %3031 = vmatpush1.msra.mxu0 %v2848
      %3032 = vmatprep.subr.mxu0 0.0
      %3033 = vmatpush2.msra.mxu0 %v2879
      %3034 = vmatprep.subr.mxu0 0.0
      %3035 = vmatpush2.msra.mxu0 %v2878
      %3036 = vmatprep.subr.mxu0 0.0
      %3037 = vmatpush2.msra.mxu0 %v2877
      %3038 = vmatprep.subr.mxu0 0.0
      %3039 = vmatpush2.msra.mxu0 %v2876
      %3040 = vmatprep.subr.mxu0 0.0
      %3041 = vmatpush2.msra.mxu0 %v2875
      %3042 = vmatprep.subr.mxu0 0.0
      %3043 = vmatpush2.msra.mxu0 %v2874
      %3044 = vmatprep.subr.mxu0 0.0
      %3045 = vmatpush2.msra.mxu0 %v2873
      %3046 = vmatprep.subr.mxu0 0.0
      %3047 = vmatpush2.msra.mxu0 %v2872
      %3048 = vmatprep.subr.mxu0 0.0
      %3049 = vmatpush2.msra.mxu0 %v2871
      %3050 = vmatprep.subr.mxu0 0.0
      %3051 = vmatpush2.msra.mxu0 %v2870
      %3052 = vmatprep.subr.mxu0 0.0
      %3053 = vmatpush2.msra.mxu0 %v2869
      %3054 = vmatprep.subr.mxu0 0.0
      %3055 = vmatpush2.msra.mxu0 %v2868
      %3056 = vmatprep.subr.mxu0 0.0
      %3057 = vmatpush2.msra.mxu0 %v2867
      %3058 = vmatprep.subr.mxu0 0.0
      %3059 = vmatpush2.msra.mxu0 %v2866
      %3060 = vmatprep.subr.mxu0 0.0
      %3061 = vmatpush2.msra.mxu0 %v2865
      %3062 = vmatprep.subr.mxu0 0.0
      %3063 = vmatpush2.msra.mxu0 %v2864
      %3064 = vmatprep.mubr.f32.mxu0 %v2765
      %3065 = vmatmul.mubr.f32.gmra.mxu0 %v2727
      %v3066 = vpop.f32.mrf.mxu0
      %v3067 = vadd.f32 %v2998, %v3066
      %v3068 = vpop.f32.mrf.mxu0
      %3069 = vmatprep.mubr.f32.mxu0 %v2768
      %3070 = vmatmul.mubr.f32.gmra.mxu0 %v2729
      %v3071 = vpop.f32.mrf.mxu0
      %v3072 = vadd.f32 %v2998, %v3071
      %v3073 = vpop.f32.mrf.mxu0
      %3074 = vmatprep.mubr.f32.mxu0 %v2771
      %3075 = vmatmul.mubr.f32.gmra.mxu0 %v2731
      %v3076 = vpop.f32.mrf.mxu0
      %v3077 = vadd.f32 %v2998, %v3076
      %v3078 = vpop.f32.mrf.mxu0
      %3079 = vmatprep.mubr.f32.mxu0 %v2774
      %3080 = vmatmul.mubr.f32.gmra.mxu0 %v2733
      %v3081 = vpop.f32.mrf.mxu0
      %v3082 = vadd.f32 %v2998, %v3081
      %v3083 = vpop.f32.mrf.mxu0
      %3084 = vmatprep.mubr.f32.mxu0 %v2777
      %3085 = vmatmul.mubr.f32.gmra.mxu0 %v2735
      %v3086 = vpop.f32.mrf.mxu0
      %v3087 = vadd.f32 %v2998, %v3086
      %v3088 = vpop.f32.mrf.mxu0
      %3089 = vmatprep.mubr.f32.mxu0 %v2780
      %3090 = vmatmul.mubr.f32.gmra.mxu0 %v2737
      %v3091 = vpop.f32.mrf.mxu0
      %v3092 = vadd.f32 %v2998, %v3091
      %v3093 = vpop.f32.mrf.mxu0
      %3094 = vmatprep.mubr.f32.mxu0 %v2783
      %3095 = vmatmul.mubr.f32.gmra.mxu0 %v2739
      %v3096 = vpop.f32.mrf.mxu0
      %v3097 = vadd.f32 %v2998, %v3096
      %v3098 = vpop.f32.mrf.mxu0
      %3099 = vmatprep.mubr.f32.mxu0 %v2786
      %3100 = vmatmul.mubr.f32.gmra.mxu0 %v2741
      %v3101 = vpop.f32.mrf.mxu0
      %v3102 = vadd.f32 %v2998, %v3101
      %v3103 = vpop.f32.mrf.mxu0
      %3104 = vdwg.mxu0
      %3105 = vmatprep.subr.mxu0 0.0
      %3106 = vmatpush1.msra.mxu0 %v2895
      %3107 = vmatprep.subr.mxu0 0.0
      %3108 = vmatpush1.msra.mxu0 %v2894
      %3109 = vmatprep.subr.mxu0 0.0
      %3110 = vmatpush1.msra.mxu0 %v2893
      %3111 = vmatprep.subr.mxu0 0.0
      %3112 = vmatpush1.msra.mxu0 %v2892
      %3113 = vmatprep.subr.mxu0 0.0
      %3114 = vmatpush1.msra.mxu0 %v2891
      %3115 = vmatprep.subr.mxu0 0.0
      %3116 = vmatpush1.msra.mxu0 %v2890
      %3117 = vmatprep.subr.mxu0 0.0
      %3118 = vmatpush1.msra.mxu0 %v2889
      %3119 = vmatprep.subr.mxu0 0.0
      %3120 = vmatpush1.msra.mxu0 %v2888
      %3121 = vmatprep.subr.mxu0 0.0
      %3122 = vmatpush1.msra.mxu0 %v2887
      %3123 = vmatprep.subr.mxu0 0.0
      %3124 = vmatpush1.msra.mxu0 %v2886
      %3125 = vmatprep.subr.mxu0 0.0
      %3126 = vmatpush1.msra.mxu0 %v2885
      %3127 = vmatprep.subr.mxu0 0.0
      %3128 = vmatpush1.msra.mxu0 %v2884
      %3129 = vmatprep.subr.mxu0 0.0
      %3130 = vmatpush1.msra.mxu0 %v2883
      %3131 = vmatprep.subr.mxu0 0.0
      %3132 = vmatpush1.msra.mxu0 %v2882
      %3133 = vmatprep.subr.mxu0 0.0
      %3134 = vmatpush1.msra.mxu0 %v2881
      %3135 = vmatprep.subr.mxu0 0.0
      %3136 = vmatpush1.msra.mxu0 %v2880
      %3137 = vmatprep.subr.mxu0 0.0
      %3138 = vmatpush2.msra.mxu0 %v2911
      %3139 = vmatprep.subr.mxu0 0.0
      %3140 = vmatpush2.msra.mxu0 %v2910
      %3141 = vmatprep.subr.mxu0 0.0
      %3142 = vmatpush2.msra.mxu0 %v2909
      %3143 = vmatprep.subr.mxu0 0.0
      %3144 = vmatpush2.msra.mxu0 %v2908
      %3145 = vmatprep.subr.mxu0 0.0
      %3146 = vmatpush2.msra.mxu0 %v2907
      %3147 = vmatprep.subr.mxu0 0.0
      %3148 = vmatpush2.msra.mxu0 %v2906
      %3149 = vmatprep.subr.mxu0 0.0
      %3150 = vmatpush2.msra.mxu0 %v2905
      %3151 = vmatprep.subr.mxu0 0.0
      %3152 = vmatpush2.msra.mxu0 %v2904
      %3153 = vmatprep.subr.mxu0 0.0
      %3154 = vmatpush2.msra.mxu0 %v2903
      %3155 = vmatprep.subr.mxu0 0.0
      %3156 = vmatpush2.msra.mxu0 %v2902
      %3157 = vmatprep.subr.mxu0 0.0
      %3158 = vmatpush2.msra.mxu0 %v2901
      %3159 = vmatprep.subr.mxu0 0.0
      %3160 = vmatpush2.msra.mxu0 %v2900
      %3161 = vmatprep.subr.mxu0 0.0
      %3162 = vmatpush2.msra.mxu0 %v2899
      %3163 = vmatprep.subr.mxu0 0.0
      %3164 = vmatpush2.msra.mxu0 %v2898
      %3165 = vmatprep.subr.mxu0 0.0
      %3166 = vmatpush2.msra.mxu0 %v2897
      %3167 = vmatprep.subr.mxu0 0.0
      %3168 = vmatpush2.msra.mxu0 %v2896
      %3169 = vmatprep.mubr.f32.mxu0 %v2729
      %3170 = vmatmul.mubr.f32.gmra.mxu0 %v2797
      %v3171 = vpop.f32.mrf.mxu0
      %v3172 = vadd.f32 %v3067, %v3171
      %v3173 = vpop.f32.mrf.mxu0
      %3174 = vmatprep.mubr.f32.mxu0 %v2731
      %3175 = vmatmul.mubr.f32.gmra.mxu0 %v2800
      %v3176 = vpop.f32.mrf.mxu0
      %v3177 = vadd.f32 %v3072, %v3176
      %v3178 = vpop.f32.mrf.mxu0
      %3179 = vmatprep.mubr.f32.mxu0 %v2733
      %3180 = vmatmul.mubr.f32.gmra.mxu0 %v2803
      %v3181 = vpop.f32.mrf.mxu0
      %v3182 = vadd.f32 %v3077, %v3181
      %v3183 = vpop.f32.mrf.mxu0
      %3184 = vmatprep.mubr.f32.mxu0 %v2735
      %3185 = vmatmul.mubr.f32.gmra.mxu0 %v2806
      %v3186 = vpop.f32.mrf.mxu0
      %v3187 = vadd.f32 %v3082, %v3186
      %v3188 = vpop.f32.mrf.mxu0
      %3189 = vmatprep.mubr.f32.mxu0 %v2737
      %3190 = vmatmul.mubr.f32.gmra.mxu0 %v2809
      %v3191 = vpop.f32.mrf.mxu0
      %v3192 = vadd.f32 %v3087, %v3191
      %v3193 = vpop.f32.mrf.mxu0
      %3194 = vmatprep.mubr.f32.mxu0 %v2739
      %3195 = vmatmul.mubr.f32.gmra.mxu0 %v2812
      %v3196 = vpop.f32.mrf.mxu0
      %v3197 = vadd.f32 %v3092, %v3196
      %v3198 = vpop.f32.mrf.mxu0
      %3199 = vmatprep.mubr.f32.mxu0 %v2741
      %3200 = vmatmul.mubr.f32.gmra.mxu0 %v2815
      %v3201 = vpop.f32.mrf.mxu0
      %v3202 = vadd.f32 %v3097, %v3201
      %v3203 = vpop.f32.mrf.mxu0
      %3204 = vmatprep.mubr.f32.mxu0 %v2743
      %3205 = vmatmul.mubr.f32.gmra.mxu0 %v2818
      %v3206 = vpop.f32.mrf.mxu0
      %v3207 = vadd.f32 %v3102, %v3206
      %v3208 = vpop.f32.mrf.mxu0
      %3209 = vdwg.mxu0
      %3210 = vmatprep.subr.mxu0 0.0
      %3211 = vmatpush1.msra.mxu0 %v2927
      %3212 = vmatprep.subr.mxu0 0.0
      %3213 = vmatpush1.msra.mxu0 %v2926
      %3214 = vmatprep.subr.mxu0 0.0
      %3215 = vmatpush1.msra.mxu0 %v2925
      %3216 = vmatprep.subr.mxu0 0.0
      %3217 = vmatpush1.msra.mxu0 %v2924
      %3218 = vmatprep.subr.mxu0 0.0
      %3219 = vmatpush1.msra.mxu0 %v2923
      %3220 = vmatprep.subr.mxu0 0.0
      %3221 = vmatpush1.msra.mxu0 %v2922
      %3222 = vmatprep.subr.mxu0 0.0
      %3223 = vmatpush1.msra.mxu0 %v2921
      %3224 = vmatprep.subr.mxu0 0.0
      %3225 = vmatpush1.msra.mxu0 %v2920
      %3226 = vmatprep.subr.mxu0 0.0
      %3227 = vmatpush1.msra.mxu0 %v2919
      %3228 = vmatprep.subr.mxu0 0.0
      %3229 = vmatpush1.msra.mxu0 %v2918
      %3230 = vmatprep.subr.mxu0 0.0
      %3231 = vmatpush1.msra.mxu0 %v2917
      %3232 = vmatprep.subr.mxu0 0.0
      %3233 = vmatpush1.msra.mxu0 %v2916
      %3234 = vmatprep.subr.mxu0 0.0
      %3235 = vmatpush1.msra.mxu0 %v2915
      %3236 = vmatprep.subr.mxu0 0.0
      %3237 = vmatpush1.msra.mxu0 %v2914
      %3238 = vmatprep.subr.mxu0 0.0
      %3239 = vmatpush1.msra.mxu0 %v2913
      %3240 = vmatprep.subr.mxu0 0.0
      %3241 = vmatpush1.msra.mxu0 %v2912
      %3242 = vmatprep.subr.mxu0 0.0
      %3243 = vmatpush2.msra.mxu0 %v2943
      %3244 = vmatprep.subr.mxu0 0.0
      %3245 = vmatpush2.msra.mxu0 %v2942
      %3246 = vmatprep.subr.mxu0 0.0
      %3247 = vmatpush2.msra.mxu0 %v2941
      %3248 = vmatprep.subr.mxu0 0.0
      %3249 = vmatpush2.msra.mxu0 %v2940
      %3250 = vmatprep.subr.mxu0 0.0
      %3251 = vmatpush2.msra.mxu0 %v2939
      %3252 = vmatprep.subr.mxu0 0.0
      %3253 = vmatpush2.msra.mxu0 %v2938
      %3254 = vmatprep.subr.mxu0 0.0
      %3255 = vmatpush2.msra.mxu0 %v2937
      %3256 = vmatprep.subr.mxu0 0.0
      %3257 = vmatpush2.msra.mxu0 %v2936
      %3258 = vmatprep.subr.mxu0 0.0
      %3259 = vmatpush2.msra.mxu0 %v2935
      %3260 = vmatprep.subr.mxu0 0.0
      %3261 = vmatpush2.msra.mxu0 %v2934
      %3262 = vmatprep.subr.mxu0 0.0
      %3263 = vmatpush2.msra.mxu0 %v2933
      %3264 = vmatprep.subr.mxu0 0.0
      %3265 = vmatpush2.msra.mxu0 %v2932
      %3266 = vmatprep.subr.mxu0 0.0
      %3267 = vmatpush2.msra.mxu0 %v2931
      %3268 = vmatprep.subr.mxu0 0.0
      %3269 = vmatpush2.msra.mxu0 %v2930
      %3270 = vmatprep.subr.mxu0 0.0
      %3271 = vmatpush2.msra.mxu0 %v2929
      %3272 = vmatprep.subr.mxu0 0.0
      %3273 = vmatpush2.msra.mxu0 %v2928
      %3274 = vmatprep.mubr.f32.mxu0 %v2800
      %3275 = vmatmul.mubr.f32.gmra.mxu0 %v2768
      %v3276 = vpop.f32.mrf.mxu0
      %v3277 = vadd.f32 %v3172, %v3276
      %v3278 = vpop.f32.mrf.mxu0
      %3279 = vmatprep.mubr.f32.mxu0 %v2803
      %3280 = vmatmul.mubr.f32.gmra.mxu0 %v2771
      %v3281 = vpop.f32.mrf.mxu0
      %v3282 = vadd.f32 %v3177, %v3281
      %v3283 = vpop.f32.mrf.mxu0
      %3284 = vmatprep.mubr.f32.mxu0 %v2806
      %3285 = vmatmul.mubr.f32.gmra.mxu0 %v2774
      %v3286 = vpop.f32.mrf.mxu0
      %v3287 = vadd.f32 %v3182, %v3286
      %v3288 = vpop.f32.mrf.mxu0
      %3289 = vmatprep.mubr.f32.mxu0 %v2809
      %3290 = vmatmul.mubr.f32.gmra.mxu0 %v2777
      %v3291 = vpop.f32.mrf.mxu0
      %v3292 = vadd.f32 %v3187, %v3291
      %v3293 = vpop.f32.mrf.mxu0
      %3294 = vmatprep.mubr.f32.mxu0 %v2812
      %3295 = vmatmul.mubr.f32.gmra.mxu0 %v2780
      %v3296 = vpop.f32.mrf.mxu0
      %v3297 = vadd.f32 %v3192, %v3296
      %v3298 = vpop.f32.mrf.mxu0
      %3299 = vmatprep.mubr.f32.mxu0 %v2815
      %3300 = vmatmul.mubr.f32.gmra.mxu0 %v2783
      %v3301 = vpop.f32.mrf.mxu0
      %v3302 = vadd.f32 %v3197, %v3301
      %v3303 = vpop.f32.mrf.mxu0
      %3304 = vmatprep.mubr.f32.mxu0 %v2818
      %3305 = vmatmul.mubr.f32.gmra.mxu0 %v2786
      %v3306 = vpop.f32.mrf.mxu0
      %v3307 = vadd.f32 %v3202, %v3306
      %v3308 = vpop.f32.mrf.mxu0
      %3309 = vmatprep.mubr.f32.mxu0 %v2835
      %3310 = vmatmul.mubr.f32.gmra.mxu0 %v2831
      %v3311 = vpop.f32.mrf.mxu0
      %v3312 = vadd.f32 %v3207, %v3311
      %v3313 = vpop.f32.mrf.mxu0
      %3314 = vdwg.mxu0
      %3315 = vmatprep.subr.mxu0 0.0
      %3316 = vmatpush1.msra.mxu0 %v2959
      %3317 = vmatprep.subr.mxu0 0.0
      %3318 = vmatpush1.msra.mxu0 %v2958
      %3319 = vmatprep.subr.mxu0 0.0
      %3320 = vmatpush1.msra.mxu0 %v2957
      %3321 = vmatprep.subr.mxu0 0.0
      %3322 = vmatpush1.msra.mxu0 %v2956
      %3323 = vmatprep.subr.mxu0 0.0
      %3324 = vmatpush1.msra.mxu0 %v2955
      %3325 = vmatprep.subr.mxu0 0.0
      %3326 = vmatpush1.msra.mxu0 %v2954
      %3327 = vmatprep.subr.mxu0 0.0
      %3328 = vmatpush1.msra.mxu0 %v2953
      %3329 = vmatprep.subr.mxu0 0.0
      %3330 = vmatpush1.msra.mxu0 %v2952
      %3331 = vmatprep.subr.mxu0 0.0
      %3332 = vmatpush1.msra.mxu0 %v2951
      %3333 = vmatprep.subr.mxu0 0.0
      %3334 = vmatpush1.msra.mxu0 %v2950
      %3335 = vmatprep.subr.mxu0 0.0
      %3336 = vmatpush1.msra.mxu0 %v2949
      %3337 = vmatprep.subr.mxu0 0.0
      %3338 = vmatpush1.msra.mxu0 %v2948
      %3339 = vmatprep.subr.mxu0 0.0
      %3340 = vmatpush1.msra.mxu0 %v2947
      %3341 = vmatprep.subr.mxu0 0.0
      %3342 = vmatpush1.msra.mxu0 %v2946
      %3343 = vmatprep.subr.mxu0 0.0
      %3344 = vmatpush1.msra.mxu0 %v2945
      %3345 = vmatprep.subr.mxu0 0.0
      %3346 = vmatpush1.msra.mxu0 %v2944
      %3347 = vmatprep.subr.mxu0 0.0
      %3348 = vmatpush2.msra.mxu0 %v2975
      %3349 = vmatprep.subr.mxu0 0.0
      %3350 = vmatpush2.msra.mxu0 %v2974
      %3351 = vmatprep.subr.mxu0 0.0
      %3352 = vmatpush2.msra.mxu0 %v2973
      %3353 = vmatprep.subr.mxu0 0.0
      %3354 = vmatpush2.msra.mxu0 %v2972
      %3355 = vmatprep.subr.mxu0 0.0
      %3356 = vmatpush2.msra.mxu0 %v2971
      %3357 = vmatprep.subr.mxu0 0.0
      %3358 = vmatpush2.msra.mxu0 %v2970
      %3359 = vmatprep.subr.mxu0 0.0
      %3360 = vmatpush2.msra.mxu0 %v2969
      %3361 = vmatprep.subr.mxu0 0.0
      %3362 = vmatpush2.msra.mxu0 %v2968
      %3363 = vmatprep.subr.mxu0 0.0
      %3364 = vmatpush2.msra.mxu0 %v2967
      %3365 = vmatprep.subr.mxu0 0.0
      %3366 = vmatpush2.msra.mxu0 %v2966
      %3367 = vmatprep.subr.mxu0 0.0
      %3368 = vmatpush2.msra.mxu0 %v2965
      %3369 = vmatprep.subr.mxu0 0.0
      %3370 = vmatpush2.msra.mxu0 %v2964
      %3371 = vmatprep.subr.mxu0 0.0
      %3372 = vmatpush2.msra.mxu0 %v2963
      %3373 = vmatprep.subr.mxu0 0.0
      %3374 = vmatpush2.msra.mxu0 %v2962
      %3375 = vmatprep.subr.mxu0 0.0
      %3376 = vmatpush2.msra.mxu0 %v2961
      %3377 = vmatprep.subr.mxu0 0.0
      %3378 = vmatpush2.msra.mxu0 %v2960
      %3379 = vmatprep.mubr.f32.mxu0 %v2771
      %3380 = vmatmul.mubr.f32.gmra.mxu0 %v2731
      %v3381 = vpop.f32.mrf.mxu0
      %v3382 = vadd.f32 %v3277, %v3381
      %v3383 = vpop.f32.mrf.mxu0
      %3384 = vmatprep.mubr.f32.mxu0 %v2774
      %3385 = vmatmul.mubr.f32.gmra.mxu0 %v2733
      %v3386 = vpop.f32.mrf.mxu0
      %v3387 = vadd.f32 %v3282, %v3386
      %v3388 = vpop.f32.mrf.mxu0
      %3389 = vmatprep.mubr.f32.mxu0 %v2777
      %3390 = vmatmul.mubr.f32.gmra.mxu0 %v2735
      %v3391 = vpop.f32.mrf.mxu0
      %v3392 = vadd.f32 %v3287, %v3391
      %v3393 = vpop.f32.mrf.mxu0
      %3394 = vmatprep.mubr.f32.mxu0 %v2780
      %3395 = vmatmul.mubr.f32.gmra.mxu0 %v2737
      %v3396 = vpop.f32.mrf.mxu0
      %v3397 = vadd.f32 %v3292, %v3396
      %v3398 = vpop.f32.mrf.mxu0
      %3399 = vmatprep.mubr.f32.mxu0 %v2783
      %3400 = vmatmul.mubr.f32.gmra.mxu0 %v2739
      %v3401 = vpop.f32.mrf.mxu0
      %v3402 = vadd.f32 %v3297, %v3401
      %v3403 = vpop.f32.mrf.mxu0
      %3404 = vmatprep.mubr.f32.mxu0 %v2786
      %3405 = vmatmul.mubr.f32.gmra.mxu0 %v2741
      %v3406 = vpop.f32.mrf.mxu0
      %v3407 = vadd.f32 %v3302, %v3406
      %v3408 = vpop.f32.mrf.mxu0
      %3409 = vmatprep.mubr.f32.mxu0 %v2831
      %3410 = vmatmul.mubr.f32.gmra.mxu0 %v2743
      %v3411 = vpop.f32.mrf.mxu0
      %v3412 = vadd.f32 %v3307, %v3411
      %v3413 = vpop.f32.mrf.mxu0
      %3414 = vmatprep.mubr.f32.mxu0 %v2841
      %3415 = vmatmul.mubr.f32.gmra.mxu0 %v2745
      %v3416 = vpop.f32.mrf.mxu0
      %v3417 = vadd.f32 %v3312, %v3416
      %v3418 = vpop.f32.mrf.mxu0
      %3419 = vdwg.mxu0
      %3420 = vmatprep.subr.mxu0 0.0
      %3421 = vmatpush1.msra.mxu0 %v2991
      %3422 = vmatprep.subr.mxu0 0.0
      %3423 = vmatpush1.msra.mxu0 %v2990
      %3424 = vmatprep.subr.mxu0 0.0
      %3425 = vmatpush1.msra.mxu0 %v2989
      %3426 = vmatprep.subr.mxu0 0.0
      %3427 = vmatpush1.msra.mxu0 %v2988
      %3428 = vmatprep.subr.mxu0 0.0
      %3429 = vmatpush1.msra.mxu0 %v2987
      %3430 = vmatprep.subr.mxu0 0.0
      %3431 = vmatpush1.msra.mxu0 %v2986
      %3432 = vmatprep.subr.mxu0 0.0
      %3433 = vmatpush1.msra.mxu0 %v2985
      %3434 = vmatprep.subr.mxu0 0.0
      %3435 = vmatpush1.msra.mxu0 %v2984
      %3436 = vmatprep.subr.mxu0 0.0
      %3437 = vmatpush1.msra.mxu0 %v2983
      %3438 = vmatprep.subr.mxu0 0.0
      %3439 = vmatpush1.msra.mxu0 %v2982
      %3440 = vmatprep.subr.mxu0 0.0
      %3441 = vmatpush1.msra.mxu0 %v2981
      %3442 = vmatprep.subr.mxu0 0.0
      %3443 = vmatpush1.msra.mxu0 %v2980
      %3444 = vmatprep.subr.mxu0 0.0
      %3445 = vmatpush1.msra.mxu0 %v2979
      %3446 = vmatprep.subr.mxu0 0.0
      %3447 = vmatpush1.msra.mxu0 %v2978
      %3448 = vmatprep.subr.mxu0 0.0
      %3449 = vmatpush1.msra.mxu0 %v2977
      %3450 = vmatprep.subr.mxu0 0.0
      %3451 = vmatpush1.msra.mxu0 %v2976
      %3452 = vmatprep.subr.mxu0 0.0
      %3453 = vmatpush2.msra.mxu0 0.0
      %3454 = vmatprep.subr.mxu0 0.0
      %3455 = vmatpush2.msra.mxu0 0.0
      %3456 = vmatprep.subr.mxu0 0.0
      %3457 = vmatpush2.msra.mxu0 0.0
      %3458 = vmatprep.subr.mxu0 0.0
      %3459 = vmatpush2.msra.mxu0 0.0
      %3460 = vmatprep.subr.mxu0 0.0
      %3461 = vmatpush2.msra.mxu0 0.0
      %3462 = vmatprep.subr.mxu0 0.0
      %3463 = vmatpush2.msra.mxu0 0.0
      %3464 = vmatprep.subr.mxu0 0.0
      %3465 = vmatpush2.msra.mxu0 0.0
      %3466 = vmatprep.subr.mxu0 0.0
      %3467 = vmatpush2.msra.mxu0 0.0
      %3468 = vmatprep.subr.mxu0 0.0
      %3469 = vmatpush2.msra.mxu0 0.0
      %3470 = vmatprep.subr.mxu0 0.0
      %3471 = vmatpush2.msra.mxu0 0.0
      %3472 = vmatprep.subr.mxu0 0.0
      %3473 = vmatpush2.msra.mxu0 0.0
      %3474 = vmatprep.subr.mxu0 0.0
      %3475 = vmatpush2.msra.mxu0 0.0
      %3476 = vmatprep.subr.mxu0 0.0
      %3477 = vmatpush2.msra.mxu0 0.0
      %3478 = vmatprep.subr.mxu0 0.0
      %3479 = vmatpush2.msra.mxu0 0.0
      %3480 = vmatprep.subr.mxu0 0.0
      %3481 = vmatpush2.msra.mxu0 0.0
      %3482 = vmatprep.subr.mxu0 0.0
      %3483 = vmatpush2.msra.mxu0 0.0
      %3484 = vmatprep.mubr.f32.mxu0 0.0
      %3485 = vmatmul.mubr.f32.gmra.mxu0 %v2803
      %v3486 = vpop.f32.mrf.mxu0
      %v3487 = vadd.f32 %v3382, %v3486
      %v3488 = vpop.f32.mrf.mxu0
      %3489 = vmatprep.mubr.f32.mxu0 0.0
      %3490 = vmatmul.mubr.f32.gmra.mxu0 %v2806
      %v3491 = vpop.f32.mrf.mxu0
      %v3492 = vadd.f32 %v3387, %v3491
      %v3493 = vpop.f32.mrf.mxu0
      %3494 = vmatprep.mubr.f32.mxu0 0.0
      %3495 = vmatmul.mubr.f32.gmra.mxu0 %v2809
      %v3496 = vpop.f32.mrf.mxu0
      %v3497 = vadd.f32 %v3392, %v3496
      %v3498 = vpop.f32.mrf.mxu0
      %3499 = vmatprep.mubr.f32.mxu0 0.0
      %3500 = vmatmul.mubr.f32.gmra.mxu0 %v2812
      %v3501 = vpop.f32.mrf.mxu0
      %v3502 = vadd.f32 %v3397, %v3501
      %v3503 = vpop.f32.mrf.mxu0
      %3504 = vmatprep.mubr.f32.mxu0 0.0
      %3505 = vmatmul.mubr.f32.gmra.mxu0 %v2815
      %v3506 = vpop.f32.mrf.mxu0
      %v3507 = vadd.f32 %v3402, %v3506
      %v3508 = vpop.f32.mrf.mxu0
      %3509 = vmatprep.mubr.f32.mxu0 0.0
      %3510 = vmatmul.mubr.f32.gmra.mxu0 %v2818
      %v3511 = vpop.f32.mrf.mxu0
      %v3512 = vadd.f32 %v3407, %v3511
      %v3513 = vpop.f32.mrf.mxu0
      %3514 = vmatprep.mubr.f32.mxu0 0.0
      %3515 = vmatmul.mubr.f32.gmra.mxu0 %v2835
      %v3516 = vpop.f32.mrf.mxu0
      %v3517 = vadd.f32 %v3412, %v3516
      %v3518 = vpop.f32.mrf.mxu0
      %3519 = vmatprep.mubr.f32.mxu0 0.0
      %3520 = vmatmul.mubr.f32.gmra.mxu0 %v2845
      %v3521 = vpop.f32.mrf.mxu0
      %v3522 = vadd.f32 %v3417, %v3521
      %v3523 = vpop.f32.mrf.mxu0
      %3524 = vdwg.mxu0
      %v3525 = vmax.f32 %v3487, 0.0
      %v3526 = vmax.f32 %v3492, 0.0
      %v3527 = vmax.f32 %v3497, 0.0
      %v3528 = vmax.f32 %v3502, 0.0
      %v3529 = vmax.f32 %v3507, 0.0
      %v3530 = vmax.f32 %v3512, 0.0
      %v3531 = vmax.f32 %v3517, 0.0
      %v3532 = vmax.f32 %v3522, 0.0
      %3533 = vst.msk [vmem:[%s255 + $0x1] sm:$0xff] %vm1090, %v3525
      %3534 = vst.msk [vmem:[%s255 + $0x11] sm:$0xff] %vm1090, %v3526
      %3535 = vst.msk [vmem:[%s255 + $0x21] sm:$0xff] %vm1090, %v3527
      %3536 = vst.msk [vmem:[%s255 + $0x31] sm:$0xff] %vm1090, %v3528
      %3537 = vst.msk [vmem:[%s255 + $0x41] sm:$0xff] %vm1090, %v3529
      %3538 = vst.msk [vmem:[%s255 + $0x51] sm:$0xff] %vm1090, %v3530
      %3539 = vst.msk [vmem:[%s255 + $0x61] sm:$0xff] %vm1090, %v3531
      %3540 = vst.msk [vmem:[%s255 + $0x71] sm:$0xff] %vm1090, %v3532
      %v3541 = vld [vmem:[#allocation2] sm:$0xff]
      %v3542 = vld [vmem:[#allocation2 + $0x8] sm:$0x3]
      %v3543 = vld [vmem:[#allocation2 + $0x10] sm:$0xff]
      %v3544 = vld [vmem:[#allocation2 + $0x18] sm:$0x3]
      %v3545 = vld [vmem:[#allocation2 + $0x20] sm:$0xff]
      %v3546 = vld [vmem:[#allocation2 + $0x28] sm:$0x3]
      %v3547 = vld [vmem:[#allocation2 + $0x30] sm:$0xff]
      %v3548 = vld [vmem:[#allocation2 + $0x38] sm:$0x3]
      %v3549 = vld [vmem:[#allocation2 + $0x40] sm:$0xff]
      %v3550 = vld [vmem:[#allocation2 + $0x48] sm:$0x3]
      %v3551 = vld [vmem:[#allocation2 + $0x50] sm:$0xff]
      %v3552 = vld [vmem:[#allocation2 + $0x58] sm:$0x3]
      %v3553 = vld [vmem:[#allocation2 + $0x60] sm:$0xff]
      %v3554 = vld [vmem:[#allocation2 + $0x68] sm:$0x3]
      %v3555 = vld [vmem:[#allocation2 + $0x70] sm:$0xff]
      %v3556 = vld [vmem:[#allocation2 + $0x78] sm:$0x3]
      %v3557 = vld [vmem:[#allocation2 + $0x80] sm:$0xff]
      %v3558 = vld [vmem:[#allocation2 + $0x88] sm:$0x3]
      %v3559 = vld [vmem:[#allocation2 + $0x90] sm:$0xff]
      %v3560 = vld [vmem:[#allocation2 + $0x98] sm:$0x3]
      %v3577 = vrot.slane %v3541, 1
      %v3578 = vrot.slane %v3542, 1
      %v3579 = vsel %vm300, %v3577, %v3578
      %v3580 = vrot.slane %v3543, 1
      %v3581 = vrot.slane %v3544, 1
      %v3582 = vsel %vm300, %v3580, %v3581
      %v3583 = vrot.slane %v3545, 1
      %v3584 = vrot.slane %v3546, 1
      %v3585 = vsel %vm300, %v3583, %v3584
      %v3586 = vrot.slane %v3547, 1
      %v3587 = vrot.slane %v3548, 1
      %v3588 = vsel %vm300, %v3586, %v3587
      %v3589 = vrot.slane %v3549, 1
      %v3590 = vrot.slane %v3550, 1
      %v3591 = vsel %vm300, %v3589, %v3590
      %v3592 = vrot.slane %v3551, 1
      %v3593 = vrot.slane %v3552, 1
      %v3594 = vsel %vm300, %v3592, %v3593
      %v3595 = vrot.slane %v3553, 1
      %v3596 = vrot.slane %v3554, 1
      %v3597 = vsel %vm300, %v3595, %v3596
      %v3598 = vrot.slane %v3555, 1
      %v3599 = vrot.slane %v3556, 1
      %v3600 = vsel %vm300, %v3598, %v3599
      %v3609 = vrot.slane %v3541, 2
      %v3610 = vrot.slane %v3542, 2
      %v3611 = vsel %vm333, %v3609, %v3610
      %v3612 = vrot.slane %v3543, 2
      %v3613 = vrot.slane %v3544, 2
      %v3614 = vsel %vm333, %v3612, %v3613
      %v3615 = vrot.slane %v3545, 2
      %v3616 = vrot.slane %v3546, 2
      %v3617 = vsel %vm333, %v3615, %v3616
      %v3618 = vrot.slane %v3547, 2
      %v3619 = vrot.slane %v3548, 2
      %v3620 = vsel %vm333, %v3618, %v3619
      %v3621 = vrot.slane %v3549, 2
      %v3622 = vrot.slane %v3550, 2
      %v3623 = vsel %vm333, %v3621, %v3622
      %v3624 = vrot.slane %v3551, 2
      %v3625 = vrot.slane %v3552, 2
      %v3626 = vsel %vm333, %v3624, %v3625
      %v3627 = vrot.slane %v3553, 2
      %v3628 = vrot.slane %v3554, 2
      %v3629 = vsel %vm333, %v3627, %v3628
      %v3630 = vrot.slane %v3555, 2
      %v3631 = vrot.slane %v3556, 2
      %v3632 = vsel %vm333, %v3630, %v3631
      %v3643 = vrot.slane %v3557, 1
      %v3644 = vrot.slane %v3558, 1
      %v3645 = vsel %vm300, %v3643, %v3644
      %v3647 = vrot.slane %v3557, 2
      %v3648 = vrot.slane %v3558, 2
      %v3649 = vsel %vm333, %v3647, %v3648
      %v3653 = vrot.slane %v3559, 1
      %v3654 = vrot.slane %v3560, 1
      %v3655 = vsel %vm300, %v3653, %v3654
      %v3657 = vrot.slane %v3559, 2
      %v3658 = vrot.slane %v3560, 2
      %v3659 = vsel %vm333, %v3657, %v3658
      %s3661 = scalar_lea.vmem %s1, 4608
      %v3662 = vld [vmem:[%s3661] sm:$0xff]
      %v3663 = vld [vmem:[%s3661 + $0x8] sm:$0xff]
      %v3664 = vld [vmem:[%s3661 + $0x10] sm:$0xff]
      %v3665 = vld [vmem:[%s3661 + $0x18] sm:$0xff]
      %v3666 = vld [vmem:[%s3661 + $0x20] sm:$0xff]
      %v3667 = vld [vmem:[%s3661 + $0x28] sm:$0xff]
      %v3668 = vld [vmem:[%s3661 + $0x30] sm:$0xff]
      %v3669 = vld [vmem:[%s3661 + $0x38] sm:$0xff]
      %v3670 = vld [vmem:[%s3661 + $0x40] sm:$0xff]
      %v3671 = vld [vmem:[%s3661 + $0x48] sm:$0xff]
      %v3672 = vld [vmem:[%s3661 + $0x50] sm:$0xff]
      %v3673 = vld [vmem:[%s3661 + $0x58] sm:$0xff]
      %v3674 = vld [vmem:[%s3661 + $0x60] sm:$0xff]
      %v3675 = vld [vmem:[%s3661 + $0x68] sm:$0xff]
      %v3676 = vld [vmem:[%s3661 + $0x70] sm:$0xff]
      %v3677 = vld [vmem:[%s3661 + $0x78] sm:$0xff]
      %v3678 = vld [vmem:[%s3661 + $0x80] sm:$0xff]
      %v3679 = vld [vmem:[%s3661 + $0x88] sm:$0xff]
      %v3680 = vld [vmem:[%s3661 + $0x90] sm:$0xff]
      %v3681 = vld [vmem:[%s3661 + $0x98] sm:$0xff]
      %v3682 = vld [vmem:[%s3661 + $0xa0] sm:$0xff]
      %v3683 = vld [vmem:[%s3661 + $0xa8] sm:$0xff]
      %v3684 = vld [vmem:[%s3661 + $0xb0] sm:$0xff]
      %v3685 = vld [vmem:[%s3661 + $0xb8] sm:$0xff]
      %v3686 = vld [vmem:[%s3661 + $0xc0] sm:$0xff]
      %v3687 = vld [vmem:[%s3661 + $0xc8] sm:$0xff]
      %v3688 = vld [vmem:[%s3661 + $0xd0] sm:$0xff]
      %v3689 = vld [vmem:[%s3661 + $0xd8] sm:$0xff]
      %v3690 = vld [vmem:[%s3661 + $0xe0] sm:$0xff]
      %v3691 = vld [vmem:[%s3661 + $0xe8] sm:$0xff]
      %v3692 = vld [vmem:[%s3661 + $0xf0] sm:$0xff]
      %v3693 = vld [vmem:[%s3661 + $0xf8] sm:$0xff]
      %v3694 = vld [vmem:[%s3661 + $0x100] sm:$0xff]
      %v3695 = vld [vmem:[%s3661 + $0x108] sm:$0xff]
      %v3696 = vld [vmem:[%s3661 + $0x110] sm:$0xff]
      %v3697 = vld [vmem:[%s3661 + $0x118] sm:$0xff]
      %v3698 = vld [vmem:[%s3661 + $0x120] sm:$0xff]
      %v3699 = vld [vmem:[%s3661 + $0x128] sm:$0xff]
      %v3700 = vld [vmem:[%s3661 + $0x130] sm:$0xff]
      %v3701 = vld [vmem:[%s3661 + $0x138] sm:$0xff]
      %v3702 = vld [vmem:[%s3661 + $0x140] sm:$0xff]
      %v3703 = vld [vmem:[%s3661 + $0x148] sm:$0xff]
      %v3704 = vld [vmem:[%s3661 + $0x150] sm:$0xff]
      %v3705 = vld [vmem:[%s3661 + $0x158] sm:$0xff]
      %v3706 = vld [vmem:[%s3661 + $0x160] sm:$0xff]
      %v3707 = vld [vmem:[%s3661 + $0x168] sm:$0xff]
      %v3708 = vld [vmem:[%s3661 + $0x170] sm:$0xff]
      %v3709 = vld [vmem:[%s3661 + $0x178] sm:$0xff]
      %v3710 = vld [vmem:[%s3661 + $0x180] sm:$0xff]
      %v3711 = vld [vmem:[%s3661 + $0x188] sm:$0xff]
      %v3712 = vld [vmem:[%s3661 + $0x190] sm:$0xff]
      %v3713 = vld [vmem:[%s3661 + $0x198] sm:$0xff]
      %v3714 = vld [vmem:[%s3661 + $0x1a0] sm:$0xff]
      %v3715 = vld [vmem:[%s3661 + $0x1a8] sm:$0xff]
      %v3716 = vld [vmem:[%s3661 + $0x1b0] sm:$0xff]
      %v3717 = vld [vmem:[%s3661 + $0x1b8] sm:$0xff]
      %v3718 = vld [vmem:[%s3661 + $0x1c0] sm:$0xff]
      %v3719 = vld [vmem:[%s3661 + $0x1c8] sm:$0xff]
      %v3720 = vld [vmem:[%s3661 + $0x1d0] sm:$0xff]
      %v3721 = vld [vmem:[%s3661 + $0x1d8] sm:$0xff]
      %v3722 = vld [vmem:[%s3661 + $0x1e0] sm:$0xff]
      %v3723 = vld [vmem:[%s3661 + $0x1e8] sm:$0xff]
      %v3724 = vld [vmem:[%s3661 + $0x1f0] sm:$0xff]
      %v3725 = vld [vmem:[%s3661 + $0x1f8] sm:$0xff]
      %v3726 = vld [vmem:[%s3661 + $0x200] sm:$0xff]
      %v3727 = vld [vmem:[%s3661 + $0x208] sm:$0xff]
      %v3728 = vld [vmem:[%s3661 + $0x210] sm:$0xff]
      %v3729 = vld [vmem:[%s3661 + $0x218] sm:$0xff]
      %v3730 = vld [vmem:[%s3661 + $0x220] sm:$0xff]
      %v3731 = vld [vmem:[%s3661 + $0x228] sm:$0xff]
      %v3732 = vld [vmem:[%s3661 + $0x230] sm:$0xff]
      %v3733 = vld [vmem:[%s3661 + $0x238] sm:$0xff]
      %v3734 = vld [vmem:[%s3661 + $0x240] sm:$0xff]
      %v3735 = vld [vmem:[%s3661 + $0x248] sm:$0xff]
      %v3736 = vld [vmem:[%s3661 + $0x250] sm:$0xff]
      %v3737 = vld [vmem:[%s3661 + $0x258] sm:$0xff]
      %v3738 = vld [vmem:[%s3661 + $0x260] sm:$0xff]
      %v3739 = vld [vmem:[%s3661 + $0x268] sm:$0xff]
      %v3740 = vld [vmem:[%s3661 + $0x270] sm:$0xff]
      %v3741 = vld [vmem:[%s3661 + $0x278] sm:$0xff]
      %v3742 = vld [vmem:[%s3661 + $0x280] sm:$0xff]
      %v3743 = vld [vmem:[%s3661 + $0x288] sm:$0xff]
      %v3744 = vld [vmem:[%s3661 + $0x290] sm:$0xff]
      %v3745 = vld [vmem:[%s3661 + $0x298] sm:$0xff]
      %v3746 = vld [vmem:[%s3661 + $0x2a0] sm:$0xff]
      %v3747 = vld [vmem:[%s3661 + $0x2a8] sm:$0xff]
      %v3748 = vld [vmem:[%s3661 + $0x2b0] sm:$0xff]
      %v3749 = vld [vmem:[%s3661 + $0x2b8] sm:$0xff]
      %v3750 = vld [vmem:[%s3661 + $0x2c0] sm:$0xff]
      %v3751 = vld [vmem:[%s3661 + $0x2c8] sm:$0xff]
      %v3752 = vld [vmem:[%s3661 + $0x2d0] sm:$0xff]
      %v3753 = vld [vmem:[%s3661 + $0x2d8] sm:$0xff]
      %v3754 = vld [vmem:[%s3661 + $0x2e0] sm:$0xff]
      %v3755 = vld [vmem:[%s3661 + $0x2e8] sm:$0xff]
      %v3756 = vld [vmem:[%s3661 + $0x2f0] sm:$0xff]
      %v3757 = vld [vmem:[%s3661 + $0x2f8] sm:$0xff]
      %v3758 = vld [vmem:[%s3661 + $0x300] sm:$0xff]
      %v3759 = vld [vmem:[%s3661 + $0x308] sm:$0xff]
      %v3760 = vld [vmem:[%s3661 + $0x310] sm:$0xff]
      %v3761 = vld [vmem:[%s3661 + $0x318] sm:$0xff]
      %v3762 = vld [vmem:[%s3661 + $0x320] sm:$0xff]
      %v3763 = vld [vmem:[%s3661 + $0x328] sm:$0xff]
      %v3764 = vld [vmem:[%s3661 + $0x330] sm:$0xff]
      %v3765 = vld [vmem:[%s3661 + $0x338] sm:$0xff]
      %v3766 = vld [vmem:[%s3661 + $0x340] sm:$0xff]
      %v3767 = vld [vmem:[%s3661 + $0x348] sm:$0xff]
      %v3768 = vld [vmem:[%s3661 + $0x350] sm:$0xff]
      %v3769 = vld [vmem:[%s3661 + $0x358] sm:$0xff]
      %v3770 = vld [vmem:[%s3661 + $0x360] sm:$0xff]
      %v3771 = vld [vmem:[%s3661 + $0x368] sm:$0xff]
      %v3772 = vld [vmem:[%s3661 + $0x370] sm:$0xff]
      %v3773 = vld [vmem:[%s3661 + $0x378] sm:$0xff]
      %v3774 = vld [vmem:[%s3661 + $0x380] sm:$0xff]
      %v3775 = vld [vmem:[%s3661 + $0x388] sm:$0xff]
      %v3776 = vld [vmem:[%s3661 + $0x390] sm:$0xff]
      %v3777 = vld [vmem:[%s3661 + $0x398] sm:$0xff]
      %v3778 = vld [vmem:[%s3661 + $0x3a0] sm:$0xff]
      %v3779 = vld [vmem:[%s3661 + $0x3a8] sm:$0xff]
      %v3780 = vld [vmem:[%s3661 + $0x3b0] sm:$0xff]
      %v3781 = vld [vmem:[%s3661 + $0x3b8] sm:$0xff]
      %v3782 = vld [vmem:[%s3661 + $0x3c0] sm:$0xff]
      %v3783 = vld [vmem:[%s3661 + $0x3c8] sm:$0xff]
      %v3784 = vld [vmem:[%s3661 + $0x3d0] sm:$0xff]
      %v3785 = vld [vmem:[%s3661 + $0x3d8] sm:$0xff]
      %v3786 = vld [vmem:[%s3661 + $0x3e0] sm:$0xff]
      %v3787 = vld [vmem:[%s3661 + $0x3e8] sm:$0xff]
      %v3788 = vld [vmem:[%s3661 + $0x3f0] sm:$0xff]
      %v3789 = vld [vmem:[%s3661 + $0x3f8] sm:$0xff]
      %v3790 = vld [vmem:[%s3661 + $0x400] sm:$0xff]
      %v3791 = vld [vmem:[%s3661 + $0x408] sm:$0xff]
      %v3792 = vld [vmem:[%s3661 + $0x410] sm:$0xff]
      %v3793 = vld [vmem:[%s3661 + $0x418] sm:$0xff]
      %v3794 = vld [vmem:[%s3661 + $0x420] sm:$0xff]
      %v3795 = vld [vmem:[%s3661 + $0x428] sm:$0xff]
      %v3796 = vld [vmem:[%s3661 + $0x430] sm:$0xff]
      %v3797 = vld [vmem:[%s3661 + $0x438] sm:$0xff]
      %v3798 = vld [vmem:[%s3661 + $0x440] sm:$0xff]
      %v3799 = vld [vmem:[%s3661 + $0x448] sm:$0xff]
      %v3800 = vld [vmem:[%s3661 + $0x450] sm:$0xff]
      %v3801 = vld [vmem:[%s3661 + $0x458] sm:$0xff]
      %v3802 = vld [vmem:[%s3661 + $0x460] sm:$0xff]
      %v3803 = vld [vmem:[%s3661 + $0x468] sm:$0xff]
      %v3804 = vld [vmem:[%s3661 + $0x470] sm:$0xff]
      %v3805 = vld [vmem:[%s3661 + $0x478] sm:$0xff]
      %s3806 = scalar_lea.vmem %s2, 4
      %v3807 = vld [vmem:[%s3806] sm:$0x1]
      %v3809 = vlaneseq
      %v3810 = vshrl.u32 %v3809, 7
      %v3811 = vsub.s32 0, %v3810
      %v3812 = vrot.slane %v3807, %v3811
      %3814 = vmatprep.subr.mxu0 0.0
      %3815 = vmatpush1.msra.mxu0 %v3677
      %3816 = vmatprep.subr.mxu0 0.0
      %3817 = vmatpush1.msra.mxu0 %v3676
      %3818 = vmatprep.subr.mxu0 0.0
      %3819 = vmatpush1.msra.mxu0 %v3675
      %3820 = vmatprep.subr.mxu0 0.0
      %3821 = vmatpush1.msra.mxu0 %v3674
      %3822 = vmatprep.subr.mxu0 0.0
      %3823 = vmatpush1.msra.mxu0 %v3673
      %3824 = vmatprep.subr.mxu0 0.0
      %3825 = vmatpush1.msra.mxu0 %v3672
      %3826 = vmatprep.subr.mxu0 0.0
      %3827 = vmatpush1.msra.mxu0 %v3671
      %3828 = vmatprep.subr.mxu0 0.0
      %3829 = vmatpush1.msra.mxu0 %v3670
      %3830 = vmatprep.subr.mxu0 0.0
      %3831 = vmatpush1.msra.mxu0 %v3669
      %3832 = vmatprep.subr.mxu0 0.0
      %3833 = vmatpush1.msra.mxu0 %v3668
      %3834 = vmatprep.subr.mxu0 0.0
      %3835 = vmatpush1.msra.mxu0 %v3667
      %3836 = vmatprep.subr.mxu0 0.0
      %3837 = vmatpush1.msra.mxu0 %v3666
      %3838 = vmatprep.subr.mxu0 0.0
      %3839 = vmatpush1.msra.mxu0 %v3665
      %3840 = vmatprep.subr.mxu0 0.0
      %3841 = vmatpush1.msra.mxu0 %v3664
      %3842 = vmatprep.subr.mxu0 0.0
      %3843 = vmatpush1.msra.mxu0 %v3663
      %3844 = vmatprep.subr.mxu0 0.0
      %3845 = vmatpush1.msra.mxu0 %v3662
      %3846 = vmatprep.subr.mxu0 0.0
      %3847 = vmatpush2.msra.mxu0 %v3693
      %3848 = vmatprep.subr.mxu0 0.0
      %3849 = vmatpush2.msra.mxu0 %v3692
      %3850 = vmatprep.subr.mxu0 0.0
      %3851 = vmatpush2.msra.mxu0 %v3691
      %3852 = vmatprep.subr.mxu0 0.0
      %3853 = vmatpush2.msra.mxu0 %v3690
      %3854 = vmatprep.subr.mxu0 0.0
      %3855 = vmatpush2.msra.mxu0 %v3689
      %3856 = vmatprep.subr.mxu0 0.0
      %3857 = vmatpush2.msra.mxu0 %v3688
      %3858 = vmatprep.subr.mxu0 0.0
      %3859 = vmatpush2.msra.mxu0 %v3687
      %3860 = vmatprep.subr.mxu0 0.0
      %3861 = vmatpush2.msra.mxu0 %v3686
      %3862 = vmatprep.subr.mxu0 0.0
      %3863 = vmatpush2.msra.mxu0 %v3685
      %3864 = vmatprep.subr.mxu0 0.0
      %3865 = vmatpush2.msra.mxu0 %v3684
      %3866 = vmatprep.subr.mxu0 0.0
      %3867 = vmatpush2.msra.mxu0 %v3683
      %3868 = vmatprep.subr.mxu0 0.0
      %3869 = vmatpush2.msra.mxu0 %v3682
      %3870 = vmatprep.subr.mxu0 0.0
      %3871 = vmatpush2.msra.mxu0 %v3681
      %3872 = vmatprep.subr.mxu0 0.0
      %3873 = vmatpush2.msra.mxu0 %v3680
      %3874 = vmatprep.subr.mxu0 0.0
      %3875 = vmatpush2.msra.mxu0 %v3679
      %3876 = vmatprep.subr.mxu0 0.0
      %3877 = vmatpush2.msra.mxu0 %v3678
      %3878 = vmatprep.mubr.f32.mxu0 %v3579
      %3879 = vmatmul.mubr.f32.gmra.mxu0 %v3541
      %v3880 = vpop.f32.mrf.mxu0
      %v3881 = vadd.f32 %v3812, %v3880
      %v3882 = vpop.f32.mrf.mxu0
      %3883 = vmatprep.mubr.f32.mxu0 %v3582
      %3884 = vmatmul.mubr.f32.gmra.mxu0 %v3543
      %v3885 = vpop.f32.mrf.mxu0
      %v3886 = vadd.f32 %v3812, %v3885
      %v3887 = vpop.f32.mrf.mxu0
      %3888 = vmatprep.mubr.f32.mxu0 %v3585
      %3889 = vmatmul.mubr.f32.gmra.mxu0 %v3545
      %v3890 = vpop.f32.mrf.mxu0
      %v3891 = vadd.f32 %v3812, %v3890
      %v3892 = vpop.f32.mrf.mxu0
      %3893 = vmatprep.mubr.f32.mxu0 %v3588
      %3894 = vmatmul.mubr.f32.gmra.mxu0 %v3547
      %v3895 = vpop.f32.mrf.mxu0
      %v3896 = vadd.f32 %v3812, %v3895
      %v3897 = vpop.f32.mrf.mxu0
      %3898 = vmatprep.mubr.f32.mxu0 %v3591
      %3899 = vmatmul.mubr.f32.gmra.mxu0 %v3549
      %v3900 = vpop.f32.mrf.mxu0
      %v3901 = vadd.f32 %v3812, %v3900
      %v3902 = vpop.f32.mrf.mxu0
      %3903 = vmatprep.mubr.f32.mxu0 %v3594
      %3904 = vmatmul.mubr.f32.gmra.mxu0 %v3551
      %v3905 = vpop.f32.mrf.mxu0
      %v3906 = vadd.f32 %v3812, %v3905
      %v3907 = vpop.f32.mrf.mxu0
      %3908 = vmatprep.mubr.f32.mxu0 %v3597
      %3909 = vmatmul.mubr.f32.gmra.mxu0 %v3553
      %v3910 = vpop.f32.mrf.mxu0
      %v3911 = vadd.f32 %v3812, %v3910
      %v3912 = vpop.f32.mrf.mxu0
      %3913 = vmatprep.mubr.f32.mxu0 %v3600
      %3914 = vmatmul.mubr.f32.gmra.mxu0 %v3555
      %v3915 = vpop.f32.mrf.mxu0
      %v3916 = vadd.f32 %v3812, %v3915
      %v3917 = vpop.f32.mrf.mxu0
      %3918 = vdwg.mxu0
      %3919 = vmatprep.subr.mxu0 0.0
      %3920 = vmatpush1.msra.mxu0 %v3709
      %3921 = vmatprep.subr.mxu0 0.0
      %3922 = vmatpush1.msra.mxu0 %v3708
      %3923 = vmatprep.subr.mxu0 0.0
      %3924 = vmatpush1.msra.mxu0 %v3707
      %3925 = vmatprep.subr.mxu0 0.0
      %3926 = vmatpush1.msra.mxu0 %v3706
      %3927 = vmatprep.subr.mxu0 0.0
      %3928 = vmatpush1.msra.mxu0 %v3705
      %3929 = vmatprep.subr.mxu0 0.0
      %3930 = vmatpush1.msra.mxu0 %v3704
      %3931 = vmatprep.subr.mxu0 0.0
      %3932 = vmatpush1.msra.mxu0 %v3703
      %3933 = vmatprep.subr.mxu0 0.0
      %3934 = vmatpush1.msra.mxu0 %v3702
      %3935 = vmatprep.subr.mxu0 0.0
      %3936 = vmatpush1.msra.mxu0 %v3701
      %3937 = vmatprep.subr.mxu0 0.0
      %3938 = vmatpush1.msra.mxu0 %v3700
      %3939 = vmatprep.subr.mxu0 0.0
      %3940 = vmatpush1.msra.mxu0 %v3699
      %3941 = vmatprep.subr.mxu0 0.0
      %3942 = vmatpush1.msra.mxu0 %v3698
      %3943 = vmatprep.subr.mxu0 0.0
      %3944 = vmatpush1.msra.mxu0 %v3697
      %3945 = vmatprep.subr.mxu0 0.0
      %3946 = vmatpush1.msra.mxu0 %v3696
      %3947 = vmatprep.subr.mxu0 0.0
      %3948 = vmatpush1.msra.mxu0 %v3695
      %3949 = vmatprep.subr.mxu0 0.0
      %3950 = vmatpush1.msra.mxu0 %v3694
      %3951 = vmatprep.subr.mxu0 0.0
      %3952 = vmatpush2.msra.mxu0 %v3725
      %3953 = vmatprep.subr.mxu0 0.0
      %3954 = vmatpush2.msra.mxu0 %v3724
      %3955 = vmatprep.subr.mxu0 0.0
      %3956 = vmatpush2.msra.mxu0 %v3723
      %3957 = vmatprep.subr.mxu0 0.0
      %3958 = vmatpush2.msra.mxu0 %v3722
      %3959 = vmatprep.subr.mxu0 0.0
      %3960 = vmatpush2.msra.mxu0 %v3721
      %3961 = vmatprep.subr.mxu0 0.0
      %3962 = vmatpush2.msra.mxu0 %v3720
      %3963 = vmatprep.subr.mxu0 0.0
      %3964 = vmatpush2.msra.mxu0 %v3719
      %3965 = vmatprep.subr.mxu0 0.0
      %3966 = vmatpush2.msra.mxu0 %v3718
      %3967 = vmatprep.subr.mxu0 0.0
      %3968 = vmatpush2.msra.mxu0 %v3717
      %3969 = vmatprep.subr.mxu0 0.0
      %3970 = vmatpush2.msra.mxu0 %v3716
      %3971 = vmatprep.subr.mxu0 0.0
      %3972 = vmatpush2.msra.mxu0 %v3715
      %3973 = vmatprep.subr.mxu0 0.0
      %3974 = vmatpush2.msra.mxu0 %v3714
      %3975 = vmatprep.subr.mxu0 0.0
      %3976 = vmatpush2.msra.mxu0 %v3713
      %3977 = vmatprep.subr.mxu0 0.0
      %3978 = vmatpush2.msra.mxu0 %v3712
      %3979 = vmatprep.subr.mxu0 0.0
      %3980 = vmatpush2.msra.mxu0 %v3711
      %3981 = vmatprep.subr.mxu0 0.0
      %3982 = vmatpush2.msra.mxu0 %v3710
      %3983 = vmatprep.mubr.f32.mxu0 %v3543
      %3984 = vmatmul.mubr.f32.gmra.mxu0 %v3611
      %v3985 = vpop.f32.mrf.mxu0
      %v3986 = vadd.f32 %v3881, %v3985
      %v3987 = vpop.f32.mrf.mxu0
      %3988 = vmatprep.mubr.f32.mxu0 %v3545
      %3989 = vmatmul.mubr.f32.gmra.mxu0 %v3614
      %v3990 = vpop.f32.mrf.mxu0
      %v3991 = vadd.f32 %v3886, %v3990
      %v3992 = vpop.f32.mrf.mxu0
      %3993 = vmatprep.mubr.f32.mxu0 %v3547
      %3994 = vmatmul.mubr.f32.gmra.mxu0 %v3617
      %v3995 = vpop.f32.mrf.mxu0
      %v3996 = vadd.f32 %v3891, %v3995
      %v3997 = vpop.f32.mrf.mxu0
      %3998 = vmatprep.mubr.f32.mxu0 %v3549
      %3999 = vmatmul.mubr.f32.gmra.mxu0 %v3620
      %v4000 = vpop.f32.mrf.mxu0
      %v4001 = vadd.f32 %v3896, %v4000
      %v4002 = vpop.f32.mrf.mxu0
      %4003 = vmatprep.mubr.f32.mxu0 %v3551
      %4004 = vmatmul.mubr.f32.gmra.mxu0 %v3623
      %v4005 = vpop.f32.mrf.mxu0
      %v4006 = vadd.f32 %v3901, %v4005
      %v4007 = vpop.f32.mrf.mxu0
      %4008 = vmatprep.mubr.f32.mxu0 %v3553
      %4009 = vmatmul.mubr.f32.gmra.mxu0 %v3626
      %v4010 = vpop.f32.mrf.mxu0
      %v4011 = vadd.f32 %v3906, %v4010
      %v4012 = vpop.f32.mrf.mxu0
      %4013 = vmatprep.mubr.f32.mxu0 %v3555
      %4014 = vmatmul.mubr.f32.gmra.mxu0 %v3629
      %v4015 = vpop.f32.mrf.mxu0
      %v4016 = vadd.f32 %v3911, %v4015
      %v4017 = vpop.f32.mrf.mxu0
      %4018 = vmatprep.mubr.f32.mxu0 %v3557
      %4019 = vmatmul.mubr.f32.gmra.mxu0 %v3632
      %v4020 = vpop.f32.mrf.mxu0
      %v4021 = vadd.f32 %v3916, %v4020
      %v4022 = vpop.f32.mrf.mxu0
      %4023 = vdwg.mxu0
      %4024 = vmatprep.subr.mxu0 0.0
      %4025 = vmatpush1.msra.mxu0 %v3741
      %4026 = vmatprep.subr.mxu0 0.0
      %4027 = vmatpush1.msra.mxu0 %v3740
      %4028 = vmatprep.subr.mxu0 0.0
      %4029 = vmatpush1.msra.mxu0 %v3739
      %4030 = vmatprep.subr.mxu0 0.0
      %4031 = vmatpush1.msra.mxu0 %v3738
      %4032 = vmatprep.subr.mxu0 0.0
      %4033 = vmatpush1.msra.mxu0 %v3737
      %4034 = vmatprep.subr.mxu0 0.0
      %4035 = vmatpush1.msra.mxu0 %v3736
      %4036 = vmatprep.subr.mxu0 0.0
      %4037 = vmatpush1.msra.mxu0 %v3735
      %4038 = vmatprep.subr.mxu0 0.0
      %4039 = vmatpush1.msra.mxu0 %v3734
      %4040 = vmatprep.subr.mxu0 0.0
      %4041 = vmatpush1.msra.mxu0 %v3733
      %4042 = vmatprep.subr.mxu0 0.0
      %4043 = vmatpush1.msra.mxu0 %v3732
      %4044 = vmatprep.subr.mxu0 0.0
      %4045 = vmatpush1.msra.mxu0 %v3731
      %4046 = vmatprep.subr.mxu0 0.0
      %4047 = vmatpush1.msra.mxu0 %v3730
      %4048 = vmatprep.subr.mxu0 0.0
      %4049 = vmatpush1.msra.mxu0 %v3729
      %4050 = vmatprep.subr.mxu0 0.0
      %4051 = vmatpush1.msra.mxu0 %v3728
      %4052 = vmatprep.subr.mxu0 0.0
      %4053 = vmatpush1.msra.mxu0 %v3727
      %4054 = vmatprep.subr.mxu0 0.0
      %4055 = vmatpush1.msra.mxu0 %v3726
      %4056 = vmatprep.subr.mxu0 0.0
      %4057 = vmatpush2.msra.mxu0 %v3757
      %4058 = vmatprep.subr.mxu0 0.0
      %4059 = vmatpush2.msra.mxu0 %v3756
      %4060 = vmatprep.subr.mxu0 0.0
      %4061 = vmatpush2.msra.mxu0 %v3755
      %4062 = vmatprep.subr.mxu0 0.0
      %4063 = vmatpush2.msra.mxu0 %v3754
      %4064 = vmatprep.subr.mxu0 0.0
      %4065 = vmatpush2.msra.mxu0 %v3753
      %4066 = vmatprep.subr.mxu0 0.0
      %4067 = vmatpush2.msra.mxu0 %v3752
      %4068 = vmatprep.subr.mxu0 0.0
      %4069 = vmatpush2.msra.mxu0 %v3751
      %4070 = vmatprep.subr.mxu0 0.0
      %4071 = vmatpush2.msra.mxu0 %v3750
      %4072 = vmatprep.subr.mxu0 0.0
      %4073 = vmatpush2.msra.mxu0 %v3749
      %4074 = vmatprep.subr.mxu0 0.0
      %4075 = vmatpush2.msra.mxu0 %v3748
      %4076 = vmatprep.subr.mxu0 0.0
      %4077 = vmatpush2.msra.mxu0 %v3747
      %4078 = vmatprep.subr.mxu0 0.0
      %4079 = vmatpush2.msra.mxu0 %v3746
      %4080 = vmatprep.subr.mxu0 0.0
      %4081 = vmatpush2.msra.mxu0 %v3745
      %4082 = vmatprep.subr.mxu0 0.0
      %4083 = vmatpush2.msra.mxu0 %v3744
      %4084 = vmatprep.subr.mxu0 0.0
      %4085 = vmatpush2.msra.mxu0 %v3743
      %4086 = vmatprep.subr.mxu0 0.0
      %4087 = vmatpush2.msra.mxu0 %v3742
      %4088 = vmatprep.mubr.f32.mxu0 %v3614
      %4089 = vmatmul.mubr.f32.gmra.mxu0 %v3582
      %v4090 = vpop.f32.mrf.mxu0
      %v4091 = vadd.f32 %v3986, %v4090
      %v4092 = vpop.f32.mrf.mxu0
      %4093 = vmatprep.mubr.f32.mxu0 %v3617
      %4094 = vmatmul.mubr.f32.gmra.mxu0 %v3585
      %v4095 = vpop.f32.mrf.mxu0
      %v4096 = vadd.f32 %v3991, %v4095
      %v4097 = vpop.f32.mrf.mxu0
      %4098 = vmatprep.mubr.f32.mxu0 %v3620
      %4099 = vmatmul.mubr.f32.gmra.mxu0 %v3588
      %v4100 = vpop.f32.mrf.mxu0
      %v4101 = vadd.f32 %v3996, %v4100
      %v4102 = vpop.f32.mrf.mxu0
      %4103 = vmatprep.mubr.f32.mxu0 %v3623
      %4104 = vmatmul.mubr.f32.gmra.mxu0 %v3591
      %v4105 = vpop.f32.mrf.mxu0
      %v4106 = vadd.f32 %v4001, %v4105
      %v4107 = vpop.f32.mrf.mxu0
      %4108 = vmatprep.mubr.f32.mxu0 %v3626
      %4109 = vmatmul.mubr.f32.gmra.mxu0 %v3594
      %v4110 = vpop.f32.mrf.mxu0
      %v4111 = vadd.f32 %v4006, %v4110
      %v4112 = vpop.f32.mrf.mxu0
      %4113 = vmatprep.mubr.f32.mxu0 %v3629
      %4114 = vmatmul.mubr.f32.gmra.mxu0 %v3597
      %v4115 = vpop.f32.mrf.mxu0
      %v4116 = vadd.f32 %v4011, %v4115
      %v4117 = vpop.f32.mrf.mxu0
      %4118 = vmatprep.mubr.f32.mxu0 %v3632
      %4119 = vmatmul.mubr.f32.gmra.mxu0 %v3600
      %v4120 = vpop.f32.mrf.mxu0
      %v4121 = vadd.f32 %v4016, %v4120
      %v4122 = vpop.f32.mrf.mxu0
      %4123 = vmatprep.mubr.f32.mxu0 %v3649
      %4124 = vmatmul.mubr.f32.gmra.mxu0 %v3645
      %v4125 = vpop.f32.mrf.mxu0
      %v4126 = vadd.f32 %v4021, %v4125
      %v4127 = vpop.f32.mrf.mxu0
      %4128 = vdwg.mxu0
      %4129 = vmatprep.subr.mxu0 0.0
      %4130 = vmatpush1.msra.mxu0 %v3773
      %4131 = vmatprep.subr.mxu0 0.0
      %4132 = vmatpush1.msra.mxu0 %v3772
      %4133 = vmatprep.subr.mxu0 0.0
      %4134 = vmatpush1.msra.mxu0 %v3771
      %4135 = vmatprep.subr.mxu0 0.0
      %4136 = vmatpush1.msra.mxu0 %v3770
      %4137 = vmatprep.subr.mxu0 0.0
      %4138 = vmatpush1.msra.mxu0 %v3769
      %4139 = vmatprep.subr.mxu0 0.0
      %4140 = vmatpush1.msra.mxu0 %v3768
      %4141 = vmatprep.subr.mxu0 0.0
      %4142 = vmatpush1.msra.mxu0 %v3767
      %4143 = vmatprep.subr.mxu0 0.0
      %4144 = vmatpush1.msra.mxu0 %v3766
      %4145 = vmatprep.subr.mxu0 0.0
      %4146 = vmatpush1.msra.mxu0 %v3765
      %4147 = vmatprep.subr.mxu0 0.0
      %4148 = vmatpush1.msra.mxu0 %v3764
      %4149 = vmatprep.subr.mxu0 0.0
      %4150 = vmatpush1.msra.mxu0 %v3763
      %4151 = vmatprep.subr.mxu0 0.0
      %4152 = vmatpush1.msra.mxu0 %v3762
      %4153 = vmatprep.subr.mxu0 0.0
      %4154 = vmatpush1.msra.mxu0 %v3761
      %4155 = vmatprep.subr.mxu0 0.0
      %4156 = vmatpush1.msra.mxu0 %v3760
      %4157 = vmatprep.subr.mxu0 0.0
      %4158 = vmatpush1.msra.mxu0 %v3759
      %4159 = vmatprep.subr.mxu0 0.0
      %4160 = vmatpush1.msra.mxu0 %v3758
      %4161 = vmatprep.subr.mxu0 0.0
      %4162 = vmatpush2.msra.mxu0 %v3789
      %4163 = vmatprep.subr.mxu0 0.0
      %4164 = vmatpush2.msra.mxu0 %v3788
      %4165 = vmatprep.subr.mxu0 0.0
      %4166 = vmatpush2.msra.mxu0 %v3787
      %4167 = vmatprep.subr.mxu0 0.0
      %4168 = vmatpush2.msra.mxu0 %v3786
      %4169 = vmatprep.subr.mxu0 0.0
      %4170 = vmatpush2.msra.mxu0 %v3785
      %4171 = vmatprep.subr.mxu0 0.0
      %4172 = vmatpush2.msra.mxu0 %v3784
      %4173 = vmatprep.subr.mxu0 0.0
      %4174 = vmatpush2.msra.mxu0 %v3783
      %4175 = vmatprep.subr.mxu0 0.0
      %4176 = vmatpush2.msra.mxu0 %v3782
      %4177 = vmatprep.subr.mxu0 0.0
      %4178 = vmatpush2.msra.mxu0 %v3781
      %4179 = vmatprep.subr.mxu0 0.0
      %4180 = vmatpush2.msra.mxu0 %v3780
      %4181 = vmatprep.subr.mxu0 0.0
      %4182 = vmatpush2.msra.mxu0 %v3779
      %4183 = vmatprep.subr.mxu0 0.0
      %4184 = vmatpush2.msra.mxu0 %v3778
      %4185 = vmatprep.subr.mxu0 0.0
      %4186 = vmatpush2.msra.mxu0 %v3777
      %4187 = vmatprep.subr.mxu0 0.0
      %4188 = vmatpush2.msra.mxu0 %v3776
      %4189 = vmatprep.subr.mxu0 0.0
      %4190 = vmatpush2.msra.mxu0 %v3775
      %4191 = vmatprep.subr.mxu0 0.0
      %4192 = vmatpush2.msra.mxu0 %v3774
      %4193 = vmatprep.mubr.f32.mxu0 %v3585
      %4194 = vmatmul.mubr.f32.gmra.mxu0 %v3545
      %v4195 = vpop.f32.mrf.mxu0
      %v4196 = vadd.f32 %v4091, %v4195
      %v4197 = vpop.f32.mrf.mxu0
      %4198 = vmatprep.mubr.f32.mxu0 %v3588
      %4199 = vmatmul.mubr.f32.gmra.mxu0 %v3547
      %v4200 = vpop.f32.mrf.mxu0
      %v4201 = vadd.f32 %v4096, %v4200
      %v4202 = vpop.f32.mrf.mxu0
      %4203 = vmatprep.mubr.f32.mxu0 %v3591
      %4204 = vmatmul.mubr.f32.gmra.mxu0 %v3549
      %v4205 = vpop.f32.mrf.mxu0
      %v4206 = vadd.f32 %v4101, %v4205
      %v4207 = vpop.f32.mrf.mxu0
      %4208 = vmatprep.mubr.f32.mxu0 %v3594
      %4209 = vmatmul.mubr.f32.gmra.mxu0 %v3551
      %v4210 = vpop.f32.mrf.mxu0
      %v4211 = vadd.f32 %v4106, %v4210
      %v4212 = vpop.f32.mrf.mxu0
      %4213 = vmatprep.mubr.f32.mxu0 %v3597
      %4214 = vmatmul.mubr.f32.gmra.mxu0 %v3553
      %v4215 = vpop.f32.mrf.mxu0
      %v4216 = vadd.f32 %v4111, %v4215
      %v4217 = vpop.f32.mrf.mxu0
      %4218 = vmatprep.mubr.f32.mxu0 %v3600
      %4219 = vmatmul.mubr.f32.gmra.mxu0 %v3555
      %v4220 = vpop.f32.mrf.mxu0
      %v4221 = vadd.f32 %v4116, %v4220
      %v4222 = vpop.f32.mrf.mxu0
      %4223 = vmatprep.mubr.f32.mxu0 %v3645
      %4224 = vmatmul.mubr.f32.gmra.mxu0 %v3557
      %v4225 = vpop.f32.mrf.mxu0
      %v4226 = vadd.f32 %v4121, %v4225
      %v4227 = vpop.f32.mrf.mxu0
      %4228 = vmatprep.mubr.f32.mxu0 %v3655
      %4229 = vmatmul.mubr.f32.gmra.mxu0 %v3559
      %v4230 = vpop.f32.mrf.mxu0
      %v4231 = vadd.f32 %v4126, %v4230
      %v4232 = vpop.f32.mrf.mxu0
      %4233 = vdwg.mxu0
      %4234 = vmatprep.subr.mxu0 0.0
      %4235 = vmatpush1.msra.mxu0 %v3805
      %4236 = vmatprep.subr.mxu0 0.0
      %4237 = vmatpush1.msra.mxu0 %v3804
      %4238 = vmatprep.subr.mxu0 0.0
      %4239 = vmatpush1.msra.mxu0 %v3803
      %4240 = vmatprep.subr.mxu0 0.0
      %4241 = vmatpush1.msra.mxu0 %v3802
      %4242 = vmatprep.subr.mxu0 0.0
      %4243 = vmatpush1.msra.mxu0 %v3801
      %4244 = vmatprep.subr.mxu0 0.0
      %4245 = vmatpush1.msra.mxu0 %v3800
      %4246 = vmatprep.subr.mxu0 0.0
      %4247 = vmatpush1.msra.mxu0 %v3799
      %4248 = vmatprep.subr.mxu0 0.0
      %4249 = vmatpush1.msra.mxu0 %v3798
      %4250 = vmatprep.subr.mxu0 0.0
      %4251 = vmatpush1.msra.mxu0 %v3797
      %4252 = vmatprep.subr.mxu0 0.0
      %4253 = vmatpush1.msra.mxu0 %v3796
      %4254 = vmatprep.subr.mxu0 0.0
      %4255 = vmatpush1.msra.mxu0 %v3795
      %4256 = vmatprep.subr.mxu0 0.0
      %4257 = vmatpush1.msra.mxu0 %v3794
      %4258 = vmatprep.subr.mxu0 0.0
      %4259 = vmatpush1.msra.mxu0 %v3793
      %4260 = vmatprep.subr.mxu0 0.0
      %4261 = vmatpush1.msra.mxu0 %v3792
      %4262 = vmatprep.subr.mxu0 0.0
      %4263 = vmatpush1.msra.mxu0 %v3791
      %4264 = vmatprep.subr.mxu0 0.0
      %4265 = vmatpush1.msra.mxu0 %v3790
      %4266 = vmatprep.subr.mxu0 0.0
      %4267 = vmatpush2.msra.mxu0 0.0
      %4268 = vmatprep.subr.mxu0 0.0
      %4269 = vmatpush2.msra.mxu0 0.0
      %4270 = vmatprep.subr.mxu0 0.0
      %4271 = vmatpush2.msra.mxu0 0.0
      %4272 = vmatprep.subr.mxu0 0.0
      %4273 = vmatpush2.msra.mxu0 0.0
      %4274 = vmatprep.subr.mxu0 0.0
      %4275 = vmatpush2.msra.mxu0 0.0
      %4276 = vmatprep.subr.mxu0 0.0
      %4277 = vmatpush2.msra.mxu0 0.0
      %4278 = vmatprep.subr.mxu0 0.0
      %4279 = vmatpush2.msra.mxu0 0.0
      %4280 = vmatprep.subr.mxu0 0.0
      %4281 = vmatpush2.msra.mxu0 0.0
      %4282 = vmatprep.subr.mxu0 0.0
      %4283 = vmatpush2.msra.mxu0 0.0
      %4284 = vmatprep.subr.mxu0 0.0
      %4285 = vmatpush2.msra.mxu0 0.0
      %4286 = vmatprep.subr.mxu0 0.0
      %4287 = vmatpush2.msra.mxu0 0.0
      %4288 = vmatprep.subr.mxu0 0.0
      %4289 = vmatpush2.msra.mxu0 0.0
      %4290 = vmatprep.subr.mxu0 0.0
      %4291 = vmatpush2.msra.mxu0 0.0
      %4292 = vmatprep.subr.mxu0 0.0
      %4293 = vmatpush2.msra.mxu0 0.0
      %4294 = vmatprep.subr.mxu0 0.0
      %4295 = vmatpush2.msra.mxu0 0.0
      %4296 = vmatprep.subr.mxu0 0.0
      %4297 = vmatpush2.msra.mxu0 0.0
      %4298 = vmatprep.mubr.f32.mxu0 0.0
      %4299 = vmatmul.mubr.f32.gmra.mxu0 %v3617
      %v4300 = vpop.f32.mrf.mxu0
      %v4301 = vadd.f32 %v4196, %v4300
      %v4302 = vpop.f32.mrf.mxu0
      %4303 = vmatprep.mubr.f32.mxu0 0.0
      %4304 = vmatmul.mubr.f32.gmra.mxu0 %v3620
      %v4305 = vpop.f32.mrf.mxu0
      %v4306 = vadd.f32 %v4201, %v4305
      %v4307 = vpop.f32.mrf.mxu0
      %4308 = vmatprep.mubr.f32.mxu0 0.0
      %4309 = vmatmul.mubr.f32.gmra.mxu0 %v3623
      %v4310 = vpop.f32.mrf.mxu0
      %v4311 = vadd.f32 %v4206, %v4310
      %v4312 = vpop.f32.mrf.mxu0
      %4313 = vmatprep.mubr.f32.mxu0 0.0
      %4314 = vmatmul.mubr.f32.gmra.mxu0 %v3626
      %v4315 = vpop.f32.mrf.mxu0
      %v4316 = vadd.f32 %v4211, %v4315
      %v4317 = vpop.f32.mrf.mxu0
      %4318 = vmatprep.mubr.f32.mxu0 0.0
      %4319 = vmatmul.mubr.f32.gmra.mxu0 %v3629
      %v4320 = vpop.f32.mrf.mxu0
      %v4321 = vadd.f32 %v4216, %v4320
      %v4322 = vpop.f32.mrf.mxu0
      %4323 = vmatprep.mubr.f32.mxu0 0.0
      %4324 = vmatmul.mubr.f32.gmra.mxu0 %v3632
      %v4325 = vpop.f32.mrf.mxu0
      %v4326 = vadd.f32 %v4221, %v4325
      %v4327 = vpop.f32.mrf.mxu0
      %4328 = vmatprep.mubr.f32.mxu0 0.0
      %4329 = vmatmul.mubr.f32.gmra.mxu0 %v3649
      %v4330 = vpop.f32.mrf.mxu0
      %v4331 = vadd.f32 %v4226, %v4330
      %v4332 = vpop.f32.mrf.mxu0
      %4333 = vmatprep.mubr.f32.mxu0 0.0
      %4334 = vmatmul.mubr.f32.gmra.mxu0 %v3659
      %v4335 = vpop.f32.mrf.mxu0
      %v4336 = vadd.f32 %v4231, %v4335
      %v4337 = vpop.f32.mrf.mxu0
      %4338 = vdwg.mxu0
      %v4339 = vadd.f32 %v2711, %v4301
      %v4340 = vadd.f32 %v2712, %v4306
      %v4341 = vadd.f32 %v2713, %v4311
      %v4342 = vadd.f32 %v2714, %v4316
      %v4343 = vadd.f32 %v2715, %v4321
      %v4344 = vadd.f32 %v2716, %v4326
      %v4345 = vadd.f32 %v2717, %v4331
      %v4346 = vadd.f32 %v2718, %v4336
      %4347 = vst.msk [vmem:[%s255 + $0x1] sm:$0xff] %vm1090, %v4339
      %4348 = vst.msk [vmem:[%s255 + $0x11] sm:$0xff] %vm1090, %v4340
      %4349 = vst.msk [vmem:[%s255 + $0x21] sm:$0xff] %vm1090, %v4341
      %4350 = vst.msk [vmem:[%s255 + $0x31] sm:$0xff] %vm1090, %v4342
      %4351 = vst.msk [vmem:[%s255 + $0x41] sm:$0xff] %vm1090, %v4343
      %4352 = vst.msk [vmem:[%s255 + $0x51] sm:$0xff] %vm1090, %v4344
      %4353 = vst.msk [vmem:[%s255 + $0x61] sm:$0xff] %vm1090, %v4345
      %4354 = vst.msk [vmem:[%s255 + $0x71] sm:$0xff] %vm1090, %v4346
      %v4355 = vld [vmem:[#allocation2] sm:$0xff]
      %v4356 = vld [vmem:[#allocation2 + $0x8] sm:$0x3]
      %v4357 = vld [vmem:[#allocation2 + $0x10] sm:$0xff]
      %v4358 = vld [vmem:[#allocation2 + $0x18] sm:$0x3]
      %v4359 = vld [vmem:[#allocation2 + $0x20] sm:$0xff]
      %v4360 = vld [vmem:[#allocation2 + $0x28] sm:$0x3]
      %v4361 = vld [vmem:[#allocation2 + $0x30] sm:$0xff]
      %v4362 = vld [vmem:[#allocation2 + $0x38] sm:$0x3]
      %v4363 = vld [vmem:[#allocation2 + $0x40] sm:$0xff]
      %v4364 = vld [vmem:[#allocation2 + $0x48] sm:$0x3]
      %v4365 = vld [vmem:[#allocation2 + $0x50] sm:$0xff]
      %v4366 = vld [vmem:[#allocation2 + $0x58] sm:$0x3]
      %v4367 = vld [vmem:[#allocation2 + $0x60] sm:$0xff]
      %v4368 = vld [vmem:[#allocation2 + $0x68] sm:$0x3]
      %v4369 = vld [vmem:[#allocation2 + $0x70] sm:$0xff]
      %v4370 = vld [vmem:[#allocation2 + $0x78] sm:$0x3]
      %v4371 = vld [vmem:[#allocation2 + $0x80] sm:$0xff]
      %v4372 = vld [vmem:[#allocation2 + $0x88] sm:$0x3]
      %v4373 = vld [vmem:[#allocation2 + $0x90] sm:$0xff]
      %v4374 = vld [vmem:[#allocation2 + $0x98] sm:$0x3]
      %v4391 = vrot.slane %v4355, 1
      %v4392 = vrot.slane %v4356, 1
      %v4393 = vsel %vm300, %v4391, %v4392
      %v4394 = vrot.slane %v4357, 1
      %v4395 = vrot.slane %v4358, 1
      %v4396 = vsel %vm300, %v4394, %v4395
      %v4397 = vrot.slane %v4359, 1
      %v4398 = vrot.slane %v4360, 1
      %v4399 = vsel %vm300, %v4397, %v4398
      %v4400 = vrot.slane %v4361, 1
      %v4401 = vrot.slane %v4362, 1
      %v4402 = vsel %vm300, %v4400, %v4401
      %v4403 = vrot.slane %v4363, 1
      %v4404 = vrot.slane %v4364, 1
      %v4405 = vsel %vm300, %v4403, %v4404
      %v4406 = vrot.slane %v4365, 1
      %v4407 = vrot.slane %v4366, 1
      %v4408 = vsel %vm300, %v4406, %v4407
      %v4409 = vrot.slane %v4367, 1
      %v4410 = vrot.slane %v4368, 1
      %v4411 = vsel %vm300, %v4409, %v4410
      %v4412 = vrot.slane %v4369, 1
      %v4413 = vrot.slane %v4370, 1
      %v4414 = vsel %vm300, %v4412, %v4413
      %v4423 = vrot.slane %v4355, 2
      %v4424 = vrot.slane %v4356, 2
      %v4425 = vsel %vm333, %v4423, %v4424
      %v4426 = vrot.slane %v4357, 2
      %v4427 = vrot.slane %v4358, 2
      %v4428 = vsel %vm333, %v4426, %v4427
      %v4429 = vrot.slane %v4359, 2
      %v4430 = vrot.slane %v4360, 2
      %v4431 = vsel %vm333, %v4429, %v4430
      %v4432 = vrot.slane %v4361, 2
      %v4433 = vrot.slane %v4362, 2
      %v4434 = vsel %vm333, %v4432, %v4433
      %v4435 = vrot.slane %v4363, 2
      %v4436 = vrot.slane %v4364, 2
      %v4437 = vsel %vm333, %v4435, %v4436
      %v4438 = vrot.slane %v4365, 2
      %v4439 = vrot.slane %v4366, 2
      %v4440 = vsel %vm333, %v4438, %v4439
      %v4441 = vrot.slane %v4367, 2
      %v4442 = vrot.slane %v4368, 2
      %v4443 = vsel %vm333, %v4441, %v4442
      %v4444 = vrot.slane %v4369, 2
      %v4445 = vrot.slane %v4370, 2
      %v4446 = vsel %vm333, %v4444, %v4445
      %v4457 = vrot.slane %v4371, 1
      %v4458 = vrot.slane %v4372, 1
      %v4459 = vsel %vm300, %v4457, %v4458
      %v4461 = vrot.slane %v4371, 2
      %v4462 = vrot.slane %v4372, 2
      %v4463 = vsel %vm333, %v4461, %v4462
      %v4467 = vrot.slane %v4373, 1
      %v4468 = vrot.slane %v4374, 1
      %v4469 = vsel %vm300, %v4467, %v4468
      %v4471 = vrot.slane %v4373, 2
      %v4472 = vrot.slane %v4374, 2
      %v4473 = vsel %vm333, %v4471, %v4472
      %s4475 = scalar_lea.vmem %s1, 5760
      %v4476 = vld [vmem:[%s4475] sm:$0xff]
      %v4477 = vld [vmem:[%s4475 + $0x8] sm:$0xff]
      %v4478 = vld [vmem:[%s4475 + $0x10] sm:$0xff]
      %v4479 = vld [vmem:[%s4475 + $0x18] sm:$0xff]
      %v4480 = vld [vmem:[%s4475 + $0x20] sm:$0xff]
      %v4481 = vld [vmem:[%s4475 + $0x28] sm:$0xff]
      %v4482 = vld [vmem:[%s4475 + $0x30] sm:$0xff]
      %v4483 = vld [vmem:[%s4475 + $0x38] sm:$0xff]
      %v4484 = vld [vmem:[%s4475 + $0x40] sm:$0xff]
      %v4485 = vld [vmem:[%s4475 + $0x48] sm:$0xff]
      %v4486 = vld [vmem:[%s4475 + $0x50] sm:$0xff]
      %v4487 = vld [vmem:[%s4475 + $0x58] sm:$0xff]
      %v4488 = vld [vmem:[%s4475 + $0x60] sm:$0xff]
      %v4489 = vld [vmem:[%s4475 + $0x68] sm:$0xff]
      %v4490 = vld [vmem:[%s4475 + $0x70] sm:$0xff]
      %v4491 = vld [vmem:[%s4475 + $0x78] sm:$0xff]
      %v4492 = vld [vmem:[%s4475 + $0x80] sm:$0xff]
      %v4493 = vld [vmem:[%s4475 + $0x88] sm:$0xff]
      %v4494 = vld [vmem:[%s4475 + $0x90] sm:$0xff]
      %v4495 = vld [vmem:[%s4475 + $0x98] sm:$0xff]
      %v4496 = vld [vmem:[%s4475 + $0xa0] sm:$0xff]
      %v4497 = vld [vmem:[%s4475 + $0xa8] sm:$0xff]
      %v4498 = vld [vmem:[%s4475 + $0xb0] sm:$0xff]
      %v4499 = vld [vmem:[%s4475 + $0xb8] sm:$0xff]
      %v4500 = vld [vmem:[%s4475 + $0xc0] sm:$0xff]
      %v4501 = vld [vmem:[%s4475 + $0xc8] sm:$0xff]
      %v4502 = vld [vmem:[%s4475 + $0xd0] sm:$0xff]
      %v4503 = vld [vmem:[%s4475 + $0xd8] sm:$0xff]
      %v4504 = vld [vmem:[%s4475 + $0xe0] sm:$0xff]
      %v4505 = vld [vmem:[%s4475 + $0xe8] sm:$0xff]
      %v4506 = vld [vmem:[%s4475 + $0xf0] sm:$0xff]
      %v4507 = vld [vmem:[%s4475 + $0xf8] sm:$0xff]
      %v4508 = vld [vmem:[%s4475 + $0x100] sm:$0xff]
      %v4509 = vld [vmem:[%s4475 + $0x108] sm:$0xff]
      %v4510 = vld [vmem:[%s4475 + $0x110] sm:$0xff]
      %v4511 = vld [vmem:[%s4475 + $0x118] sm:$0xff]
      %v4512 = vld [vmem:[%s4475 + $0x120] sm:$0xff]
      %v4513 = vld [vmem:[%s4475 + $0x128] sm:$0xff]
      %v4514 = vld [vmem:[%s4475 + $0x130] sm:$0xff]
      %v4515 = vld [vmem:[%s4475 + $0x138] sm:$0xff]
      %v4516 = vld [vmem:[%s4475 + $0x140] sm:$0xff]
      %v4517 = vld [vmem:[%s4475 + $0x148] sm:$0xff]
      %v4518 = vld [vmem:[%s4475 + $0x150] sm:$0xff]
      %v4519 = vld [vmem:[%s4475 + $0x158] sm:$0xff]
      %v4520 = vld [vmem:[%s4475 + $0x160] sm:$0xff]
      %v4521 = vld [vmem:[%s4475 + $0x168] sm:$0xff]
      %v4522 = vld [vmem:[%s4475 + $0x170] sm:$0xff]
      %v4523 = vld [vmem:[%s4475 + $0x178] sm:$0xff]
      %v4524 = vld [vmem:[%s4475 + $0x180] sm:$0xff]
      %v4525 = vld [vmem:[%s4475 + $0x188] sm:$0xff]
      %v4526 = vld [vmem:[%s4475 + $0x190] sm:$0xff]
      %v4527 = vld [vmem:[%s4475 + $0x198] sm:$0xff]
      %v4528 = vld [vmem:[%s4475 + $0x1a0] sm:$0xff]
      %v4529 = vld [vmem:[%s4475 + $0x1a8] sm:$0xff]
      %v4530 = vld [vmem:[%s4475 + $0x1b0] sm:$0xff]
      %v4531 = vld [vmem:[%s4475 + $0x1b8] sm:$0xff]
      %v4532 = vld [vmem:[%s4475 + $0x1c0] sm:$0xff]
      %v4533 = vld [vmem:[%s4475 + $0x1c8] sm:$0xff]
      %v4534 = vld [vmem:[%s4475 + $0x1d0] sm:$0xff]
      %v4535 = vld [vmem:[%s4475 + $0x1d8] sm:$0xff]
      %v4536 = vld [vmem:[%s4475 + $0x1e0] sm:$0xff]
      %v4537 = vld [vmem:[%s4475 + $0x1e8] sm:$0xff]
      %v4538 = vld [vmem:[%s4475 + $0x1f0] sm:$0xff]
      %v4539 = vld [vmem:[%s4475 + $0x1f8] sm:$0xff]
      %v4540 = vld [vmem:[%s4475 + $0x200] sm:$0xff]
      %v4541 = vld [vmem:[%s4475 + $0x208] sm:$0xff]
      %v4542 = vld [vmem:[%s4475 + $0x210] sm:$0xff]
      %v4543 = vld [vmem:[%s4475 + $0x218] sm:$0xff]
      %v4544 = vld [vmem:[%s4475 + $0x220] sm:$0xff]
      %v4545 = vld [vmem:[%s4475 + $0x228] sm:$0xff]
      %v4546 = vld [vmem:[%s4475 + $0x230] sm:$0xff]
      %v4547 = vld [vmem:[%s4475 + $0x238] sm:$0xff]
      %v4548 = vld [vmem:[%s4475 + $0x240] sm:$0xff]
      %v4549 = vld [vmem:[%s4475 + $0x248] sm:$0xff]
      %v4550 = vld [vmem:[%s4475 + $0x250] sm:$0xff]
      %v4551 = vld [vmem:[%s4475 + $0x258] sm:$0xff]
      %v4552 = vld [vmem:[%s4475 + $0x260] sm:$0xff]
      %v4553 = vld [vmem:[%s4475 + $0x268] sm:$0xff]
      %v4554 = vld [vmem:[%s4475 + $0x270] sm:$0xff]
      %v4555 = vld [vmem:[%s4475 + $0x278] sm:$0xff]
      %v4556 = vld [vmem:[%s4475 + $0x280] sm:$0xff]
      %v4557 = vld [vmem:[%s4475 + $0x288] sm:$0xff]
      %v4558 = vld [vmem:[%s4475 + $0x290] sm:$0xff]
      %v4559 = vld [vmem:[%s4475 + $0x298] sm:$0xff]
      %v4560 = vld [vmem:[%s4475 + $0x2a0] sm:$0xff]
      %v4561 = vld [vmem:[%s4475 + $0x2a8] sm:$0xff]
      %v4562 = vld [vmem:[%s4475 + $0x2b0] sm:$0xff]
      %v4563 = vld [vmem:[%s4475 + $0x2b8] sm:$0xff]
      %v4564 = vld [vmem:[%s4475 + $0x2c0] sm:$0xff]
      %v4565 = vld [vmem:[%s4475 + $0x2c8] sm:$0xff]
      %v4566 = vld [vmem:[%s4475 + $0x2d0] sm:$0xff]
      %v4567 = vld [vmem:[%s4475 + $0x2d8] sm:$0xff]
      %v4568 = vld [vmem:[%s4475 + $0x2e0] sm:$0xff]
      %v4569 = vld [vmem:[%s4475 + $0x2e8] sm:$0xff]
      %v4570 = vld [vmem:[%s4475 + $0x2f0] sm:$0xff]
      %v4571 = vld [vmem:[%s4475 + $0x2f8] sm:$0xff]
      %v4572 = vld [vmem:[%s4475 + $0x300] sm:$0xff]
      %v4573 = vld [vmem:[%s4475 + $0x308] sm:$0xff]
      %v4574 = vld [vmem:[%s4475 + $0x310] sm:$0xff]
      %v4575 = vld [vmem:[%s4475 + $0x318] sm:$0xff]
      %v4576 = vld [vmem:[%s4475 + $0x320] sm:$0xff]
      %v4577 = vld [vmem:[%s4475 + $0x328] sm:$0xff]
      %v4578 = vld [vmem:[%s4475 + $0x330] sm:$0xff]
      %v4579 = vld [vmem:[%s4475 + $0x338] sm:$0xff]
      %v4580 = vld [vmem:[%s4475 + $0x340] sm:$0xff]
      %v4581 = vld [vmem:[%s4475 + $0x348] sm:$0xff]
      %v4582 = vld [vmem:[%s4475 + $0x350] sm:$0xff]
      %v4583 = vld [vmem:[%s4475 + $0x358] sm:$0xff]
      %v4584 = vld [vmem:[%s4475 + $0x360] sm:$0xff]
      %v4585 = vld [vmem:[%s4475 + $0x368] sm:$0xff]
      %v4586 = vld [vmem:[%s4475 + $0x370] sm:$0xff]
      %v4587 = vld [vmem:[%s4475 + $0x378] sm:$0xff]
      %v4588 = vld [vmem:[%s4475 + $0x380] sm:$0xff]
      %v4589 = vld [vmem:[%s4475 + $0x388] sm:$0xff]
      %v4590 = vld [vmem:[%s4475 + $0x390] sm:$0xff]
      %v4591 = vld [vmem:[%s4475 + $0x398] sm:$0xff]
      %v4592 = vld [vmem:[%s4475 + $0x3a0] sm:$0xff]
      %v4593 = vld [vmem:[%s4475 + $0x3a8] sm:$0xff]
      %v4594 = vld [vmem:[%s4475 + $0x3b0] sm:$0xff]
      %v4595 = vld [vmem:[%s4475 + $0x3b8] sm:$0xff]
      %v4596 = vld [vmem:[%s4475 + $0x3c0] sm:$0xff]
      %v4597 = vld [vmem:[%s4475 + $0x3c8] sm:$0xff]
      %v4598 = vld [vmem:[%s4475 + $0x3d0] sm:$0xff]
      %v4599 = vld [vmem:[%s4475 + $0x3d8] sm:$0xff]
      %v4600 = vld [vmem:[%s4475 + $0x3e0] sm:$0xff]
      %v4601 = vld [vmem:[%s4475 + $0x3e8] sm:$0xff]
      %v4602 = vld [vmem:[%s4475 + $0x3f0] sm:$0xff]
      %v4603 = vld [vmem:[%s4475 + $0x3f8] sm:$0xff]
      %v4604 = vld [vmem:[%s4475 + $0x400] sm:$0xff]
      %v4605 = vld [vmem:[%s4475 + $0x408] sm:$0xff]
      %v4606 = vld [vmem:[%s4475 + $0x410] sm:$0xff]
      %v4607 = vld [vmem:[%s4475 + $0x418] sm:$0xff]
      %v4608 = vld [vmem:[%s4475 + $0x420] sm:$0xff]
      %v4609 = vld [vmem:[%s4475 + $0x428] sm:$0xff]
      %v4610 = vld [vmem:[%s4475 + $0x430] sm:$0xff]
      %v4611 = vld [vmem:[%s4475 + $0x438] sm:$0xff]
      %v4612 = vld [vmem:[%s4475 + $0x440] sm:$0xff]
      %v4613 = vld [vmem:[%s4475 + $0x448] sm:$0xff]
      %v4614 = vld [vmem:[%s4475 + $0x450] sm:$0xff]
      %v4615 = vld [vmem:[%s4475 + $0x458] sm:$0xff]
      %v4616 = vld [vmem:[%s4475 + $0x460] sm:$0xff]
      %v4617 = vld [vmem:[%s4475 + $0x468] sm:$0xff]
      %v4618 = vld [vmem:[%s4475 + $0x470] sm:$0xff]
      %v4619 = vld [vmem:[%s4475 + $0x478] sm:$0xff]
      %s4620 = scalar_lea.vmem %s2, 5
      %v4621 = vld [vmem:[%s4620] sm:$0x1]
      %v4623 = vlaneseq
      %v4624 = vshrl.u32 %v4623, 7
      %v4625 = vsub.s32 0, %v4624
      %v4626 = vrot.slane %v4621, %v4625
      %4628 = vmatprep.subr.mxu0 0.0
      %4629 = vmatpush1.msra.mxu0 %v4491
      %4630 = vmatprep.subr.mxu0 0.0
      %4631 = vmatpush1.msra.mxu0 %v4490
      %4632 = vmatprep.subr.mxu0 0.0
      %4633 = vmatpush1.msra.mxu0 %v4489
      %4634 = vmatprep.subr.mxu0 0.0
      %4635 = vmatpush1.msra.mxu0 %v4488
      %4636 = vmatprep.subr.mxu0 0.0
      %4637 = vmatpush1.msra.mxu0 %v4487
      %4638 = vmatprep.subr.mxu0 0.0
      %4639 = vmatpush1.msra.mxu0 %v4486
      %4640 = vmatprep.subr.mxu0 0.0
      %4641 = vmatpush1.msra.mxu0 %v4485
      %4642 = vmatprep.subr.mxu0 0.0
      %4643 = vmatpush1.msra.mxu0 %v4484
      %4644 = vmatprep.subr.mxu0 0.0
      %4645 = vmatpush1.msra.mxu0 %v4483
      %4646 = vmatprep.subr.mxu0 0.0
      %4647 = vmatpush1.msra.mxu0 %v4482
      %4648 = vmatprep.subr.mxu0 0.0
      %4649 = vmatpush1.msra.mxu0 %v4481
      %4650 = vmatprep.subr.mxu0 0.0
      %4651 = vmatpush1.msra.mxu0 %v4480
      %4652 = vmatprep.subr.mxu0 0.0
      %4653 = vmatpush1.msra.mxu0 %v4479
      %4654 = vmatprep.subr.mxu0 0.0
      %4655 = vmatpush1.msra.mxu0 %v4478
      %4656 = vmatprep.subr.mxu0 0.0
      %4657 = vmatpush1.msra.mxu0 %v4477
      %4658 = vmatprep.subr.mxu0 0.0
      %4659 = vmatpush1.msra.mxu0 %v4476
      %4660 = vmatprep.subr.mxu0 0.0
      %4661 = vmatpush2.msra.mxu0 %v4507
      %4662 = vmatprep.subr.mxu0 0.0
      %4663 = vmatpush2.msra.mxu0 %v4506
      %4664 = vmatprep.subr.mxu0 0.0
      %4665 = vmatpush2.msra.mxu0 %v4505
      %4666 = vmatprep.subr.mxu0 0.0
      %4667 = vmatpush2.msra.mxu0 %v4504
      %4668 = vmatprep.subr.mxu0 0.0
      %4669 = vmatpush2.msra.mxu0 %v4503
      %4670 = vmatprep.subr.mxu0 0.0
      %4671 = vmatpush2.msra.mxu0 %v4502
      %4672 = vmatprep.subr.mxu0 0.0
      %4673 = vmatpush2.msra.mxu0 %v4501
      %4674 = vmatprep.subr.mxu0 0.0
      %4675 = vmatpush2.msra.mxu0 %v4500
      %4676 = vmatprep.subr.mxu0 0.0
      %4677 = vmatpush2.msra.mxu0 %v4499
      %4678 = vmatprep.subr.mxu0 0.0
      %4679 = vmatpush2.msra.mxu0 %v4498
      %4680 = vmatprep.subr.mxu0 0.0
      %4681 = vmatpush2.msra.mxu0 %v4497
      %4682 = vmatprep.subr.mxu0 0.0
      %4683 = vmatpush2.msra.mxu0 %v4496
      %4684 = vmatprep.subr.mxu0 0.0
      %4685 = vmatpush2.msra.mxu0 %v4495
      %4686 = vmatprep.subr.mxu0 0.0
      %4687 = vmatpush2.msra.mxu0 %v4494
      %4688 = vmatprep.subr.mxu0 0.0
      %4689 = vmatpush2.msra.mxu0 %v4493
      %4690 = vmatprep.subr.mxu0 0.0
      %4691 = vmatpush2.msra.mxu0 %v4492
      %4692 = vmatprep.mubr.f32.mxu0 %v4393
      %4693 = vmatmul.mubr.f32.gmra.mxu0 %v4355
      %v4694 = vpop.f32.mrf.mxu0
      %v4695 = vadd.f32 %v4626, %v4694
      %v4696 = vpop.f32.mrf.mxu0
      %4697 = vmatprep.mubr.f32.mxu0 %v4396
      %4698 = vmatmul.mubr.f32.gmra.mxu0 %v4357
      %v4699 = vpop.f32.mrf.mxu0
      %v4700 = vadd.f32 %v4626, %v4699
      %v4701 = vpop.f32.mrf.mxu0
      %4702 = vmatprep.mubr.f32.mxu0 %v4399
      %4703 = vmatmul.mubr.f32.gmra.mxu0 %v4359
      %v4704 = vpop.f32.mrf.mxu0
      %v4705 = vadd.f32 %v4626, %v4704
      %v4706 = vpop.f32.mrf.mxu0
      %4707 = vmatprep.mubr.f32.mxu0 %v4402
      %4708 = vmatmul.mubr.f32.gmra.mxu0 %v4361
      %v4709 = vpop.f32.mrf.mxu0
      %v4710 = vadd.f32 %v4626, %v4709
      %v4711 = vpop.f32.mrf.mxu0
      %4712 = vmatprep.mubr.f32.mxu0 %v4405
      %4713 = vmatmul.mubr.f32.gmra.mxu0 %v4363
      %v4714 = vpop.f32.mrf.mxu0
      %v4715 = vadd.f32 %v4626, %v4714
      %v4716 = vpop.f32.mrf.mxu0
      %4717 = vmatprep.mubr.f32.mxu0 %v4408
      %4718 = vmatmul.mubr.f32.gmra.mxu0 %v4365
      %v4719 = vpop.f32.mrf.mxu0
      %v4720 = vadd.f32 %v4626, %v4719
      %v4721 = vpop.f32.mrf.mxu0
      %4722 = vmatprep.mubr.f32.mxu0 %v4411
      %4723 = vmatmul.mubr.f32.gmra.mxu0 %v4367
      %v4724 = vpop.f32.mrf.mxu0
      %v4725 = vadd.f32 %v4626, %v4724
      %v4726 = vpop.f32.mrf.mxu0
      %4727 = vmatprep.mubr.f32.mxu0 %v4414
      %4728 = vmatmul.mubr.f32.gmra.mxu0 %v4369
      %v4729 = vpop.f32.mrf.mxu0
      %v4730 = vadd.f32 %v4626, %v4729
      %v4731 = vpop.f32.mrf.mxu0
      %4732 = vdwg.mxu0
      %4733 = vmatprep.subr.mxu0 0.0
      %4734 = vmatpush1.msra.mxu0 %v4523
      %4735 = vmatprep.subr.mxu0 0.0
      %4736 = vmatpush1.msra.mxu0 %v4522
      %4737 = vmatprep.subr.mxu0 0.0
      %4738 = vmatpush1.msra.mxu0 %v4521
      %4739 = vmatprep.subr.mxu0 0.0
      %4740 = vmatpush1.msra.mxu0 %v4520
      %4741 = vmatprep.subr.mxu0 0.0
      %4742 = vmatpush1.msra.mxu0 %v4519
      %4743 = vmatprep.subr.mxu0 0.0
      %4744 = vmatpush1.msra.mxu0 %v4518
      %4745 = vmatprep.subr.mxu0 0.0
      %4746 = vmatpush1.msra.mxu0 %v4517
      %4747 = vmatprep.subr.mxu0 0.0
      %4748 = vmatpush1.msra.mxu0 %v4516
      %4749 = vmatprep.subr.mxu0 0.0
      %4750 = vmatpush1.msra.mxu0 %v4515
      %4751 = vmatprep.subr.mxu0 0.0
      %4752 = vmatpush1.msra.mxu0 %v4514
      %4753 = vmatprep.subr.mxu0 0.0
      %4754 = vmatpush1.msra.mxu0 %v4513
      %4755 = vmatprep.subr.mxu0 0.0
      %4756 = vmatpush1.msra.mxu0 %v4512
      %4757 = vmatprep.subr.mxu0 0.0
      %4758 = vmatpush1.msra.mxu0 %v4511
      %4759 = vmatprep.subr.mxu0 0.0
      %4760 = vmatpush1.msra.mxu0 %v4510
      %4761 = vmatprep.subr.mxu0 0.0
      %4762 = vmatpush1.msra.mxu0 %v4509
      %4763 = vmatprep.subr.mxu0 0.0
      %4764 = vmatpush1.msra.mxu0 %v4508
      %4765 = vmatprep.subr.mxu0 0.0
      %4766 = vmatpush2.msra.mxu0 %v4539
      %4767 = vmatprep.subr.mxu0 0.0
      %4768 = vmatpush2.msra.mxu0 %v4538
      %4769 = vmatprep.subr.mxu0 0.0
      %4770 = vmatpush2.msra.mxu0 %v4537
      %4771 = vmatprep.subr.mxu0 0.0
      %4772 = vmatpush2.msra.mxu0 %v4536
      %4773 = vmatprep.subr.mxu0 0.0
      %4774 = vmatpush2.msra.mxu0 %v4535
      %4775 = vmatprep.subr.mxu0 0.0
      %4776 = vmatpush2.msra.mxu0 %v4534
      %4777 = vmatprep.subr.mxu0 0.0
      %4778 = vmatpush2.msra.mxu0 %v4533
      %4779 = vmatprep.subr.mxu0 0.0
      %4780 = vmatpush2.msra.mxu0 %v4532
      %4781 = vmatprep.subr.mxu0 0.0
      %4782 = vmatpush2.msra.mxu0 %v4531
      %4783 = vmatprep.subr.mxu0 0.0
      %4784 = vmatpush2.msra.mxu0 %v4530
      %4785 = vmatprep.subr.mxu0 0.0
      %4786 = vmatpush2.msra.mxu0 %v4529
      %4787 = vmatprep.subr.mxu0 0.0
      %4788 = vmatpush2.msra.mxu0 %v4528
      %4789 = vmatprep.subr.mxu0 0.0
      %4790 = vmatpush2.msra.mxu0 %v4527
      %4791 = vmatprep.subr.mxu0 0.0
      %4792 = vmatpush2.msra.mxu0 %v4526
      %4793 = vmatprep.subr.mxu0 0.0
      %4794 = vmatpush2.msra.mxu0 %v4525
      %4795 = vmatprep.subr.mxu0 0.0
      %4796 = vmatpush2.msra.mxu0 %v4524
      %4797 = vmatprep.mubr.f32.mxu0 %v4357
      %4798 = vmatmul.mubr.f32.gmra.mxu0 %v4425
      %v4799 = vpop.f32.mrf.mxu0
      %v4800 = vadd.f32 %v4695, %v4799
      %v4801 = vpop.f32.mrf.mxu0
      %4802 = vmatprep.mubr.f32.mxu0 %v4359
      %4803 = vmatmul.mubr.f32.gmra.mxu0 %v4428
      %v4804 = vpop.f32.mrf.mxu0
      %v4805 = vadd.f32 %v4700, %v4804
      %v4806 = vpop.f32.mrf.mxu0
      %4807 = vmatprep.mubr.f32.mxu0 %v4361
      %4808 = vmatmul.mubr.f32.gmra.mxu0 %v4431
      %v4809 = vpop.f32.mrf.mxu0
      %v4810 = vadd.f32 %v4705, %v4809
      %v4811 = vpop.f32.mrf.mxu0
      %4812 = vmatprep.mubr.f32.mxu0 %v4363
      %4813 = vmatmul.mubr.f32.gmra.mxu0 %v4434
      %v4814 = vpop.f32.mrf.mxu0
      %v4815 = vadd.f32 %v4710, %v4814
      %v4816 = vpop.f32.mrf.mxu0
      %4817 = vmatprep.mubr.f32.mxu0 %v4365
      %4818 = vmatmul.mubr.f32.gmra.mxu0 %v4437
      %v4819 = vpop.f32.mrf.mxu0
      %v4820 = vadd.f32 %v4715, %v4819
      %v4821 = vpop.f32.mrf.mxu0
      %4822 = vmatprep.mubr.f32.mxu0 %v4367
      %4823 = vmatmul.mubr.f32.gmra.mxu0 %v4440
      %v4824 = vpop.f32.mrf.mxu0
      %v4825 = vadd.f32 %v4720, %v4824
      %v4826 = vpop.f32.mrf.mxu0
      %4827 = vmatprep.mubr.f32.mxu0 %v4369
      %4828 = vmatmul.mubr.f32.gmra.mxu0 %v4443
      %v4829 = vpop.f32.mrf.mxu0
      %v4830 = vadd.f32 %v4725, %v4829
      %v4831 = vpop.f32.mrf.mxu0
      %4832 = vmatprep.mubr.f32.mxu0 %v4371
      %4833 = vmatmul.mubr.f32.gmra.mxu0 %v4446
      %v4834 = vpop.f32.mrf.mxu0
      %v4835 = vadd.f32 %v4730, %v4834
      %v4836 = vpop.f32.mrf.mxu0
      %4837 = vdwg.mxu0
      %4838 = vmatprep.subr.mxu0 0.0
      %4839 = vmatpush1.msra.mxu0 %v4555
      %4840 = vmatprep.subr.mxu0 0.0
      %4841 = vmatpush1.msra.mxu0 %v4554
      %4842 = vmatprep.subr.mxu0 0.0
      %4843 = vmatpush1.msra.mxu0 %v4553
      %4844 = vmatprep.subr.mxu0 0.0
      %4845 = vmatpush1.msra.mxu0 %v4552
      %4846 = vmatprep.subr.mxu0 0.0
      %4847 = vmatpush1.msra.mxu0 %v4551
      %4848 = vmatprep.subr.mxu0 0.0
      %4849 = vmatpush1.msra.mxu0 %v4550
      %4850 = vmatprep.subr.mxu0 0.0
      %4851 = vmatpush1.msra.mxu0 %v4549
      %4852 = vmatprep.subr.mxu0 0.0
      %4853 = vmatpush1.msra.mxu0 %v4548
      %4854 = vmatprep.subr.mxu0 0.0
      %4855 = vmatpush1.msra.mxu0 %v4547
      %4856 = vmatprep.subr.mxu0 0.0
      %4857 = vmatpush1.msra.mxu0 %v4546
      %4858 = vmatprep.subr.mxu0 0.0
      %4859 = vmatpush1.msra.mxu0 %v4545
      %4860 = vmatprep.subr.mxu0 0.0
      %4861 = vmatpush1.msra.mxu0 %v4544
      %4862 = vmatprep.subr.mxu0 0.0
      %4863 = vmatpush1.msra.mxu0 %v4543
      %4864 = vmatprep.subr.mxu0 0.0
      %4865 = vmatpush1.msra.mxu0 %v4542
      %4866 = vmatprep.subr.mxu0 0.0
      %4867 = vmatpush1.msra.mxu0 %v4541
      %4868 = vmatprep.subr.mxu0 0.0
      %4869 = vmatpush1.msra.mxu0 %v4540
      %4870 = vmatprep.subr.mxu0 0.0
      %4871 = vmatpush2.msra.mxu0 %v4571
      %4872 = vmatprep.subr.mxu0 0.0
      %4873 = vmatpush2.msra.mxu0 %v4570
      %4874 = vmatprep.subr.mxu0 0.0
      %4875 = vmatpush2.msra.mxu0 %v4569
      %4876 = vmatprep.subr.mxu0 0.0
      %4877 = vmatpush2.msra.mxu0 %v4568
      %4878 = vmatprep.subr.mxu0 0.0
      %4879 = vmatpush2.msra.mxu0 %v4567
      %4880 = vmatprep.subr.mxu0 0.0
      %4881 = vmatpush2.msra.mxu0 %v4566
      %4882 = vmatprep.subr.mxu0 0.0
      %4883 = vmatpush2.msra.mxu0 %v4565
      %4884 = vmatprep.subr.mxu0 0.0
      %4885 = vmatpush2.msra.mxu0 %v4564
      %4886 = vmatprep.subr.mxu0 0.0
      %4887 = vmatpush2.msra.mxu0 %v4563
      %4888 = vmatprep.subr.mxu0 0.0
      %4889 = vmatpush2.msra.mxu0 %v4562
      %4890 = vmatprep.subr.mxu0 0.0
      %4891 = vmatpush2.msra.mxu0 %v4561
      %4892 = vmatprep.subr.mxu0 0.0
      %4893 = vmatpush2.msra.mxu0 %v4560
      %4894 = vmatprep.subr.mxu0 0.0
      %4895 = vmatpush2.msra.mxu0 %v4559
      %4896 = vmatprep.subr.mxu0 0.0
      %4897 = vmatpush2.msra.mxu0 %v4558
      %4898 = vmatprep.subr.mxu0 0.0
      %4899 = vmatpush2.msra.mxu0 %v4557
      %4900 = vmatprep.subr.mxu0 0.0
      %4901 = vmatpush2.msra.mxu0 %v4556
      %4902 = vmatprep.mubr.f32.mxu0 %v4428
      %4903 = vmatmul.mubr.f32.gmra.mxu0 %v4396
      %v4904 = vpop.f32.mrf.mxu0
      %v4905 = vadd.f32 %v4800, %v4904
      %v4906 = vpop.f32.mrf.mxu0
      %4907 = vmatprep.mubr.f32.mxu0 %v4431
      %4908 = vmatmul.mubr.f32.gmra.mxu0 %v4399
      %v4909 = vpop.f32.mrf.mxu0
      %v4910 = vadd.f32 %v4805, %v4909
      %v4911 = vpop.f32.mrf.mxu0
      %4912 = vmatprep.mubr.f32.mxu0 %v4434
      %4913 = vmatmul.mubr.f32.gmra.mxu0 %v4402
      %v4914 = vpop.f32.mrf.mxu0
      %v4915 = vadd.f32 %v4810, %v4914
      %v4916 = vpop.f32.mrf.mxu0
      %4917 = vmatprep.mubr.f32.mxu0 %v4437
      %4918 = vmatmul.mubr.f32.gmra.mxu0 %v4405
      %v4919 = vpop.f32.mrf.mxu0
      %v4920 = vadd.f32 %v4815, %v4919
      %v4921 = vpop.f32.mrf.mxu0
      %4922 = vmatprep.mubr.f32.mxu0 %v4440
      %4923 = vmatmul.mubr.f32.gmra.mxu0 %v4408
      %v4924 = vpop.f32.mrf.mxu0
      %v4925 = vadd.f32 %v4820, %v4924
      %v4926 = vpop.f32.mrf.mxu0
      %4927 = vmatprep.mubr.f32.mxu0 %v4443
      %4928 = vmatmul.mubr.f32.gmra.mxu0 %v4411
      %v4929 = vpop.f32.mrf.mxu0
      %v4930 = vadd.f32 %v4825, %v4929
      %v4931 = vpop.f32.mrf.mxu0
      %4932 = vmatprep.mubr.f32.mxu0 %v4446
      %4933 = vmatmul.mubr.f32.gmra.mxu0 %v4414
      %v4934 = vpop.f32.mrf.mxu0
      %v4935 = vadd.f32 %v4830, %v4934
      %v4936 = vpop.f32.mrf.mxu0
      %4937 = vmatprep.mubr.f32.mxu0 %v4463
      %4938 = vmatmul.mubr.f32.gmra.mxu0 %v4459
      %v4939 = vpop.f32.mrf.mxu0
      %v4940 = vadd.f32 %v4835, %v4939
      %v4941 = vpop.f32.mrf.mxu0
      %4942 = vdwg.mxu0
      %4943 = vmatprep.subr.mxu0 0.0
      %4944 = vmatpush1.msra.mxu0 %v4587
      %4945 = vmatprep.subr.mxu0 0.0
      %4946 = vmatpush1.msra.mxu0 %v4586
      %4947 = vmatprep.subr.mxu0 0.0
      %4948 = vmatpush1.msra.mxu0 %v4585
      %4949 = vmatprep.subr.mxu0 0.0
      %4950 = vmatpush1.msra.mxu0 %v4584
      %4951 = vmatprep.subr.mxu0 0.0
      %4952 = vmatpush1.msra.mxu0 %v4583
      %4953 = vmatprep.subr.mxu0 0.0
      %4954 = vmatpush1.msra.mxu0 %v4582
      %4955 = vmatprep.subr.mxu0 0.0
      %4956 = vmatpush1.msra.mxu0 %v4581
      %4957 = vmatprep.subr.mxu0 0.0
      %4958 = vmatpush1.msra.mxu0 %v4580
      %4959 = vmatprep.subr.mxu0 0.0
      %4960 = vmatpush1.msra.mxu0 %v4579
      %4961 = vmatprep.subr.mxu0 0.0
      %4962 = vmatpush1.msra.mxu0 %v4578
      %4963 = vmatprep.subr.mxu0 0.0
      %4964 = vmatpush1.msra.mxu0 %v4577
      %4965 = vmatprep.subr.mxu0 0.0
      %4966 = vmatpush1.msra.mxu0 %v4576
      %4967 = vmatprep.subr.mxu0 0.0
      %4968 = vmatpush1.msra.mxu0 %v4575
      %4969 = vmatprep.subr.mxu0 0.0
      %4970 = vmatpush1.msra.mxu0 %v4574
      %4971 = vmatprep.subr.mxu0 0.0
      %4972 = vmatpush1.msra.mxu0 %v4573
      %4973 = vmatprep.subr.mxu0 0.0
      %4974 = vmatpush1.msra.mxu0 %v4572
      %4975 = vmatprep.subr.mxu0 0.0
      %4976 = vmatpush2.msra.mxu0 %v4603
      %4977 = vmatprep.subr.mxu0 0.0
      %4978 = vmatpush2.msra.mxu0 %v4602
      %4979 = vmatprep.subr.mxu0 0.0
      %4980 = vmatpush2.msra.mxu0 %v4601
      %4981 = vmatprep.subr.mxu0 0.0
      %4982 = vmatpush2.msra.mxu0 %v4600
      %4983 = vmatprep.subr.mxu0 0.0
      %4984 = vmatpush2.msra.mxu0 %v4599
      %4985 = vmatprep.subr.mxu0 0.0
      %4986 = vmatpush2.msra.mxu0 %v4598
      %4987 = vmatprep.subr.mxu0 0.0
      %4988 = vmatpush2.msra.mxu0 %v4597
      %4989 = vmatprep.subr.mxu0 0.0
      %4990 = vmatpush2.msra.mxu0 %v4596
      %4991 = vmatprep.subr.mxu0 0.0
      %4992 = vmatpush2.msra.mxu0 %v4595
      %4993 = vmatprep.subr.mxu0 0.0
      %4994 = vmatpush2.msra.mxu0 %v4594
      %4995 = vmatprep.subr.mxu0 0.0
      %4996 = vmatpush2.msra.mxu0 %v4593
      %4997 = vmatprep.subr.mxu0 0.0
      %4998 = vmatpush2.msra.mxu0 %v4592
      %4999 = vmatprep.subr.mxu0 0.0
      %5000 = vmatpush2.msra.mxu0 %v4591
      %5001 = vmatprep.subr.mxu0 0.0
      %5002 = vmatpush2.msra.mxu0 %v4590
      %5003 = vmatprep.subr.mxu0 0.0
      %5004 = vmatpush2.msra.mxu0 %v4589
      %5005 = vmatprep.subr.mxu0 0.0
      %5006 = vmatpush2.msra.mxu0 %v4588
      %5007 = vmatprep.mubr.f32.mxu0 %v4399
      %5008 = vmatmul.mubr.f32.gmra.mxu0 %v4359
      %v5009 = vpop.f32.mrf.mxu0
      %v5010 = vadd.f32 %v4905, %v5009
      %v5011 = vpop.f32.mrf.mxu0
      %5012 = vmatprep.mubr.f32.mxu0 %v4402
      %5013 = vmatmul.mubr.f32.gmra.mxu0 %v4361
      %v5014 = vpop.f32.mrf.mxu0
      %v5015 = vadd.f32 %v4910, %v5014
      %v5016 = vpop.f32.mrf.mxu0
      %5017 = vmatprep.mubr.f32.mxu0 %v4405
      %5018 = vmatmul.mubr.f32.gmra.mxu0 %v4363
      %v5019 = vpop.f32.mrf.mxu0
      %v5020 = vadd.f32 %v4915, %v5019
      %v5021 = vpop.f32.mrf.mxu0
      %5022 = vmatprep.mubr.f32.mxu0 %v4408
      %5023 = vmatmul.mubr.f32.gmra.mxu0 %v4365
      %v5024 = vpop.f32.mrf.mxu0
      %v5025 = vadd.f32 %v4920, %v5024
      %v5026 = vpop.f32.mrf.mxu0
      %5027 = vmatprep.mubr.f32.mxu0 %v4411
      %5028 = vmatmul.mubr.f32.gmra.mxu0 %v4367
      %v5029 = vpop.f32.mrf.mxu0
      %v5030 = vadd.f32 %v4925, %v5029
      %v5031 = vpop.f32.mrf.mxu0
      %5032 = vmatprep.mubr.f32.mxu0 %v4414
      %5033 = vmatmul.mubr.f32.gmra.mxu0 %v4369
      %v5034 = vpop.f32.mrf.mxu0
      %v5035 = vadd.f32 %v4930, %v5034
      %v5036 = vpop.f32.mrf.mxu0
      %5037 = vmatprep.mubr.f32.mxu0 %v4459
      %5038 = vmatmul.mubr.f32.gmra.mxu0 %v4371
      %v5039 = vpop.f32.mrf.mxu0
      %v5040 = vadd.f32 %v4935, %v5039
      %v5041 = vpop.f32.mrf.mxu0
      %5042 = vmatprep.mubr.f32.mxu0 %v4469
      %5043 = vmatmul.mubr.f32.gmra.mxu0 %v4373
      %v5044 = vpop.f32.mrf.mxu0
      %v5045 = vadd.f32 %v4940, %v5044
      %v5046 = vpop.f32.mrf.mxu0
      %5047 = vdwg.mxu0
      %5048 = vmatprep.subr.mxu0 0.0
      %5049 = vmatpush1.msra.mxu0 %v4619
      %5050 = vmatprep.subr.mxu0 0.0
      %5051 = vmatpush1.msra.mxu0 %v4618
      %5052 = vmatprep.subr.mxu0 0.0
      %5053 = vmatpush1.msra.mxu0 %v4617
      %5054 = vmatprep.subr.mxu0 0.0
      %5055 = vmatpush1.msra.mxu0 %v4616
      %5056 = vmatprep.subr.mxu0 0.0
      %5057 = vmatpush1.msra.mxu0 %v4615
      %5058 = vmatprep.subr.mxu0 0.0
      %5059 = vmatpush1.msra.mxu0 %v4614
      %5060 = vmatprep.subr.mxu0 0.0
      %5061 = vmatpush1.msra.mxu0 %v4613
      %5062 = vmatprep.subr.mxu0 0.0
      %5063 = vmatpush1.msra.mxu0 %v4612
      %5064 = vmatprep.subr.mxu0 0.0
      %5065 = vmatpush1.msra.mxu0 %v4611
      %5066 = vmatprep.subr.mxu0 0.0
      %5067 = vmatpush1.msra.mxu0 %v4610
      %5068 = vmatprep.subr.mxu0 0.0
      %5069 = vmatpush1.msra.mxu0 %v4609
      %5070 = vmatprep.subr.mxu0 0.0
      %5071 = vmatpush1.msra.mxu0 %v4608
      %5072 = vmatprep.subr.mxu0 0.0
      %5073 = vmatpush1.msra.mxu0 %v4607
      %5074 = vmatprep.subr.mxu0 0.0
      %5075 = vmatpush1.msra.mxu0 %v4606
      %5076 = vmatprep.subr.mxu0 0.0
      %5077 = vmatpush1.msra.mxu0 %v4605
      %5078 = vmatprep.subr.mxu0 0.0
      %5079 = vmatpush1.msra.mxu0 %v4604
      %5080 = vmatprep.subr.mxu0 0.0
      %5081 = vmatpush2.msra.mxu0 0.0
      %5082 = vmatprep.subr.mxu0 0.0
      %5083 = vmatpush2.msra.mxu0 0.0
      %5084 = vmatprep.subr.mxu0 0.0
      %5085 = vmatpush2.msra.mxu0 0.0
      %5086 = vmatprep.subr.mxu0 0.0
      %5087 = vmatpush2.msra.mxu0 0.0
      %5088 = vmatprep.subr.mxu0 0.0
      %5089 = vmatpush2.msra.mxu0 0.0
      %5090 = vmatprep.subr.mxu0 0.0
      %5091 = vmatpush2.msra.mxu0 0.0
      %5092 = vmatprep.subr.mxu0 0.0
      %5093 = vmatpush2.msra.mxu0 0.0
      %5094 = vmatprep.subr.mxu0 0.0
      %5095 = vmatpush2.msra.mxu0 0.0
      %5096 = vmatprep.subr.mxu0 0.0
      %5097 = vmatpush2.msra.mxu0 0.0
      %5098 = vmatprep.subr.mxu0 0.0
      %5099 = vmatpush2.msra.mxu0 0.0
      %5100 = vmatprep.subr.mxu0 0.0
      %5101 = vmatpush2.msra.mxu0 0.0
      %5102 = vmatprep.subr.mxu0 0.0
      %5103 = vmatpush2.msra.mxu0 0.0
      %5104 = vmatprep.subr.mxu0 0.0
      %5105 = vmatpush2.msra.mxu0 0.0
      %5106 = vmatprep.subr.mxu0 0.0
      %5107 = vmatpush2.msra.mxu0 0.0
      %5108 = vmatprep.subr.mxu0 0.0
      %5109 = vmatpush2.msra.mxu0 0.0
      %5110 = vmatprep.subr.mxu0 0.0
      %5111 = vmatpush2.msra.mxu0 0.0
      %5112 = vmatprep.mubr.f32.mxu0 0.0
      %5113 = vmatmul.mubr.f32.gmra.mxu0 %v4431
      %v5114 = vpop.f32.mrf.mxu0
      %v5115 = vadd.f32 %v5010, %v5114
      %v5116 = vpop.f32.mrf.mxu0
      %5117 = vmatprep.mubr.f32.mxu0 0.0
      %5118 = vmatmul.mubr.f32.gmra.mxu0 %v4434
      %v5119 = vpop.f32.mrf.mxu0
      %v5120 = vadd.f32 %v5015, %v5119
      %v5121 = vpop.f32.mrf.mxu0
      %5122 = vmatprep.mubr.f32.mxu0 0.0
      %5123 = vmatmul.mubr.f32.gmra.mxu0 %v4437
      %v5124 = vpop.f32.mrf.mxu0
      %v5125 = vadd.f32 %v5020, %v5124
      %v5126 = vpop.f32.mrf.mxu0
      %5127 = vmatprep.mubr.f32.mxu0 0.0
      %5128 = vmatmul.mubr.f32.gmra.mxu0 %v4440
      %v5129 = vpop.f32.mrf.mxu0
      %v5130 = vadd.f32 %v5025, %v5129
      %v5131 = vpop.f32.mrf.mxu0
      %5132 = vmatprep.mubr.f32.mxu0 0.0
      %5133 = vmatmul.mubr.f32.gmra.mxu0 %v4443
      %v5134 = vpop.f32.mrf.mxu0
      %v5135 = vadd.f32 %v5030, %v5134
      %v5136 = vpop.f32.mrf.mxu0
      %5137 = vmatprep.mubr.f32.mxu0 0.0
      %5138 = vmatmul.mubr.f32.gmra.mxu0 %v4446
      %v5139 = vpop.f32.mrf.mxu0
      %v5140 = vadd.f32 %v5035, %v5139
      %v5141 = vpop.f32.mrf.mxu0
      %5142 = vmatprep.mubr.f32.mxu0 0.0
      %5143 = vmatmul.mubr.f32.gmra.mxu0 %v4463
      %v5144 = vpop.f32.mrf.mxu0
      %v5145 = vadd.f32 %v5040, %v5144
      %v5146 = vpop.f32.mrf.mxu0
      %5147 = vmatprep.mubr.f32.mxu0 0.0
      %5148 = vmatmul.mubr.f32.gmra.mxu0 %v4473
      %v5149 = vpop.f32.mrf.mxu0
      %v5150 = vadd.f32 %v5045, %v5149
      %v5151 = vpop.f32.mrf.mxu0
      %5152 = vdwg.mxu0
      %v5153 = vmax.f32 %v5115, 0.0
      %v5154 = vmax.f32 %v5120, 0.0
      %v5155 = vmax.f32 %v5125, 0.0
      %v5156 = vmax.f32 %v5130, 0.0
      %v5157 = vmax.f32 %v5135, 0.0
      %v5158 = vmax.f32 %v5140, 0.0
      %v5159 = vmax.f32 %v5145, 0.0
      %v5160 = vmax.f32 %v5150, 0.0
      %5161 = vst.msk [vmem:[%s255 + $0x1] sm:$0xff] %vm1090, %v5153
      %5162 = vst.msk [vmem:[%s255 + $0x11] sm:$0xff] %vm1090, %v5154
      %5163 = vst.msk [vmem:[%s255 + $0x21] sm:$0xff] %vm1090, %v5155
      %5164 = vst.msk [vmem:[%s255 + $0x31] sm:$0xff] %vm1090, %v5156
      %5165 = vst.msk [vmem:[%s255 + $0x41] sm:$0xff] %vm1090, %v5157
      %5166 = vst.msk [vmem:[%s255 + $0x51] sm:$0xff] %vm1090, %v5158
      %5167 = vst.msk [vmem:[%s255 + $0x61] sm:$0xff] %vm1090, %v5159
      %5168 = vst.msk [vmem:[%s255 + $0x71] sm:$0xff] %vm1090, %v5160
      %v5169 = vld [vmem:[#allocation2] sm:$0xff]
      %v5170 = vld [vmem:[#allocation2 + $0x8] sm:$0x3]
      %v5171 = vld [vmem:[#allocation2 + $0x10] sm:$0xff]
      %v5172 = vld [vmem:[#allocation2 + $0x18] sm:$0x3]
      %v5173 = vld [vmem:[#allocation2 + $0x20] sm:$0xff]
      %v5174 = vld [vmem:[#allocation2 + $0x28] sm:$0x3]
      %v5175 = vld [vmem:[#allocation2 + $0x30] sm:$0xff]
      %v5176 = vld [vmem:[#allocation2 + $0x38] sm:$0x3]
      %v5177 = vld [vmem:[#allocation2 + $0x40] sm:$0xff]
      %v5178 = vld [vmem:[#allocation2 + $0x48] sm:$0x3]
      %v5179 = vld [vmem:[#allocation2 + $0x50] sm:$0xff]
      %v5180 = vld [vmem:[#allocation2 + $0x58] sm:$0x3]
      %v5181 = vld [vmem:[#allocation2 + $0x60] sm:$0xff]
      %v5182 = vld [vmem:[#allocation2 + $0x68] sm:$0x3]
      %v5183 = vld [vmem:[#allocation2 + $0x70] sm:$0xff]
      %v5184 = vld [vmem:[#allocation2 + $0x78] sm:$0x3]
      %v5185 = vld [vmem:[#allocation2 + $0x80] sm:$0xff]
      %v5186 = vld [vmem:[#allocation2 + $0x88] sm:$0x3]
      %v5187 = vld [vmem:[#allocation2 + $0x90] sm:$0xff]
      %v5188 = vld [vmem:[#allocation2 + $0x98] sm:$0x3]
      %v5205 = vrot.slane %v5169, 1
      %v5206 = vrot.slane %v5170, 1
      %v5207 = vsel %vm300, %v5205, %v5206
      %v5208 = vrot.slane %v5171, 1
      %v5209 = vrot.slane %v5172, 1
      %v5210 = vsel %vm300, %v5208, %v5209
      %v5211 = vrot.slane %v5173, 1
      %v5212 = vrot.slane %v5174, 1
      %v5213 = vsel %vm300, %v5211, %v5212
      %v5214 = vrot.slane %v5175, 1
      %v5215 = vrot.slane %v5176, 1
      %v5216 = vsel %vm300, %v5214, %v5215
      %v5217 = vrot.slane %v5177, 1
      %v5218 = vrot.slane %v5178, 1
      %v5219 = vsel %vm300, %v5217, %v5218
      %v5220 = vrot.slane %v5179, 1
      %v5221 = vrot.slane %v5180, 1
      %v5222 = vsel %vm300, %v5220, %v5221
      %v5223 = vrot.slane %v5181, 1
      %v5224 = vrot.slane %v5182, 1
      %v5225 = vsel %vm300, %v5223, %v5224
      %v5226 = vrot.slane %v5183, 1
      %v5227 = vrot.slane %v5184, 1
      %v5228 = vsel %vm300, %v5226, %v5227
      %v5237 = vrot.slane %v5169, 2
      %v5238 = vrot.slane %v5170, 2
      %v5239 = vsel %vm333, %v5237, %v5238
      %v5240 = vrot.slane %v5171, 2
      %v5241 = vrot.slane %v5172, 2
      %v5242 = vsel %vm333, %v5240, %v5241
      %v5243 = vrot.slane %v5173, 2
      %v5244 = vrot.slane %v5174, 2
      %v5245 = vsel %vm333, %v5243, %v5244
      %v5246 = vrot.slane %v5175, 2
      %v5247 = vrot.slane %v5176, 2
      %v5248 = vsel %vm333, %v5246, %v5247
      %v5249 = vrot.slane %v5177, 2
      %v5250 = vrot.slane %v5178, 2
      %v5251 = vsel %vm333, %v5249, %v5250
      %v5252 = vrot.slane %v5179, 2
      %v5253 = vrot.slane %v5180, 2
      %v5254 = vsel %vm333, %v5252, %v5253
      %v5255 = vrot.slane %v5181, 2
      %v5256 = vrot.slane %v5182, 2
      %v5257 = vsel %vm333, %v5255, %v5256
      %v5258 = vrot.slane %v5183, 2
      %v5259 = vrot.slane %v5184, 2
      %v5260 = vsel %vm333, %v5258, %v5259
      %v5271 = vrot.slane %v5185, 1
      %v5272 = vrot.slane %v5186, 1
      %v5273 = vsel %vm300, %v5271, %v5272
      %v5275 = vrot.slane %v5185, 2
      %v5276 = vrot.slane %v5186, 2
      %v5277 = vsel %vm333, %v5275, %v5276
      %v5281 = vrot.slane %v5187, 1
      %v5282 = vrot.slane %v5188, 1
      %v5283 = vsel %vm300, %v5281, %v5282
      %v5285 = vrot.slane %v5187, 2
      %v5286 = vrot.slane %v5188, 2
      %v5287 = vsel %vm333, %v5285, %v5286
      %s5289 = scalar_lea.vmem %s1, 6912
      %v5290 = vld [vmem:[%s5289] sm:$0xff]
      %v5291 = vld [vmem:[%s5289 + $0x8] sm:$0xff]
      %v5292 = vld [vmem:[%s5289 + $0x10] sm:$0xff]
      %v5293 = vld [vmem:[%s5289 + $0x18] sm:$0xff]
      %v5294 = vld [vmem:[%s5289 + $0x20] sm:$0xff]
      %v5295 = vld [vmem:[%s5289 + $0x28] sm:$0xff]
      %v5296 = vld [vmem:[%s5289 + $0x30] sm:$0xff]
      %v5297 = vld [vmem:[%s5289 + $0x38] sm:$0xff]
      %v5298 = vld [vmem:[%s5289 + $0x40] sm:$0xff]
      %v5299 = vld [vmem:[%s5289 + $0x48] sm:$0xff]
      %v5300 = vld [vmem:[%s5289 + $0x50] sm:$0xff]
      %v5301 = vld [vmem:[%s5289 + $0x58] sm:$0xff]
      %v5302 = vld [vmem:[%s5289 + $0x60] sm:$0xff]
      %v5303 = vld [vmem:[%s5289 + $0x68] sm:$0xff]
      %v5304 = vld [vmem:[%s5289 + $0x70] sm:$0xff]
      %v5305 = vld [vmem:[%s5289 + $0x78] sm:$0xff]
      %v5306 = vld [vmem:[%s5289 + $0x80] sm:$0xff]
      %v5307 = vld [vmem:[%s5289 + $0x88] sm:$0xff]
      %v5308 = vld [vmem:[%s5289 + $0x90] sm:$0xff]
      %v5309 = vld [vmem:[%s5289 + $0x98] sm:$0xff]
      %v5310 = vld [vmem:[%s5289 + $0xa0] sm:$0xff]
      %v5311 = vld [vmem:[%s5289 + $0xa8] sm:$0xff]
      %v5312 = vld [vmem:[%s5289 + $0xb0] sm:$0xff]
      %v5313 = vld [vmem:[%s5289 + $0xb8] sm:$0xff]
      %v5314 = vld [vmem:[%s5289 + $0xc0] sm:$0xff]
      %v5315 = vld [vmem:[%s5289 + $0xc8] sm:$0xff]
      %v5316 = vld [vmem:[%s5289 + $0xd0] sm:$0xff]
      %v5317 = vld [vmem:[%s5289 + $0xd8] sm:$0xff]
      %v5318 = vld [vmem:[%s5289 + $0xe0] sm:$0xff]
      %v5319 = vld [vmem:[%s5289 + $0xe8] sm:$0xff]
      %v5320 = vld [vmem:[%s5289 + $0xf0] sm:$0xff]
      %v5321 = vld [vmem:[%s5289 + $0xf8] sm:$0xff]
      %v5322 = vld [vmem:[%s5289 + $0x100] sm:$0xff]
      %v5323 = vld [vmem:[%s5289 + $0x108] sm:$0xff]
      %v5324 = vld [vmem:[%s5289 + $0x110] sm:$0xff]
      %v5325 = vld [vmem:[%s5289 + $0x118] sm:$0xff]
      %v5326 = vld [vmem:[%s5289 + $0x120] sm:$0xff]
      %v5327 = vld [vmem:[%s5289 + $0x128] sm:$0xff]
      %v5328 = vld [vmem:[%s5289 + $0x130] sm:$0xff]
      %v5329 = vld [vmem:[%s5289 + $0x138] sm:$0xff]
      %v5330 = vld [vmem:[%s5289 + $0x140] sm:$0xff]
      %v5331 = vld [vmem:[%s5289 + $0x148] sm:$0xff]
      %v5332 = vld [vmem:[%s5289 + $0x150] sm:$0xff]
      %v5333 = vld [vmem:[%s5289 + $0x158] sm:$0xff]
      %v5334 = vld [vmem:[%s5289 + $0x160] sm:$0xff]
      %v5335 = vld [vmem:[%s5289 + $0x168] sm:$0xff]
      %v5336 = vld [vmem:[%s5289 + $0x170] sm:$0xff]
      %v5337 = vld [vmem:[%s5289 + $0x178] sm:$0xff]
      %v5338 = vld [vmem:[%s5289 + $0x180] sm:$0xff]
      %v5339 = vld [vmem:[%s5289 + $0x188] sm:$0xff]
      %v5340 = vld [vmem:[%s5289 + $0x190] sm:$0xff]
      %v5341 = vld [vmem:[%s5289 + $0x198] sm:$0xff]
      %v5342 = vld [vmem:[%s5289 + $0x1a0] sm:$0xff]
      %v5343 = vld [vmem:[%s5289 + $0x1a8] sm:$0xff]
      %v5344 = vld [vmem:[%s5289 + $0x1b0] sm:$0xff]
      %v5345 = vld [vmem:[%s5289 + $0x1b8] sm:$0xff]
      %v5346 = vld [vmem:[%s5289 + $0x1c0] sm:$0xff]
      %v5347 = vld [vmem:[%s5289 + $0x1c8] sm:$0xff]
      %v5348 = vld [vmem:[%s5289 + $0x1d0] sm:$0xff]
      %v5349 = vld [vmem:[%s5289 + $0x1d8] sm:$0xff]
      %v5350 = vld [vmem:[%s5289 + $0x1e0] sm:$0xff]
      %v5351 = vld [vmem:[%s5289 + $0x1e8] sm:$0xff]
      %v5352 = vld [vmem:[%s5289 + $0x1f0] sm:$0xff]
      %v5353 = vld [vmem:[%s5289 + $0x1f8] sm:$0xff]
      %v5354 = vld [vmem:[%s5289 + $0x200] sm:$0xff]
      %v5355 = vld [vmem:[%s5289 + $0x208] sm:$0xff]
      %v5356 = vld [vmem:[%s5289 + $0x210] sm:$0xff]
      %v5357 = vld [vmem:[%s5289 + $0x218] sm:$0xff]
      %v5358 = vld [vmem:[%s5289 + $0x220] sm:$0xff]
      %v5359 = vld [vmem:[%s5289 + $0x228] sm:$0xff]
      %v5360 = vld [vmem:[%s5289 + $0x230] sm:$0xff]
      %v5361 = vld [vmem:[%s5289 + $0x238] sm:$0xff]
      %v5362 = vld [vmem:[%s5289 + $0x240] sm:$0xff]
      %v5363 = vld [vmem:[%s5289 + $0x248] sm:$0xff]
      %v5364 = vld [vmem:[%s5289 + $0x250] sm:$0xff]
      %v5365 = vld [vmem:[%s5289 + $0x258] sm:$0xff]
      %v5366 = vld [vmem:[%s5289 + $0x260] sm:$0xff]
      %v5367 = vld [vmem:[%s5289 + $0x268] sm:$0xff]
      %v5368 = vld [vmem:[%s5289 + $0x270] sm:$0xff]
      %v5369 = vld [vmem:[%s5289 + $0x278] sm:$0xff]
      %v5370 = vld [vmem:[%s5289 + $0x280] sm:$0xff]
      %v5371 = vld [vmem:[%s5289 + $0x288] sm:$0xff]
      %v5372 = vld [vmem:[%s5289 + $0x290] sm:$0xff]
      %v5373 = vld [vmem:[%s5289 + $0x298] sm:$0xff]
      %v5374 = vld [vmem:[%s5289 + $0x2a0] sm:$0xff]
      %v5375 = vld [vmem:[%s5289 + $0x2a8] sm:$0xff]
      %v5376 = vld [vmem:[%s5289 + $0x2b0] sm:$0xff]
      %v5377 = vld [vmem:[%s5289 + $0x2b8] sm:$0xff]
      %v5378 = vld [vmem:[%s5289 + $0x2c0] sm:$0xff]
      %v5379 = vld [vmem:[%s5289 + $0x2c8] sm:$0xff]
      %v5380 = vld [vmem:[%s5289 + $0x2d0] sm:$0xff]
      %v5381 = vld [vmem:[%s5289 + $0x2d8] sm:$0xff]
      %v5382 = vld [vmem:[%s5289 + $0x2e0] sm:$0xff]
      %v5383 = vld [vmem:[%s5289 + $0x2e8] sm:$0xff]
      %v5384 = vld [vmem:[%s5289 + $0x2f0] sm:$0xff]
      %v5385 = vld [vmem:[%s5289 + $0x2f8] sm:$0xff]
      %v5386 = vld [vmem:[%s5289 + $0x300] sm:$0xff]
      %v5387 = vld [vmem:[%s5289 + $0x308] sm:$0xff]
      %v5388 = vld [vmem:[%s5289 + $0x310] sm:$0xff]
      %v5389 = vld [vmem:[%s5289 + $0x318] sm:$0xff]
      %v5390 = vld [vmem:[%s5289 + $0x320] sm:$0xff]
      %v5391 = vld [vmem:[%s5289 + $0x328] sm:$0xff]
      %v5392 = vld [vmem:[%s5289 + $0x330] sm:$0xff]
      %v5393 = vld [vmem:[%s5289 + $0x338] sm:$0xff]
      %v5394 = vld [vmem:[%s5289 + $0x340] sm:$0xff]
      %v5395 = vld [vmem:[%s5289 + $0x348] sm:$0xff]
      %v5396 = vld [vmem:[%s5289 + $0x350] sm:$0xff]
      %v5397 = vld [vmem:[%s5289 + $0x358] sm:$0xff]
      %v5398 = vld [vmem:[%s5289 + $0x360] sm:$0xff]
      %v5399 = vld [vmem:[%s5289 + $0x368] sm:$0xff]
      %v5400 = vld [vmem:[%s5289 + $0x370] sm:$0xff]
      %v5401 = vld [vmem:[%s5289 + $0x378] sm:$0xff]
      %v5402 = vld [vmem:[%s5289 + $0x380] sm:$0xff]
      %v5403 = vld [vmem:[%s5289 + $0x388] sm:$0xff]
      %v5404 = vld [vmem:[%s5289 + $0x390] sm:$0xff]
      %v5405 = vld [vmem:[%s5289 + $0x398] sm:$0xff]
      %v5406 = vld [vmem:[%s5289 + $0x3a0] sm:$0xff]
      %v5407 = vld [vmem:[%s5289 + $0x3a8] sm:$0xff]
      %v5408 = vld [vmem:[%s5289 + $0x3b0] sm:$0xff]
      %v5409 = vld [vmem:[%s5289 + $0x3b8] sm:$0xff]
      %v5410 = vld [vmem:[%s5289 + $0x3c0] sm:$0xff]
      %v5411 = vld [vmem:[%s5289 + $0x3c8] sm:$0xff]
      %v5412 = vld [vmem:[%s5289 + $0x3d0] sm:$0xff]
      %v5413 = vld [vmem:[%s5289 + $0x3d8] sm:$0xff]
      %v5414 = vld [vmem:[%s5289 + $0x3e0] sm:$0xff]
      %v5415 = vld [vmem:[%s5289 + $0x3e8] sm:$0xff]
      %v5416 = vld [vmem:[%s5289 + $0x3f0] sm:$0xff]
      %v5417 = vld [vmem:[%s5289 + $0x3f8] sm:$0xff]
      %v5418 = vld [vmem:[%s5289 + $0x400] sm:$0xff]
      %v5419 = vld [vmem:[%s5289 + $0x408] sm:$0xff]
      %v5420 = vld [vmem:[%s5289 + $0x410] sm:$0xff]
      %v5421 = vld [vmem:[%s5289 + $0x418] sm:$0xff]
      %v5422 = vld [vmem:[%s5289 + $0x420] sm:$0xff]
      %v5423 = vld [vmem:[%s5289 + $0x428] sm:$0xff]
      %v5424 = vld [vmem:[%s5289 + $0x430] sm:$0xff]
      %v5425 = vld [vmem:[%s5289 + $0x438] sm:$0xff]
      %v5426 = vld [vmem:[%s5289 + $0x440] sm:$0xff]
      %v5427 = vld [vmem:[%s5289 + $0x448] sm:$0xff]
      %v5428 = vld [vmem:[%s5289 + $0x450] sm:$0xff]
      %v5429 = vld [vmem:[%s5289 + $0x458] sm:$0xff]
      %v5430 = vld [vmem:[%s5289 + $0x460] sm:$0xff]
      %v5431 = vld [vmem:[%s5289 + $0x468] sm:$0xff]
      %v5432 = vld [vmem:[%s5289 + $0x470] sm:$0xff]
      %v5433 = vld [vmem:[%s5289 + $0x478] sm:$0xff]
      %s5434 = scalar_lea.vmem %s2, 6
      %v5435 = vld [vmem:[%s5434] sm:$0x1]
      %v5437 = vlaneseq
      %v5438 = vshrl.u32 %v5437, 7
      %v5439 = vsub.s32 0, %v5438
      %v5440 = vrot.slane %v5435, %v5439
      %5442 = vmatprep.subr.mxu0 0.0
      %5443 = vmatpush1.msra.mxu0 %v5305
      %5444 = vmatprep.subr.mxu0 0.0
      %5445 = vmatpush1.msra.mxu0 %v5304
      %5446 = vmatprep.subr.mxu0 0.0
      %5447 = vmatpush1.msra.mxu0 %v5303
      %5448 = vmatprep.subr.mxu0 0.0
      %5449 = vmatpush1.msra.mxu0 %v5302
      %5450 = vmatprep.subr.mxu0 0.0
      %5451 = vmatpush1.msra.mxu0 %v5301
      %5452 = vmatprep.subr.mxu0 0.0
      %5453 = vmatpush1.msra.mxu0 %v5300
      %5454 = vmatprep.subr.mxu0 0.0
      %5455 = vmatpush1.msra.mxu0 %v5299
      %5456 = vmatprep.subr.mxu0 0.0
      %5457 = vmatpush1.msra.mxu0 %v5298
      %5458 = vmatprep.subr.mxu0 0.0
      %5459 = vmatpush1.msra.mxu0 %v5297
      %5460 = vmatprep.subr.mxu0 0.0
      %5461 = vmatpush1.msra.mxu0 %v5296
      %5462 = vmatprep.subr.mxu0 0.0
      %5463 = vmatpush1.msra.mxu0 %v5295
      %5464 = vmatprep.subr.mxu0 0.0
      %5465 = vmatpush1.msra.mxu0 %v5294
      %5466 = vmatprep.subr.mxu0 0.0
      %5467 = vmatpush1.msra.mxu0 %v5293
      %5468 = vmatprep.subr.mxu0 0.0
      %5469 = vmatpush1.msra.mxu0 %v5292
      %5470 = vmatprep.subr.mxu0 0.0
      %5471 = vmatpush1.msra.mxu0 %v5291
      %5472 = vmatprep.subr.mxu0 0.0
      %5473 = vmatpush1.msra.mxu0 %v5290
      %5474 = vmatprep.subr.mxu0 0.0
      %5475 = vmatpush2.msra.mxu0 %v5321
      %5476 = vmatprep.subr.mxu0 0.0
      %5477 = vmatpush2.msra.mxu0 %v5320
      %5478 = vmatprep.subr.mxu0 0.0
      %5479 = vmatpush2.msra.mxu0 %v5319
      %5480 = vmatprep.subr.mxu0 0.0
      %5481 = vmatpush2.msra.mxu0 %v5318
      %5482 = vmatprep.subr.mxu0 0.0
      %5483 = vmatpush2.msra.mxu0 %v5317
      %5484 = vmatprep.subr.mxu0 0.0
      %5485 = vmatpush2.msra.mxu0 %v5316
      %5486 = vmatprep.subr.mxu0 0.0
      %5487 = vmatpush2.msra.mxu0 %v5315
      %5488 = vmatprep.subr.mxu0 0.0
      %5489 = vmatpush2.msra.mxu0 %v5314
      %5490 = vmatprep.subr.mxu0 0.0
      %5491 = vmatpush2.msra.mxu0 %v5313
      %5492 = vmatprep.subr.mxu0 0.0
      %5493 = vmatpush2.msra.mxu0 %v5312
      %5494 = vmatprep.subr.mxu0 0.0
      %5495 = vmatpush2.msra.mxu0 %v5311
      %5496 = vmatprep.subr.mxu0 0.0
      %5497 = vmatpush2.msra.mxu0 %v5310
      %5498 = vmatprep.subr.mxu0 0.0
      %5499 = vmatpush2.msra.mxu0 %v5309
      %5500 = vmatprep.subr.mxu0 0.0
      %5501 = vmatpush2.msra.mxu0 %v5308
      %5502 = vmatprep.subr.mxu0 0.0
      %5503 = vmatpush2.msra.mxu0 %v5307
      %5504 = vmatprep.subr.mxu0 0.0
      %5505 = vmatpush2.msra.mxu0 %v5306
      %5506 = vmatprep.mubr.f32.mxu0 %v5207
      %5507 = vmatmul.mubr.f32.gmra.mxu0 %v5169
      %v5508 = vpop.f32.mrf.mxu0
      %v5509 = vadd.f32 %v5440, %v5508
      %v5510 = vpop.f32.mrf.mxu0
      %5511 = vmatprep.mubr.f32.mxu0 %v5210
      %5512 = vmatmul.mubr.f32.gmra.mxu0 %v5171
      %v5513 = vpop.f32.mrf.mxu0
      %v5514 = vadd.f32 %v5440, %v5513
      %v5515 = vpop.f32.mrf.mxu0
      %5516 = vmatprep.mubr.f32.mxu0 %v5213
      %5517 = vmatmul.mubr.f32.gmra.mxu0 %v5173
      %v5518 = vpop.f32.mrf.mxu0
      %v5519 = vadd.f32 %v5440, %v5518
      %v5520 = vpop.f32.mrf.mxu0
      %5521 = vmatprep.mubr.f32.mxu0 %v5216
      %5522 = vmatmul.mubr.f32.gmra.mxu0 %v5175
      %v5523 = vpop.f32.mrf.mxu0
      %v5524 = vadd.f32 %v5440, %v5523
      %v5525 = vpop.f32.mrf.mxu0
      %5526 = vmatprep.mubr.f32.mxu0 %v5219
      %5527 = vmatmul.mubr.f32.gmra.mxu0 %v5177
      %v5528 = vpop.f32.mrf.mxu0
      %v5529 = vadd.f32 %v5440, %v5528
      %v5530 = vpop.f32.mrf.mxu0
      %5531 = vmatprep.mubr.f32.mxu0 %v5222
      %5532 = vmatmul.mubr.f32.gmra.mxu0 %v5179
      %v5533 = vpop.f32.mrf.mxu0
      %v5534 = vadd.f32 %v5440, %v5533
      %v5535 = vpop.f32.mrf.mxu0
      %5536 = vmatprep.mubr.f32.mxu0 %v5225
      %5537 = vmatmul.mubr.f32.gmra.mxu0 %v5181
      %v5538 = vpop.f32.mrf.mxu0
      %v5539 = vadd.f32 %v5440, %v5538
      %v5540 = vpop.f32.mrf.mxu0
      %5541 = vmatprep.mubr.f32.mxu0 %v5228
      %5542 = vmatmul.mubr.f32.gmra.mxu0 %v5183
      %v5543 = vpop.f32.mrf.mxu0
      %v5544 = vadd.f32 %v5440, %v5543
      %v5545 = vpop.f32.mrf.mxu0
      %5546 = vdwg.mxu0
      %5547 = vmatprep.subr.mxu0 0.0
      %5548 = vmatpush1.msra.mxu0 %v5337
      %5549 = vmatprep.subr.mxu0 0.0
      %5550 = vmatpush1.msra.mxu0 %v5336
      %5551 = vmatprep.subr.mxu0 0.0
      %5552 = vmatpush1.msra.mxu0 %v5335
      %5553 = vmatprep.subr.mxu0 0.0
      %5554 = vmatpush1.msra.mxu0 %v5334
      %5555 = vmatprep.subr.mxu0 0.0
      %5556 = vmatpush1.msra.mxu0 %v5333
      %5557 = vmatprep.subr.mxu0 0.0
      %5558 = vmatpush1.msra.mxu0 %v5332
      %5559 = vmatprep.subr.mxu0 0.0
      %5560 = vmatpush1.msra.mxu0 %v5331
      %5561 = vmatprep.subr.mxu0 0.0
      %5562 = vmatpush1.msra.mxu0 %v5330
      %5563 = vmatprep.subr.mxu0 0.0
      %5564 = vmatpush1.msra.mxu0 %v5329
      %5565 = vmatprep.subr.mxu0 0.0
      %5566 = vmatpush1.msra.mxu0 %v5328
      %5567 = vmatprep.subr.mxu0 0.0
      %5568 = vmatpush1.msra.mxu0 %v5327
      %5569 = vmatprep.subr.mxu0 0.0
      %5570 = vmatpush1.msra.mxu0 %v5326
      %5571 = vmatprep.subr.mxu0 0.0
      %5572 = vmatpush1.msra.mxu0 %v5325
      %5573 = vmatprep.subr.mxu0 0.0
      %5574 = vmatpush1.msra.mxu0 %v5324
      %5575 = vmatprep.subr.mxu0 0.0
      %5576 = vmatpush1.msra.mxu0 %v5323
      %5577 = vmatprep.subr.mxu0 0.0
      %5578 = vmatpush1.msra.mxu0 %v5322
      %5579 = vmatprep.subr.mxu0 0.0
      %5580 = vmatpush2.msra.mxu0 %v5353
      %5581 = vmatprep.subr.mxu0 0.0
      %5582 = vmatpush2.msra.mxu0 %v5352
      %5583 = vmatprep.subr.mxu0 0.0
      %5584 = vmatpush2.msra.mxu0 %v5351
      %5585 = vmatprep.subr.mxu0 0.0
      %5586 = vmatpush2.msra.mxu0 %v5350
      %5587 = vmatprep.subr.mxu0 0.0
      %5588 = vmatpush2.msra.mxu0 %v5349
      %5589 = vmatprep.subr.mxu0 0.0
      %5590 = vmatpush2.msra.mxu0 %v5348
      %5591 = vmatprep.subr.mxu0 0.0
      %5592 = vmatpush2.msra.mxu0 %v5347
      %5593 = vmatprep.subr.mxu0 0.0
      %5594 = vmatpush2.msra.mxu0 %v5346
      %5595 = vmatprep.subr.mxu0 0.0
      %5596 = vmatpush2.msra.mxu0 %v5345
      %5597 = vmatprep.subr.mxu0 0.0
      %5598 = vmatpush2.msra.mxu0 %v5344
      %5599 = vmatprep.subr.mxu0 0.0
      %5600 = vmatpush2.msra.mxu0 %v5343
      %5601 = vmatprep.subr.mxu0 0.0
      %5602 = vmatpush2.msra.mxu0 %v5342
      %5603 = vmatprep.subr.mxu0 0.0
      %5604 = vmatpush2.msra.mxu0 %v5341
      %5605 = vmatprep.subr.mxu0 0.0
      %5606 = vmatpush2.msra.mxu0 %v5340
      %5607 = vmatprep.subr.mxu0 0.0
      %5608 = vmatpush2.msra.mxu0 %v5339
      %5609 = vmatprep.subr.mxu0 0.0
      %5610 = vmatpush2.msra.mxu0 %v5338
      %5611 = vmatprep.mubr.f32.mxu0 %v5171
      %5612 = vmatmul.mubr.f32.gmra.mxu0 %v5239
      %v5613 = vpop.f32.mrf.mxu0
      %v5614 = vadd.f32 %v5509, %v5613
      %v5615 = vpop.f32.mrf.mxu0
      %5616 = vmatprep.mubr.f32.mxu0 %v5173
      %5617 = vmatmul.mubr.f32.gmra.mxu0 %v5242
      %v5618 = vpop.f32.mrf.mxu0
      %v5619 = vadd.f32 %v5514, %v5618
      %v5620 = vpop.f32.mrf.mxu0
      %5621 = vmatprep.mubr.f32.mxu0 %v5175
      %5622 = vmatmul.mubr.f32.gmra.mxu0 %v5245
      %v5623 = vpop.f32.mrf.mxu0
      %v5624 = vadd.f32 %v5519, %v5623
      %v5625 = vpop.f32.mrf.mxu0
      %5626 = vmatprep.mubr.f32.mxu0 %v5177
      %5627 = vmatmul.mubr.f32.gmra.mxu0 %v5248
      %v5628 = vpop.f32.mrf.mxu0
      %v5629 = vadd.f32 %v5524, %v5628
      %v5630 = vpop.f32.mrf.mxu0
      %5631 = vmatprep.mubr.f32.mxu0 %v5179
      %5632 = vmatmul.mubr.f32.gmra.mxu0 %v5251
      %v5633 = vpop.f32.mrf.mxu0
      %v5634 = vadd.f32 %v5529, %v5633
      %v5635 = vpop.f32.mrf.mxu0
      %5636 = vmatprep.mubr.f32.mxu0 %v5181
      %5637 = vmatmul.mubr.f32.gmra.mxu0 %v5254
      %v5638 = vpop.f32.mrf.mxu0
      %v5639 = vadd.f32 %v5534, %v5638
      %v5640 = vpop.f32.mrf.mxu0
      %5641 = vmatprep.mubr.f32.mxu0 %v5183
      %5642 = vmatmul.mubr.f32.gmra.mxu0 %v5257
      %v5643 = vpop.f32.mrf.mxu0
      %v5644 = vadd.f32 %v5539, %v5643
      %v5645 = vpop.f32.mrf.mxu0
      %5646 = vmatprep.mubr.f32.mxu0 %v5185
      %5647 = vmatmul.mubr.f32.gmra.mxu0 %v5260
      %v5648 = vpop.f32.mrf.mxu0
      %v5649 = vadd.f32 %v5544, %v5648
      %v5650 = vpop.f32.mrf.mxu0
      %5651 = vdwg.mxu0
      %5652 = vmatprep.subr.mxu0 0.0
      %5653 = vmatpush1.msra.mxu0 %v5369
      %5654 = vmatprep.subr.mxu0 0.0
      %5655 = vmatpush1.msra.mxu0 %v5368
      %5656 = vmatprep.subr.mxu0 0.0
      %5657 = vmatpush1.msra.mxu0 %v5367
      %5658 = vmatprep.subr.mxu0 0.0
      %5659 = vmatpush1.msra.mxu0 %v5366
      %5660 = vmatprep.subr.mxu0 0.0
      %5661 = vmatpush1.msra.mxu0 %v5365
      %5662 = vmatprep.subr.mxu0 0.0
      %5663 = vmatpush1.msra.mxu0 %v5364
      %5664 = vmatprep.subr.mxu0 0.0
      %5665 = vmatpush1.msra.mxu0 %v5363
      %5666 = vmatprep.subr.mxu0 0.0
      %5667 = vmatpush1.msra.mxu0 %v5362
      %5668 = vmatprep.subr.mxu0 0.0
      %5669 = vmatpush1.msra.mxu0 %v5361
      %5670 = vmatprep.subr.mxu0 0.0
      %5671 = vmatpush1.msra.mxu0 %v5360
      %5672 = vmatprep.subr.mxu0 0.0
      %5673 = vmatpush1.msra.mxu0 %v5359
      %5674 = vmatprep.subr.mxu0 0.0
      %5675 = vmatpush1.msra.mxu0 %v5358
      %5676 = vmatprep.subr.mxu0 0.0
      %5677 = vmatpush1.msra.mxu0 %v5357
      %5678 = vmatprep.subr.mxu0 0.0
      %5679 = vmatpush1.msra.mxu0 %v5356
      %5680 = vmatprep.subr.mxu0 0.0
      %5681 = vmatpush1.msra.mxu0 %v5355
      %5682 = vmatprep.subr.mxu0 0.0
      %5683 = vmatpush1.msra.mxu0 %v5354
      %5684 = vmatprep.subr.mxu0 0.0
      %5685 = vmatpush2.msra.mxu0 %v5385
      %5686 = vmatprep.subr.mxu0 0.0
      %5687 = vmatpush2.msra.mxu0 %v5384
      %5688 = vmatprep.subr.mxu0 0.0
      %5689 = vmatpush2.msra.mxu0 %v5383
      %5690 = vmatprep.subr.mxu0 0.0
      %5691 = vmatpush2.msra.mxu0 %v5382
      %5692 = vmatprep.subr.mxu0 0.0
      %5693 = vmatpush2.msra.mxu0 %v5381
      %5694 = vmatprep.subr.mxu0 0.0
      %5695 = vmatpush2.msra.mxu0 %v5380
      %5696 = vmatprep.subr.mxu0 0.0
      %5697 = vmatpush2.msra.mxu0 %v5379
      %5698 = vmatprep.subr.mxu0 0.0
      %5699 = vmatpush2.msra.mxu0 %v5378
      %5700 = vmatprep.subr.mxu0 0.0
      %5701 = vmatpush2.msra.mxu0 %v5377
      %5702 = vmatprep.subr.mxu0 0.0
      %5703 = vmatpush2.msra.mxu0 %v5376
      %5704 = vmatprep.subr.mxu0 0.0
      %5705 = vmatpush2.msra.mxu0 %v5375
      %5706 = vmatprep.subr.mxu0 0.0
      %5707 = vmatpush2.msra.mxu0 %v5374
      %5708 = vmatprep.subr.mxu0 0.0
      %5709 = vmatpush2.msra.mxu0 %v5373
      %5710 = vmatprep.subr.mxu0 0.0
      %5711 = vmatpush2.msra.mxu0 %v5372
      %5712 = vmatprep.subr.mxu0 0.0
      %5713 = vmatpush2.msra.mxu0 %v5371
      %5714 = vmatprep.subr.mxu0 0.0
      %5715 = vmatpush2.msra.mxu0 %v5370
      %5716 = vmatprep.mubr.f32.mxu0 %v5242
      %5717 = vmatmul.mubr.f32.gmra.mxu0 %v5210
      %v5718 = vpop.f32.mrf.mxu0
      %v5719 = vadd.f32 %v5614, %v5718
      %v5720 = vpop.f32.mrf.mxu0
      %5721 = vmatprep.mubr.f32.mxu0 %v5245
      %5722 = vmatmul.mubr.f32.gmra.mxu0 %v5213
      %v5723 = vpop.f32.mrf.mxu0
      %v5724 = vadd.f32 %v5619, %v5723
      %v5725 = vpop.f32.mrf.mxu0
      %5726 = vmatprep.mubr.f32.mxu0 %v5248
      %5727 = vmatmul.mubr.f32.gmra.mxu0 %v5216
      %v5728 = vpop.f32.mrf.mxu0
      %v5729 = vadd.f32 %v5624, %v5728
      %v5730 = vpop.f32.mrf.mxu0
      %5731 = vmatprep.mubr.f32.mxu0 %v5251
      %5732 = vmatmul.mubr.f32.gmra.mxu0 %v5219
      %v5733 = vpop.f32.mrf.mxu0
      %v5734 = vadd.f32 %v5629, %v5733
      %v5735 = vpop.f32.mrf.mxu0
      %5736 = vmatprep.mubr.f32.mxu0 %v5254
      %5737 = vmatmul.mubr.f32.gmra.mxu0 %v5222
      %v5738 = vpop.f32.mrf.mxu0
      %v5739 = vadd.f32 %v5634, %v5738
      %v5740 = vpop.f32.mrf.mxu0
      %5741 = vmatprep.mubr.f32.mxu0 %v5257
      %5742 = vmatmul.mubr.f32.gmra.mxu0 %v5225
      %v5743 = vpop.f32.mrf.mxu0
      %v5744 = vadd.f32 %v5639, %v5743
      %v5745 = vpop.f32.mrf.mxu0
      %5746 = vmatprep.mubr.f32.mxu0 %v5260
      %5747 = vmatmul.mubr.f32.gmra.mxu0 %v5228
      %v5748 = vpop.f32.mrf.mxu0
      %v5749 = vadd.f32 %v5644, %v5748
      %v5750 = vpop.f32.mrf.mxu0
      %5751 = vmatprep.mubr.f32.mxu0 %v5277
      %5752 = vmatmul.mubr.f32.gmra.mxu0 %v5273
      %v5753 = vpop.f32.mrf.mxu0
      %v5754 = vadd.f32 %v5649, %v5753
      %v5755 = vpop.f32.mrf.mxu0
      %5756 = vdwg.mxu0
      %5757 = vmatprep.subr.mxu0 0.0
      %5758 = vmatpush1.msra.mxu0 %v5401
      %5759 = vmatprep.subr.mxu0 0.0
      %5760 = vmatpush1.msra.mxu0 %v5400
      %5761 = vmatprep.subr.mxu0 0.0
      %5762 = vmatpush1.msra.mxu0 %v5399
      %5763 = vmatprep.subr.mxu0 0.0
      %5764 = vmatpush1.msra.mxu0 %v5398
      %5765 = vmatprep.subr.mxu0 0.0
      %5766 = vmatpush1.msra.mxu0 %v5397
      %5767 = vmatprep.subr.mxu0 0.0
      %5768 = vmatpush1.msra.mxu0 %v5396
      %5769 = vmatprep.subr.mxu0 0.0
      %5770 = vmatpush1.msra.mxu0 %v5395
      %5771 = vmatprep.subr.mxu0 0.0
      %5772 = vmatpush1.msra.mxu0 %v5394
      %5773 = vmatprep.subr.mxu0 0.0
      %5774 = vmatpush1.msra.mxu0 %v5393
      %5775 = vmatprep.subr.mxu0 0.0
      %5776 = vmatpush1.msra.mxu0 %v5392
      %5777 = vmatprep.subr.mxu0 0.0
      %5778 = vmatpush1.msra.mxu0 %v5391
      %5779 = vmatprep.subr.mxu0 0.0
      %5780 = vmatpush1.msra.mxu0 %v5390
      %5781 = vmatprep.subr.mxu0 0.0
      %5782 = vmatpush1.msra.mxu0 %v5389
      %5783 = vmatprep.subr.mxu0 0.0
      %5784 = vmatpush1.msra.mxu0 %v5388
      %5785 = vmatprep.subr.mxu0 0.0
      %5786 = vmatpush1.msra.mxu0 %v5387
      %5787 = vmatprep.subr.mxu0 0.0
      %5788 = vmatpush1.msra.mxu0 %v5386
      %5789 = vmatprep.subr.mxu0 0.0
      %5790 = vmatpush2.msra.mxu0 %v5417
      %5791 = vmatprep.subr.mxu0 0.0
      %5792 = vmatpush2.msra.mxu0 %v5416
      %5793 = vmatprep.subr.mxu0 0.0
      %5794 = vmatpush2.msra.mxu0 %v5415
      %5795 = vmatprep.subr.mxu0 0.0
      %5796 = vmatpush2.msra.mxu0 %v5414
      %5797 = vmatprep.subr.mxu0 0.0
      %5798 = vmatpush2.msra.mxu0 %v5413
      %5799 = vmatprep.subr.mxu0 0.0
      %5800 = vmatpush2.msra.mxu0 %v5412
      %5801 = vmatprep.subr.mxu0 0.0
      %5802 = vmatpush2.msra.mxu0 %v5411
      %5803 = vmatprep.subr.mxu0 0.0
      %5804 = vmatpush2.msra.mxu0 %v5410
      %5805 = vmatprep.subr.mxu0 0.0
      %5806 = vmatpush2.msra.mxu0 %v5409
      %5807 = vmatprep.subr.mxu0 0.0
      %5808 = vmatpush2.msra.mxu0 %v5408
      %5809 = vmatprep.subr.mxu0 0.0
      %5810 = vmatpush2.msra.mxu0 %v5407
      %5811 = vmatprep.subr.mxu0 0.0
      %5812 = vmatpush2.msra.mxu0 %v5406
      %5813 = vmatprep.subr.mxu0 0.0
      %5814 = vmatpush2.msra.mxu0 %v5405
      %5815 = vmatprep.subr.mxu0 0.0
      %5816 = vmatpush2.msra.mxu0 %v5404
      %5817 = vmatprep.subr.mxu0 0.0
      %5818 = vmatpush2.msra.mxu0 %v5403
      %5819 = vmatprep.subr.mxu0 0.0
      %5820 = vmatpush2.msra.mxu0 %v5402
      %5821 = vmatprep.mubr.f32.mxu0 %v5213
      %5822 = vmatmul.mubr.f32.gmra.mxu0 %v5173
      %v5823 = vpop.f32.mrf.mxu0
      %v5824 = vadd.f32 %v5719, %v5823
      %v5825 = vpop.f32.mrf.mxu0
      %5826 = vmatprep.mubr.f32.mxu0 %v5216
      %5827 = vmatmul.mubr.f32.gmra.mxu0 %v5175
      %v5828 = vpop.f32.mrf.mxu0
      %v5829 = vadd.f32 %v5724, %v5828
      %v5830 = vpop.f32.mrf.mxu0
      %5831 = vmatprep.mubr.f32.mxu0 %v5219
      %5832 = vmatmul.mubr.f32.gmra.mxu0 %v5177
      %v5833 = vpop.f32.mrf.mxu0
      %v5834 = vadd.f32 %v5729, %v5833
      %v5835 = vpop.f32.mrf.mxu0
      %5836 = vmatprep.mubr.f32.mxu0 %v5222
      %5837 = vmatmul.mubr.f32.gmra.mxu0 %v5179
      %v5838 = vpop.f32.mrf.mxu0
      %v5839 = vadd.f32 %v5734, %v5838
      %v5840 = vpop.f32.mrf.mxu0
      %5841 = vmatprep.mubr.f32.mxu0 %v5225
      %5842 = vmatmul.mubr.f32.gmra.mxu0 %v5181
      %v5843 = vpop.f32.mrf.mxu0
      %v5844 = vadd.f32 %v5739, %v5843
      %v5845 = vpop.f32.mrf.mxu0
      %5846 = vmatprep.mubr.f32.mxu0 %v5228
      %5847 = vmatmul.mubr.f32.gmra.mxu0 %v5183
      %v5848 = vpop.f32.mrf.mxu0
      %v5849 = vadd.f32 %v5744, %v5848
      %v5850 = vpop.f32.mrf.mxu0
      %5851 = vmatprep.mubr.f32.mxu0 %v5273
      %5852 = vmatmul.mubr.f32.gmra.mxu0 %v5185
      %v5853 = vpop.f32.mrf.mxu0
      %v5854 = vadd.f32 %v5749, %v5853
      %v5855 = vpop.f32.mrf.mxu0
      %5856 = vmatprep.mubr.f32.mxu0 %v5283
      %5857 = vmatmul.mubr.f32.gmra.mxu0 %v5187
      %v5858 = vpop.f32.mrf.mxu0
      %v5859 = vadd.f32 %v5754, %v5858
      %v5860 = vpop.f32.mrf.mxu0
      %5861 = vdwg.mxu0
      %5862 = vmatprep.subr.mxu0 0.0
      %5863 = vmatpush1.msra.mxu0 %v5433
      %5864 = vmatprep.subr.mxu0 0.0
      %5865 = vmatpush1.msra.mxu0 %v5432
      %5866 = vmatprep.subr.mxu0 0.0
      %5867 = vmatpush1.msra.mxu0 %v5431
      %5868 = vmatprep.subr.mxu0 0.0
      %5869 = vmatpush1.msra.mxu0 %v5430
      %5870 = vmatprep.subr.mxu0 0.0
      %5871 = vmatpush1.msra.mxu0 %v5429
      %5872 = vmatprep.subr.mxu0 0.0
      %5873 = vmatpush1.msra.mxu0 %v5428
      %5874 = vmatprep.subr.mxu0 0.0
      %5875 = vmatpush1.msra.mxu0 %v5427
      %5876 = vmatprep.subr.mxu0 0.0
      %5877 = vmatpush1.msra.mxu0 %v5426
      %5878 = vmatprep.subr.mxu0 0.0
      %5879 = vmatpush1.msra.mxu0 %v5425
      %5880 = vmatprep.subr.mxu0 0.0
      %5881 = vmatpush1.msra.mxu0 %v5424
      %5882 = vmatprep.subr.mxu0 0.0
      %5883 = vmatpush1.msra.mxu0 %v5423
      %5884 = vmatprep.subr.mxu0 0.0
      %5885 = vmatpush1.msra.mxu0 %v5422
      %5886 = vmatprep.subr.mxu0 0.0
      %5887 = vmatpush1.msra.mxu0 %v5421
      %5888 = vmatprep.subr.mxu0 0.0
      %5889 = vmatpush1.msra.mxu0 %v5420
      %5890 = vmatprep.subr.mxu0 0.0
      %5891 = vmatpush1.msra.mxu0 %v5419
      %5892 = vmatprep.subr.mxu0 0.0
      %5893 = vmatpush1.msra.mxu0 %v5418
      %5894 = vmatprep.subr.mxu0 0.0
      %5895 = vmatpush2.msra.mxu0 0.0
      %5896 = vmatprep.subr.mxu0 0.0
      %5897 = vmatpush2.msra.mxu0 0.0
      %5898 = vmatprep.subr.mxu0 0.0
      %5899 = vmatpush2.msra.mxu0 0.0
      %5900 = vmatprep.subr.mxu0 0.0
      %5901 = vmatpush2.msra.mxu0 0.0
      %5902 = vmatprep.subr.mxu0 0.0
      %5903 = vmatpush2.msra.mxu0 0.0
      %5904 = vmatprep.subr.mxu0 0.0
      %5905 = vmatpush2.msra.mxu0 0.0
      %5906 = vmatprep.subr.mxu0 0.0
      %5907 = vmatpush2.msra.mxu0 0.0
      %5908 = vmatprep.subr.mxu0 0.0
      %5909 = vmatpush2.msra.mxu0 0.0
      %5910 = vmatprep.subr.mxu0 0.0
      %5911 = vmatpush2.msra.mxu0 0.0
      %5912 = vmatprep.subr.mxu0 0.0
      %5913 = vmatpush2.msra.mxu0 0.0
      %5914 = vmatprep.subr.mxu0 0.0
      %5915 = vmatpush2.msra.mxu0 0.0
      %5916 = vmatprep.subr.mxu0 0.0
      %5917 = vmatpush2.msra.mxu0 0.0
      %5918 = vmatprep.subr.mxu0 0.0
      %5919 = vmatpush2.msra.mxu0 0.0
      %5920 = vmatprep.subr.mxu0 0.0
      %5921 = vmatpush2.msra.mxu0 0.0
      %5922 = vmatprep.subr.mxu0 0.0
      %5923 = vmatpush2.msra.mxu0 0.0
      %5924 = vmatprep.subr.mxu0 0.0
      %5925 = vmatpush2.msra.mxu0 0.0
      %5926 = vmatprep.mubr.f32.mxu0 0.0
      %5927 = vmatmul.mubr.f32.gmra.mxu0 %v5245
      %v5928 = vpop.f32.mrf.mxu0
      %v5929 = vadd.f32 %v5824, %v5928
      %v5930 = vpop.f32.mrf.mxu0
      %5931 = vmatprep.mubr.f32.mxu0 0.0
      %5932 = vmatmul.mubr.f32.gmra.mxu0 %v5248
      %v5933 = vpop.f32.mrf.mxu0
      %v5934 = vadd.f32 %v5829, %v5933
      %v5935 = vpop.f32.mrf.mxu0
      %5936 = vmatprep.mubr.f32.mxu0 0.0
      %5937 = vmatmul.mubr.f32.gmra.mxu0 %v5251
      %v5938 = vpop.f32.mrf.mxu0
      %v5939 = vadd.f32 %v5834, %v5938
      %v5940 = vpop.f32.mrf.mxu0
      %5941 = vmatprep.mubr.f32.mxu0 0.0
      %5942 = vmatmul.mubr.f32.gmra.mxu0 %v5254
      %v5943 = vpop.f32.mrf.mxu0
      %v5944 = vadd.f32 %v5839, %v5943
      %v5945 = vpop.f32.mrf.mxu0
      %5946 = vmatprep.mubr.f32.mxu0 0.0
      %5947 = vmatmul.mubr.f32.gmra.mxu0 %v5257
      %v5948 = vpop.f32.mrf.mxu0
      %v5949 = vadd.f32 %v5844, %v5948
      %v5950 = vpop.f32.mrf.mxu0
      %5951 = vmatprep.mubr.f32.mxu0 0.0
      %5952 = vmatmul.mubr.f32.gmra.mxu0 %v5260
      %v5953 = vpop.f32.mrf.mxu0
      %v5954 = vadd.f32 %v5849, %v5953
      %v5955 = vpop.f32.mrf.mxu0
      %5956 = vmatprep.mubr.f32.mxu0 0.0
      %5957 = vmatmul.mubr.f32.gmra.mxu0 %v5277
      %v5958 = vpop.f32.mrf.mxu0
      %v5959 = vadd.f32 %v5854, %v5958
      %v5960 = vpop.f32.mrf.mxu0
      %5961 = vmatprep.mubr.f32.mxu0 0.0
      %5962 = vmatmul.mubr.f32.gmra.mxu0 %v5287
      %v5963 = vpop.f32.mrf.mxu0
      %v5964 = vadd.f32 %v5859, %v5963
      %v5965 = vpop.f32.mrf.mxu0
      %5966 = vdwg.mxu0
      %v5967 = vadd.f32 %v4339, %v5929
      %v5968 = vadd.f32 %v4340, %v5934
      %v5969 = vadd.f32 %v4341, %v5939
      %v5970 = vadd.f32 %v4342, %v5944
      %v5971 = vadd.f32 %v4343, %v5949
      %v5972 = vadd.f32 %v4344, %v5954
      %v5973 = vadd.f32 %v4345, %v5959
      %v5974 = vadd.f32 %v4346, %v5964
      %5975 = vst.msk [vmem:[%s255 + $0x1] sm:$0xff] %vm1090, %v5967
      %5976 = vst.msk [vmem:[%s255 + $0x11] sm:$0xff] %vm1090, %v5968
      %5977 = vst.msk [vmem:[%s255 + $0x21] sm:$0xff] %vm1090, %v5969
      %5978 = vst.msk [vmem:[%s255 + $0x31] sm:$0xff] %vm1090, %v5970
      %5979 = vst.msk [vmem:[%s255 + $0x41] sm:$0xff] %vm1090, %v5971
      %5980 = vst.msk [vmem:[%s255 + $0x51] sm:$0xff] %vm1090, %v5972
      %5981 = vst.msk [vmem:[%s255 + $0x61] sm:$0xff] %vm1090, %v5973
      %5982 = vst.msk [vmem:[%s255 + $0x71] sm:$0xff] %vm1090, %v5974
      %v5983 = vld [vmem:[#allocation2] sm:$0xff]
      %v5984 = vld [vmem:[#allocation2 + $0x8] sm:$0x3]
      %v5985 = vld [vmem:[#allocation2 + $0x10] sm:$0xff]
      %v5986 = vld [vmem:[#allocation2 + $0x18] sm:$0x3]
      %v5987 = vld [vmem:[#allocation2 + $0x20] sm:$0xff]
      %v5988 = vld [vmem:[#allocation2 + $0x28] sm:$0x3]
      %v5989 = vld [vmem:[#allocation2 + $0x30] sm:$0xff]
      %v5990 = vld [vmem:[#allocation2 + $0x38] sm:$0x3]
      %v5991 = vld [vmem:[#allocation2 + $0x40] sm:$0xff]
      %v5992 = vld [vmem:[#allocation2 + $0x48] sm:$0x3]
      %v5993 = vld [vmem:[#allocation2 + $0x50] sm:$0xff]
      %v5994 = vld [vmem:[#allocation2 + $0x58] sm:$0x3]
      %v5995 = vld [vmem:[#allocation2 + $0x60] sm:$0xff]
      %v5996 = vld [vmem:[#allocation2 + $0x68] sm:$0x3]
      %v5997 = vld [vmem:[#allocation2 + $0x70] sm:$0xff]
      %v5998 = vld [vmem:[#allocation2 + $0x78] sm:$0x3]
      %v5999 = vld [vmem:[#allocation2 + $0x80] sm:$0xff]
      %v6000 = vld [vmem:[#allocation2 + $0x88] sm:$0x3]
      %v6001 = vld [vmem:[#allocation2 + $0x90] sm:$0xff]
      %v6002 = vld [vmem:[#allocation2 + $0x98] sm:$0x3]
      %v6019 = vrot.slane %v5983, 1
      %v6020 = vrot.slane %v5984, 1
      %v6021 = vsel %vm300, %v6019, %v6020
      %v6022 = vrot.slane %v5985, 1
      %v6023 = vrot.slane %v5986, 1
      %v6024 = vsel %vm300, %v6022, %v6023
      %v6025 = vrot.slane %v5987, 1
      %v6026 = vrot.slane %v5988, 1
      %v6027 = vsel %vm300, %v6025, %v6026
      %v6028 = vrot.slane %v5989, 1
      %v6029 = vrot.slane %v5990, 1
      %v6030 = vsel %vm300, %v6028, %v6029
      %v6031 = vrot.slane %v5991, 1
      %v6032 = vrot.slane %v5992, 1
      %v6033 = vsel %vm300, %v6031, %v6032
      %v6034 = vrot.slane %v5993, 1
      %v6035 = vrot.slane %v5994, 1
      %v6036 = vsel %vm300, %v6034, %v6035
      %v6037 = vrot.slane %v5995, 1
      %v6038 = vrot.slane %v5996, 1
      %v6039 = vsel %vm300, %v6037, %v6038
      %v6040 = vrot.slane %v5997, 1
      %v6041 = vrot.slane %v5998, 1
      %v6042 = vsel %vm300, %v6040, %v6041
      %v6051 = vrot.slane %v5983, 2
      %v6052 = vrot.slane %v5984, 2
      %v6053 = vsel %vm333, %v6051, %v6052
      %v6054 = vrot.slane %v5985, 2
      %v6055 = vrot.slane %v5986, 2
      %v6056 = vsel %vm333, %v6054, %v6055
      %v6057 = vrot.slane %v5987, 2
      %v6058 = vrot.slane %v5988, 2
      %v6059 = vsel %vm333, %v6057, %v6058
      %v6060 = vrot.slane %v5989, 2
      %v6061 = vrot.slane %v5990, 2
      %v6062 = vsel %vm333, %v6060, %v6061
      %v6063 = vrot.slane %v5991, 2
      %v6064 = vrot.slane %v5992, 2
      %v6065 = vsel %vm333, %v6063, %v6064
      %v6066 = vrot.slane %v5993, 2
      %v6067 = vrot.slane %v5994, 2
      %v6068 = vsel %vm333, %v6066, %v6067
      %v6069 = vrot.slane %v5995, 2
      %v6070 = vrot.slane %v5996, 2
      %v6071 = vsel %vm333, %v6069, %v6070
      %v6072 = vrot.slane %v5997, 2
      %v6073 = vrot.slane %v5998, 2
      %v6074 = vsel %vm333, %v6072, %v6073
      %v6085 = vrot.slane %v5999, 1
      %v6086 = vrot.slane %v6000, 1
      %v6087 = vsel %vm300, %v6085, %v6086
      %v6089 = vrot.slane %v5999, 2
      %v6090 = vrot.slane %v6000, 2
      %v6091 = vsel %vm333, %v6089, %v6090
      %v6095 = vrot.slane %v6001, 1
      %v6096 = vrot.slane %v6002, 1
      %v6097 = vsel %vm300, %v6095, %v6096
      %v6099 = vrot.slane %v6001, 2
      %v6100 = vrot.slane %v6002, 2
      %v6101 = vsel %vm333, %v6099, %v6100
      %s6103 = scalar_lea.vmem %s1, 8064
      %v6104 = vld [vmem:[%s6103] sm:$0xff]
      %v6105 = vld [vmem:[%s6103 + $0x8] sm:$0xff]
      %v6106 = vld [vmem:[%s6103 + $0x10] sm:$0xff]
      %v6107 = vld [vmem:[%s6103 + $0x18] sm:$0xff]
      %v6108 = vld [vmem:[%s6103 + $0x20] sm:$0xff]
      %v6109 = vld [vmem:[%s6103 + $0x28] sm:$0xff]
      %v6110 = vld [vmem:[%s6103 + $0x30] sm:$0xff]
      %v6111 = vld [vmem:[%s6103 + $0x38] sm:$0xff]
      %v6112 = vld [vmem:[%s6103 + $0x40] sm:$0xff]
      %v6113 = vld [vmem:[%s6103 + $0x48] sm:$0xff]
      %v6114 = vld [vmem:[%s6103 + $0x50] sm:$0xff]
      %v6115 = vld [vmem:[%s6103 + $0x58] sm:$0xff]
      %v6116 = vld [vmem:[%s6103 + $0x60] sm:$0xff]
      %v6117 = vld [vmem:[%s6103 + $0x68] sm:$0xff]
      %v6118 = vld [vmem:[%s6103 + $0x70] sm:$0xff]
      %v6119 = vld [vmem:[%s6103 + $0x78] sm:$0xff]
      %v6120 = vld [vmem:[%s6103 + $0x80] sm:$0xff]
      %v6121 = vld [vmem:[%s6103 + $0x88] sm:$0xff]
      %v6122 = vld [vmem:[%s6103 + $0x90] sm:$0xff]
      %v6123 = vld [vmem:[%s6103 + $0x98] sm:$0xff]
      %v6124 = vld [vmem:[%s6103 + $0xa0] sm:$0xff]
      %v6125 = vld [vmem:[%s6103 + $0xa8] sm:$0xff]
      %v6126 = vld [vmem:[%s6103 + $0xb0] sm:$0xff]
      %v6127 = vld [vmem:[%s6103 + $0xb8] sm:$0xff]
      %v6128 = vld [vmem:[%s6103 + $0xc0] sm:$0xff]
      %v6129 = vld [vmem:[%s6103 + $0xc8] sm:$0xff]
      %v6130 = vld [vmem:[%s6103 + $0xd0] sm:$0xff]
      %v6131 = vld [vmem:[%s6103 + $0xd8] sm:$0xff]
      %v6132 = vld [vmem:[%s6103 + $0xe0] sm:$0xff]
      %v6133 = vld [vmem:[%s6103 + $0xe8] sm:$0xff]
      %v6134 = vld [vmem:[%s6103 + $0xf0] sm:$0xff]
      %v6135 = vld [vmem:[%s6103 + $0xf8] sm:$0xff]
      %v6136 = vld [vmem:[%s6103 + $0x100] sm:$0xff]
      %v6137 = vld [vmem:[%s6103 + $0x108] sm:$0xff]
      %v6138 = vld [vmem:[%s6103 + $0x110] sm:$0xff]
      %v6139 = vld [vmem:[%s6103 + $0x118] sm:$0xff]
      %v6140 = vld [vmem:[%s6103 + $0x120] sm:$0xff]
      %v6141 = vld [vmem:[%s6103 + $0x128] sm:$0xff]
      %v6142 = vld [vmem:[%s6103 + $0x130] sm:$0xff]
      %v6143 = vld [vmem:[%s6103 + $0x138] sm:$0xff]
      %v6144 = vld [vmem:[%s6103 + $0x140] sm:$0xff]
      %v6145 = vld [vmem:[%s6103 + $0x148] sm:$0xff]
      %v6146 = vld [vmem:[%s6103 + $0x150] sm:$0xff]
      %v6147 = vld [vmem:[%s6103 + $0x158] sm:$0xff]
      %v6148 = vld [vmem:[%s6103 + $0x160] sm:$0xff]
      %v6149 = vld [vmem:[%s6103 + $0x168] sm:$0xff]
      %v6150 = vld [vmem:[%s6103 + $0x170] sm:$0xff]
      %v6151 = vld [vmem:[%s6103 + $0x178] sm:$0xff]
      %v6152 = vld [vmem:[%s6103 + $0x180] sm:$0xff]
      %v6153 = vld [vmem:[%s6103 + $0x188] sm:$0xff]
      %v6154 = vld [vmem:[%s6103 + $0x190] sm:$0xff]
      %v6155 = vld [vmem:[%s6103 + $0x198] sm:$0xff]
      %v6156 = vld [vmem:[%s6103 + $0x1a0] sm:$0xff]
      %v6157 = vld [vmem:[%s6103 + $0x1a8] sm:$0xff]
      %v6158 = vld [vmem:[%s6103 + $0x1b0] sm:$0xff]
      %v6159 = vld [vmem:[%s6103 + $0x1b8] sm:$0xff]
      %v6160 = vld [vmem:[%s6103 + $0x1c0] sm:$0xff]
      %v6161 = vld [vmem:[%s6103 + $0x1c8] sm:$0xff]
      %v6162 = vld [vmem:[%s6103 + $0x1d0] sm:$0xff]
      %v6163 = vld [vmem:[%s6103 + $0x1d8] sm:$0xff]
      %v6164 = vld [vmem:[%s6103 + $0x1e0] sm:$0xff]
      %v6165 = vld [vmem:[%s6103 + $0x1e8] sm:$0xff]
      %v6166 = vld [vmem:[%s6103 + $0x1f0] sm:$0xff]
      %v6167 = vld [vmem:[%s6103 + $0x1f8] sm:$0xff]
      %v6168 = vld [vmem:[%s6103 + $0x200] sm:$0xff]
      %v6169 = vld [vmem:[%s6103 + $0x208] sm:$0xff]
      %v6170 = vld [vmem:[%s6103 + $0x210] sm:$0xff]
      %v6171 = vld [vmem:[%s6103 + $0x218] sm:$0xff]
      %v6172 = vld [vmem:[%s6103 + $0x220] sm:$0xff]
      %v6173 = vld [vmem:[%s6103 + $0x228] sm:$0xff]
      %v6174 = vld [vmem:[%s6103 + $0x230] sm:$0xff]
      %v6175 = vld [vmem:[%s6103 + $0x238] sm:$0xff]
      %v6176 = vld [vmem:[%s6103 + $0x240] sm:$0xff]
      %v6177 = vld [vmem:[%s6103 + $0x248] sm:$0xff]
      %v6178 = vld [vmem:[%s6103 + $0x250] sm:$0xff]
      %v6179 = vld [vmem:[%s6103 + $0x258] sm:$0xff]
      %v6180 = vld [vmem:[%s6103 + $0x260] sm:$0xff]
      %v6181 = vld [vmem:[%s6103 + $0x268] sm:$0xff]
      %v6182 = vld [vmem:[%s6103 + $0x270] sm:$0xff]
      %v6183 = vld [vmem:[%s6103 + $0x278] sm:$0xff]
      %v6184 = vld [vmem:[%s6103 + $0x280] sm:$0xff]
      %v6185 = vld [vmem:[%s6103 + $0x288] sm:$0xff]
      %v6186 = vld [vmem:[%s6103 + $0x290] sm:$0xff]
      %v6187 = vld [vmem:[%s6103 + $0x298] sm:$0xff]
      %v6188 = vld [vmem:[%s6103 + $0x2a0] sm:$0xff]
      %v6189 = vld [vmem:[%s6103 + $0x2a8] sm:$0xff]
      %v6190 = vld [vmem:[%s6103 + $0x2b0] sm:$0xff]
      %v6191 = vld [vmem:[%s6103 + $0x2b8] sm:$0xff]
      %v6192 = vld [vmem:[%s6103 + $0x2c0] sm:$0xff]
      %v6193 = vld [vmem:[%s6103 + $0x2c8] sm:$0xff]
      %v6194 = vld [vmem:[%s6103 + $0x2d0] sm:$0xff]
      %v6195 = vld [vmem:[%s6103 + $0x2d8] sm:$0xff]
      %v6196 = vld [vmem:[%s6103 + $0x2e0] sm:$0xff]
      %v6197 = vld [vmem:[%s6103 + $0x2e8] sm:$0xff]
      %v6198 = vld [vmem:[%s6103 + $0x2f0] sm:$0xff]
      %v6199 = vld [vmem:[%s6103 + $0x2f8] sm:$0xff]
      %v6200 = vld [vmem:[%s6103 + $0x300] sm:$0xff]
      %v6201 = vld [vmem:[%s6103 + $0x308] sm:$0xff]
      %v6202 = vld [vmem:[%s6103 + $0x310] sm:$0xff]
      %v6203 = vld [vmem:[%s6103 + $0x318] sm:$0xff]
      %v6204 = vld [vmem:[%s6103 + $0x320] sm:$0xff]
      %v6205 = vld [vmem:[%s6103 + $0x328] sm:$0xff]
      %v6206 = vld [vmem:[%s6103 + $0x330] sm:$0xff]
      %v6207 = vld [vmem:[%s6103 + $0x338] sm:$0xff]
      %v6208 = vld [vmem:[%s6103 + $0x340] sm:$0xff]
      %v6209 = vld [vmem:[%s6103 + $0x348] sm:$0xff]
      %v6210 = vld [vmem:[%s6103 + $0x350] sm:$0xff]
      %v6211 = vld [vmem:[%s6103 + $0x358] sm:$0xff]
      %v6212 = vld [vmem:[%s6103 + $0x360] sm:$0xff]
      %v6213 = vld [vmem:[%s6103 + $0x368] sm:$0xff]
      %v6214 = vld [vmem:[%s6103 + $0x370] sm:$0xff]
      %v6215 = vld [vmem:[%s6103 + $0x378] sm:$0xff]
      %v6216 = vld [vmem:[%s6103 + $0x380] sm:$0xff]
      %v6217 = vld [vmem:[%s6103 + $0x388] sm:$0xff]
      %v6218 = vld [vmem:[%s6103 + $0x390] sm:$0xff]
      %v6219 = vld [vmem:[%s6103 + $0x398] sm:$0xff]
      %v6220 = vld [vmem:[%s6103 + $0x3a0] sm:$0xff]
      %v6221 = vld [vmem:[%s6103 + $0x3a8] sm:$0xff]
      %v6222 = vld [vmem:[%s6103 + $0x3b0] sm:$0xff]
      %v6223 = vld [vmem:[%s6103 + $0x3b8] sm:$0xff]
      %v6224 = vld [vmem:[%s6103 + $0x3c0] sm:$0xff]
      %v6225 = vld [vmem:[%s6103 + $0x3c8] sm:$0xff]
      %v6226 = vld [vmem:[%s6103 + $0x3d0] sm:$0xff]
      %v6227 = vld [vmem:[%s6103 + $0x3d8] sm:$0xff]
      %v6228 = vld [vmem:[%s6103 + $0x3e0] sm:$0xff]
      %v6229 = vld [vmem:[%s6103 + $0x3e8] sm:$0xff]
      %v6230 = vld [vmem:[%s6103 + $0x3f0] sm:$0xff]
      %v6231 = vld [vmem:[%s6103 + $0x3f8] sm:$0xff]
      %v6232 = vld [vmem:[%s6103 + $0x400] sm:$0xff]
      %v6233 = vld [vmem:[%s6103 + $0x408] sm:$0xff]
      %v6234 = vld [vmem:[%s6103 + $0x410] sm:$0xff]
      %v6235 = vld [vmem:[%s6103 + $0x418] sm:$0xff]
      %v6236 = vld [vmem:[%s6103 + $0x420] sm:$0xff]
      %v6237 = vld [vmem:[%s6103 + $0x428] sm:$0xff]
      %v6238 = vld [vmem:[%s6103 + $0x430] sm:$0xff]
      %v6239 = vld [vmem:[%s6103 + $0x438] sm:$0xff]
      %v6240 = vld [vmem:[%s6103 + $0x440] sm:$0xff]
      %v6241 = vld [vmem:[%s6103 + $0x448] sm:$0xff]
      %v6242 = vld [vmem:[%s6103 + $0x450] sm:$0xff]
      %v6243 = vld [vmem:[%s6103 + $0x458] sm:$0xff]
      %v6244 = vld [vmem:[%s6103 + $0x460] sm:$0xff]
      %v6245 = vld [vmem:[%s6103 + $0x468] sm:$0xff]
      %v6246 = vld [vmem:[%s6103 + $0x470] sm:$0xff]
      %v6247 = vld [vmem:[%s6103 + $0x478] sm:$0xff]
      %s6248 = scalar_lea.vmem %s2, 7
      %v6249 = vld [vmem:[%s6248] sm:$0x1]
      %v6251 = vlaneseq
      %v6252 = vshrl.u32 %v6251, 7
      %v6253 = vsub.s32 0, %v6252
      %v6254 = vrot.slane %v6249, %v6253
      %6256 = vmatprep.subr.mxu0 0.0
      %6257 = vmatpush1.msra.mxu0 %v6119
      %6258 = vmatprep.subr.mxu0 0.0
      %6259 = vmatpush1.msra.mxu0 %v6118
      %6260 = vmatprep.subr.mxu0 0.0
      %6261 = vmatpush1.msra.mxu0 %v6117
      %6262 = vmatprep.subr.mxu0 0.0
      %6263 = vmatpush1.msra.mxu0 %v6116
      %6264 = vmatprep.subr.mxu0 0.0
      %6265 = vmatpush1.msra.mxu0 %v6115
      %6266 = vmatprep.subr.mxu0 0.0
      %6267 = vmatpush1.msra.mxu0 %v6114
      %6268 = vmatprep.subr.mxu0 0.0
      %6269 = vmatpush1.msra.mxu0 %v6113
      %6270 = vmatprep.subr.mxu0 0.0
      %6271 = vmatpush1.msra.mxu0 %v6112
      %6272 = vmatprep.subr.mxu0 0.0
      %6273 = vmatpush1.msra.mxu0 %v6111
      %6274 = vmatprep.subr.mxu0 0.0
      %6275 = vmatpush1.msra.mxu0 %v6110
      %6276 = vmatprep.subr.mxu0 0.0
      %6277 = vmatpush1.msra.mxu0 %v6109
      %6278 = vmatprep.subr.mxu0 0.0
      %6279 = vmatpush1.msra.mxu0 %v6108
      %6280 = vmatprep.subr.mxu0 0.0
      %6281 = vmatpush1.msra.mxu0 %v6107
      %6282 = vmatprep.subr.mxu0 0.0
      %6283 = vmatpush1.msra.mxu0 %v6106
      %6284 = vmatprep.subr.mxu0 0.0
      %6285 = vmatpush1.msra.mxu0 %v6105
      %6286 = vmatprep.subr.mxu0 0.0
      %6287 = vmatpush1.msra.mxu0 %v6104
      %6288 = vmatprep.subr.mxu0 0.0
      %6289 = vmatpush2.msra.mxu0 %v6135
      %6290 = vmatprep.subr.mxu0 0.0
      %6291 = vmatpush2.msra.mxu0 %v6134
      %6292 = vmatprep.subr.mxu0 0.0
      %6293 = vmatpush2.msra.mxu0 %v6133
      %6294 = vmatprep.subr.mxu0 0.0
      %6295 = vmatpush2.msra.mxu0 %v6132
      %6296 = vmatprep.subr.mxu0 0.0
      %6297 = vmatpush2.msra.mxu0 %v6131
      %6298 = vmatprep.subr.mxu0 0.0
      %6299 = vmatpush2.msra.mxu0 %v6130
      %6300 = vmatprep.subr.mxu0 0.0
      %6301 = vmatpush2.msra.mxu0 %v6129
      %6302 = vmatprep.subr.mxu0 0.0
      %6303 = vmatpush2.msra.mxu0 %v6128
      %6304 = vmatprep.subr.mxu0 0.0
      %6305 = vmatpush2.msra.mxu0 %v6127
      %6306 = vmatprep.subr.mxu0 0.0
      %6307 = vmatpush2.msra.mxu0 %v6126
      %6308 = vmatprep.subr.mxu0 0.0
      %6309 = vmatpush2.msra.mxu0 %v6125
      %6310 = vmatprep.subr.mxu0 0.0
      %6311 = vmatpush2.msra.mxu0 %v6124
      %6312 = vmatprep.subr.mxu0 0.0
      %6313 = vmatpush2.msra.mxu0 %v6123
      %6314 = vmatprep.subr.mxu0 0.0
      %6315 = vmatpush2.msra.mxu0 %v6122
      %6316 = vmatprep.subr.mxu0 0.0
      %6317 = vmatpush2.msra.mxu0 %v6121
      %6318 = vmatprep.subr.mxu0 0.0
      %6319 = vmatpush2.msra.mxu0 %v6120
      %6320 = vmatprep.mubr.f32.mxu0 %v6021
      %6321 = vmatmul.mubr.f32.gmra.mxu0 %v5983
      %v6322 = vpop.f32.mrf.mxu0
      %v6323 = vadd.f32 %v6254, %v6322
      %v6324 = vpop.f32.mrf.mxu0
      %6325 = vmatprep.mubr.f32.mxu0 %v6024
      %6326 = vmatmul.mubr.f32.gmra.mxu0 %v5985
      %v6327 = vpop.f32.mrf.mxu0
      %v6328 = vadd.f32 %v6254, %v6327
      %v6329 = vpop.f32.mrf.mxu0
      %6330 = vmatprep.mubr.f32.mxu0 %v6027
      %6331 = vmatmul.mubr.f32.gmra.mxu0 %v5987
      %v6332 = vpop.f32.mrf.mxu0
      %v6333 = vadd.f32 %v6254, %v6332
      %v6334 = vpop.f32.mrf.mxu0
      %6335 = vmatprep.mubr.f32.mxu0 %v6030
      %6336 = vmatmul.mubr.f32.gmra.mxu0 %v5989
      %v6337 = vpop.f32.mrf.mxu0
      %v6338 = vadd.f32 %v6254, %v6337
      %v6339 = vpop.f32.mrf.mxu0
      %6340 = vmatprep.mubr.f32.mxu0 %v6033
      %6341 = vmatmul.mubr.f32.gmra.mxu0 %v5991
      %v6342 = vpop.f32.mrf.mxu0
      %v6343 = vadd.f32 %v6254, %v6342
      %v6344 = vpop.f32.mrf.mxu0
      %6345 = vmatprep.mubr.f32.mxu0 %v6036
      %6346 = vmatmul.mubr.f32.gmra.mxu0 %v5993
      %v6347 = vpop.f32.mrf.mxu0
      %v6348 = vadd.f32 %v6254, %v6347
      %v6349 = vpop.f32.mrf.mxu0
      %6350 = vmatprep.mubr.f32.mxu0 %v6039
      %6351 = vmatmul.mubr.f32.gmra.mxu0 %v5995
      %v6352 = vpop.f32.mrf.mxu0
      %v6353 = vadd.f32 %v6254, %v6352
      %v6354 = vpop.f32.mrf.mxu0
      %6355 = vmatprep.mubr.f32.mxu0 %v6042
      %6356 = vmatmul.mubr.f32.gmra.mxu0 %v5997
      %v6357 = vpop.f32.mrf.mxu0
      %v6358 = vadd.f32 %v6254, %v6357
      %v6359 = vpop.f32.mrf.mxu0
      %6360 = vdwg.mxu0
      %6361 = vmatprep.subr.mxu0 0.0
      %6362 = vmatpush1.msra.mxu0 %v6151
      %6363 = vmatprep.subr.mxu0 0.0
      %6364 = vmatpush1.msra.mxu0 %v6150
      %6365 = vmatprep.subr.mxu0 0.0
      %6366 = vmatpush1.msra.mxu0 %v6149
      %6367 = vmatprep.subr.mxu0 0.0
      %6368 = vmatpush1.msra.mxu0 %v6148
      %6369 = vmatprep.subr.mxu0 0.0
      %6370 = vmatpush1.msra.mxu0 %v6147
      %6371 = vmatprep.subr.mxu0 0.0
      %6372 = vmatpush1.msra.mxu0 %v6146
      %6373 = vmatprep.subr.mxu0 0.0
      %6374 = vmatpush1.msra.mxu0 %v6145
      %6375 = vmatprep.subr.mxu0 0.0
      %6376 = vmatpush1.msra.mxu0 %v6144
      %6377 = vmatprep.subr.mxu0 0.0
      %6378 = vmatpush1.msra.mxu0 %v6143
      %6379 = vmatprep.subr.mxu0 0.0
      %6380 = vmatpush1.msra.mxu0 %v6142
      %6381 = vmatprep.subr.mxu0 0.0
      %6382 = vmatpush1.msra.mxu0 %v6141
      %6383 = vmatprep.subr.mxu0 0.0
      %6384 = vmatpush1.msra.mxu0 %v6140
      %6385 = vmatprep.subr.mxu0 0.0
      %6386 = vmatpush1.msra.mxu0 %v6139
      %6387 = vmatprep.subr.mxu0 0.0
      %6388 = vmatpush1.msra.mxu0 %v6138
      %6389 = vmatprep.subr.mxu0 0.0
      %6390 = vmatpush1.msra.mxu0 %v6137
      %6391 = vmatprep.subr.mxu0 0.0
      %6392 = vmatpush1.msra.mxu0 %v6136
      %6393 = vmatprep.subr.mxu0 0.0
      %6394 = vmatpush2.msra.mxu0 %v6167
      %6395 = vmatprep.subr.mxu0 0.0
      %6396 = vmatpush2.msra.mxu0 %v6166
      %6397 = vmatprep.subr.mxu0 0.0
      %6398 = vmatpush2.msra.mxu0 %v6165
      %6399 = vmatprep.subr.mxu0 0.0
      %6400 = vmatpush2.msra.mxu0 %v6164
      %6401 = vmatprep.subr.mxu0 0.0
      %6402 = vmatpush2.msra.mxu0 %v6163
      %6403 = vmatprep.subr.mxu0 0.0
      %6404 = vmatpush2.msra.mxu0 %v6162
      %6405 = vmatprep.subr.mxu0 0.0
      %6406 = vmatpush2.msra.mxu0 %v6161
      %6407 = vmatprep.subr.mxu0 0.0
      %6408 = vmatpush2.msra.mxu0 %v6160
      %6409 = vmatprep.subr.mxu0 0.0
      %6410 = vmatpush2.msra.mxu0 %v6159
      %6411 = vmatprep.subr.mxu0 0.0
      %6412 = vmatpush2.msra.mxu0 %v6158
      %6413 = vmatprep.subr.mxu0 0.0
      %6414 = vmatpush2.msra.mxu0 %v6157
      %6415 = vmatprep.subr.mxu0 0.0
      %6416 = vmatpush2.msra.mxu0 %v6156
      %6417 = vmatprep.subr.mxu0 0.0
      %6418 = vmatpush2.msra.mxu0 %v6155
      %6419 = vmatprep.subr.mxu0 0.0
      %6420 = vmatpush2.msra.mxu0 %v6154
      %6421 = vmatprep.subr.mxu0 0.0
      %6422 = vmatpush2.msra.mxu0 %v6153
      %6423 = vmatprep.subr.mxu0 0.0
      %6424 = vmatpush2.msra.mxu0 %v6152
      %6425 = vmatprep.mubr.f32.mxu0 %v5985
      %6426 = vmatmul.mubr.f32.gmra.mxu0 %v6053
      %v6427 = vpop.f32.mrf.mxu0
      %v6428 = vadd.f32 %v6323, %v6427
      %v6429 = vpop.f32.mrf.mxu0
      %6430 = vmatprep.mubr.f32.mxu0 %v5987
      %6431 = vmatmul.mubr.f32.gmra.mxu0 %v6056
      %v6432 = vpop.f32.mrf.mxu0
      %v6433 = vadd.f32 %v6328, %v6432
      %v6434 = vpop.f32.mrf.mxu0
      %6435 = vmatprep.mubr.f32.mxu0 %v5989
      %6436 = vmatmul.mubr.f32.gmra.mxu0 %v6059
      %v6437 = vpop.f32.mrf.mxu0
      %v6438 = vadd.f32 %v6333, %v6437
      %v6439 = vpop.f32.mrf.mxu0
      %6440 = vmatprep.mubr.f32.mxu0 %v5991
      %6441 = vmatmul.mubr.f32.gmra.mxu0 %v6062
      %v6442 = vpop.f32.mrf.mxu0
      %v6443 = vadd.f32 %v6338, %v6442
      %v6444 = vpop.f32.mrf.mxu0
      %6445 = vmatprep.mubr.f32.mxu0 %v5993
      %6446 = vmatmul.mubr.f32.gmra.mxu0 %v6065
      %v6447 = vpop.f32.mrf.mxu0
      %v6448 = vadd.f32 %v6343, %v6447
      %v6449 = vpop.f32.mrf.mxu0
      %6450 = vmatprep.mubr.f32.mxu0 %v5995
      %6451 = vmatmul.mubr.f32.gmra.mxu0 %v6068
      %v6452 = vpop.f32.mrf.mxu0
      %v6453 = vadd.f32 %v6348, %v6452
      %v6454 = vpop.f32.mrf.mxu0
      %6455 = vmatprep.mubr.f32.mxu0 %v5997
      %6456 = vmatmul.mubr.f32.gmra.mxu0 %v6071
      %v6457 = vpop.f32.mrf.mxu0
      %v6458 = vadd.f32 %v6353, %v6457
      %v6459 = vpop.f32.mrf.mxu0
      %6460 = vmatprep.mubr.f32.mxu0 %v5999
      %6461 = vmatmul.mubr.f32.gmra.mxu0 %v6074
      %v6462 = vpop.f32.mrf.mxu0
      %v6463 = vadd.f32 %v6358, %v6462
      %v6464 = vpop.f32.mrf.mxu0
      %6465 = vdwg.mxu0
      %6466 = vmatprep.subr.mxu0 0.0
      %6467 = vmatpush1.msra.mxu0 %v6183
      %6468 = vmatprep.subr.mxu0 0.0
      %6469 = vmatpush1.msra.mxu0 %v6182
      %6470 = vmatprep.subr.mxu0 0.0
      %6471 = vmatpush1.msra.mxu0 %v6181
      %6472 = vmatprep.subr.mxu0 0.0
      %6473 = vmatpush1.msra.mxu0 %v6180
      %6474 = vmatprep.subr.mxu0 0.0
      %6475 = vmatpush1.msra.mxu0 %v6179
      %6476 = vmatprep.subr.mxu0 0.0
      %6477 = vmatpush1.msra.mxu0 %v6178
      %6478 = vmatprep.subr.mxu0 0.0
      %6479 = vmatpush1.msra.mxu0 %v6177
      %6480 = vmatprep.subr.mxu0 0.0
      %6481 = vmatpush1.msra.mxu0 %v6176
      %6482 = vmatprep.subr.mxu0 0.0
      %6483 = vmatpush1.msra.mxu0 %v6175
      %6484 = vmatprep.subr.mxu0 0.0
      %6485 = vmatpush1.msra.mxu0 %v6174
      %6486 = vmatprep.subr.mxu0 0.0
      %6487 = vmatpush1.msra.mxu0 %v6173
      %6488 = vmatprep.subr.mxu0 0.0
      %6489 = vmatpush1.msra.mxu0 %v6172
      %6490 = vmatprep.subr.mxu0 0.0
      %6491 = vmatpush1.msra.mxu0 %v6171
      %6492 = vmatprep.subr.mxu0 0.0
      %6493 = vmatpush1.msra.mxu0 %v6170
      %6494 = vmatprep.subr.mxu0 0.0
      %6495 = vmatpush1.msra.mxu0 %v6169
      %6496 = vmatprep.subr.mxu0 0.0
      %6497 = vmatpush1.msra.mxu0 %v6168
      %6498 = vmatprep.subr.mxu0 0.0
      %6499 = vmatpush2.msra.mxu0 %v6199
      %6500 = vmatprep.subr.mxu0 0.0
      %6501 = vmatpush2.msra.mxu0 %v6198
      %6502 = vmatprep.subr.mxu0 0.0
      %6503 = vmatpush2.msra.mxu0 %v6197
      %6504 = vmatprep.subr.mxu0 0.0
      %6505 = vmatpush2.msra.mxu0 %v6196
      %6506 = vmatprep.subr.mxu0 0.0
      %6507 = vmatpush2.msra.mxu0 %v6195
      %6508 = vmatprep.subr.mxu0 0.0
      %6509 = vmatpush2.msra.mxu0 %v6194
      %6510 = vmatprep.subr.mxu0 0.0
      %6511 = vmatpush2.msra.mxu0 %v6193
      %6512 = vmatprep.subr.mxu0 0.0
      %6513 = vmatpush2.msra.mxu0 %v6192
      %6514 = vmatprep.subr.mxu0 0.0
      %6515 = vmatpush2.msra.mxu0 %v6191
      %6516 = vmatprep.subr.mxu0 0.0
      %6517 = vmatpush2.msra.mxu0 %v6190
      %6518 = vmatprep.subr.mxu0 0.0
      %6519 = vmatpush2.msra.mxu0 %v6189
      %6520 = vmatprep.subr.mxu0 0.0
      %6521 = vmatpush2.msra.mxu0 %v6188
      %6522 = vmatprep.subr.mxu0 0.0
      %6523 = vmatpush2.msra.mxu0 %v6187
      %6524 = vmatprep.subr.mxu0 0.0
      %6525 = vmatpush2.msra.mxu0 %v6186
      %6526 = vmatprep.subr.mxu0 0.0
      %6527 = vmatpush2.msra.mxu0 %v6185
      %6528 = vmatprep.subr.mxu0 0.0
      %6529 = vmatpush2.msra.mxu0 %v6184
      %6530 = vmatprep.mubr.f32.mxu0 %v6056
      %6531 = vmatmul.mubr.f32.gmra.mxu0 %v6024
      %v6532 = vpop.f32.mrf.mxu0
      %v6533 = vadd.f32 %v6428, %v6532
      %v6534 = vpop.f32.mrf.mxu0
      %6535 = vmatprep.mubr.f32.mxu0 %v6059
      %6536 = vmatmul.mubr.f32.gmra.mxu0 %v6027
      %v6537 = vpop.f32.mrf.mxu0
      %v6538 = vadd.f32 %v6433, %v6537
      %v6539 = vpop.f32.mrf.mxu0
      %6540 = vmatprep.mubr.f32.mxu0 %v6062
      %6541 = vmatmul.mubr.f32.gmra.mxu0 %v6030
      %v6542 = vpop.f32.mrf.mxu0
      %v6543 = vadd.f32 %v6438, %v6542
      %v6544 = vpop.f32.mrf.mxu0
      %6545 = vmatprep.mubr.f32.mxu0 %v6065
      %6546 = vmatmul.mubr.f32.gmra.mxu0 %v6033
      %v6547 = vpop.f32.mrf.mxu0
      %v6548 = vadd.f32 %v6443, %v6547
      %v6549 = vpop.f32.mrf.mxu0
      %6550 = vmatprep.mubr.f32.mxu0 %v6068
      %6551 = vmatmul.mubr.f32.gmra.mxu0 %v6036
      %v6552 = vpop.f32.mrf.mxu0
      %v6553 = vadd.f32 %v6448, %v6552
      %v6554 = vpop.f32.mrf.mxu0
      %6555 = vmatprep.mubr.f32.mxu0 %v6071
      %6556 = vmatmul.mubr.f32.gmra.mxu0 %v6039
      %v6557 = vpop.f32.mrf.mxu0
      %v6558 = vadd.f32 %v6453, %v6557
      %v6559 = vpop.f32.mrf.mxu0
      %6560 = vmatprep.mubr.f32.mxu0 %v6074
      %6561 = vmatmul.mubr.f32.gmra.mxu0 %v6042
      %v6562 = vpop.f32.mrf.mxu0
      %v6563 = vadd.f32 %v6458, %v6562
      %v6564 = vpop.f32.mrf.mxu0
      %6565 = vmatprep.mubr.f32.mxu0 %v6091
      %6566 = vmatmul.mubr.f32.gmra.mxu0 %v6087
      %v6567 = vpop.f32.mrf.mxu0
      %v6568 = vadd.f32 %v6463, %v6567
      %v6569 = vpop.f32.mrf.mxu0
      %6570 = vdwg.mxu0
      %6571 = vmatprep.subr.mxu0 0.0
      %6572 = vmatpush1.msra.mxu0 %v6215
      %6573 = vmatprep.subr.mxu0 0.0
      %6574 = vmatpush1.msra.mxu0 %v6214
      %6575 = vmatprep.subr.mxu0 0.0
      %6576 = vmatpush1.msra.mxu0 %v6213
      %6577 = vmatprep.subr.mxu0 0.0
      %6578 = vmatpush1.msra.mxu0 %v6212
      %6579 = vmatprep.subr.mxu0 0.0
      %6580 = vmatpush1.msra.mxu0 %v6211
      %6581 = vmatprep.subr.mxu0 0.0
      %6582 = vmatpush1.msra.mxu0 %v6210
      %6583 = vmatprep.subr.mxu0 0.0
      %6584 = vmatpush1.msra.mxu0 %v6209
      %6585 = vmatprep.subr.mxu0 0.0
      %6586 = vmatpush1.msra.mxu0 %v6208
      %6587 = vmatprep.subr.mxu0 0.0
      %6588 = vmatpush1.msra.mxu0 %v6207
      %6589 = vmatprep.subr.mxu0 0.0
      %6590 = vmatpush1.msra.mxu0 %v6206
      %6591 = vmatprep.subr.mxu0 0.0
      %6592 = vmatpush1.msra.mxu0 %v6205
      %6593 = vmatprep.subr.mxu0 0.0
      %6594 = vmatpush1.msra.mxu0 %v6204
      %6595 = vmatprep.subr.mxu0 0.0
      %6596 = vmatpush1.msra.mxu0 %v6203
      %6597 = vmatprep.subr.mxu0 0.0
      %6598 = vmatpush1.msra.mxu0 %v6202
      %6599 = vmatprep.subr.mxu0 0.0
      %6600 = vmatpush1.msra.mxu0 %v6201
      %6601 = vmatprep.subr.mxu0 0.0
      %6602 = vmatpush1.msra.mxu0 %v6200
      %6603 = vmatprep.subr.mxu0 0.0
      %6604 = vmatpush2.msra.mxu0 %v6231
      %6605 = vmatprep.subr.mxu0 0.0
      %6606 = vmatpush2.msra.mxu0 %v6230
      %6607 = vmatprep.subr.mxu0 0.0
      %6608 = vmatpush2.msra.mxu0 %v6229
      %6609 = vmatprep.subr.mxu0 0.0
      %6610 = vmatpush2.msra.mxu0 %v6228
      %6611 = vmatprep.subr.mxu0 0.0
      %6612 = vmatpush2.msra.mxu0 %v6227
      %6613 = vmatprep.subr.mxu0 0.0
      %6614 = vmatpush2.msra.mxu0 %v6226
      %6615 = vmatprep.subr.mxu0 0.0
      %6616 = vmatpush2.msra.mxu0 %v6225
      %6617 = vmatprep.subr.mxu0 0.0
      %6618 = vmatpush2.msra.mxu0 %v6224
      %6619 = vmatprep.subr.mxu0 0.0
      %6620 = vmatpush2.msra.mxu0 %v6223
      %6621 = vmatprep.subr.mxu0 0.0
      %6622 = vmatpush2.msra.mxu0 %v6222
      %6623 = vmatprep.subr.mxu0 0.0
      %6624 = vmatpush2.msra.mxu0 %v6221
      %6625 = vmatprep.subr.mxu0 0.0
      %6626 = vmatpush2.msra.mxu0 %v6220
      %6627 = vmatprep.subr.mxu0 0.0
      %6628 = vmatpush2.msra.mxu0 %v6219
      %6629 = vmatprep.subr.mxu0 0.0
      %6630 = vmatpush2.msra.mxu0 %v6218
      %6631 = vmatprep.subr.mxu0 0.0
      %6632 = vmatpush2.msra.mxu0 %v6217
      %6633 = vmatprep.subr.mxu0 0.0
      %6634 = vmatpush2.msra.mxu0 %v6216
      %6635 = vmatprep.mubr.f32.mxu0 %v6027
      %6636 = vmatmul.mubr.f32.gmra.mxu0 %v5987
      %v6637 = vpop.f32.mrf.mxu0
      %v6638 = vadd.f32 %v6533, %v6637
      %v6639 = vpop.f32.mrf.mxu0
      %6640 = vmatprep.mubr.f32.mxu0 %v6030
      %6641 = vmatmul.mubr.f32.gmra.mxu0 %v5989
      %v6642 = vpop.f32.mrf.mxu0
      %v6643 = vadd.f32 %v6538, %v6642
      %v6644 = vpop.f32.mrf.mxu0
      %6645 = vmatprep.mubr.f32.mxu0 %v6033
      %6646 = vmatmul.mubr.f32.gmra.mxu0 %v5991
      %v6647 = vpop.f32.mrf.mxu0
      %v6648 = vadd.f32 %v6543, %v6647
      %v6649 = vpop.f32.mrf.mxu0
      %6650 = vmatprep.mubr.f32.mxu0 %v6036
      %6651 = vmatmul.mubr.f32.gmra.mxu0 %v5993
      %v6652 = vpop.f32.mrf.mxu0
      %v6653 = vadd.f32 %v6548, %v6652
      %v6654 = vpop.f32.mrf.mxu0
      %6655 = vmatprep.mubr.f32.mxu0 %v6039
      %6656 = vmatmul.mubr.f32.gmra.mxu0 %v5995
      %v6657 = vpop.f32.mrf.mxu0
      %v6658 = vadd.f32 %v6553, %v6657
      %v6659 = vpop.f32.mrf.mxu0
      %6660 = vmatprep.mubr.f32.mxu0 %v6042
      %6661 = vmatmul.mubr.f32.gmra.mxu0 %v5997
      %v6662 = vpop.f32.mrf.mxu0
      %v6663 = vadd.f32 %v6558, %v6662
      %v6664 = vpop.f32.mrf.mxu0
      %6665 = vmatprep.mubr.f32.mxu0 %v6087
      %6666 = vmatmul.mubr.f32.gmra.mxu0 %v5999
      %v6667 = vpop.f32.mrf.mxu0
      %v6668 = vadd.f32 %v6563, %v6667
      %v6669 = vpop.f32.mrf.mxu0
      %6670 = vmatprep.mubr.f32.mxu0 %v6097
      %6671 = vmatmul.mubr.f32.gmra.mxu0 %v6001
      %v6672 = vpop.f32.mrf.mxu0
      %v6673 = vadd.f32 %v6568, %v6672
      %v6674 = vpop.f32.mrf.mxu0
      %6675 = vdwg.mxu0
      %6676 = vmatprep.subr.mxu0 0.0
      %6677 = vmatpush1.msra.mxu0 %v6247
      %6678 = vmatprep.subr.mxu0 0.0
      %6679 = vmatpush1.msra.mxu0 %v6246
      %6680 = vmatprep.subr.mxu0 0.0
      %6681 = vmatpush1.msra.mxu0 %v6245
      %6682 = vmatprep.subr.mxu0 0.0
      %6683 = vmatpush1.msra.mxu0 %v6244
      %6684 = vmatprep.subr.mxu0 0.0
      %6685 = vmatpush1.msra.mxu0 %v6243
      %6686 = vmatprep.subr.mxu0 0.0
      %6687 = vmatpush1.msra.mxu0 %v6242
      %6688 = vmatprep.subr.mxu0 0.0
      %6689 = vmatpush1.msra.mxu0 %v6241
      %6690 = vmatprep.subr.mxu0 0.0
      %6691 = vmatpush1.msra.mxu0 %v6240
      %6692 = vmatprep.subr.mxu0 0.0
      %6693 = vmatpush1.msra.mxu0 %v6239
      %6694 = vmatprep.subr.mxu0 0.0
      %6695 = vmatpush1.msra.mxu0 %v6238
      %6696 = vmatprep.subr.mxu0 0.0
      %6697 = vmatpush1.msra.mxu0 %v6237
      %6698 = vmatprep.subr.mxu0 0.0
      %6699 = vmatpush1.msra.mxu0 %v6236
      %6700 = vmatprep.subr.mxu0 0.0
      %6701 = vmatpush1.msra.mxu0 %v6235
      %6702 = vmatprep.subr.mxu0 0.0
      %6703 = vmatpush1.msra.mxu0 %v6234
      %6704 = vmatprep.subr.mxu0 0.0
      %6705 = vmatpush1.msra.mxu0 %v6233
      %6706 = vmatprep.subr.mxu0 0.0
      %6707 = vmatpush1.msra.mxu0 %v6232
      %6708 = vmatprep.subr.mxu0 0.0
      %6709 = vmatpush2.msra.mxu0 0.0
      %6710 = vmatprep.subr.mxu0 0.0
      %6711 = vmatpush2.msra.mxu0 0.0
      %6712 = vmatprep.subr.mxu0 0.0
      %6713 = vmatpush2.msra.mxu0 0.0
      %6714 = vmatprep.subr.mxu0 0.0
      %6715 = vmatpush2.msra.mxu0 0.0
      %6716 = vmatprep.subr.mxu0 0.0
      %6717 = vmatpush2.msra.mxu0 0.0
      %6718 = vmatprep.subr.mxu0 0.0
      %6719 = vmatpush2.msra.mxu0 0.0
      %6720 = vmatprep.subr.mxu0 0.0
      %6721 = vmatpush2.msra.mxu0 0.0
      %6722 = vmatprep.subr.mxu0 0.0
      %6723 = vmatpush2.msra.mxu0 0.0
      %6724 = vmatprep.subr.mxu0 0.0
      %6725 = vmatpush2.msra.mxu0 0.0
      %6726 = vmatprep.subr.mxu0 0.0
      %6727 = vmatpush2.msra.mxu0 0.0
      %6728 = vmatprep.subr.mxu0 0.0
      %6729 = vmatpush2.msra.mxu0 0.0
      %6730 = vmatprep.subr.mxu0 0.0
      %6731 = vmatpush2.msra.mxu0 0.0
      %6732 = vmatprep.subr.mxu0 0.0
      %6733 = vmatpush2.msra.mxu0 0.0
      %6734 = vmatprep.subr.mxu0 0.0
      %6735 = vmatpush2.msra.mxu0 0.0
      %6736 = vmatprep.subr.mxu0 0.0
      %6737 = vmatpush2.msra.mxu0 0.0
      %6738 = vmatprep.subr.mxu0 0.0
      %6739 = vmatpush2.msra.mxu0 0.0
      %6740 = vmatprep.mubr.f32.mxu0 0.0
      %6741 = vmatmul.mubr.f32.gmra.mxu0 %v6059
      %v6742 = vpop.f32.mrf.mxu0
      %v6743 = vadd.f32 %v6638, %v6742
      %v6744 = vpop.f32.mrf.mxu0
      %6745 = vmatprep.mubr.f32.mxu0 0.0
      %6746 = vmatmul.mubr.f32.gmra.mxu0 %v6062
      %v6747 = vpop.f32.mrf.mxu0
      %v6748 = vadd.f32 %v6643, %v6747
      %v6749 = vpop.f32.mrf.mxu0
      %6750 = vmatprep.mubr.f32.mxu0 0.0
      %6751 = vmatmul.mubr.f32.gmra.mxu0 %v6065
      %v6752 = vpop.f32.mrf.mxu0
      %v6753 = vadd.f32 %v6648, %v6752
      %v6754 = vpop.f32.mrf.mxu0
      %6755 = vmatprep.mubr.f32.mxu0 0.0
      %6756 = vmatmul.mubr.f32.gmra.mxu0 %v6068
      %v6757 = vpop.f32.mrf.mxu0
      %v6758 = vadd.f32 %v6653, %v6757
      %v6759 = vpop.f32.mrf.mxu0
      %6760 = vmatprep.mubr.f32.mxu0 0.0
      %6761 = vmatmul.mubr.f32.gmra.mxu0 %v6071
      %v6762 = vpop.f32.mrf.mxu0
      %v6763 = vadd.f32 %v6658, %v6762
      %v6764 = vpop.f32.mrf.mxu0
      %6765 = vmatprep.mubr.f32.mxu0 0.0
      %6766 = vmatmul.mubr.f32.gmra.mxu0 %v6074
      %v6767 = vpop.f32.mrf.mxu0
      %v6768 = vadd.f32 %v6663, %v6767
      %v6769 = vpop.f32.mrf.mxu0
      %6770 = vmatprep.mubr.f32.mxu0 0.0
      %6771 = vmatmul.mubr.f32.gmra.mxu0 %v6091
      %v6772 = vpop.f32.mrf.mxu0
      %v6773 = vadd.f32 %v6668, %v6772
      %v6774 = vpop.f32.mrf.mxu0
      %6775 = vmatprep.mubr.f32.mxu0 0.0
      %6776 = vmatmul.mubr.f32.gmra.mxu0 %v6101
      %v6777 = vpop.f32.mrf.mxu0
      %v6778 = vadd.f32 %v6673, %v6777
      %v6779 = vpop.f32.mrf.mxu0
      %6780 = vdwg.mxu0
      %v6781 = vmax.f32 %v6743, 0.0
      %v6782 = vmax.f32 %v6748, 0.0
      %v6783 = vmax.f32 %v6753, 0.0
      %v6784 = vmax.f32 %v6758, 0.0
      %v6785 = vmax.f32 %v6763, 0.0
      %v6786 = vmax.f32 %v6768, 0.0
      %v6787 = vmax.f32 %v6773, 0.0
      %v6788 = vmax.f32 %v6778, 0.0
      %6789 = vst.msk [vmem:[%s255 + $0x1] sm:$0xff] %vm1090, %v6781
      %6790 = vst.msk [vmem:[%s255 + $0x11] sm:$0xff] %vm1090, %v6782
      %6791 = vst.msk [vmem:[%s255 + $0x21] sm:$0xff] %vm1090, %v6783
      %6792 = vst.msk [vmem:[%s255 + $0x31] sm:$0xff] %vm1090, %v6784
      %6793 = vst.msk [vmem:[%s255 + $0x41] sm:$0xff] %vm1090, %v6785
      %6794 = vst.msk [vmem:[%s255 + $0x51] sm:$0xff] %vm1090, %v6786
      %6795 = vst.msk [vmem:[%s255 + $0x61] sm:$0xff] %vm1090, %v6787
      %6796 = vst.msk [vmem:[%s255 + $0x71] sm:$0xff] %vm1090, %v6788
      %v6797 = vld [vmem:[#allocation2] sm:$0xff]
      %v6798 = vld [vmem:[#allocation2 + $0x8] sm:$0x3]
      %v6799 = vld [vmem:[#allocation2 + $0x10] sm:$0xff]
      %v6800 = vld [vmem:[#allocation2 + $0x18] sm:$0x3]
      %v6801 = vld [vmem:[#allocation2 + $0x20] sm:$0xff]
      %v6802 = vld [vmem:[#allocation2 + $0x28] sm:$0x3]
      %v6803 = vld [vmem:[#allocation2 + $0x30] sm:$0xff]
      %v6804 = vld [vmem:[#allocation2 + $0x38] sm:$0x3]
      %v6805 = vld [vmem:[#allocation2 + $0x40] sm:$0xff]
      %v6806 = vld [vmem:[#allocation2 + $0x48] sm:$0x3]
      %v6807 = vld [vmem:[#allocation2 + $0x50] sm:$0xff]
      %v6808 = vld [vmem:[#allocation2 + $0x58] sm:$0x3]
      %v6809 = vld [vmem:[#allocation2 + $0x60] sm:$0xff]
      %v6810 = vld [vmem:[#allocation2 + $0x68] sm:$0x3]
      %v6811 = vld [vmem:[#allocation2 + $0x70] sm:$0xff]
      %v6812 = vld [vmem:[#allocation2 + $0x78] sm:$0x3]
      %v6813 = vld [vmem:[#allocation2 + $0x80] sm:$0xff]
      %v6814 = vld [vmem:[#allocation2 + $0x88] sm:$0x3]
      %v6815 = vld [vmem:[#allocation2 + $0x90] sm:$0xff]
      %v6816 = vld [vmem:[#allocation2 + $0x98] sm:$0x3]
      %v6833 = vrot.slane %v6797, 1
      %v6834 = vrot.slane %v6798, 1
      %v6835 = vsel %vm300, %v6833, %v6834
      %v6836 = vrot.slane %v6799, 1
      %v6837 = vrot.slane %v6800, 1
      %v6838 = vsel %vm300, %v6836, %v6837
      %v6839 = vrot.slane %v6801, 1
      %v6840 = vrot.slane %v6802, 1
      %v6841 = vsel %vm300, %v6839, %v6840
      %v6842 = vrot.slane %v6803, 1
      %v6843 = vrot.slane %v6804, 1
      %v6844 = vsel %vm300, %v6842, %v6843
      %v6845 = vrot.slane %v6805, 1
      %v6846 = vrot.slane %v6806, 1
      %v6847 = vsel %vm300, %v6845, %v6846
      %v6848 = vrot.slane %v6807, 1
      %v6849 = vrot.slane %v6808, 1
      %v6850 = vsel %vm300, %v6848, %v6849
      %v6851 = vrot.slane %v6809, 1
      %v6852 = vrot.slane %v6810, 1
      %v6853 = vsel %vm300, %v6851, %v6852
      %v6854 = vrot.slane %v6811, 1
      %v6855 = vrot.slane %v6812, 1
      %v6856 = vsel %vm300, %v6854, %v6855
      %v6865 = vrot.slane %v6797, 2
      %v6866 = vrot.slane %v6798, 2
      %v6867 = vsel %vm333, %v6865, %v6866
      %v6868 = vrot.slane %v6799, 2
      %v6869 = vrot.slane %v6800, 2
      %v6870 = vsel %vm333, %v6868, %v6869
      %v6871 = vrot.slane %v6801, 2
      %v6872 = vrot.slane %v6802, 2
      %v6873 = vsel %vm333, %v6871, %v6872
      %v6874 = vrot.slane %v6803, 2
      %v6875 = vrot.slane %v6804, 2
      %v6876 = vsel %vm333, %v6874, %v6875
      %v6877 = vrot.slane %v6805, 2
      %v6878 = vrot.slane %v6806, 2
      %v6879 = vsel %vm333, %v6877, %v6878
      %v6880 = vrot.slane %v6807, 2
      %v6881 = vrot.slane %v6808, 2
      %v6882 = vsel %vm333, %v6880, %v6881
      %v6883 = vrot.slane %v6809, 2
      %v6884 = vrot.slane %v6810, 2
      %v6885 = vsel %vm333, %v6883, %v6884
      %v6886 = vrot.slane %v6811, 2
      %v6887 = vrot.slane %v6812, 2
      %v6888 = vsel %vm333, %v6886, %v6887
      %v6899 = vrot.slane %v6813, 1
      %v6900 = vrot.slane %v6814, 1
      %v6901 = vsel %vm300, %v6899, %v6900
      %v6903 = vrot.slane %v6813, 2
      %v6904 = vrot.slane %v6814, 2
      %v6905 = vsel %vm333, %v6903, %v6904
      %v6909 = vrot.slane %v6815, 1
      %v6910 = vrot.slane %v6816, 1
      %v6911 = vsel %vm300, %v6909, %v6910
      %v6913 = vrot.slane %v6815, 2
      %v6914 = vrot.slane %v6816, 2
      %v6915 = vsel %vm333, %v6913, %v6914
      %s6917 = scalar_lea.vmem %s1, 9216
      %v6918 = vld [vmem:[%s6917] sm:$0xff]
      %v6919 = vld [vmem:[%s6917 + $0x8] sm:$0xff]
      %v6920 = vld [vmem:[%s6917 + $0x10] sm:$0xff]
      %v6921 = vld [vmem:[%s6917 + $0x18] sm:$0xff]
      %v6922 = vld [vmem:[%s6917 + $0x20] sm:$0xff]
      %v6923 = vld [vmem:[%s6917 + $0x28] sm:$0xff]
      %v6924 = vld [vmem:[%s6917 + $0x30] sm:$0xff]
      %v6925 = vld [vmem:[%s6917 + $0x38] sm:$0xff]
      %v6926 = vld [vmem:[%s6917 + $0x40] sm:$0xff]
      %v6927 = vld [vmem:[%s6917 + $0x48] sm:$0xff]
      %v6928 = vld [vmem:[%s6917 + $0x50] sm:$0xff]
      %v6929 = vld [vmem:[%s6917 + $0x58] sm:$0xff]
      %v6930 = vld [vmem:[%s6917 + $0x60] sm:$0xff]
      %v6931 = vld [vmem:[%s6917 + $0x68] sm:$0xff]
      %v6932 = vld [vmem:[%s6917 + $0x70] sm:$0xff]
      %v6933 = vld [vmem:[%s6917 + $0x78] sm:$0xff]
      %v6934 = vld [vmem:[%s6917 + $0x80] sm:$0xff]
      %v6935 = vld [vmem:[%s6917 + $0x88] sm:$0xff]
      %v6936 = vld [vmem:[%s6917 + $0x90] sm:$0xff]
      %v6937 = vld [vmem:[%s6917 + $0x98] sm:$0xff]
      %v6938 = vld [vmem:[%s6917 + $0xa0] sm:$0xff]
      %v6939 = vld [vmem:[%s6917 + $0xa8] sm:$0xff]
      %v6940 = vld [vmem:[%s6917 + $0xb0] sm:$0xff]
      %v6941 = vld [vmem:[%s6917 + $0xb8] sm:$0xff]
      %v6942 = vld [vmem:[%s6917 + $0xc0] sm:$0xff]
      %v6943 = vld [vmem:[%s6917 + $0xc8] sm:$0xff]
      %v6944 = vld [vmem:[%s6917 + $0xd0] sm:$0xff]
      %v6945 = vld [vmem:[%s6917 + $0xd8] sm:$0xff]
      %v6946 = vld [vmem:[%s6917 + $0xe0] sm:$0xff]
      %v6947 = vld [vmem:[%s6917 + $0xe8] sm:$0xff]
      %v6948 = vld [vmem:[%s6917 + $0xf0] sm:$0xff]
      %v6949 = vld [vmem:[%s6917 + $0xf8] sm:$0xff]
      %v6950 = vld [vmem:[%s6917 + $0x100] sm:$0xff]
      %v6951 = vld [vmem:[%s6917 + $0x108] sm:$0xff]
      %v6952 = vld [vmem:[%s6917 + $0x110] sm:$0xff]
      %v6953 = vld [vmem:[%s6917 + $0x118] sm:$0xff]
      %v6954 = vld [vmem:[%s6917 + $0x120] sm:$0xff]
      %v6955 = vld [vmem:[%s6917 + $0x128] sm:$0xff]
      %v6956 = vld [vmem:[%s6917 + $0x130] sm:$0xff]
      %v6957 = vld [vmem:[%s6917 + $0x138] sm:$0xff]
      %v6958 = vld [vmem:[%s6917 + $0x140] sm:$0xff]
      %v6959 = vld [vmem:[%s6917 + $0x148] sm:$0xff]
      %v6960 = vld [vmem:[%s6917 + $0x150] sm:$0xff]
      %v6961 = vld [vmem:[%s6917 + $0x158] sm:$0xff]
      %v6962 = vld [vmem:[%s6917 + $0x160] sm:$0xff]
      %v6963 = vld [vmem:[%s6917 + $0x168] sm:$0xff]
      %v6964 = vld [vmem:[%s6917 + $0x170] sm:$0xff]
      %v6965 = vld [vmem:[%s6917 + $0x178] sm:$0xff]
      %v6966 = vld [vmem:[%s6917 + $0x180] sm:$0xff]
      %v6967 = vld [vmem:[%s6917 + $0x188] sm:$0xff]
      %v6968 = vld [vmem:[%s6917 + $0x190] sm:$0xff]
      %v6969 = vld [vmem:[%s6917 + $0x198] sm:$0xff]
      %v6970 = vld [vmem:[%s6917 + $0x1a0] sm:$0xff]
      %v6971 = vld [vmem:[%s6917 + $0x1a8] sm:$0xff]
      %v6972 = vld [vmem:[%s6917 + $0x1b0] sm:$0xff]
      %v6973 = vld [vmem:[%s6917 + $0x1b8] sm:$0xff]
      %v6974 = vld [vmem:[%s6917 + $0x1c0] sm:$0xff]
      %v6975 = vld [vmem:[%s6917 + $0x1c8] sm:$0xff]
      %v6976 = vld [vmem:[%s6917 + $0x1d0] sm:$0xff]
      %v6977 = vld [vmem:[%s6917 + $0x1d8] sm:$0xff]
      %v6978 = vld [vmem:[%s6917 + $0x1e0] sm:$0xff]
      %v6979 = vld [vmem:[%s6917 + $0x1e8] sm:$0xff]
      %v6980 = vld [vmem:[%s6917 + $0x1f0] sm:$0xff]
      %v6981 = vld [vmem:[%s6917 + $0x1f8] sm:$0xff]
      %v6982 = vld [vmem:[%s6917 + $0x200] sm:$0xff]
      %v6983 = vld [vmem:[%s6917 + $0x208] sm:$0xff]
      %v6984 = vld [vmem:[%s6917 + $0x210] sm:$0xff]
      %v6985 = vld [vmem:[%s6917 + $0x218] sm:$0xff]
      %v6986 = vld [vmem:[%s6917 + $0x220] sm:$0xff]
      %v6987 = vld [vmem:[%s6917 + $0x228] sm:$0xff]
      %v6988 = vld [vmem:[%s6917 + $0x230] sm:$0xff]
      %v6989 = vld [vmem:[%s6917 + $0x238] sm:$0xff]
      %v6990 = vld [vmem:[%s6917 + $0x240] sm:$0xff]
      %v6991 = vld [vmem:[%s6917 + $0x248] sm:$0xff]
      %v6992 = vld [vmem:[%s6917 + $0x250] sm:$0xff]
      %v6993 = vld [vmem:[%s6917 + $0x258] sm:$0xff]
      %v6994 = vld [vmem:[%s6917 + $0x260] sm:$0xff]
      %v6995 = vld [vmem:[%s6917 + $0x268] sm:$0xff]
      %v6996 = vld [vmem:[%s6917 + $0x270] sm:$0xff]
      %v6997 = vld [vmem:[%s6917 + $0x278] sm:$0xff]
      %v6998 = vld [vmem:[%s6917 + $0x280] sm:$0xff]
      %v6999 = vld [vmem:[%s6917 + $0x288] sm:$0xff]
      %v7000 = vld [vmem:[%s6917 + $0x290] sm:$0xff]
      %v7001 = vld [vmem:[%s6917 + $0x298] sm:$0xff]
      %v7002 = vld [vmem:[%s6917 + $0x2a0] sm:$0xff]
      %v7003 = vld [vmem:[%s6917 + $0x2a8] sm:$0xff]
      %v7004 = vld [vmem:[%s6917 + $0x2b0] sm:$0xff]
      %v7005 = vld [vmem:[%s6917 + $0x2b8] sm:$0xff]
      %v7006 = vld [vmem:[%s6917 + $0x2c0] sm:$0xff]
      %v7007 = vld [vmem:[%s6917 + $0x2c8] sm:$0xff]
      %v7008 = vld [vmem:[%s6917 + $0x2d0] sm:$0xff]
      %v7009 = vld [vmem:[%s6917 + $0x2d8] sm:$0xff]
      %v7010 = vld [vmem:[%s6917 + $0x2e0] sm:$0xff]
      %v7011 = vld [vmem:[%s6917 + $0x2e8] sm:$0xff]
      %v7012 = vld [vmem:[%s6917 + $0x2f0] sm:$0xff]
      %v7013 = vld [vmem:[%s6917 + $0x2f8] sm:$0xff]
      %v7014 = vld [vmem:[%s6917 + $0x300] sm:$0xff]
      %v7015 = vld [vmem:[%s6917 + $0x308] sm:$0xff]
      %v7016 = vld [vmem:[%s6917 + $0x310] sm:$0xff]
      %v7017 = vld [vmem:[%s6917 + $0x318] sm:$0xff]
      %v7018 = vld [vmem:[%s6917 + $0x320] sm:$0xff]
      %v7019 = vld [vmem:[%s6917 + $0x328] sm:$0xff]
      %v7020 = vld [vmem:[%s6917 + $0x330] sm:$0xff]
      %v7021 = vld [vmem:[%s6917 + $0x338] sm:$0xff]
      %v7022 = vld [vmem:[%s6917 + $0x340] sm:$0xff]
      %v7023 = vld [vmem:[%s6917 + $0x348] sm:$0xff]
      %v7024 = vld [vmem:[%s6917 + $0x350] sm:$0xff]
      %v7025 = vld [vmem:[%s6917 + $0x358] sm:$0xff]
      %v7026 = vld [vmem:[%s6917 + $0x360] sm:$0xff]
      %v7027 = vld [vmem:[%s6917 + $0x368] sm:$0xff]
      %v7028 = vld [vmem:[%s6917 + $0x370] sm:$0xff]
      %v7029 = vld [vmem:[%s6917 + $0x378] sm:$0xff]
      %v7030 = vld [vmem:[%s6917 + $0x380] sm:$0xff]
      %v7031 = vld [vmem:[%s6917 + $0x388] sm:$0xff]
      %v7032 = vld [vmem:[%s6917 + $0x390] sm:$0xff]
      %v7033 = vld [vmem:[%s6917 + $0x398] sm:$0xff]
      %v7034 = vld [vmem:[%s6917 + $0x3a0] sm:$0xff]
      %v7035 = vld [vmem:[%s6917 + $0x3a8] sm:$0xff]
      %v7036 = vld [vmem:[%s6917 + $0x3b0] sm:$0xff]
      %v7037 = vld [vmem:[%s6917 + $0x3b8] sm:$0xff]
      %v7038 = vld [vmem:[%s6917 + $0x3c0] sm:$0xff]
      %v7039 = vld [vmem:[%s6917 + $0x3c8] sm:$0xff]
      %v7040 = vld [vmem:[%s6917 + $0x3d0] sm:$0xff]
      %v7041 = vld [vmem:[%s6917 + $0x3d8] sm:$0xff]
      %v7042 = vld [vmem:[%s6917 + $0x3e0] sm:$0xff]
      %v7043 = vld [vmem:[%s6917 + $0x3e8] sm:$0xff]
      %v7044 = vld [vmem:[%s6917 + $0x3f0] sm:$0xff]
      %v7045 = vld [vmem:[%s6917 + $0x3f8] sm:$0xff]
      %v7046 = vld [vmem:[%s6917 + $0x400] sm:$0xff]
      %v7047 = vld [vmem:[%s6917 + $0x408] sm:$0xff]
      %v7048 = vld [vmem:[%s6917 + $0x410] sm:$0xff]
      %v7049 = vld [vmem:[%s6917 + $0x418] sm:$0xff]
      %v7050 = vld [vmem:[%s6917 + $0x420] sm:$0xff]
      %v7051 = vld [vmem:[%s6917 + $0x428] sm:$0xff]
      %v7052 = vld [vmem:[%s6917 + $0x430] sm:$0xff]
      %v7053 = vld [vmem:[%s6917 + $0x438] sm:$0xff]
      %v7054 = vld [vmem:[%s6917 + $0x440] sm:$0xff]
      %v7055 = vld [vmem:[%s6917 + $0x448] sm:$0xff]
      %v7056 = vld [vmem:[%s6917 + $0x450] sm:$0xff]
      %v7057 = vld [vmem:[%s6917 + $0x458] sm:$0xff]
      %v7058 = vld [vmem:[%s6917 + $0x460] sm:$0xff]
      %v7059 = vld [vmem:[%s6917 + $0x468] sm:$0xff]
      %v7060 = vld [vmem:[%s6917 + $0x470] sm:$0xff]
      %v7061 = vld [vmem:[%s6917 + $0x478] sm:$0xff]
      %s7062 = scalar_lea.vmem %s2, 8
      %v7063 = vld [vmem:[%s7062] sm:$0x1]
      %v7065 = vlaneseq
      %v7066 = vshrl.u32 %v7065, 7
      %v7067 = vsub.s32 0, %v7066
      %v7068 = vrot.slane %v7063, %v7067
      %7070 = vmatprep.subr.mxu0 0.0
      %7071 = vmatpush1.msra.mxu0 %v6933
      %7072 = vmatprep.subr.mxu0 0.0
      %7073 = vmatpush1.msra.mxu0 %v6932
      %7074 = vmatprep.subr.mxu0 0.0
      %7075 = vmatpush1.msra.mxu0 %v6931
      %7076 = vmatprep.subr.mxu0 0.0
      %7077 = vmatpush1.msra.mxu0 %v6930
      %7078 = vmatprep.subr.mxu0 0.0
      %7079 = vmatpush1.msra.mxu0 %v6929
      %7080 = vmatprep.subr.mxu0 0.0
      %7081 = vmatpush1.msra.mxu0 %v6928
      %7082 = vmatprep.subr.mxu0 0.0
      %7083 = vmatpush1.msra.mxu0 %v6927
      %7084 = vmatprep.subr.mxu0 0.0
      %7085 = vmatpush1.msra.mxu0 %v6926
      %7086 = vmatprep.subr.mxu0 0.0
      %7087 = vmatpush1.msra.mxu0 %v6925
      %7088 = vmatprep.subr.mxu0 0.0
      %7089 = vmatpush1.msra.mxu0 %v6924
      %7090 = vmatprep.subr.mxu0 0.0
      %7091 = vmatpush1.msra.mxu0 %v6923
      %7092 = vmatprep.subr.mxu0 0.0
      %7093 = vmatpush1.msra.mxu0 %v6922
      %7094 = vmatprep.subr.mxu0 0.0
      %7095 = vmatpush1.msra.mxu0 %v6921
      %7096 = vmatprep.subr.mxu0 0.0
      %7097 = vmatpush1.msra.mxu0 %v6920
      %7098 = vmatprep.subr.mxu0 0.0
      %7099 = vmatpush1.msra.mxu0 %v6919
      %7100 = vmatprep.subr.mxu0 0.0
      %7101 = vmatpush1.msra.mxu0 %v6918
      %7102 = vmatprep.subr.mxu0 0.0
      %7103 = vmatpush2.msra.mxu0 %v6949
      %7104 = vmatprep.subr.mxu0 0.0
      %7105 = vmatpush2.msra.mxu0 %v6948
      %7106 = vmatprep.subr.mxu0 0.0
      %7107 = vmatpush2.msra.mxu0 %v6947
      %7108 = vmatprep.subr.mxu0 0.0
      %7109 = vmatpush2.msra.mxu0 %v6946
      %7110 = vmatprep.subr.mxu0 0.0
      %7111 = vmatpush2.msra.mxu0 %v6945
      %7112 = vmatprep.subr.mxu0 0.0
      %7113 = vmatpush2.msra.mxu0 %v6944
      %7114 = vmatprep.subr.mxu0 0.0
      %7115 = vmatpush2.msra.mxu0 %v6943
      %7116 = vmatprep.subr.mxu0 0.0
      %7117 = vmatpush2.msra.mxu0 %v6942
      %7118 = vmatprep.subr.mxu0 0.0
      %7119 = vmatpush2.msra.mxu0 %v6941
      %7120 = vmatprep.subr.mxu0 0.0
      %7121 = vmatpush2.msra.mxu0 %v6940
      %7122 = vmatprep.subr.mxu0 0.0
      %7123 = vmatpush2.msra.mxu0 %v6939
      %7124 = vmatprep.subr.mxu0 0.0
      %7125 = vmatpush2.msra.mxu0 %v6938
      %7126 = vmatprep.subr.mxu0 0.0
      %7127 = vmatpush2.msra.mxu0 %v6937
      %7128 = vmatprep.subr.mxu0 0.0
      %7129 = vmatpush2.msra.mxu0 %v6936
      %7130 = vmatprep.subr.mxu0 0.0
      %7131 = vmatpush2.msra.mxu0 %v6935
      %7132 = vmatprep.subr.mxu0 0.0
      %7133 = vmatpush2.msra.mxu0 %v6934
      %7134 = vmatprep.mubr.f32.mxu0 %v6835
      %7135 = vmatmul.mubr.f32.gmra.mxu0 %v6797
      %v7136 = vpop.f32.mrf.mxu0
      %v7137 = vadd.f32 %v7068, %v7136
      %v7138 = vpop.f32.mrf.mxu0
      %7139 = vmatprep.mubr.f32.mxu0 %v6838
      %7140 = vmatmul.mubr.f32.gmra.mxu0 %v6799
      %v7141 = vpop.f32.mrf.mxu0
      %v7142 = vadd.f32 %v7068, %v7141
      %v7143 = vpop.f32.mrf.mxu0
      %7144 = vmatprep.mubr.f32.mxu0 %v6841
      %7145 = vmatmul.mubr.f32.gmra.mxu0 %v6801
      %v7146 = vpop.f32.mrf.mxu0
      %v7147 = vadd.f32 %v7068, %v7146
      %v7148 = vpop.f32.mrf.mxu0
      %7149 = vmatprep.mubr.f32.mxu0 %v6844
      %7150 = vmatmul.mubr.f32.gmra.mxu0 %v6803
      %v7151 = vpop.f32.mrf.mxu0
      %v7152 = vadd.f32 %v7068, %v7151
      %v7153 = vpop.f32.mrf.mxu0
      %7154 = vmatprep.mubr.f32.mxu0 %v6847
      %7155 = vmatmul.mubr.f32.gmra.mxu0 %v6805
      %v7156 = vpop.f32.mrf.mxu0
      %v7157 = vadd.f32 %v7068, %v7156
      %v7158 = vpop.f32.mrf.mxu0
      %7159 = vmatprep.mubr.f32.mxu0 %v6850
      %7160 = vmatmul.mubr.f32.gmra.mxu0 %v6807
      %v7161 = vpop.f32.mrf.mxu0
      %v7162 = vadd.f32 %v7068, %v7161
      %v7163 = vpop.f32.mrf.mxu0
      %7164 = vmatprep.mubr.f32.mxu0 %v6853
      %7165 = vmatmul.mubr.f32.gmra.mxu0 %v6809
      %v7166 = vpop.f32.mrf.mxu0
      %v7167 = vadd.f32 %v7068, %v7166
      %v7168 = vpop.f32.mrf.mxu0
      %7169 = vmatprep.mubr.f32.mxu0 %v6856
      %7170 = vmatmul.mubr.f32.gmra.mxu0 %v6811
      %v7171 = vpop.f32.mrf.mxu0
      %v7172 = vadd.f32 %v7068, %v7171
      %v7173 = vpop.f32.mrf.mxu0
      %7174 = vdwg.mxu0
      %7175 = vmatprep.subr.mxu0 0.0
      %7176 = vmatpush1.msra.mxu0 %v6965
      %7177 = vmatprep.subr.mxu0 0.0
      %7178 = vmatpush1.msra.mxu0 %v6964
      %7179 = vmatprep.subr.mxu0 0.0
      %7180 = vmatpush1.msra.mxu0 %v6963
      %7181 = vmatprep.subr.mxu0 0.0
      %7182 = vmatpush1.msra.mxu0 %v6962
      %7183 = vmatprep.subr.mxu0 0.0
      %7184 = vmatpush1.msra.mxu0 %v6961
      %7185 = vmatprep.subr.mxu0 0.0
      %7186 = vmatpush1.msra.mxu0 %v6960
      %7187 = vmatprep.subr.mxu0 0.0
      %7188 = vmatpush1.msra.mxu0 %v6959
      %7189 = vmatprep.subr.mxu0 0.0
      %7190 = vmatpush1.msra.mxu0 %v6958
      %7191 = vmatprep.subr.mxu0 0.0
      %7192 = vmatpush1.msra.mxu0 %v6957
      %7193 = vmatprep.subr.mxu0 0.0
      %7194 = vmatpush1.msra.mxu0 %v6956
      %7195 = vmatprep.subr.mxu0 0.0
      %7196 = vmatpush1.msra.mxu0 %v6955
      %7197 = vmatprep.subr.mxu0 0.0
      %7198 = vmatpush1.msra.mxu0 %v6954
      %7199 = vmatprep.subr.mxu0 0.0
      %7200 = vmatpush1.msra.mxu0 %v6953
      %7201 = vmatprep.subr.mxu0 0.0
      %7202 = vmatpush1.msra.mxu0 %v6952
      %7203 = vmatprep.subr.mxu0 0.0
      %7204 = vmatpush1.msra.mxu0 %v6951
      %7205 = vmatprep.subr.mxu0 0.0
      %7206 = vmatpush1.msra.mxu0 %v6950
      %7207 = vmatprep.subr.mxu0 0.0
      %7208 = vmatpush2.msra.mxu0 %v6981
      %7209 = vmatprep.subr.mxu0 0.0
      %7210 = vmatpush2.msra.mxu0 %v6980
      %7211 = vmatprep.subr.mxu0 0.0
      %7212 = vmatpush2.msra.mxu0 %v6979
      %7213 = vmatprep.subr.mxu0 0.0
      %7214 = vmatpush2.msra.mxu0 %v6978
      %7215 = vmatprep.subr.mxu0 0.0
      %7216 = vmatpush2.msra.mxu0 %v6977
      %7217 = vmatprep.subr.mxu0 0.0
      %7218 = vmatpush2.msra.mxu0 %v6976
      %7219 = vmatprep.subr.mxu0 0.0
      %7220 = vmatpush2.msra.mxu0 %v6975
      %7221 = vmatprep.subr.mxu0 0.0
      %7222 = vmatpush2.msra.mxu0 %v6974
      %7223 = vmatprep.subr.mxu0 0.0
      %7224 = vmatpush2.msra.mxu0 %v6973
      %7225 = vmatprep.subr.mxu0 0.0
      %7226 = vmatpush2.msra.mxu0 %v6972
      %7227 = vmatprep.subr.mxu0 0.0
      %7228 = vmatpush2.msra.mxu0 %v6971
      %7229 = vmatprep.subr.mxu0 0.0
      %7230 = vmatpush2.msra.mxu0 %v6970
      %7231 = vmatprep.subr.mxu0 0.0
      %7232 = vmatpush2.msra.mxu0 %v6969
      %7233 = vmatprep.subr.mxu0 0.0
      %7234 = vmatpush2.msra.mxu0 %v6968
      %7235 = vmatprep.subr.mxu0 0.0
      %7236 = vmatpush2.msra.mxu0 %v6967
      %7237 = vmatprep.subr.mxu0 0.0
      %7238 = vmatpush2.msra.mxu0 %v6966
      %7239 = vmatprep.mubr.f32.mxu0 %v6799
      %7240 = vmatmul.mubr.f32.gmra.mxu0 %v6867
      %v7241 = vpop.f32.mrf.mxu0
      %v7242 = vadd.f32 %v7137, %v7241
      %v7243 = vpop.f32.mrf.mxu0
      %7244 = vmatprep.mubr.f32.mxu0 %v6801
      %7245 = vmatmul.mubr.f32.gmra.mxu0 %v6870
      %v7246 = vpop.f32.mrf.mxu0
      %v7247 = vadd.f32 %v7142, %v7246
      %v7248 = vpop.f32.mrf.mxu0
      %7249 = vmatprep.mubr.f32.mxu0 %v6803
      %7250 = vmatmul.mubr.f32.gmra.mxu0 %v6873
      %v7251 = vpop.f32.mrf.mxu0
      %v7252 = vadd.f32 %v7147, %v7251
      %v7253 = vpop.f32.mrf.mxu0
      %7254 = vmatprep.mubr.f32.mxu0 %v6805
      %7255 = vmatmul.mubr.f32.gmra.mxu0 %v6876
      %v7256 = vpop.f32.mrf.mxu0
      %v7257 = vadd.f32 %v7152, %v7256
      %v7258 = vpop.f32.mrf.mxu0
      %7259 = vmatprep.mubr.f32.mxu0 %v6807
      %7260 = vmatmul.mubr.f32.gmra.mxu0 %v6879
      %v7261 = vpop.f32.mrf.mxu0
      %v7262 = vadd.f32 %v7157, %v7261
      %v7263 = vpop.f32.mrf.mxu0
      %7264 = vmatprep.mubr.f32.mxu0 %v6809
      %7265 = vmatmul.mubr.f32.gmra.mxu0 %v6882
      %v7266 = vpop.f32.mrf.mxu0
      %v7267 = vadd.f32 %v7162, %v7266
      %v7268 = vpop.f32.mrf.mxu0
      %7269 = vmatprep.mubr.f32.mxu0 %v6811
      %7270 = vmatmul.mubr.f32.gmra.mxu0 %v6885
      %v7271 = vpop.f32.mrf.mxu0
      %v7272 = vadd.f32 %v7167, %v7271
      %v7273 = vpop.f32.mrf.mxu0
      %7274 = vmatprep.mubr.f32.mxu0 %v6813
      %7275 = vmatmul.mubr.f32.gmra.mxu0 %v6888
      %v7276 = vpop.f32.mrf.mxu0
      %v7277 = vadd.f32 %v7172, %v7276
      %v7278 = vpop.f32.mrf.mxu0
      %7279 = vdwg.mxu0
      %7280 = vmatprep.subr.mxu0 0.0
      %7281 = vmatpush1.msra.mxu0 %v6997
      %7282 = vmatprep.subr.mxu0 0.0
      %7283 = vmatpush1.msra.mxu0 %v6996
      %7284 = vmatprep.subr.mxu0 0.0
      %7285 = vmatpush1.msra.mxu0 %v6995
      %7286 = vmatprep.subr.mxu0 0.0
      %7287 = vmatpush1.msra.mxu0 %v6994
      %7288 = vmatprep.subr.mxu0 0.0
      %7289 = vmatpush1.msra.mxu0 %v6993
      %7290 = vmatprep.subr.mxu0 0.0
      %7291 = vmatpush1.msra.mxu0 %v6992
      %7292 = vmatprep.subr.mxu0 0.0
      %7293 = vmatpush1.msra.mxu0 %v6991
      %7294 = vmatprep.subr.mxu0 0.0
      %7295 = vmatpush1.msra.mxu0 %v6990
      %7296 = vmatprep.subr.mxu0 0.0
      %7297 = vmatpush1.msra.mxu0 %v6989
      %7298 = vmatprep.subr.mxu0 0.0
      %7299 = vmatpush1.msra.mxu0 %v6988
      %7300 = vmatprep.subr.mxu0 0.0
      %7301 = vmatpush1.msra.mxu0 %v6987
      %7302 = vmatprep.subr.mxu0 0.0
      %7303 = vmatpush1.msra.mxu0 %v6986
      %7304 = vmatprep.subr.mxu0 0.0
      %7305 = vmatpush1.msra.mxu0 %v6985
      %7306 = vmatprep.subr.mxu0 0.0
      %7307 = vmatpush1.msra.mxu0 %v6984
      %7308 = vmatprep.subr.mxu0 0.0
      %7309 = vmatpush1.msra.mxu0 %v6983
      %7310 = vmatprep.subr.mxu0 0.0
      %7311 = vmatpush1.msra.mxu0 %v6982
      %7312 = vmatprep.subr.mxu0 0.0
      %7313 = vmatpush2.msra.mxu0 %v7013
      %7314 = vmatprep.subr.mxu0 0.0
      %7315 = vmatpush2.msra.mxu0 %v7012
      %7316 = vmatprep.subr.mxu0 0.0
      %7317 = vmatpush2.msra.mxu0 %v7011
      %7318 = vmatprep.subr.mxu0 0.0
      %7319 = vmatpush2.msra.mxu0 %v7010
      %7320 = vmatprep.subr.mxu0 0.0
      %7321 = vmatpush2.msra.mxu0 %v7009
      %7322 = vmatprep.subr.mxu0 0.0
      %7323 = vmatpush2.msra.mxu0 %v7008
      %7324 = vmatprep.subr.mxu0 0.0
      %7325 = vmatpush2.msra.mxu0 %v7007
      %7326 = vmatprep.subr.mxu0 0.0
      %7327 = vmatpush2.msra.mxu0 %v7006
      %7328 = vmatprep.subr.mxu0 0.0
      %7329 = vmatpush2.msra.mxu0 %v7005
      %7330 = vmatprep.subr.mxu0 0.0
      %7331 = vmatpush2.msra.mxu0 %v7004
      %7332 = vmatprep.subr.mxu0 0.0
      %7333 = vmatpush2.msra.mxu0 %v7003
      %7334 = vmatprep.subr.mxu0 0.0
      %7335 = vmatpush2.msra.mxu0 %v7002
      %7336 = vmatprep.subr.mxu0 0.0
      %7337 = vmatpush2.msra.mxu0 %v7001
      %7338 = vmatprep.subr.mxu0 0.0
      %7339 = vmatpush2.msra.mxu0 %v7000
      %7340 = vmatprep.subr.mxu0 0.0
      %7341 = vmatpush2.msra.mxu0 %v6999
      %7342 = vmatprep.subr.mxu0 0.0
      %7343 = vmatpush2.msra.mxu0 %v6998
      %7344 = vmatprep.mubr.f32.mxu0 %v6870
      %7345 = vmatmul.mubr.f32.gmra.mxu0 %v6838
      %v7346 = vpop.f32.mrf.mxu0
      %v7347 = vadd.f32 %v7242, %v7346
      %v7348 = vpop.f32.mrf.mxu0
      %7349 = vmatprep.mubr.f32.mxu0 %v6873
      %7350 = vmatmul.mubr.f32.gmra.mxu0 %v6841
      %v7351 = vpop.f32.mrf.mxu0
      %v7352 = vadd.f32 %v7247, %v7351
      %v7353 = vpop.f32.mrf.mxu0
      %7354 = vmatprep.mubr.f32.mxu0 %v6876
      %7355 = vmatmul.mubr.f32.gmra.mxu0 %v6844
      %v7356 = vpop.f32.mrf.mxu0
      %v7357 = vadd.f32 %v7252, %v7356
      %v7358 = vpop.f32.mrf.mxu0
      %7359 = vmatprep.mubr.f32.mxu0 %v6879
      %7360 = vmatmul.mubr.f32.gmra.mxu0 %v6847
      %v7361 = vpop.f32.mrf.mxu0
      %v7362 = vadd.f32 %v7257, %v7361
      %v7363 = vpop.f32.mrf.mxu0
      %7364 = vmatprep.mubr.f32.mxu0 %v6882
      %7365 = vmatmul.mubr.f32.gmra.mxu0 %v6850
      %v7366 = vpop.f32.mrf.mxu0
      %v7367 = vadd.f32 %v7262, %v7366
      %v7368 = vpop.f32.mrf.mxu0
      %7369 = vmatprep.mubr.f32.mxu0 %v6885
      %7370 = vmatmul.mubr.f32.gmra.mxu0 %v6853
      %v7371 = vpop.f32.mrf.mxu0
      %v7372 = vadd.f32 %v7267, %v7371
      %v7373 = vpop.f32.mrf.mxu0
      %7374 = vmatprep.mubr.f32.mxu0 %v6888
      %7375 = vmatmul.mubr.f32.gmra.mxu0 %v6856
      %v7376 = vpop.f32.mrf.mxu0
      %v7377 = vadd.f32 %v7272, %v7376
      %v7378 = vpop.f32.mrf.mxu0
      %7379 = vmatprep.mubr.f32.mxu0 %v6905
      %7380 = vmatmul.mubr.f32.gmra.mxu0 %v6901
      %v7381 = vpop.f32.mrf.mxu0
      %v7382 = vadd.f32 %v7277, %v7381
      %v7383 = vpop.f32.mrf.mxu0
      %7384 = vdwg.mxu0
      %7385 = vmatprep.subr.mxu0 0.0
      %7386 = vmatpush1.msra.mxu0 %v7029
      %7387 = vmatprep.subr.mxu0 0.0
      %7388 = vmatpush1.msra.mxu0 %v7028
      %7389 = vmatprep.subr.mxu0 0.0
      %7390 = vmatpush1.msra.mxu0 %v7027
      %7391 = vmatprep.subr.mxu0 0.0
      %7392 = vmatpush1.msra.mxu0 %v7026
      %7393 = vmatprep.subr.mxu0 0.0
      %7394 = vmatpush1.msra.mxu0 %v7025
      %7395 = vmatprep.subr.mxu0 0.0
      %7396 = vmatpush1.msra.mxu0 %v7024
      %7397 = vmatprep.subr.mxu0 0.0
      %7398 = vmatpush1.msra.mxu0 %v7023
      %7399 = vmatprep.subr.mxu0 0.0
      %7400 = vmatpush1.msra.mxu0 %v7022
      %7401 = vmatprep.subr.mxu0 0.0
      %7402 = vmatpush1.msra.mxu0 %v7021
      %7403 = vmatprep.subr.mxu0 0.0
      %7404 = vmatpush1.msra.mxu0 %v7020
      %7405 = vmatprep.subr.mxu0 0.0
      %7406 = vmatpush1.msra.mxu0 %v7019
      %7407 = vmatprep.subr.mxu0 0.0
      %7408 = vmatpush1.msra.mxu0 %v7018
      %7409 = vmatprep.subr.mxu0 0.0
      %7410 = vmatpush1.msra.mxu0 %v7017
      %7411 = vmatprep.subr.mxu0 0.0
      %7412 = vmatpush1.msra.mxu0 %v7016
      %7413 = vmatprep.subr.mxu0 0.0
      %7414 = vmatpush1.msra.mxu0 %v7015
      %7415 = vmatprep.subr.mxu0 0.0
      %7416 = vmatpush1.msra.mxu0 %v7014
      %7417 = vmatprep.subr.mxu0 0.0
      %7418 = vmatpush2.msra.mxu0 %v7045
      %7419 = vmatprep.subr.mxu0 0.0
      %7420 = vmatpush2.msra.mxu0 %v7044
      %7421 = vmatprep.subr.mxu0 0.0
      %7422 = vmatpush2.msra.mxu0 %v7043
      %7423 = vmatprep.subr.mxu0 0.0
      %7424 = vmatpush2.msra.mxu0 %v7042
      %7425 = vmatprep.subr.mxu0 0.0
      %7426 = vmatpush2.msra.mxu0 %v7041
      %7427 = vmatprep.subr.mxu0 0.0
      %7428 = vmatpush2.msra.mxu0 %v7040
      %7429 = vmatprep.subr.mxu0 0.0
      %7430 = vmatpush2.msra.mxu0 %v7039
      %7431 = vmatprep.subr.mxu0 0.0
      %7432 = vmatpush2.msra.mxu0 %v7038
      %7433 = vmatprep.subr.mxu0 0.0
      %7434 = vmatpush2.msra.mxu0 %v7037
      %7435 = vmatprep.subr.mxu0 0.0
      %7436 = vmatpush2.msra.mxu0 %v7036
      %7437 = vmatprep.subr.mxu0 0.0
      %7438 = vmatpush2.msra.mxu0 %v7035
      %7439 = vmatprep.subr.mxu0 0.0
      %7440 = vmatpush2.msra.mxu0 %v7034
      %7441 = vmatprep.subr.mxu0 0.0
      %7442 = vmatpush2.msra.mxu0 %v7033
      %7443 = vmatprep.subr.mxu0 0.0
      %7444 = vmatpush2.msra.mxu0 %v7032
      %7445 = vmatprep.subr.mxu0 0.0
      %7446 = vmatpush2.msra.mxu0 %v7031
      %7447 = vmatprep.subr.mxu0 0.0
      %7448 = vmatpush2.msra.mxu0 %v7030
      %7449 = vmatprep.mubr.f32.mxu0 %v6841
      %7450 = vmatmul.mubr.f32.gmra.mxu0 %v6801
      %v7451 = vpop.f32.mrf.mxu0
      %v7452 = vadd.f32 %v7347, %v7451
      %v7453 = vpop.f32.mrf.mxu0
      %7454 = vmatprep.mubr.f32.mxu0 %v6844
      %7455 = vmatmul.mubr.f32.gmra.mxu0 %v6803
      %v7456 = vpop.f32.mrf.mxu0
      %v7457 = vadd.f32 %v7352, %v7456
      %v7458 = vpop.f32.mrf.mxu0
      %7459 = vmatprep.mubr.f32.mxu0 %v6847
      %7460 = vmatmul.mubr.f32.gmra.mxu0 %v6805
      %v7461 = vpop.f32.mrf.mxu0
      %v7462 = vadd.f32 %v7357, %v7461
      %v7463 = vpop.f32.mrf.mxu0
      %7464 = vmatprep.mubr.f32.mxu0 %v6850
      %7465 = vmatmul.mubr.f32.gmra.mxu0 %v6807
      %v7466 = vpop.f32.mrf.mxu0
      %v7467 = vadd.f32 %v7362, %v7466
      %v7468 = vpop.f32.mrf.mxu0
      %7469 = vmatprep.mubr.f32.mxu0 %v6853
      %7470 = vmatmul.mubr.f32.gmra.mxu0 %v6809
      %v7471 = vpop.f32.mrf.mxu0
      %v7472 = vadd.f32 %v7367, %v7471
      %v7473 = vpop.f32.mrf.mxu0
      %7474 = vmatprep.mubr.f32.mxu0 %v6856
      %7475 = vmatmul.mubr.f32.gmra.mxu0 %v6811
      %v7476 = vpop.f32.mrf.mxu0
      %v7477 = vadd.f32 %v7372, %v7476
      %v7478 = vpop.f32.mrf.mxu0
      %7479 = vmatprep.mubr.f32.mxu0 %v6901
      %7480 = vmatmul.mubr.f32.gmra.mxu0 %v6813
      %v7481 = vpop.f32.mrf.mxu0
      %v7482 = vadd.f32 %v7377, %v7481
      %v7483 = vpop.f32.mrf.mxu0
      %7484 = vmatprep.mubr.f32.mxu0 %v6911
      %7485 = vmatmul.mubr.f32.gmra.mxu0 %v6815
      %v7486 = vpop.f32.mrf.mxu0
      %v7487 = vadd.f32 %v7382, %v7486
      %v7488 = vpop.f32.mrf.mxu0
      %7489 = vdwg.mxu0
      %7490 = vmatprep.subr.mxu0 0.0
      %7491 = vmatpush1.msra.mxu0 %v7061
      %7492 = vmatprep.subr.mxu0 0.0
      %7493 = vmatpush1.msra.mxu0 %v7060
      %7494 = vmatprep.subr.mxu0 0.0
      %7495 = vmatpush1.msra.mxu0 %v7059
      %7496 = vmatprep.subr.mxu0 0.0
      %7497 = vmatpush1.msra.mxu0 %v7058
      %7498 = vmatprep.subr.mxu0 0.0
      %7499 = vmatpush1.msra.mxu0 %v7057
      %7500 = vmatprep.subr.mxu0 0.0
      %7501 = vmatpush1.msra.mxu0 %v7056
      %7502 = vmatprep.subr.mxu0 0.0
      %7503 = vmatpush1.msra.mxu0 %v7055
      %7504 = vmatprep.subr.mxu0 0.0
      %7505 = vmatpush1.msra.mxu0 %v7054
      %7506 = vmatprep.subr.mxu0 0.0
      %7507 = vmatpush1.msra.mxu0 %v7053
      %7508 = vmatprep.subr.mxu0 0.0
      %7509 = vmatpush1.msra.mxu0 %v7052
      %7510 = vmatprep.subr.mxu0 0.0
      %7511 = vmatpush1.msra.mxu0 %v7051
      %7512 = vmatprep.subr.mxu0 0.0
      %7513 = vmatpush1.msra.mxu0 %v7050
      %7514 = vmatprep.subr.mxu0 0.0
      %7515 = vmatpush1.msra.mxu0 %v7049
      %7516 = vmatprep.subr.mxu0 0.0
      %7517 = vmatpush1.msra.mxu0 %v7048
      %7518 = vmatprep.subr.mxu0 0.0
      %7519 = vmatpush1.msra.mxu0 %v7047
      %7520 = vmatprep.subr.mxu0 0.0
      %7521 = vmatpush1.msra.mxu0 %v7046
      %7522 = vmatprep.subr.mxu0 0.0
      %7523 = vmatpush2.msra.mxu0 0.0
      %7524 = vmatprep.subr.mxu0 0.0
      %7525 = vmatpush2.msra.mxu0 0.0
      %7526 = vmatprep.subr.mxu0 0.0
      %7527 = vmatpush2.msra.mxu0 0.0
      %7528 = vmatprep.subr.mxu0 0.0
      %7529 = vmatpush2.msra.mxu0 0.0
      %7530 = vmatprep.subr.mxu0 0.0
      %7531 = vmatpush2.msra.mxu0 0.0
      %7532 = vmatprep.subr.mxu0 0.0
      %7533 = vmatpush2.msra.mxu0 0.0
      %7534 = vmatprep.subr.mxu0 0.0
      %7535 = vmatpush2.msra.mxu0 0.0
      %7536 = vmatprep.subr.mxu0 0.0
      %7537 = vmatpush2.msra.mxu0 0.0
      %7538 = vmatprep.subr.mxu0 0.0
      %7539 = vmatpush2.msra.mxu0 0.0
      %7540 = vmatprep.subr.mxu0 0.0
      %7541 = vmatpush2.msra.mxu0 0.0
      %7542 = vmatprep.subr.mxu0 0.0
      %7543 = vmatpush2.msra.mxu0 0.0
      %7544 = vmatprep.subr.mxu0 0.0
      %7545 = vmatpush2.msra.mxu0 0.0
      %7546 = vmatprep.subr.mxu0 0.0
      %7547 = vmatpush2.msra.mxu0 0.0
      %7548 = vmatprep.subr.mxu0 0.0
      %7549 = vmatpush2.msra.mxu0 0.0
      %7550 = vmatprep.subr.mxu0 0.0
      %7551 = vmatpush2.msra.mxu0 0.0
      %7552 = vmatprep.subr.mxu0 0.0
      %7553 = vmatpush2.msra.mxu0 0.0
      %7554 = vmatprep.mubr.f32.mxu0 0.0
      %7555 = vmatmul.mubr.f32.gmra.mxu0 %v6873
      %v7556 = vpop.f32.mrf.mxu0
      %v7557 = vadd.f32 %v7452, %v7556
      %v7558 = vpop.f32.mrf.mxu0
      %7559 = vmatprep.mubr.f32.mxu0 0.0
      %7560 = vmatmul.mubr.f32.gmra.mxu0 %v6876
      %v7561 = vpop.f32.mrf.mxu0
      %v7562 = vadd.f32 %v7457, %v7561
      %v7563 = vpop.f32.mrf.mxu0
      %7564 = vmatprep.mubr.f32.mxu0 0.0
      %7565 = vmatmul.mubr.f32.gmra.mxu0 %v6879
      %v7566 = vpop.f32.mrf.mxu0
      %v7567 = vadd.f32 %v7462, %v7566
      %v7568 = vpop.f32.mrf.mxu0
      %7569 = vmatprep.mubr.f32.mxu0 0.0
      %7570 = vmatmul.mubr.f32.gmra.mxu0 %v6882
      %v7571 = vpop.f32.mrf.mxu0
      %v7572 = vadd.f32 %v7467, %v7571
      %v7573 = vpop.f32.mrf.mxu0
      %7574 = vmatprep.mubr.f32.mxu0 0.0
      %7575 = vmatmul.mubr.f32.gmra.mxu0 %v6885
      %v7576 = vpop.f32.mrf.mxu0
      %v7577 = vadd.f32 %v7472, %v7576
      %v7578 = vpop.f32.mrf.mxu0
      %7579 = vmatprep.mubr.f32.mxu0 0.0
      %7580 = vmatmul.mubr.f32.gmra.mxu0 %v6888
      %v7581 = vpop.f32.mrf.mxu0
      %v7582 = vadd.f32 %v7477, %v7581
      %v7583 = vpop.f32.mrf.mxu0
      %7584 = vmatprep.mubr.f32.mxu0 0.0
      %7585 = vmatmul.mubr.f32.gmra.mxu0 %v6905
      %v7586 = vpop.f32.mrf.mxu0
      %v7587 = vadd.f32 %v7482, %v7586
      %v7588 = vpop.f32.mrf.mxu0
      %7589 = vmatprep.mubr.f32.mxu0 0.0
      %7590 = vmatmul.mubr.f32.gmra.mxu0 %v6915
      %v7591 = vpop.f32.mrf.mxu0
      %v7592 = vadd.f32 %v7487, %v7591
      %v7593 = vpop.f32.mrf.mxu0
      %7594 = vdwg.mxu0
      %v7595 = vadd.f32 %v5967, %v7557
      %v7596 = vadd.f32 %v5968, %v7562
      %v7597 = vadd.f32 %v5969, %v7567
      %v7598 = vadd.f32 %v5970, %v7572
      %v7599 = vadd.f32 %v5971, %v7577
      %v7600 = vadd.f32 %v5972, %v7582
      %v7601 = vadd.f32 %v5973, %v7587
      %v7602 = vadd.f32 %v5974, %v7592
      %7603 = vst.msk [vmem:[%s255 + $0x1] sm:$0xff] %vm1090, %v7595
      %7604 = vst.msk [vmem:[%s255 + $0x11] sm:$0xff] %vm1090, %v7596
      %7605 = vst.msk [vmem:[%s255 + $0x21] sm:$0xff] %vm1090, %v7597
      %7606 = vst.msk [vmem:[%s255 + $0x31] sm:$0xff] %vm1090, %v7598
      %7607 = vst.msk [vmem:[%s255 + $0x41] sm:$0xff] %vm1090, %v7599
      %7608 = vst.msk [vmem:[%s255 + $0x51] sm:$0xff] %vm1090, %v7600
      %7609 = vst.msk [vmem:[%s255 + $0x61] sm:$0xff] %vm1090, %v7601
      %7610 = vst.msk [vmem:[%s255 + $0x71] sm:$0xff] %vm1090, %v7602
      %v7611 = vld [vmem:[#allocation2] sm:$0xff]
      %v7612 = vld [vmem:[#allocation2 + $0x8] sm:$0x3]
      %v7613 = vld [vmem:[#allocation2 + $0x10] sm:$0xff]
      %v7614 = vld [vmem:[#allocation2 + $0x18] sm:$0x3]
      %v7615 = vld [vmem:[#allocation2 + $0x20] sm:$0xff]
      %v7616 = vld [vmem:[#allocation2 + $0x28] sm:$0x3]
      %v7617 = vld [vmem:[#allocation2 + $0x30] sm:$0xff]
      %v7618 = vld [vmem:[#allocation2 + $0x38] sm:$0x3]
      %v7619 = vld [vmem:[#allocation2 + $0x40] sm:$0xff]
      %v7620 = vld [vmem:[#allocation2 + $0x48] sm:$0x3]
      %v7621 = vld [vmem:[#allocation2 + $0x50] sm:$0xff]
      %v7622 = vld [vmem:[#allocation2 + $0x58] sm:$0x3]
      %v7623 = vld [vmem:[#allocation2 + $0x60] sm:$0xff]
      %v7624 = vld [vmem:[#allocation2 + $0x68] sm:$0x3]
      %v7625 = vld [vmem:[#allocation2 + $0x70] sm:$0xff]
      %v7626 = vld [vmem:[#allocation2 + $0x78] sm:$0x3]
      %v7627 = vld [vmem:[#allocation2 + $0x80] sm:$0xff]
      %v7628 = vld [vmem:[#allocation2 + $0x88] sm:$0x3]
      %v7629 = vld [vmem:[#allocation2 + $0x90] sm:$0xff]
      %v7630 = vld [vmem:[#allocation2 + $0x98] sm:$0x3]
      %v7647 = vrot.slane %v7611, 1
      %v7648 = vrot.slane %v7612, 1
      %v7649 = vsel %vm300, %v7647, %v7648
      %v7650 = vrot.slane %v7613, 1
      %v7651 = vrot.slane %v7614, 1
      %v7652 = vsel %vm300, %v7650, %v7651
      %v7653 = vrot.slane %v7615, 1
      %v7654 = vrot.slane %v7616, 1
      %v7655 = vsel %vm300, %v7653, %v7654
      %v7656 = vrot.slane %v7617, 1
      %v7657 = vrot.slane %v7618, 1
      %v7658 = vsel %vm300, %v7656, %v7657
      %v7659 = vrot.slane %v7619, 1
      %v7660 = vrot.slane %v7620, 1
      %v7661 = vsel %vm300, %v7659, %v7660
      %v7662 = vrot.slane %v7621, 1
      %v7663 = vrot.slane %v7622, 1
      %v7664 = vsel %vm300, %v7662, %v7663
      %v7665 = vrot.slane %v7623, 1
      %v7666 = vrot.slane %v7624, 1
      %v7667 = vsel %vm300, %v7665, %v7666
      %v7668 = vrot.slane %v7625, 1
      %v7669 = vrot.slane %v7626, 1
      %v7670 = vsel %vm300, %v7668, %v7669
      %v7679 = vrot.slane %v7611, 2
      %v7680 = vrot.slane %v7612, 2
      %v7681 = vsel %vm333, %v7679, %v7680
      %v7682 = vrot.slane %v7613, 2
      %v7683 = vrot.slane %v7614, 2
      %v7684 = vsel %vm333, %v7682, %v7683
      %v7685 = vrot.slane %v7615, 2
      %v7686 = vrot.slane %v7616, 2
      %v7687 = vsel %vm333, %v7685, %v7686
      %v7688 = vrot.slane %v7617, 2
      %v7689 = vrot.slane %v7618, 2
      %v7690 = vsel %vm333, %v7688, %v7689
      %v7691 = vrot.slane %v7619, 2
      %v7692 = vrot.slane %v7620, 2
      %v7693 = vsel %vm333, %v7691, %v7692
      %v7694 = vrot.slane %v7621, 2
      %v7695 = vrot.slane %v7622, 2
      %v7696 = vsel %vm333, %v7694, %v7695
      %v7697 = vrot.slane %v7623, 2
      %v7698 = vrot.slane %v7624, 2
      %v7699 = vsel %vm333, %v7697, %v7698
      %v7700 = vrot.slane %v7625, 2
      %v7701 = vrot.slane %v7626, 2
      %v7702 = vsel %vm333, %v7700, %v7701
      %v7713 = vrot.slane %v7627, 1
      %v7714 = vrot.slane %v7628, 1
      %v7715 = vsel %vm300, %v7713, %v7714
      %v7717 = vrot.slane %v7627, 2
      %v7718 = vrot.slane %v7628, 2
      %v7719 = vsel %vm333, %v7717, %v7718
      %v7723 = vrot.slane %v7629, 1
      %v7724 = vrot.slane %v7630, 1
      %v7725 = vsel %vm300, %v7723, %v7724
      %v7727 = vrot.slane %v7629, 2
      %v7728 = vrot.slane %v7630, 2
      %v7729 = vsel %vm333, %v7727, %v7728
      %s7731 = scalar_lea.vmem %s1, 10368
      %v7732 = vld [vmem:[%s7731] sm:$0xff]
      %v7733 = vld [vmem:[%s7731 + $0x8] sm:$0xff]
      %v7734 = vld [vmem:[%s7731 + $0x10] sm:$0xff]
      %v7735 = vld [vmem:[%s7731 + $0x18] sm:$0xff]
      %v7736 = vld [vmem:[%s7731 + $0x20] sm:$0xff]
      %v7737 = vld [vmem:[%s7731 + $0x28] sm:$0xff]
      %v7738 = vld [vmem:[%s7731 + $0x30] sm:$0xff]
      %v7739 = vld [vmem:[%s7731 + $0x38] sm:$0xff]
      %v7740 = vld [vmem:[%s7731 + $0x40] sm:$0xff]
      %v7741 = vld [vmem:[%s7731 + $0x48] sm:$0xff]
      %v7742 = vld [vmem:[%s7731 + $0x50] sm:$0xff]
      %v7743 = vld [vmem:[%s7731 + $0x58] sm:$0xff]
      %v7744 = vld [vmem:[%s7731 + $0x60] sm:$0xff]
      %v7745 = vld [vmem:[%s7731 + $0x68] sm:$0xff]
      %v7746 = vld [vmem:[%s7731 + $0x70] sm:$0xff]
      %v7747 = vld [vmem:[%s7731 + $0x78] sm:$0xff]
      %v7748 = vld [vmem:[%s7731 + $0x80] sm:$0xff]
      %v7749 = vld [vmem:[%s7731 + $0x88] sm:$0xff]
      %v7750 = vld [vmem:[%s7731 + $0x90] sm:$0xff]
      %v7751 = vld [vmem:[%s7731 + $0x98] sm:$0xff]
      %v7752 = vld [vmem:[%s7731 + $0xa0] sm:$0xff]
      %v7753 = vld [vmem:[%s7731 + $0xa8] sm:$0xff]
      %v7754 = vld [vmem:[%s7731 + $0xb0] sm:$0xff]
      %v7755 = vld [vmem:[%s7731 + $0xb8] sm:$0xff]
      %v7756 = vld [vmem:[%s7731 + $0xc0] sm:$0xff]
      %v7757 = vld [vmem:[%s7731 + $0xc8] sm:$0xff]
      %v7758 = vld [vmem:[%s7731 + $0xd0] sm:$0xff]
      %v7759 = vld [vmem:[%s7731 + $0xd8] sm:$0xff]
      %v7760 = vld [vmem:[%s7731 + $0xe0] sm:$0xff]
      %v7761 = vld [vmem:[%s7731 + $0xe8] sm:$0xff]
      %v7762 = vld [vmem:[%s7731 + $0xf0] sm:$0xff]
      %v7763 = vld [vmem:[%s7731 + $0xf8] sm:$0xff]
      %v7764 = vld [vmem:[%s7731 + $0x100] sm:$0xff]
      %v7765 = vld [vmem:[%s7731 + $0x108] sm:$0xff]
      %v7766 = vld [vmem:[%s7731 + $0x110] sm:$0xff]
      %v7767 = vld [vmem:[%s7731 + $0x118] sm:$0xff]
      %v7768 = vld [vmem:[%s7731 + $0x120] sm:$0xff]
      %v7769 = vld [vmem:[%s7731 + $0x128] sm:$0xff]
      %v7770 = vld [vmem:[%s7731 + $0x130] sm:$0xff]
      %v7771 = vld [vmem:[%s7731 + $0x138] sm:$0xff]
      %v7772 = vld [vmem:[%s7731 + $0x140] sm:$0xff]
      %v7773 = vld [vmem:[%s7731 + $0x148] sm:$0xff]
      %v7774 = vld [vmem:[%s7731 + $0x150] sm:$0xff]
      %v7775 = vld [vmem:[%s7731 + $0x158] sm:$0xff]
      %v7776 = vld [vmem:[%s7731 + $0x160] sm:$0xff]
      %v7777 = vld [vmem:[%s7731 + $0x168] sm:$0xff]
      %v7778 = vld [vmem:[%s7731 + $0x170] sm:$0xff]
      %v7779 = vld [vmem:[%s7731 + $0x178] sm:$0xff]
      %v7780 = vld [vmem:[%s7731 + $0x180] sm:$0xff]
      %v7781 = vld [vmem:[%s7731 + $0x188] sm:$0xff]
      %v7782 = vld [vmem:[%s7731 + $0x190] sm:$0xff]
      %v7783 = vld [vmem:[%s7731 + $0x198] sm:$0xff]
      %v7784 = vld [vmem:[%s7731 + $0x1a0] sm:$0xff]
      %v7785 = vld [vmem:[%s7731 + $0x1a8] sm:$0xff]
      %v7786 = vld [vmem:[%s7731 + $0x1b0] sm:$0xff]
      %v7787 = vld [vmem:[%s7731 + $0x1b8] sm:$0xff]
      %v7788 = vld [vmem:[%s7731 + $0x1c0] sm:$0xff]
      %v7789 = vld [vmem:[%s7731 + $0x1c8] sm:$0xff]
      %v7790 = vld [vmem:[%s7731 + $0x1d0] sm:$0xff]
      %v7791 = vld [vmem:[%s7731 + $0x1d8] sm:$0xff]
      %v7792 = vld [vmem:[%s7731 + $0x1e0] sm:$0xff]
      %v7793 = vld [vmem:[%s7731 + $0x1e8] sm:$0xff]
      %v7794 = vld [vmem:[%s7731 + $0x1f0] sm:$0xff]
      %v7795 = vld [vmem:[%s7731 + $0x1f8] sm:$0xff]
      %v7796 = vld [vmem:[%s7731 + $0x200] sm:$0xff]
      %v7797 = vld [vmem:[%s7731 + $0x208] sm:$0xff]
      %v7798 = vld [vmem:[%s7731 + $0x210] sm:$0xff]
      %v7799 = vld [vmem:[%s7731 + $0x218] sm:$0xff]
      %v7800 = vld [vmem:[%s7731 + $0x220] sm:$0xff]
      %v7801 = vld [vmem:[%s7731 + $0x228] sm:$0xff]
      %v7802 = vld [vmem:[%s7731 + $0x230] sm:$0xff]
      %v7803 = vld [vmem:[%s7731 + $0x238] sm:$0xff]
      %v7804 = vld [vmem:[%s7731 + $0x240] sm:$0xff]
      %v7805 = vld [vmem:[%s7731 + $0x248] sm:$0xff]
      %v7806 = vld [vmem:[%s7731 + $0x250] sm:$0xff]
      %v7807 = vld [vmem:[%s7731 + $0x258] sm:$0xff]
      %v7808 = vld [vmem:[%s7731 + $0x260] sm:$0xff]
      %v7809 = vld [vmem:[%s7731 + $0x268] sm:$0xff]
      %v7810 = vld [vmem:[%s7731 + $0x270] sm:$0xff]
      %v7811 = vld [vmem:[%s7731 + $0x278] sm:$0xff]
      %v7812 = vld [vmem:[%s7731 + $0x280] sm:$0xff]
      %v7813 = vld [vmem:[%s7731 + $0x288] sm:$0xff]
      %v7814 = vld [vmem:[%s7731 + $0x290] sm:$0xff]
      %v7815 = vld [vmem:[%s7731 + $0x298] sm:$0xff]
      %v7816 = vld [vmem:[%s7731 + $0x2a0] sm:$0xff]
      %v7817 = vld [vmem:[%s7731 + $0x2a8] sm:$0xff]
      %v7818 = vld [vmem:[%s7731 + $0x2b0] sm:$0xff]
      %v7819 = vld [vmem:[%s7731 + $0x2b8] sm:$0xff]
      %v7820 = vld [vmem:[%s7731 + $0x2c0] sm:$0xff]
      %v7821 = vld [vmem:[%s7731 + $0x2c8] sm:$0xff]
      %v7822 = vld [vmem:[%s7731 + $0x2d0] sm:$0xff]
      %v7823 = vld [vmem:[%s7731 + $0x2d8] sm:$0xff]
      %v7824 = vld [vmem:[%s7731 + $0x2e0] sm:$0xff]
      %v7825 = vld [vmem:[%s7731 + $0x2e8] sm:$0xff]
      %v7826 = vld [vmem:[%s7731 + $0x2f0] sm:$0xff]
      %v7827 = vld [vmem:[%s7731 + $0x2f8] sm:$0xff]
      %v7828 = vld [vmem:[%s7731 + $0x300] sm:$0xff]
      %v7829 = vld [vmem:[%s7731 + $0x308] sm:$0xff]
      %v7830 = vld [vmem:[%s7731 + $0x310] sm:$0xff]
      %v7831 = vld [vmem:[%s7731 + $0x318] sm:$0xff]
      %v7832 = vld [vmem:[%s7731 + $0x320] sm:$0xff]
      %v7833 = vld [vmem:[%s7731 + $0x328] sm:$0xff]
      %v7834 = vld [vmem:[%s7731 + $0x330] sm:$0xff]
      %v7835 = vld [vmem:[%s7731 + $0x338] sm:$0xff]
      %v7836 = vld [vmem:[%s7731 + $0x340] sm:$0xff]
      %v7837 = vld [vmem:[%s7731 + $0x348] sm:$0xff]
      %v7838 = vld [vmem:[%s7731 + $0x350] sm:$0xff]
      %v7839 = vld [vmem:[%s7731 + $0x358] sm:$0xff]
      %v7840 = vld [vmem:[%s7731 + $0x360] sm:$0xff]
      %v7841 = vld [vmem:[%s7731 + $0x368] sm:$0xff]
      %v7842 = vld [vmem:[%s7731 + $0x370] sm:$0xff]
      %v7843 = vld [vmem:[%s7731 + $0x378] sm:$0xff]
      %v7844 = vld [vmem:[%s7731 + $0x380] sm:$0xff]
      %v7845 = vld [vmem:[%s7731 + $0x388] sm:$0xff]
      %v7846 = vld [vmem:[%s7731 + $0x390] sm:$0xff]
      %v7847 = vld [vmem:[%s7731 + $0x398] sm:$0xff]
      %v7848 = vld [vmem:[%s7731 + $0x3a0] sm:$0xff]
      %v7849 = vld [vmem:[%s7731 + $0x3a8] sm:$0xff]
      %v7850 = vld [vmem:[%s7731 + $0x3b0] sm:$0xff]
      %v7851 = vld [vmem:[%s7731 + $0x3b8] sm:$0xff]
      %v7852 = vld [vmem:[%s7731 + $0x3c0] sm:$0xff]
      %v7853 = vld [vmem:[%s7731 + $0x3c8] sm:$0xff]
      %v7854 = vld [vmem:[%s7731 + $0x3d0] sm:$0xff]
      %v7855 = vld [vmem:[%s7731 + $0x3d8] sm:$0xff]
      %v7856 = vld [vmem:[%s7731 + $0x3e0] sm:$0xff]
      %v7857 = vld [vmem:[%s7731 + $0x3e8] sm:$0xff]
      %v7858 = vld [vmem:[%s7731 + $0x3f0] sm:$0xff]
      %v7859 = vld [vmem:[%s7731 + $0x3f8] sm:$0xff]
      %v7860 = vld [vmem:[%s7731 + $0x400] sm:$0xff]
      %v7861 = vld [vmem:[%s7731 + $0x408] sm:$0xff]
      %v7862 = vld [vmem:[%s7731 + $0x410] sm:$0xff]
      %v7863 = vld [vmem:[%s7731 + $0x418] sm:$0xff]
      %v7864 = vld [vmem:[%s7731 + $0x420] sm:$0xff]
      %v7865 = vld [vmem:[%s7731 + $0x428] sm:$0xff]
      %v7866 = vld [vmem:[%s7731 + $0x430] sm:$0xff]
      %v7867 = vld [vmem:[%s7731 + $0x438] sm:$0xff]
      %v7868 = vld [vmem:[%s7731 + $0x440] sm:$0xff]
      %v7869 = vld [vmem:[%s7731 + $0x448] sm:$0xff]
      %v7870 = vld [vmem:[%s7731 + $0x450] sm:$0xff]
      %v7871 = vld [vmem:[%s7731 + $0x458] sm:$0xff]
      %v7872 = vld [vmem:[%s7731 + $0x460] sm:$0xff]
      %v7873 = vld [vmem:[%s7731 + $0x468] sm:$0xff]
      %v7874 = vld [vmem:[%s7731 + $0x470] sm:$0xff]
      %v7875 = vld [vmem:[%s7731 + $0x478] sm:$0xff]
      %s7876 = scalar_lea.vmem %s2, 9
      %v7877 = vld [vmem:[%s7876] sm:$0x1]
      %v7879 = vlaneseq
      %v7880 = vshrl.u32 %v7879, 7
      %v7881 = vsub.s32 0, %v7880
      %v7882 = vrot.slane %v7877, %v7881
      %7884 = vmatprep.subr.mxu0 0.0
      %7885 = vmatpush1.msra.mxu0 %v7747
      %7886 = vmatprep.subr.mxu0 0.0
      %7887 = vmatpush1.msra.mxu0 %v7746
      %7888 = vmatprep.subr.mxu0 0.0
      %7889 = vmatpush1.msra.mxu0 %v7745
      %7890 = vmatprep.subr.mxu0 0.0
      %7891 = vmatpush1.msra.mxu0 %v7744
      %7892 = vmatprep.subr.mxu0 0.0
      %7893 = vmatpush1.msra.mxu0 %v7743
      %7894 = vmatprep.subr.mxu0 0.0
      %7895 = vmatpush1.msra.mxu0 %v7742
      %7896 = vmatprep.subr.mxu0 0.0
      %7897 = vmatpush1.msra.mxu0 %v7741
      %7898 = vmatprep.subr.mxu0 0.0
      %7899 = vmatpush1.msra.mxu0 %v7740
      %7900 = vmatprep.subr.mxu0 0.0
      %7901 = vmatpush1.msra.mxu0 %v7739
      %7902 = vmatprep.subr.mxu0 0.0
      %7903 = vmatpush1.msra.mxu0 %v7738
      %7904 = vmatprep.subr.mxu0 0.0
      %7905 = vmatpush1.msra.mxu0 %v7737
      %7906 = vmatprep.subr.mxu0 0.0
      %7907 = vmatpush1.msra.mxu0 %v7736
      %7908 = vmatprep.subr.mxu0 0.0
      %7909 = vmatpush1.msra.mxu0 %v7735
      %7910 = vmatprep.subr.mxu0 0.0
      %7911 = vmatpush1.msra.mxu0 %v7734
      %7912 = vmatprep.subr.mxu0 0.0
      %7913 = vmatpush1.msra.mxu0 %v7733
      %7914 = vmatprep.subr.mxu0 0.0
      %7915 = vmatpush1.msra.mxu0 %v7732
      %7916 = vmatprep.subr.mxu0 0.0
      %7917 = vmatpush2.msra.mxu0 %v7763
      %7918 = vmatprep.subr.mxu0 0.0
      %7919 = vmatpush2.msra.mxu0 %v7762
      %7920 = vmatprep.subr.mxu0 0.0
      %7921 = vmatpush2.msra.mxu0 %v7761
      %7922 = vmatprep.subr.mxu0 0.0
      %7923 = vmatpush2.msra.mxu0 %v7760
      %7924 = vmatprep.subr.mxu0 0.0
      %7925 = vmatpush2.msra.mxu0 %v7759
      %7926 = vmatprep.subr.mxu0 0.0
      %7927 = vmatpush2.msra.mxu0 %v7758
      %7928 = vmatprep.subr.mxu0 0.0
      %7929 = vmatpush2.msra.mxu0 %v7757
      %7930 = vmatprep.subr.mxu0 0.0
      %7931 = vmatpush2.msra.mxu0 %v7756
      %7932 = vmatprep.subr.mxu0 0.0
      %7933 = vmatpush2.msra.mxu0 %v7755
      %7934 = vmatprep.subr.mxu0 0.0
      %7935 = vmatpush2.msra.mxu0 %v7754
      %7936 = vmatprep.subr.mxu0 0.0
      %7937 = vmatpush2.msra.mxu0 %v7753
      %7938 = vmatprep.subr.mxu0 0.0
      %7939 = vmatpush2.msra.mxu0 %v7752
      %7940 = vmatprep.subr.mxu0 0.0
      %7941 = vmatpush2.msra.mxu0 %v7751
      %7942 = vmatprep.subr.mxu0 0.0
      %7943 = vmatpush2.msra.mxu0 %v7750
      %7944 = vmatprep.subr.mxu0 0.0
      %7945 = vmatpush2.msra.mxu0 %v7749
      %7946 = vmatprep.subr.mxu0 0.0
      %7947 = vmatpush2.msra.mxu0 %v7748
      %7948 = vmatprep.mubr.f32.mxu0 %v7649
      %7949 = vmatmul.mubr.f32.gmra.mxu0 %v7611
      %v7950 = vpop.f32.mrf.mxu0
      %v7951 = vadd.f32 %v7882, %v7950
      %v7952 = vpop.f32.mrf.mxu0
      %7953 = vmatprep.mubr.f32.mxu0 %v7652
      %7954 = vmatmul.mubr.f32.gmra.mxu0 %v7613
      %v7955 = vpop.f32.mrf.mxu0
      %v7956 = vadd.f32 %v7882, %v7955
      %v7957 = vpop.f32.mrf.mxu0
      %7958 = vmatprep.mubr.f32.mxu0 %v7655
      %7959 = vmatmul.mubr.f32.gmra.mxu0 %v7615
      %v7960 = vpop.f32.mrf.mxu0
      %v7961 = vadd.f32 %v7882, %v7960
      %v7962 = vpop.f32.mrf.mxu0
      %7963 = vmatprep.mubr.f32.mxu0 %v7658
      %7964 = vmatmul.mubr.f32.gmra.mxu0 %v7617
      %v7965 = vpop.f32.mrf.mxu0
      %v7966 = vadd.f32 %v7882, %v7965
      %v7967 = vpop.f32.mrf.mxu0
      %7968 = vmatprep.mubr.f32.mxu0 %v7661
      %7969 = vmatmul.mubr.f32.gmra.mxu0 %v7619
      %v7970 = vpop.f32.mrf.mxu0
      %v7971 = vadd.f32 %v7882, %v7970
      %v7972 = vpop.f32.mrf.mxu0
      %7973 = vmatprep.mubr.f32.mxu0 %v7664
      %7974 = vmatmul.mubr.f32.gmra.mxu0 %v7621
      %v7975 = vpop.f32.mrf.mxu0
      %v7976 = vadd.f32 %v7882, %v7975
      %v7977 = vpop.f32.mrf.mxu0
      %7978 = vmatprep.mubr.f32.mxu0 %v7667
      %7979 = vmatmul.mubr.f32.gmra.mxu0 %v7623
      %v7980 = vpop.f32.mrf.mxu0
      %v7981 = vadd.f32 %v7882, %v7980
      %v7982 = vpop.f32.mrf.mxu0
      %7983 = vmatprep.mubr.f32.mxu0 %v7670
      %7984 = vmatmul.mubr.f32.gmra.mxu0 %v7625
      %v7985 = vpop.f32.mrf.mxu0
      %v7986 = vadd.f32 %v7882, %v7985
      %v7987 = vpop.f32.mrf.mxu0
      %7988 = vdwg.mxu0
      %7989 = vmatprep.subr.mxu0 0.0
      %7990 = vmatpush1.msra.mxu0 %v7779
      %7991 = vmatprep.subr.mxu0 0.0
      %7992 = vmatpush1.msra.mxu0 %v7778
      %7993 = vmatprep.subr.mxu0 0.0
      %7994 = vmatpush1.msra.mxu0 %v7777
      %7995 = vmatprep.subr.mxu0 0.0
      %7996 = vmatpush1.msra.mxu0 %v7776
      %7997 = vmatprep.subr.mxu0 0.0
      %7998 = vmatpush1.msra.mxu0 %v7775
      %7999 = vmatprep.subr.mxu0 0.0
      %8000 = vmatpush1.msra.mxu0 %v7774
      %8001 = vmatprep.subr.mxu0 0.0
      %8002 = vmatpush1.msra.mxu0 %v7773
      %8003 = vmatprep.subr.mxu0 0.0
      %8004 = vmatpush1.msra.mxu0 %v7772
      %8005 = vmatprep.subr.mxu0 0.0
      %8006 = vmatpush1.msra.mxu0 %v7771
      %8007 = vmatprep.subr.mxu0 0.0
      %8008 = vmatpush1.msra.mxu0 %v7770
      %8009 = vmatprep.subr.mxu0 0.0
      %8010 = vmatpush1.msra.mxu0 %v7769
      %8011 = vmatprep.subr.mxu0 0.0
      %8012 = vmatpush1.msra.mxu0 %v7768
      %8013 = vmatprep.subr.mxu0 0.0
      %8014 = vmatpush1.msra.mxu0 %v7767
      %8015 = vmatprep.subr.mxu0 0.0
      %8016 = vmatpush1.msra.mxu0 %v7766
      %8017 = vmatprep.subr.mxu0 0.0
      %8018 = vmatpush1.msra.mxu0 %v7765
      %8019 = vmatprep.subr.mxu0 0.0
      %8020 = vmatpush1.msra.mxu0 %v7764
      %8021 = vmatprep.subr.mxu0 0.0
      %8022 = vmatpush2.msra.mxu0 %v7795
      %8023 = vmatprep.subr.mxu0 0.0
      %8024 = vmatpush2.msra.mxu0 %v7794
      %8025 = vmatprep.subr.mxu0 0.0
      %8026 = vmatpush2.msra.mxu0 %v7793
      %8027 = vmatprep.subr.mxu0 0.0
      %8028 = vmatpush2.msra.mxu0 %v7792
      %8029 = vmatprep.subr.mxu0 0.0
      %8030 = vmatpush2.msra.mxu0 %v7791
      %8031 = vmatprep.subr.mxu0 0.0
      %8032 = vmatpush2.msra.mxu0 %v7790
      %8033 = vmatprep.subr.mxu0 0.0
      %8034 = vmatpush2.msra.mxu0 %v7789
      %8035 = vmatprep.subr.mxu0 0.0
      %8036 = vmatpush2.msra.mxu0 %v7788
      %8037 = vmatprep.subr.mxu0 0.0
      %8038 = vmatpush2.msra.mxu0 %v7787
      %8039 = vmatprep.subr.mxu0 0.0
      %8040 = vmatpush2.msra.mxu0 %v7786
      %8041 = vmatprep.subr.mxu0 0.0
      %8042 = vmatpush2.msra.mxu0 %v7785
      %8043 = vmatprep.subr.mxu0 0.0
      %8044 = vmatpush2.msra.mxu0 %v7784
      %8045 = vmatprep.subr.mxu0 0.0
      %8046 = vmatpush2.msra.mxu0 %v7783
      %8047 = vmatprep.subr.mxu0 0.0
      %8048 = vmatpush2.msra.mxu0 %v7782
      %8049 = vmatprep.subr.mxu0 0.0
      %8050 = vmatpush2.msra.mxu0 %v7781
      %8051 = vmatprep.subr.mxu0 0.0
      %8052 = vmatpush2.msra.mxu0 %v7780
      %8053 = vmatprep.mubr.f32.mxu0 %v7613
      %8054 = vmatmul.mubr.f32.gmra.mxu0 %v7681
      %v8055 = vpop.f32.mrf.mxu0
      %v8056 = vadd.f32 %v7951, %v8055
      %v8057 = vpop.f32.mrf.mxu0
      %8058 = vmatprep.mubr.f32.mxu0 %v7615
      %8059 = vmatmul.mubr.f32.gmra.mxu0 %v7684
      %v8060 = vpop.f32.mrf.mxu0
      %v8061 = vadd.f32 %v7956, %v8060
      %v8062 = vpop.f32.mrf.mxu0
      %8063 = vmatprep.mubr.f32.mxu0 %v7617
      %8064 = vmatmul.mubr.f32.gmra.mxu0 %v7687
      %v8065 = vpop.f32.mrf.mxu0
      %v8066 = vadd.f32 %v7961, %v8065
      %v8067 = vpop.f32.mrf.mxu0
      %8068 = vmatprep.mubr.f32.mxu0 %v7619
      %8069 = vmatmul.mubr.f32.gmra.mxu0 %v7690
      %v8070 = vpop.f32.mrf.mxu0
      %v8071 = vadd.f32 %v7966, %v8070
      %v8072 = vpop.f32.mrf.mxu0
      %8073 = vmatprep.mubr.f32.mxu0 %v7621
      %8074 = vmatmul.mubr.f32.gmra.mxu0 %v7693
      %v8075 = vpop.f32.mrf.mxu0
      %v8076 = vadd.f32 %v7971, %v8075
      %v8077 = vpop.f32.mrf.mxu0
      %8078 = vmatprep.mubr.f32.mxu0 %v7623
      %8079 = vmatmul.mubr.f32.gmra.mxu0 %v7696
      %v8080 = vpop.f32.mrf.mxu0
      %v8081 = vadd.f32 %v7976, %v8080
      %v8082 = vpop.f32.mrf.mxu0
      %8083 = vmatprep.mubr.f32.mxu0 %v7625
      %8084 = vmatmul.mubr.f32.gmra.mxu0 %v7699
      %v8085 = vpop.f32.mrf.mxu0
      %v8086 = vadd.f32 %v7981, %v8085
      %v8087 = vpop.f32.mrf.mxu0
      %8088 = vmatprep.mubr.f32.mxu0 %v7627
      %8089 = vmatmul.mubr.f32.gmra.mxu0 %v7702
      %v8090 = vpop.f32.mrf.mxu0
      %v8091 = vadd.f32 %v7986, %v8090
      %v8092 = vpop.f32.mrf.mxu0
      %8093 = vdwg.mxu0
      %8094 = vmatprep.subr.mxu0 0.0
      %8095 = vmatpush1.msra.mxu0 %v7811
      %8096 = vmatprep.subr.mxu0 0.0
      %8097 = vmatpush1.msra.mxu0 %v7810
      %8098 = vmatprep.subr.mxu0 0.0
      %8099 = vmatpush1.msra.mxu0 %v7809
      %8100 = vmatprep.subr.mxu0 0.0
      %8101 = vmatpush1.msra.mxu0 %v7808
      %8102 = vmatprep.subr.mxu0 0.0
      %8103 = vmatpush1.msra.mxu0 %v7807
      %8104 = vmatprep.subr.mxu0 0.0
      %8105 = vmatpush1.msra.mxu0 %v7806
      %8106 = vmatprep.subr.mxu0 0.0
      %8107 = vmatpush1.msra.mxu0 %v7805
      %8108 = vmatprep.subr.mxu0 0.0
      %8109 = vmatpush1.msra.mxu0 %v7804
      %8110 = vmatprep.subr.mxu0 0.0
      %8111 = vmatpush1.msra.mxu0 %v7803
      %8112 = vmatprep.subr.mxu0 0.0
      %8113 = vmatpush1.msra.mxu0 %v7802
      %8114 = vmatprep.subr.mxu0 0.0
      %8115 = vmatpush1.msra.mxu0 %v7801
      %8116 = vmatprep.subr.mxu0 0.0
      %8117 = vmatpush1.msra.mxu0 %v7800
      %8118 = vmatprep.subr.mxu0 0.0
      %8119 = vmatpush1.msra.mxu0 %v7799
      %8120 = vmatprep.subr.mxu0 0.0
      %8121 = vmatpush1.msra.mxu0 %v7798
      %8122 = vmatprep.subr.mxu0 0.0
      %8123 = vmatpush1.msra.mxu0 %v7797
      %8124 = vmatprep.subr.mxu0 0.0
      %8125 = vmatpush1.msra.mxu0 %v7796
      %8126 = vmatprep.subr.mxu0 0.0
      %8127 = vmatpush2.msra.mxu0 %v7827
      %8128 = vmatprep.subr.mxu0 0.0
      %8129 = vmatpush2.msra.mxu0 %v7826
      %8130 = vmatprep.subr.mxu0 0.0
      %8131 = vmatpush2.msra.mxu0 %v7825
      %8132 = vmatprep.subr.mxu0 0.0
      %8133 = vmatpush2.msra.mxu0 %v7824
      %8134 = vmatprep.subr.mxu0 0.0
      %8135 = vmatpush2.msra.mxu0 %v7823
      %8136 = vmatprep.subr.mxu0 0.0
      %8137 = vmatpush2.msra.mxu0 %v7822
      %8138 = vmatprep.subr.mxu0 0.0
      %8139 = vmatpush2.msra.mxu0 %v7821
      %8140 = vmatprep.subr.mxu0 0.0
      %8141 = vmatpush2.msra.mxu0 %v7820
      %8142 = vmatprep.subr.mxu0 0.0
      %8143 = vmatpush2.msra.mxu0 %v7819
      %8144 = vmatprep.subr.mxu0 0.0
      %8145 = vmatpush2.msra.mxu0 %v7818
      %8146 = vmatprep.subr.mxu0 0.0
      %8147 = vmatpush2.msra.mxu0 %v7817
      %8148 = vmatprep.subr.mxu0 0.0
      %8149 = vmatpush2.msra.mxu0 %v7816
      %8150 = vmatprep.subr.mxu0 0.0
      %8151 = vmatpush2.msra.mxu0 %v7815
      %8152 = vmatprep.subr.mxu0 0.0
      %8153 = vmatpush2.msra.mxu0 %v7814
      %8154 = vmatprep.subr.mxu0 0.0
      %8155 = vmatpush2.msra.mxu0 %v7813
      %8156 = vmatprep.subr.mxu0 0.0
      %8157 = vmatpush2.msra.mxu0 %v7812
      %8158 = vmatprep.mubr.f32.mxu0 %v7684
      %8159 = vmatmul.mubr.f32.gmra.mxu0 %v7652
      %v8160 = vpop.f32.mrf.mxu0
      %v8161 = vadd.f32 %v8056, %v8160
      %v8162 = vpop.f32.mrf.mxu0
      %8163 = vmatprep.mubr.f32.mxu0 %v7687
      %8164 = vmatmul.mubr.f32.gmra.mxu0 %v7655
      %v8165 = vpop.f32.mrf.mxu0
      %v8166 = vadd.f32 %v8061, %v8165
      %v8167 = vpop.f32.mrf.mxu0
      %8168 = vmatprep.mubr.f32.mxu0 %v7690
      %8169 = vmatmul.mubr.f32.gmra.mxu0 %v7658
      %v8170 = vpop.f32.mrf.mxu0
      %v8171 = vadd.f32 %v8066, %v8170
      %v8172 = vpop.f32.mrf.mxu0
      %8173 = vmatprep.mubr.f32.mxu0 %v7693
      %8174 = vmatmul.mubr.f32.gmra.mxu0 %v7661
      %v8175 = vpop.f32.mrf.mxu0
      %v8176 = vadd.f32 %v8071, %v8175
      %v8177 = vpop.f32.mrf.mxu0
      %8178 = vmatprep.mubr.f32.mxu0 %v7696
      %8179 = vmatmul.mubr.f32.gmra.mxu0 %v7664
      %v8180 = vpop.f32.mrf.mxu0
      %v8181 = vadd.f32 %v8076, %v8180
      %v8182 = vpop.f32.mrf.mxu0
      %8183 = vmatprep.mubr.f32.mxu0 %v7699
      %8184 = vmatmul.mubr.f32.gmra.mxu0 %v7667
      %v8185 = vpop.f32.mrf.mxu0
      %v8186 = vadd.f32 %v8081, %v8185
      %v8187 = vpop.f32.mrf.mxu0
      %8188 = vmatprep.mubr.f32.mxu0 %v7702
      %8189 = vmatmul.mubr.f32.gmra.mxu0 %v7670
      %v8190 = vpop.f32.mrf.mxu0
      %v8191 = vadd.f32 %v8086, %v8190
      %v8192 = vpop.f32.mrf.mxu0
      %8193 = vmatprep.mubr.f32.mxu0 %v7719
      %8194 = vmatmul.mubr.f32.gmra.mxu0 %v7715
      %v8195 = vpop.f32.mrf.mxu0
      %v8196 = vadd.f32 %v8091, %v8195
      %v8197 = vpop.f32.mrf.mxu0
      %8198 = vdwg.mxu0
      %8199 = vmatprep.subr.mxu0 0.0
      %8200 = vmatpush1.msra.mxu0 %v7843
      %8201 = vmatprep.subr.mxu0 0.0
      %8202 = vmatpush1.msra.mxu0 %v7842
      %8203 = vmatprep.subr.mxu0 0.0
      %8204 = vmatpush1.msra.mxu0 %v7841
      %8205 = vmatprep.subr.mxu0 0.0
      %8206 = vmatpush1.msra.mxu0 %v7840
      %8207 = vmatprep.subr.mxu0 0.0
      %8208 = vmatpush1.msra.mxu0 %v7839
      %8209 = vmatprep.subr.mxu0 0.0
      %8210 = vmatpush1.msra.mxu0 %v7838
      %8211 = vmatprep.subr.mxu0 0.0
      %8212 = vmatpush1.msra.mxu0 %v7837
      %8213 = vmatprep.subr.mxu0 0.0
      %8214 = vmatpush1.msra.mxu0 %v7836
      %8215 = vmatprep.subr.mxu0 0.0
      %8216 = vmatpush1.msra.mxu0 %v7835
      %8217 = vmatprep.subr.mxu0 0.0
      %8218 = vmatpush1.msra.mxu0 %v7834
      %8219 = vmatprep.subr.mxu0 0.0
      %8220 = vmatpush1.msra.mxu0 %v7833
      %8221 = vmatprep.subr.mxu0 0.0
      %8222 = vmatpush1.msra.mxu0 %v7832
      %8223 = vmatprep.subr.mxu0 0.0
      %8224 = vmatpush1.msra.mxu0 %v7831
      %8225 = vmatprep.subr.mxu0 0.0
      %8226 = vmatpush1.msra.mxu0 %v7830
      %8227 = vmatprep.subr.mxu0 0.0
      %8228 = vmatpush1.msra.mxu0 %v7829
      %8229 = vmatprep.subr.mxu0 0.0
      %8230 = vmatpush1.msra.mxu0 %v7828
      %8231 = vmatprep.subr.mxu0 0.0
      %8232 = vmatpush2.msra.mxu0 %v7859
      %8233 = vmatprep.subr.mxu0 0.0
      %8234 = vmatpush2.msra.mxu0 %v7858
      %8235 = vmatprep.subr.mxu0 0.0
      %8236 = vmatpush2.msra.mxu0 %v7857
      %8237 = vmatprep.subr.mxu0 0.0
      %8238 = vmatpush2.msra.mxu0 %v7856
      %8239 = vmatprep.subr.mxu0 0.0
      %8240 = vmatpush2.msra.mxu0 %v7855
      %8241 = vmatprep.subr.mxu0 0.0
      %8242 = vmatpush2.msra.mxu0 %v7854
      %8243 = vmatprep.subr.mxu0 0.0
      %8244 = vmatpush2.msra.mxu0 %v7853
      %8245 = vmatprep.subr.mxu0 0.0
      %8246 = vmatpush2.msra.mxu0 %v7852
      %8247 = vmatprep.subr.mxu0 0.0
      %8248 = vmatpush2.msra.mxu0 %v7851
      %8249 = vmatprep.subr.mxu0 0.0
      %8250 = vmatpush2.msra.mxu0 %v7850
      %8251 = vmatprep.subr.mxu0 0.0
      %8252 = vmatpush2.msra.mxu0 %v7849
      %8253 = vmatprep.subr.mxu0 0.0
      %8254 = vmatpush2.msra.mxu0 %v7848
      %8255 = vmatprep.subr.mxu0 0.0
      %8256 = vmatpush2.msra.mxu0 %v7847
      %8257 = vmatprep.subr.mxu0 0.0
      %8258 = vmatpush2.msra.mxu0 %v7846
      %8259 = vmatprep.subr.mxu0 0.0
      %8260 = vmatpush2.msra.mxu0 %v7845
      %8261 = vmatprep.subr.mxu0 0.0
      %8262 = vmatpush2.msra.mxu0 %v7844
      %8263 = vmatprep.mubr.f32.mxu0 %v7655
      %8264 = vmatmul.mubr.f32.gmra.mxu0 %v7615
      %v8265 = vpop.f32.mrf.mxu0
      %v8266 = vadd.f32 %v8161, %v8265
      %v8267 = vpop.f32.mrf.mxu0
      %8268 = vmatprep.mubr.f32.mxu0 %v7658
      %8269 = vmatmul.mubr.f32.gmra.mxu0 %v7617
      %v8270 = vpop.f32.mrf.mxu0
      %v8271 = vadd.f32 %v8166, %v8270
      %v8272 = vpop.f32.mrf.mxu0
      %8273 = vmatprep.mubr.f32.mxu0 %v7661
      %8274 = vmatmul.mubr.f32.gmra.mxu0 %v7619
      %v8275 = vpop.f32.mrf.mxu0
      %v8276 = vadd.f32 %v8171, %v8275
      %v8277 = vpop.f32.mrf.mxu0
      %8278 = vmatprep.mubr.f32.mxu0 %v7664
      %8279 = vmatmul.mubr.f32.gmra.mxu0 %v7621
      %v8280 = vpop.f32.mrf.mxu0
      %v8281 = vadd.f32 %v8176, %v8280
      %v8282 = vpop.f32.mrf.mxu0
      %8283 = vmatprep.mubr.f32.mxu0 %v7667
      %8284 = vmatmul.mubr.f32.gmra.mxu0 %v7623
      %v8285 = vpop.f32.mrf.mxu0
      %v8286 = vadd.f32 %v8181, %v8285
      %v8287 = vpop.f32.mrf.mxu0
      %8288 = vmatprep.mubr.f32.mxu0 %v7670
      %8289 = vmatmul.mubr.f32.gmra.mxu0 %v7625
      %v8290 = vpop.f32.mrf.mxu0
      %v8291 = vadd.f32 %v8186, %v8290
      %v8292 = vpop.f32.mrf.mxu0
      %8293 = vmatprep.mubr.f32.mxu0 %v7715
      %8294 = vmatmul.mubr.f32.gmra.mxu0 %v7627
      %v8295 = vpop.f32.mrf.mxu0
      %v8296 = vadd.f32 %v8191, %v8295
      %v8297 = vpop.f32.mrf.mxu0
      %8298 = vmatprep.mubr.f32.mxu0 %v7725
      %8299 = vmatmul.mubr.f32.gmra.mxu0 %v7629
      %v8300 = vpop.f32.mrf.mxu0
      %v8301 = vadd.f32 %v8196, %v8300
      %v8302 = vpop.f32.mrf.mxu0
      %8303 = vdwg.mxu0
      %8304 = vmatprep.subr.mxu0 0.0
      %8305 = vmatpush1.msra.mxu0 %v7875
      %8306 = vmatprep.subr.mxu0 0.0
      %8307 = vmatpush1.msra.mxu0 %v7874
      %8308 = vmatprep.subr.mxu0 0.0
      %8309 = vmatpush1.msra.mxu0 %v7873
      %8310 = vmatprep.subr.mxu0 0.0
      %8311 = vmatpush1.msra.mxu0 %v7872
      %8312 = vmatprep.subr.mxu0 0.0
      %8313 = vmatpush1.msra.mxu0 %v7871
      %8314 = vmatprep.subr.mxu0 0.0
      %8315 = vmatpush1.msra.mxu0 %v7870
      %8316 = vmatprep.subr.mxu0 0.0
      %8317 = vmatpush1.msra.mxu0 %v7869
      %8318 = vmatprep.subr.mxu0 0.0
      %8319 = vmatpush1.msra.mxu0 %v7868
      %8320 = vmatprep.subr.mxu0 0.0
      %8321 = vmatpush1.msra.mxu0 %v7867
      %8322 = vmatprep.subr.mxu0 0.0
      %8323 = vmatpush1.msra.mxu0 %v7866
      %8324 = vmatprep.subr.mxu0 0.0
      %8325 = vmatpush1.msra.mxu0 %v7865
      %8326 = vmatprep.subr.mxu0 0.0
      %8327 = vmatpush1.msra.mxu0 %v7864
      %8328 = vmatprep.subr.mxu0 0.0
      %8329 = vmatpush1.msra.mxu0 %v7863
      %8330 = vmatprep.subr.mxu0 0.0
      %8331 = vmatpush1.msra.mxu0 %v7862
      %8332 = vmatprep.subr.mxu0 0.0
      %8333 = vmatpush1.msra.mxu0 %v7861
      %8334 = vmatprep.subr.mxu0 0.0
      %8335 = vmatpush1.msra.mxu0 %v7860
      %8336 = vmatprep.subr.mxu0 0.0
      %8337 = vmatpush2.msra.mxu0 0.0
      %8338 = vmatprep.subr.mxu0 0.0
      %8339 = vmatpush2.msra.mxu0 0.0
      %8340 = vmatprep.subr.mxu0 0.0
      %8341 = vmatpush2.msra.mxu0 0.0
      %8342 = vmatprep.subr.mxu0 0.0
      %8343 = vmatpush2.msra.mxu0 0.0
      %8344 = vmatprep.subr.mxu0 0.0
      %8345 = vmatpush2.msra.mxu0 0.0
      %8346 = vmatprep.subr.mxu0 0.0
      %8347 = vmatpush2.msra.mxu0 0.0
      %8348 = vmatprep.subr.mxu0 0.0
      %8349 = vmatpush2.msra.mxu0 0.0
      %8350 = vmatprep.subr.mxu0 0.0
      %8351 = vmatpush2.msra.mxu0 0.0
      %8352 = vmatprep.subr.mxu0 0.0
      %8353 = vmatpush2.msra.mxu0 0.0
      %8354 = vmatprep.subr.mxu0 0.0
      %8355 = vmatpush2.msra.mxu0 0.0
      %8356 = vmatprep.subr.mxu0 0.0
      %8357 = vmatpush2.msra.mxu0 0.0
      %8358 = vmatprep.subr.mxu0 0.0
      %8359 = vmatpush2.msra.mxu0 0.0
      %8360 = vmatprep.subr.mxu0 0.0
      %8361 = vmatpush2.msra.mxu0 0.0
      %8362 = vmatprep.subr.mxu0 0.0
      %8363 = vmatpush2.msra.mxu0 0.0
      %8364 = vmatprep.subr.mxu0 0.0
      %8365 = vmatpush2.msra.mxu0 0.0
      %8366 = vmatprep.subr.mxu0 0.0
      %8367 = vmatpush2.msra.mxu0 0.0
      %8368 = vmatprep.mubr.f32.mxu0 0.0
      %8369 = vmatmul.mubr.f32.gmra.mxu0 %v7687
      %v8370 = vpop.f32.mrf.mxu0
      %v8371 = vadd.f32 %v8266, %v8370
      %v8372 = vpop.f32.mrf.mxu0
      %8373 = vmatprep.mubr.f32.mxu0 0.0
      %8374 = vmatmul.mubr.f32.gmra.mxu0 %v7690
      %v8375 = vpop.f32.mrf.mxu0
      %v8376 = vadd.f32 %v8271, %v8375
      %v8377 = vpop.f32.mrf.mxu0
      %8378 = vmatprep.mubr.f32.mxu0 0.0
      %8379 = vmatmul.mubr.f32.gmra.mxu0 %v7693
      %v8380 = vpop.f32.mrf.mxu0
      %v8381 = vadd.f32 %v8276, %v8380
      %v8382 = vpop.f32.mrf.mxu0
      %8383 = vmatprep.mubr.f32.mxu0 0.0
      %8384 = vmatmul.mubr.f32.gmra.mxu0 %v7696
      %v8385 = vpop.f32.mrf.mxu0
      %v8386 = vadd.f32 %v8281, %v8385
      %v8387 = vpop.f32.mrf.mxu0
      %8388 = vmatprep.mubr.f32.mxu0 0.0
      %8389 = vmatmul.mubr.f32.gmra.mxu0 %v7699
      %v8390 = vpop.f32.mrf.mxu0
      %v8391 = vadd.f32 %v8286, %v8390
      %v8392 = vpop.f32.mrf.mxu0
      %8393 = vmatprep.mubr.f32.mxu0 0.0
      %8394 = vmatmul.mubr.f32.gmra.mxu0 %v7702
      %v8395 = vpop.f32.mrf.mxu0
      %v8396 = vadd.f32 %v8291, %v8395
      %v8397 = vpop.f32.mrf.mxu0
      %8398 = vmatprep.mubr.f32.mxu0 0.0
      %8399 = vmatmul.mubr.f32.gmra.mxu0 %v7719
      %v8400 = vpop.f32.mrf.mxu0
      %v8401 = vadd.f32 %v8296, %v8400
      %v8402 = vpop.f32.mrf.mxu0
      %8403 = vmatprep.mubr.f32.mxu0 0.0
      %8404 = vmatmul.mubr.f32.gmra.mxu0 %v7729
      %v8405 = vpop.f32.mrf.mxu0
      %v8406 = vadd.f32 %v8301, %v8405
      %v8407 = vpop.f32.mrf.mxu0
      %8408 = vdwg.mxu0
      %v8409 = vtanh.pop %v8371
      %v8410 = vtanh.pop %v8376
      %v8411 = vtanh.pop %v8381
      %v8412 = vtanh.pop %v8386
      %v8413 = vtanh.pop %v8391
      %v8414 = vtanh.pop %v8396
      %v8415 = vtanh.pop %v8401
      %v8416 = vtanh.pop %v8406
      %8417 = vst.msk [vmem:[%s255 + $0x1] sm:$0xff] %vm1090, %v8409
      %8418 = vst.msk [vmem:[%s255 + $0x11] sm:$0xff] %vm1090, %v8410
      %8419 = vst.msk [vmem:[%s255 + $0x21] sm:$0xff] %vm1090, %v8411
      %8420 = vst.msk [vmem:[%s255 + $0x31] sm:$0xff] %vm1090, %v8412
      %8421 = vst.msk [vmem:[%s255 + $0x41] sm:$0xff] %vm1090, %v8413
      %8422 = vst.msk [vmem:[%s255 + $0x51] sm:$0xff] %vm1090, %v8414
      %8423 = vst.msk [vmem:[%s255 + $0x61] sm:$0xff] %vm1090, %v8415
      %8424 = vst.msk [vmem:[%s255 + $0x71] sm:$0xff] %vm1090, %v8416
      %v8425 = vld [vmem:[#allocation2] sm:$0xff]
      %v8426 = vld [vmem:[#allocation2 + $0x8] sm:$0x3]
      %v8427 = vld [vmem:[#allocation2 + $0x10] sm:$0xff]
      %v8428 = vld [vmem:[#allocation2 + $0x18] sm:$0x3]
      %v8429 = vld [vmem:[#allocation2 + $0x20] sm:$0xff]
      %v8430 = vld [vmem:[#allocation2 + $0x28] sm:$0x3]
      %v8431 = vld [vmem:[#allocation2 + $0x30] sm:$0xff]
      %v8432 = vld [vmem:[#allocation2 + $0x38] sm:$0x3]
      %v8433 = vld [vmem:[#allocation2 + $0x40] sm:$0xff]
      %v8434 = vld [vmem:[#allocation2 + $0x48] sm:$0x3]
      %v8435 = vld [vmem:[#allocation2 + $0x50] sm:$0xff]
      %v8436 = vld [vmem:[#allocation2 + $0x58] sm:$0x3]
      %v8437 = vld [vmem:[#allocation2 + $0x60] sm:$0xff]
      %v8438 = vld [vmem:[#allocation2 + $0x68] sm:$0x3]
      %v8439 = vld [vmem:[#allocation2 + $0x70] sm:$0xff]
      %v8440 = vld [vmem:[#allocation2 + $0x78] sm:$0x3]
      %v8441 = vld [vmem:[#allocation2 + $0x80] sm:$0xff]
      %v8442 = vld [vmem:[#allocation2 + $0x88] sm:$0x3]
      %v8443 = vld [vmem:[#allocation2 + $0x90] sm:$0xff]
      %v8444 = vld [vmem:[#allocation2 + $0x98] sm:$0x3]
      %v8461 = vrot.slane %v8425, 1
      %v8462 = vrot.slane %v8426, 1
      %v8463 = vsel %vm300, %v8461, %v8462
      %v8464 = vrot.slane %v8427, 1
      %v8465 = vrot.slane %v8428, 1
      %v8466 = vsel %vm300, %v8464, %v8465
      %v8467 = vrot.slane %v8429, 1
      %v8468 = vrot.slane %v8430, 1
      %v8469 = vsel %vm300, %v8467, %v8468
      %v8470 = vrot.slane %v8431, 1
      %v8471 = vrot.slane %v8432, 1
      %v8472 = vsel %vm300, %v8470, %v8471
      %v8473 = vrot.slane %v8433, 1
      %v8474 = vrot.slane %v8434, 1
      %v8475 = vsel %vm300, %v8473, %v8474
      %v8476 = vrot.slane %v8435, 1
      %v8477 = vrot.slane %v8436, 1
      %v8478 = vsel %vm300, %v8476, %v8477
      %v8479 = vrot.slane %v8437, 1
      %v8480 = vrot.slane %v8438, 1
      %v8481 = vsel %vm300, %v8479, %v8480
      %v8482 = vrot.slane %v8439, 1
      %v8483 = vrot.slane %v8440, 1
      %v8484 = vsel %vm300, %v8482, %v8483
      %v8493 = vrot.slane %v8425, 2
      %v8494 = vrot.slane %v8426, 2
      %v8495 = vsel %vm333, %v8493, %v8494
      %v8496 = vrot.slane %v8427, 2
      %v8497 = vrot.slane %v8428, 2
      %v8498 = vsel %vm333, %v8496, %v8497
      %v8499 = vrot.slane %v8429, 2
      %v8500 = vrot.slane %v8430, 2
      %v8501 = vsel %vm333, %v8499, %v8500
      %v8502 = vrot.slane %v8431, 2
      %v8503 = vrot.slane %v8432, 2
      %v8504 = vsel %vm333, %v8502, %v8503
      %v8505 = vrot.slane %v8433, 2
      %v8506 = vrot.slane %v8434, 2
      %v8507 = vsel %vm333, %v8505, %v8506
      %v8508 = vrot.slane %v8435, 2
      %v8509 = vrot.slane %v8436, 2
      %v8510 = vsel %vm333, %v8508, %v8509
      %v8511 = vrot.slane %v8437, 2
      %v8512 = vrot.slane %v8438, 2
      %v8513 = vsel %vm333, %v8511, %v8512
      %v8514 = vrot.slane %v8439, 2
      %v8515 = vrot.slane %v8440, 2
      %v8516 = vsel %vm333, %v8514, %v8515
      %v8527 = vrot.slane %v8441, 1
      %v8528 = vrot.slane %v8442, 1
      %v8529 = vsel %vm300, %v8527, %v8528
      %v8531 = vrot.slane %v8441, 2
      %v8532 = vrot.slane %v8442, 2
      %v8533 = vsel %vm333, %v8531, %v8532
      %v8537 = vrot.slane %v8443, 1
      %v8538 = vrot.slane %v8444, 1
      %v8539 = vsel %vm300, %v8537, %v8538
      %v8541 = vrot.slane %v8443, 2
      %v8542 = vrot.slane %v8444, 2
      %v8543 = vsel %vm333, %v8541, %v8542
      %v8545 = vld [vmem:[%s3] sm:$0xff]
      %v8546 = vld [vmem:[%s3 + $0x8] sm:$0x1]
      %v8549 = vlaneseq
      %v8550 = vshrl.u32 %v8549, 7
      %v8551 = vsub.s32 0, %v8550
      %v8552 = vrot.slane %v8545, %v8551
      %v8553 = vlaneseq
      %v8554 = vshrl.u32 %v8553, 7
      %v8555 = vsub.s32 1, %v8554
      %v8556 = vrot.slane %v8545, %v8555
      %v8557 = vlaneseq
      %v8558 = vshrl.u32 %v8557, 7
      %v8559 = vsub.s32 2, %v8558
      %v8560 = vrot.slane %v8545, %v8559
      %v8561 = vlaneseq
      %v8562 = vshrl.u32 %v8561, 7
      %v8563 = vsub.s32 3, %v8562
      %v8564 = vrot.slane %v8545, %v8563
      %v8565 = vlaneseq
      %v8566 = vshrl.u32 %v8565, 7
      %v8567 = vsub.s32 4, %v8566
      %v8568 = vrot.slane %v8545, %v8567
      %v8569 = vlaneseq
      %v8570 = vshrl.u32 %v8569, 7
      %v8571 = vsub.s32 5, %v8570
      %v8572 = vrot.slane %v8545, %v8571
      %v8573 = vlaneseq
      %v8574 = vshrl.u32 %v8573, 7
      %v8575 = vsub.s32 6, %v8574
      %v8576 = vrot.slane %v8545, %v8575
      %v8577 = vlaneseq
      %v8578 = vshrl.u32 %v8577, 7
      %v8579 = vsub.s32 7, %v8578
      %v8580 = vrot.slane %v8545, %v8579
      %v8581 = vlaneseq
      %v8582 = vshrl.u32 %v8581, 7
      %v8583 = vsub.s32 0, %v8582
      %v8584 = vrot.slane %v8546, %v8583
      %v8594 = vmul.f32 %v8425, %v8552
      %v8595 = vmul.f32 %v8463, %v8556
      %v8596 = vmul.f32 %v8495, %v8560
      %v8597 = vmul.f32 %v8427, %v8564
      %v8598 = vmul.f32 %v8466, %v8568
      %v8599 = vmul.f32 %v8498, %v8572
      %v8600 = vmul.f32 %v8429, %v8576
      %v8601 = vmul.f32 %v8469, %v8580
      %v8602 = vmul.f32 %v8501, %v8584
      %v8603 = vmul.f32 %v8427, %v8552
      %v8604 = vmul.f32 %v8466, %v8556
      %v8605 = vmul.f32 %v8498, %v8560
      %v8606 = vmul.f32 %v8429, %v8564
      %v8607 = vmul.f32 %v8469, %v8568
      %v8608 = vmul.f32 %v8501, %v8572
      %v8609 = vmul.f32 %v8431, %v8576
      %v8610 = vmul.f32 %v8472, %v8580
      %v8611 = vmul.f32 %v8504, %v8584
      %v8612 = vmul.f32 %v8429, %v8552
      %v8613 = vmul.f32 %v8469, %v8556
      %v8614 = vmul.f32 %v8501, %v8560
      %v8615 = vmul.f32 %v8431, %v8564
      %v8616 = vmul.f32 %v8472, %v8568
      %v8617 = vmul.f32 %v8504, %v8572
      %v8618 = vmul.f32 %v8433, %v8576
      %v8619 = vmul.f32 %v8475, %v8580
      %v8620 = vmul.f32 %v8507, %v8584
      %v8621 = vmul.f32 %v8431, %v8552
      %v8622 = vmul.f32 %v8472, %v8556
      %v8623 = vmul.f32 %v8504, %v8560
      %v8624 = vmul.f32 %v8433, %v8564
      %v8625 = vmul.f32 %v8475, %v8568
      %v8626 = vmul.f32 %v8507, %v8572
      %v8627 = vmul.f32 %v8435, %v8576
      %v8628 = vmul.f32 %v8478, %v8580
      %v8629 = vmul.f32 %v8510, %v8584
      %v8630 = vmul.f32 %v8433, %v8552
      %v8631 = vmul.f32 %v8475, %v8556
      %v8632 = vmul.f32 %v8507, %v8560
      %v8633 = vmul.f32 %v8435, %v8564
      %v8634 = vmul.f32 %v8478, %v8568
      %v8635 = vmul.f32 %v8510, %v8572
      %v8636 = vmul.f32 %v8437, %v8576
      %v8637 = vmul.f32 %v8481, %v8580
      %v8638 = vmul.f32 %v8513, %v8584
      %v8639 = vmul.f32 %v8435, %v8552
      %v8640 = vmul.f32 %v8478, %v8556
      %v8641 = vmul.f32 %v8510, %v8560
      %v8642 = vmul.f32 %v8437, %v8564
      %v8643 = vmul.f32 %v8481, %v8568
      %v8644 = vmul.f32 %v8513, %v8572
      %v8645 = vmul.f32 %v8439, %v8576
      %v8646 = vmul.f32 %v8484, %v8580
      %v8647 = vmul.f32 %v8516, %v8584
      %v8648 = vmul.f32 %v8437, %v8552
      %v8649 = vmul.f32 %v8481, %v8556
      %v8650 = vmul.f32 %v8513, %v8560
      %v8651 = vmul.f32 %v8439, %v8564
      %v8652 = vmul.f32 %v8484, %v8568
      %v8653 = vmul.f32 %v8516, %v8572
      %v8654 = vmul.f32 %v8441, %v8576
      %v8655 = vmul.f32 %v8529, %v8580
      %v8656 = vmul.f32 %v8533, %v8584
      %v8657 = vmul.f32 %v8439, %v8552
      %v8658 = vmul.f32 %v8484, %v8556
      %v8659 = vmul.f32 %v8516, %v8560
      %v8660 = vmul.f32 %v8441, %v8564
      %v8661 = vmul.f32 %v8529, %v8568
      %v8662 = vmul.f32 %v8533, %v8572
      %v8663 = vmul.f32 %v8443, %v8576
      %v8664 = vmul.f32 %v8539, %v8580
      %v8665 = vmul.f32 %v8543, %v8584
      %v8666 = vadd.f32 %v8594, %v8595
      %v8667 = vadd.f32 %v8666, %v8596
      %v8668 = vadd.f32 %v8667, %v8597
      %v8669 = vadd.f32 %v8668, %v8598
      %v8670 = vadd.f32 %v8669, %v8599
      %v8671 = vadd.f32 %v8670, %v8600
      %v8672 = vadd.f32 %v8671, %v8601
      %v8673 = vadd.f32 %v8672, %v8602
      %8674 = vadd.xlane.f32.xlu0 %v8673
      %v8675 = vpop.xlane.xlu0 %8674
      %v8676 = vadd.f32 %v8603, %v8604
      %v8677 = vadd.f32 %v8676, %v8605
      %v8678 = vadd.f32 %v8677, %v8606
      %v8679 = vadd.f32 %v8678, %v8607
      %v8680 = vadd.f32 %v8679, %v8608
      %v8681 = vadd.f32 %v8680, %v8609
      %v8682 = vadd.f32 %v8681, %v8610
      %v8683 = vadd.f32 %v8682, %v8611
      %8684 = vadd.xlane.f32.xlu0 %v8683
      %v8685 = vpop.xlane.xlu0 %8684
      %v8686 = vadd.f32 %v8612, %v8613
      %v8687 = vadd.f32 %v8686, %v8614
      %v8688 = vadd.f32 %v8687, %v8615
      %v8689 = vadd.f32 %v8688, %v8616
      %v8690 = vadd.f32 %v8689, %v8617
      %v8691 = vadd.f32 %v8690, %v8618
      %v8692 = vadd.f32 %v8691, %v8619
      %v8693 = vadd.f32 %v8692, %v8620
      %8694 = vadd.xlane.f32.xlu0 %v8693
      %v8695 = vpop.xlane.xlu0 %8694
      %v8696 = vadd.f32 %v8621, %v8622
      %v8697 = vadd.f32 %v8696, %v8623
      %v8698 = vadd.f32 %v8697, %v8624
      %v8699 = vadd.f32 %v8698, %v8625
      %v8700 = vadd.f32 %v8699, %v8626
      %v8701 = vadd.f32 %v8700, %v8627
      %v8702 = vadd.f32 %v8701, %v8628
      %v8703 = vadd.f32 %v8702, %v8629
      %8704 = vadd.xlane.f32.xlu0 %v8703
      %v8705 = vpop.xlane.xlu0 %8704
      %v8706 = vadd.f32 %v8630, %v8631
      %v8707 = vadd.f32 %v8706, %v8632
      %v8708 = vadd.f32 %v8707, %v8633
      %v8709 = vadd.f32 %v8708, %v8634
      %v8710 = vadd.f32 %v8709, %v8635
      %v8711 = vadd.f32 %v8710, %v8636
      %v8712 = vadd.f32 %v8711, %v8637
      %v8713 = vadd.f32 %v8712, %v8638
      %8714 = vadd.xlane.f32.xlu0 %v8713
      %v8715 = vpop.xlane.xlu0 %8714
      %v8716 = vadd.f32 %v8639, %v8640
      %v8717 = vadd.f32 %v8716, %v8641
      %v8718 = vadd.f32 %v8717, %v8642
      %v8719 = vadd.f32 %v8718, %v8643
      %v8720 = vadd.f32 %v8719, %v8644
      %v8721 = vadd.f32 %v8720, %v8645
      %v8722 = vadd.f32 %v8721, %v8646
      %v8723 = vadd.f32 %v8722, %v8647
      %8724 = vadd.xlane.f32.xlu0 %v8723
      %v8725 = vpop.xlane.xlu0 %8724
      %v8726 = vadd.f32 %v8648, %v8649
      %v8727 = vadd.f32 %v8726, %v8650
      %v8728 = vadd.f32 %v8727, %v8651
      %v8729 = vadd.f32 %v8728, %v8652
      %v8730 = vadd.f32 %v8729, %v8653
      %v8731 = vadd.f32 %v8730, %v8654
      %v8732 = vadd.f32 %v8731, %v8655
      %v8733 = vadd.f32 %v8732, %v8656
      %8734 = vadd.xlane.f32.xlu0 %v8733
      %v8735 = vpop.xlane.xlu0 %8734
      %v8736 = vadd.f32 %v8657, %v8658
      %v8737 = vadd.f32 %v8736, %v8659
      %v8738 = vadd.f32 %v8737, %v8660
      %v8739 = vadd.f32 %v8738, %v8661
      %v8740 = vadd.f32 %v8739, %v8662
      %v8741 = vadd.f32 %v8740, %v8663
      %v8742 = vadd.f32 %v8741, %v8664
      %v8743 = vadd.f32 %v8742, %v8665
      %8744 = vadd.xlane.f32.xlu0 %v8743
      %v8745 = vpop.xlane.xlu0 %8744
      %v8746 = vld [vmem:[#allocation3] sm:$0x1]
      %v8748 = vlaneseq
      %v8749 = vshrl.u32 %v8748, 7
      %v8750 = vsub.s32 0, %v8749
      %v8751 = vrot.slane %v8746, %v8750
      %v8753 = vadd.f32 %v8675, %v8751
      %v8754 = vadd.f32 %v8685, %v8751
      %v8755 = vadd.f32 %v8695, %v8751
      %v8756 = vadd.f32 %v8705, %v8751
      %v8757 = vadd.f32 %v8715, %v8751
      %v8758 = vadd.f32 %v8725, %v8751
      %v8759 = vadd.f32 %v8735, %v8751
      %v8760 = vadd.f32 %v8745, %v8751
      %v8761 = vtanh.pop %v8753
      %v8762 = vtanh.pop %v8754
      %v8763 = vtanh.pop %v8755
      %v8764 = vtanh.pop %v8756
      %v8765 = vtanh.pop %v8757
      %v8766 = vtanh.pop %v8758
      %v8767 = vtanh.pop %v8759
      %v8768 = vtanh.pop %v8760
      %vm8769 = vcmask 7168
      %8770 = vst.msk [vmem:[%s226] sm:$0xff] %vm8769, %v8761
      %8771 = vst.msk [vmem:[%s226 + $0x8] sm:$0xff] %vm8769, %v8762
      %8772 = vst.msk [vmem:[%s226 + $0x10] sm:$0xff] %vm8769, %v8763
      %8773 = vst.msk [vmem:[%s226 + $0x18] sm:$0xff] %vm8769, %v8764
      %8774 = vst.msk [vmem:[%s226 + $0x20] sm:$0xff] %vm8769, %v8765
      %8775 = vst.msk [vmem:[%s226 + $0x28] sm:$0xff] %vm8769, %v8766
      %8776 = vst.msk [vmem:[%s226 + $0x30] sm:$0xff] %vm8769, %v8767
      %8777 = vst.msk [vmem:[%s226 + $0x38] sm:$0xff] %vm8769, %v8768
      %p8778 = scmp.lt.s32.totalorder %s18, 1
      %s8779 = scalar_select %p8778, %s18, 1
      %s8780 = smul.addr %s8779, 8
      %s8781 = smul.addr %s8780, 8
      %s8782 = scalar_lea.vmem %s5, %s8781
      // Predicated region
      $region41: #{tpu_custom_call.1} parent=39 // pred_check
        %p8783 = pneg %p146
      $region42: #{tpu_custom_call.1} parent=39 // pred_check_branch
        %8785 = sbr.rel (%p8783) target = $region44
      $region43: #{tpu_custom_call.1} parent=39 // pred_region
        _
      $region44: #{tpu_custom_call.1} parent=39 // pred_fallthru
        _
    $region40: #{tpu_custom_call.1} parent=5 // pred_fallthru
      _
    %p8786 = scmp.le.s32.totalorder 2, %s13
    // Predicated region
    $region45: #{tpu_custom_call.1} parent=5 // pred_check
      %p8787 = pneg %p8786
    $region46: #{tpu_custom_call.1} parent=5 // pred_check_branch
      %8789 = sbr.rel (%p8787) target = $region48
    $region47: #{tpu_custom_call.1} parent=5 // pred_region
      %s8790 = ssub.s32 %s13, 2
      // Predicated region
      $region49: #{tpu_custom_call.1} parent=47 // pred_check
        %p8791 = pneg %p152
      $region50: #{tpu_custom_call.1} parent=47 // pred_check_branch
        %8793 = sbr.rel (%p8791) target = $region52
      $region51: #{tpu_custom_call.1} parent=47 // pred_region
        %p8794 = scmp.lt.s32.totalorder %s19, 1
        %s8795 = scalar_select %p8794, %s19, 1
        %s8796 = smul.addr %s8795, 8
        %s8797 = smul.addr %s8796, 8
        %s8798 = scalar_lea.vmem %s5, %s8797
      $region52: #{tpu_custom_call.1} parent=47 // pred_fallthru
        _
    $region48: #{tpu_custom_call.1} parent=5 // pred_fallthru
      _
  $region6: #{tpu_custom_call.1} parent=0 // loop_footer
    %s17 = sadd.s32 1, %s13
  $region7: #{tpu_custom_call.1} parent=0 // loop_footer_branch
    %12 = sbr.rel target = $region3
  $region8: #{tpu_custom_call.1} parent=0 // loop_exit
    _

</llo_original>
